<compile_context>
chip_gen: v5e
topology: v5e:2x2
jax: 0.10.0
libtpu: 0.0.40
codegen_flags: <defaults>
</compile_context>

<pallas_src>
import numpy as np
import jax
import jax.numpy as jnp
from jax.experimental import pallas as pl
from jax.experimental.pallas import tpu as pltpu


MB = 8  # pooled-bin axis padded to a full sublane group (review: 6 -> 8)


def _round_up(a, m):
    return ((a + m - 1) // m) * m


def _pick_rt(h, cands=(8, 6, 5, 4, 3, 2)):
    """Largest row-strip size <= 8 that divides H (fallback: whole image)."""
    for r in cands:
        if h % r == 0:
            return r
    return h


# ----------------------------------------------------------------------------
# constant operators (built once, hoisted out of the forward)
# ----------------------------------------------------------------------------
def _adaptive_pool_matrix(out_size, in_size):
    """Row-stochastic matrix reproducing nn.AdaptiveAvgPool2d along one axis."""
    m = np.zeros((out_size, in_size), np.float32)
    for i in range(out_size):
        start = (i * in_size) // out_size
        end = -((-(i + 1) * in_size) // out_size)  # ceil((i+1)*in/out)
        m[i, start:end] = 1.0 / float(end - start)
    return m


def _bilinear_matrix(out_size, in_size):
    """F.interpolate(mode='bilinear', align_corners=True) along one axis."""
    m = np.zeros((out_size, in_size), np.float32)
    if in_size == 1:
        m[:, 0] = 1.0
        return m
    for o in range(out_size):
        s = o * (in_size - 1) / (out_size - 1) if out_size > 1 else 0.0
        i0 = min(int(np.floor(s)), in_size - 1)
        i1 = min(i0 + 1, in_size - 1)
        w1 = s - i0
        m[o, i0] += 1.0 - w1
        m[o, i1] += w1
    return m


def build_constants(H, W, pool_sizes):
    """All data-independent operators, built exactly once."""
    S = len(pool_sizes)
    assert max(pool_sizes) <= MB, "pool bin larger than padded bin axis"
    Wpp = _round_up(W + 2, 16)          # padded row width (conv halo + lane/sublane align)
    Ph = [jnp.asarray(_adaptive_pool_matrix(b, H)) for b in pool_sizes]
    Pw = [jnp.asarray(_adaptive_pool_matrix(b, W)) for b in pool_sizes]
    Ah = [jnp.asarray(_bilinear_matrix(H, b)) for b in pool_sizes]
    # W-axis bilinear operators, zero at padded cols 0 / >=W+1, bin axis padded to MB.
    awp = np.zeros((S, Wpp, MB), np.float32)
    for s, b in enumerate(pool_sizes):
        awp[s, 1:W + 1, :b] = _bilinear_matrix(W, b)
    return dict(Ph=Ph, Pw=Pw, Ah=Ah, awp=jnp.asarray(awp), Wpp=Wpp)


def _bn_scale_shift(p, eps=1e-5):
    inv = p["gamma"] / jnp.sqrt(p["var"] + eps)
    scale = inv.reshape(1, -1)
    shift = (p["beta"] - p["mean"] * inv).reshape(1, -1)
    return scale, shift


# ----------------------------------------------------------------------------
# Pallas kernel 1: pyramid stages (1x1 conv + BN + ReLU), grid (N, S)
# ----------------------------------------------------------------------------
def _stage_kernel(p_ref, w_ref, scale_ref, shift_ref, o_ref):
    # p: (Bp, Cin) bf16   w: (Cin, Cs) bf16   scale/shift: (1, Cs) f32
    y = jnp.dot(p_ref[...], w_ref[...], preferred_element_type=jnp.float32)
    o_ref[...] = jnp.maximum(y * scale_ref[...] + shift_ref[...], 0.0
                             ).astype(o_ref.dtype)


def stage_forward(pooled, w_stk, scale_stk, shift_stk):
    # pooled: (N, S, Bp, Cin) bf16 (rows >= bin^2 are zero-padding, ignored later)
    N, S, Bp, Cin = pooled.shape
    Cs = w_stk.shape[-1]
    return pl.pallas_call(
        _stage_kernel,
        out_shape=jax.ShapeDtypeStruct((N, S, Bp, Cs), jnp.bfloat16),
        grid=(N, S),
        in_specs=[
            pl.BlockSpec((None, None, Bp, Cin), lambda n, s: (n, s, 0, 0)),
            pl.BlockSpec((None, Cin, Cs), lambda n, s: (s, 0, 0)),
            pl.BlockSpec((None, 1, Cs), lambda n, s: (s, 0, 0)),
            pl.BlockSpec((None, 1, Cs), lambda n, s: (s, 0, 0)),
        ],
        out_specs=pl.BlockSpec((None, None, Bp, Cs), lambda n, s: (n, s, 0, 0)),
        compiler_params=pltpu.CompilerParams(
            dimension_semantics=("parallel", "parallel")),
    )(pooled, w_stk, scale_stk, shift_stk)


# ----------------------------------------------------------------------------
# Pallas kernel 2: fused bottleneck
#   in-VMEM bilinear W-upsample + implicit concat + 3x3 conv + BN + ReLU
#   grid = (N, Co_chunks, H/Rt); each step produces Rt output rows.
# ----------------------------------------------------------------------------
def _bottleneck_kernel(xa_ref, xb_ref, ta_ref, tb_ref, wx_ref, ws_ref,
                       awp_ref, scale_ref, shift_ref, out_ref,
                       xwin_ref, twin_ref, uwin_ref):
    # xa/xb: (Rt, Wpp, Cin) bf16   padded-x rows of strip s / strip s+1
    # ta/tb: (Rt, S, MB, Cs) bf16  H-upsampled (padded) stage rows, same strips
    # wx:    (3, 3, Cin, Cck) bf16 ; ws: (S, 3, 3, Cs, Cck) bf16
    # awp:   (S, Wpp, MB) bf16     W-axis bilinear operators (zero halo cols)
    # scale/shift: (1, Cck) f32    out: (Rt, W, Cck)
    Rt, W, Cck = out_ref.shape
    S, Wpp, _ = awp_ref.shape
    M = Rt * Wpp

    # -- assemble the (Rt+2)-row halo window in VMEM, flat (row*Wpp, C) layout
    for p in range(Rt):
        xwin_ref[pl.ds(p * Wpp, Wpp), :] = xa_ref[p]
        twin_ref[p] = ta_ref[p]
    for p in range(2):
        xwin_ref[pl.ds((Rt + p) * Wpp, Wpp), :] = xb_ref[p]
        twin_ref[Rt + p] = tb_ref[p]

    # one flat f32 accumulator per dx tap -> no per-tap misaligned slicing;
    # every dot streams M = Rt*Wpp rows against a single weight slab.
    acc = [jnp.zeros((M, Cck), jnp.float32) for _ in range(3)]

    # original-feature channel group
    for dy in range(3):
        lhs = xwin_ref[pl.ds(dy * Wpp, M), :]
        for dx in range(3):
            acc[dx] = acc[dx] + jnp.dot(
                lhs, wx_ref[dy, dx], preferred_element_type=jnp.float32)

    # pyramid-stage channel groups: rebuild the W-upsampled (padded) window
    # rows in VMEM (tiny K=MB dots), then the same 9 taps.
    for s in range(S):
        aw = awp_ref[s]                                   # (Wpp, MB)
        for p in range(Rt + 2):
            up = jnp.dot(aw, twin_ref[p, s], preferred_element_type=jnp.float32)
            uwin_ref[pl.ds(p * Wpp, Wpp), :] = up.astype(uwin_ref.dtype)
        for dy in range(3):
            lhs = uwin_ref[pl.ds(dy * Wpp, M), :]
            for dx in range(3):
                acc[dx] = acc[dx] + jnp.dot(
                    lhs, ws_ref[s, dy, dx], preferred_element_type=jnp.float32)

    # combine the three dx-shifted accumulators, BN + ReLU, bf16 store per row
    scale = scale_ref[...]
    shift = shift_ref[...]
    for ri in range(Rt):
        base = ri * Wpp
        y = (acc[0][base:base + W, :]
             + acc[1][base + 1:base + 1 + W, :]
             + acc[2][base + 2:base + 2 + W, :])
        out_ref[ri] = jnp.maximum(y * scale + shift, 0.0).astype(out_ref.dtype)


def bottleneck_forward(x_pad, th, wx, ws, awp, scale, shift, *,
                       H, W, Rt, co_block=128, out_dtype=jnp.bfloat16):
    N, Hpad, Wpp, Cin = x_pad.shape
    S, _, _, Cs, Co = ws.shape
    n_strips = H // Rt
    assert Hpad == (n_strips + 1) * Rt and th.shape[1] == Hpad

    # Co chunking: keeps the per-step weight block small (v7x 64 MiB VMEM) and
    # the per-chunk accumulators register/VMEM friendly.  Chunk must be a
    # multiple of 128 (lane tiling) or the full Co.
    if Co % co_block == 0 and co_block % 128 == 0:
        Cck = co_block
    else:
        Cck = Co
    n_co = Co // Cck

    x_block = (None, Rt, Wpp, Cin)
    t_block = (None, Rt, S, MB, Cs)
    in_specs = [
        pl.BlockSpec(x_block, lambda n, c, s: (n, s, 0, 0)),        # strip s
        pl.BlockSpec(x_block, lambda n, c, s: (n, s + 1, 0, 0)),    # +2-row halo
        pl.BlockSpec(t_block, lambda n, c, s: (n, s, 0, 0, 0)),
        pl.BlockSpec(t_block, lambda n, c, s: (n, s + 1, 0, 0, 0)),
        pl.BlockSpec((3, 3, Cin, Cck), lambda n, c, s: (0, 0, 0, c)),
        pl.BlockSpec((S, 3, 3, Cs, Cck), lambda n, c, s: (0, 0, 0, 0, c)),
        pl.BlockSpec((S, Wpp, MB), lambda n, c, s: (0, 0, 0)),
        pl.BlockSpec((1, Cck), lambda n, c, s: (0, c)),
        pl.BlockSpec((1, Cck), lambda n, c, s: (0, c)),
    ]
    out_specs = pl.BlockSpec((None, Rt, W, Cck), lambda n, c, s: (n, s, 0, c))

    return pl.pallas_call(
        _bottleneck_kernel,
        out_shape=jax.ShapeDtypeStruct((N, H, W, Co), out_dtype),
        grid=(N, n_co, n_strips),            # strips innermost: weights stay
        in_specs=in_specs,                   # resident across a whole Co chunk
        out_specs=out_specs,
        scratch_shapes=[
            pltpu.VMEM(((Rt + 2) * Wpp, Cin), jnp.bfloat16),   # x halo window
            pltpu.VMEM((Rt + 2, S, MB, Cs), jnp.bfloat16),     # stage-row window
            pltpu.VMEM(((Rt + 2) * Wpp, Cs), jnp.bfloat16),    # upsampled rows
        ],
        compiler_params=pltpu.CompilerParams(
            dimension_semantics=("parallel", "parallel", "parallel"),
            vmem_limit_bytes=64 * 1024 * 1024),
    )(x_pad, x_pad, th, th, wx, ws, awp, scale, shift)


# ----------------------------------------------------------------------------
# module: parameters + forward
# ----------------------------------------------------------------------------
def init_params(key, in_channels, out_channels, pool_sizes):
    def bn(k, c):
        k1, k2, k3, k4 = jax.random.split(k, 4)
        return dict(
            gamma=1.0 + 0.1 * jax.random.normal(k1, (c,), jnp.float32),
            beta=0.1 * jax.random.normal(k2, (c,), jnp.float32),
            mean=0.1 * jax.random.normal(k3, (c,), jnp.float32),
            var=jnp.abs(jax.random.normal(k4, (c,), jnp.float32)) + 0.5,
        )

    stages = []
    for _ in pool_sizes:
        key, kw, kb = jax.random.split(key, 3)
        stages.append(
            dict(w=0.1 * jax.random.normal(kw, (in_channels, out_channels), jnp.float32),
                 **bn(kb, out_channels)))
    cat_c = in_channels + out_channels * len(pool_sizes)
    key, kw, kb = jax.random.split(key, 3)
    bottleneck = dict(
        w=0.1 * jax.random.normal(kw, (3, 3, cat_c, out_channels), jnp.float32),
        **bn(kb, out_channels))
    return dict(stages=stages, bottleneck=bottleneck)


def spp_forward(x_nchw, params, pool_sizes, consts=None,
                co_block=128, out_dtype=jnp.bfloat16):
    N, Cin, H, W = x_nchw.shape
    if consts is None:
        consts = build_constants(H, W, pool_sizes)
    Wpp = consts["Wpp"]
    S = len(pool_sizes)
    Cs = params["stages"][0]["w"].shape[1]
    Rt = _pick_rt(H)
    n_strips = H // Rt
    Hpad = (n_strips + 1) * Rt            # 1 top halo row + >=1 bottom halo rows

    # TODO(synk): an NHWC-native producer/consumer could skip these transposes.
    x = jnp.transpose(x_nchw, (0, 2, 3, 1)).astype(jnp.float32)     # NHWC

    # ---- adaptive average pooling, packed per stage (bin^2-resolution glue)
    Bp = _round_up(max(pool_sizes) ** 2, 8)
    rows, scales, shifts = [], [], []
    for s, b in enumerate(pool_sizes):
        p = jnp.einsum("ih,nhwc,jw->nijc", consts["Ph"][s], x, consts["Pw"][s])
        p = p.reshape(N, b * b, Cin)
        rows.append(jnp.pad(p, ((0, 0), (0, Bp - b * b), (0, 0))))
        sc, sh = _bn_scale_shift(params["stages"][s])
        scales.append(sc)
        shifts.append(sh)
    pooled = jnp.stack(rows, axis=1).astype(jnp.bfloat16)            # (N,S,Bp,Cin)
    w_stk = jnp.stack([sp["w"] for sp in params["stages"]], 0).astype(jnp.bfloat16)
    scale_stk = jnp.stack(scales, 0)                                 # (S,1,Cs)
    shift_stk = jnp.stack(shifts, 0)

    y_all = stage_forward(pooled, w_stk, scale_stk, shift_stk)       # (N,S,Bp,Cs)

    # ---- H-axis half of the separable bilinear upsample (bin-resolution glue)
    t_list = []
    for s, b in enumerate(pool_sizes):
        ys = y_all[:, s, :b * b, :].astype(jnp.float32).reshape(N, b, b, Cs)
        t = jnp.einsum("hi,nijc->nhjc", consts["Ah"][s], ys)         # (N,H,b,Cs)
        t_list.append(jnp.pad(t, ((0, 0), (0, 0), (0, MB - b), (0, 0))))
    th = jnp.stack(t_list, axis=2)                                   # (N,H,S,MB,Cs)
    th = jnp.pad(th, ((0, 0), (1, Hpad - H - 1), (0, 0), (0, 0), (0, 0))
                 ).astype(jnp.bfloat16)

    # ---- x pad + cast in one fused XLA pass (conv zero halo + alignment pad)
    x_pad = jnp.pad(x, ((0, 0), (1, Hpad - H - 1), (1, Wpp - W - 1), (0, 0))
                    ).astype(jnp.bfloat16)

    wb = params["bottleneck"]["w"]                                   # (3,3,Ctot,Co)
    wx = wb[:, :, :Cin, :].astype(jnp.bfloat16)
    ws = jnp.stack([wb[:, :, Cin + s * Cs: Cin + (s + 1) * Cs, :]
                    for s in range(S)], axis=0).astype(jnp.bfloat16)  # (S,3,3,Cs,Co)
    bscale, bshift = _bn_scale_shift(params["bottleneck"])            # (1, Co) f32
    awp = consts["awp"].astype(jnp.bfloat16)

    out = bottleneck_forward(x_pad, th, wx, ws, awp, bscale, bshift,
                             H=H, W=W, Rt=Rt, co_block=co_block,
                             out_dtype=out_dtype)                     # (N,H,W,Co)
    # TODO(synk): Dropout2d(0.1) is identity in eval mode; no train-mode drop applied.
    return out.transpose(0, 3, 1, 2)                                  # NCHW


# ----------------------------------------------------------------------------
# pure-JAX reference (correctness check only)
# ----------------------------------------------------------------------------
def spp_reference(x_nchw, params, pool_sizes):
    N, C, H, W = x_nchw.shape
    x = jnp.transpose(x_nchw, (0, 2, 3, 1))
    pyramids = [x]
    for ps, sp in zip(pool_sizes, params["stages"]):
        Ph = jnp.asarray(_adaptive_pool_matrix(ps, H))
        Pw = jnp.asarray(_adaptive_pool_matrix(ps, W))
        pooled = jnp.einsum("ih,nhwc,jw->nijc", Ph, x, Pw)
        y = jnp.einsum("nijc,co->nijo", pooled, sp["w"])
        scale, shift = _bn_scale_shift(sp)
        y = jnp.maximum(y * scale[0] + shift[0], 0.0)
        Ah = jnp.asarray(_bilinear_matrix(H, ps))
        Aw = jnp.asarray(_bilinear_matrix(W, ps))
        pyramids.append(jnp.einsum("hi,nijo,wj->nhwo", Ah, y, Aw))
    cat = jnp.concatenate(pyramids, axis=-1)
    bp = params["bottleneck"]
    out = jax.lax.conv_general_dilated(
        cat, bp["w"], window_strides=(1, 1), padding=((1, 1), (1, 1)),
        dimension_numbers=("NHWC", "HWIO", "NHWC"))
    scale, shift = _bn_scale_shift(bp)
    out = jnp.maximum(out * scale[0] + shift[0], 0.0)
    return out.transpose(0, 3, 1, 2)


if __name__ == "__main__":
    in_channels, out_channels = 4, 4
    pool_sizes = (1, 2, 3, 6)
    N, H, W = 2, 16, 16

    key = jax.random.PRNGKey(0)
    kx, kp = jax.random.split(key)
    x = jax.random.normal(kx, (N, in_channels, H, W), jnp.float32)
    params = init_params(kp, in_channels, out_channels, pool_sizes)
    consts = build_constants(H, W, pool_sizes)

    fwd = jax.jit(lambda xx, pp: spp_forward(xx, pp, pool_sizes, consts))
    out = jax.block_until_ready(fwd(x, params))
    assert out.shape == (N, out_channels, H, W), out.shape

    ref = spp_reference(x, params, pool_sizes)
    err = float(jnp.max(jnp.abs(out.astype(jnp.float32) - ref)))
    # bf16 MXU operands + bf16 output store vs f32 reference.
    assert err < 8e-2, f"kernel/reference mismatch: max abs err {err}"

    print("KERNEL_OK")
</pallas_src>

<mosaic_0001>
module attributes {stable_mosaic.version = 11 : i64} {
  func.func @_stage_kernel(%arg0: i32, %arg1: i32, %arg2: memref<1x1x40x4xbf16, #tpu.memory_space<vmem>>, %arg3: memref<1x4x4xbf16, #tpu.memory_space<vmem>>, %arg4: memref<1x1x4xf32, #tpu.memory_space<vmem>>, %arg5: memref<1x1x4xf32, #tpu.memory_space<vmem>>, %arg6: memref<1x1x40x4xbf16, #tpu.memory_space<vmem>>) attributes {dimension_semantics = [#tpu.dimension_semantics<parallel>, #tpu.dimension_semantics<parallel>], iteration_bounds = array<i64: 2, 4>, scalar_prefetch = 0 : i64, scratch_operands = 0 : i64, tpu.core_type = #tpu.core_type<tc>, window_params = [{transform_indices = @transform_0, window_bounds = array<i64: 1, 1, 40, 4>}, {transform_indices = @transform_1, window_bounds = array<i64: 1, 4, 4>}, {transform_indices = @transform_2, window_bounds = array<i64: 1, 1, 4>}, {transform_indices = @transform_3, window_bounds = array<i64: 1, 1, 4>}, {transform_indices = @transform_4, window_bounds = array<i64: 1, 1, 40, 4>}]} {
    %c0 = arith.constant 0 : index
    %c0_0 = arith.constant 0 : index
    %c0_1 = arith.constant 0 : index
    %c0_2 = arith.constant 0 : index
    %0 = vector.load %arg2[%c0, %c0_0, %c0_1, %c0_2] : memref<1x1x40x4xbf16, #tpu.memory_space<vmem>>, vector<1x1x40x4xbf16>
    %1 = vector.shape_cast %0 : vector<1x1x40x4xbf16> to vector<40x4xbf16>
    %c0_3 = arith.constant 0 : index
    %c0_4 = arith.constant 0 : index
    %c0_5 = arith.constant 0 : index
    %2 = vector.load %arg3[%c0_3, %c0_4, %c0_5] : memref<1x4x4xbf16, #tpu.memory_space<vmem>>, vector<1x4x4xbf16>
    %3 = vector.shape_cast %2 : vector<1x4x4xbf16> to vector<4x4xbf16>
    %cst = arith.constant dense<0.000000e+00> : vector<40x4xf32>
    %4 = tpu.matmul %1, %3, %cst {dimension_numbers = #tpu.dot_dimension_numbers<[1], [0], [0], [1], [0, 0, 1, 1], [], []>} : vector<40x4xbf16>, vector<4x4xbf16>, vector<40x4xf32> -> vector<40x4xf32>
    %c0_6 = arith.constant 0 : index
    %c0_7 = arith.constant 0 : index
    %c0_8 = arith.constant 0 : index
    %5 = vector.load %arg4[%c0_6, %c0_7, %c0_8] : memref<1x1x4xf32, #tpu.memory_space<vmem>>, vector<1x1x4xf32>
    %6 = vector.shape_cast %5 : vector<1x1x4xf32> to vector<1x4xf32>
    %7 = vector.broadcast %6 : vector<1x4xf32> to vector<40x4xf32>
    %8 = arith.mulf %4, %7 : vector<40x4xf32>
    %c0_9 = arith.constant 0 : index
    %c0_10 = arith.constant 0 : index
    %c0_11 = arith.constant 0 : index
    %9 = vector.load %arg5[%c0_9, %c0_10, %c0_11] : memref<1x1x4xf32, #tpu.memory_space<vmem>>, vector<1x1x4xf32>
    %10 = vector.shape_cast %9 : vector<1x1x4xf32> to vector<1x4xf32>
    %11 = vector.broadcast %10 : vector<1x4xf32> to vector<40x4xf32>
    %12 = arith.addf %8, %11 : vector<40x4xf32>
    %cst_12 = arith.constant 0.000000e+00 : f32
    %13 = vector.broadcast %cst_12 : f32 to vector<40x4xf32>
    %14 = arith.maximumf %12, %13 : vector<40x4xf32>
    %15 = arith.truncf %14 : vector<40x4xf32> to vector<40x4xbf16>
    %c0_13 = arith.constant 0 : index
    %c0_14 = arith.constant 0 : index
    %c0_15 = arith.constant 0 : index
    %c0_16 = arith.constant 0 : index
    %16 = vector.load %arg6[%c0_13, %c0_14, %c0_15, %c0_16] : memref<1x1x40x4xbf16, #tpu.memory_space<vmem>>, vector<1x1x40x4xbf16>
    %17 = vector.shape_cast %16 : vector<1x1x40x4xbf16> to vector<40x4xbf16>
    %18 = vector.shape_cast %15 : vector<40x4xbf16> to vector<1x1x40x4xbf16>
    tpu.vector_store %arg6[%c0_13, %c0_14, %c0_15, %c0_16], %18 {strides = array<i32>} : memref<1x1x40x4xbf16, #tpu.memory_space<vmem>>, vector<1x1x40x4xbf16>,
    return
  }
  func.func @transform_0(%arg0: i32, %arg1: i32) -> (i32, i32, i32, i32) {
    %c0_i32 = arith.constant 0 : i32
    %c0_i32_0 = arith.constant 0 : i32
    %c0_i32_1 = arith.constant 0 : i32
    return %arg0, %arg1, %c0_i32, %c0_i32_0 : i32, i32, i32, i32
  }
  func.func @transform_1(%arg0: i32, %arg1: i32) -> (i32, i32, i32) {
    %c0_i32 = arith.constant 0 : i32
    %c0_i32_0 = arith.constant 0 : i32
    %c0_i32_1 = arith.constant 0 : i32
    return %arg1, %c0_i32, %c0_i32_0 : i32, i32, i32
  }
  func.func @transform_2(%arg0: i32, %arg1: i32) -> (i32, i32, i32) {
    %c0_i32 = arith.constant 0 : i32
    %c0_i32_0 = arith.constant 0 : i32
    %c0_i32_1 = arith.constant 0 : i32
    return %arg1, %c0_i32, %c0_i32_0 : i32, i32, i32
  }
  func.func @transform_3(%arg0: i32, %arg1: i32) -> (i32, i32, i32) {
    %c0_i32 = arith.constant 0 : i32
    %c0_i32_0 = arith.constant 0 : i32
    %c0_i32_1 = arith.constant 0 : i32
    return %arg1, %c0_i32, %c0_i32_0 : i32, i32, i32
  }
  func.func @transform_4(%arg0: i32, %arg1: i32) -> (i32, i32, i32, i32) {
    %c0_i32 = arith.constant 0 : i32
    %c0_i32_0 = arith.constant 0 : i32
    %c0_i32_1 = arith.constant 0 : i32
    return %arg0, %arg1, %c0_i32, %c0_i32_0 : i32, i32, i32, i32
  }
}

module attributes {stable_mosaic.version = 11 : i64} {
  func.func @_bottleneck_kernel(%arg0: i32, %arg1: i32, %arg2: i32, %arg3: memref<1x8x32x4xbf16, #tpu.memory_space<vmem>>, %arg4: memref<1x8x32x4xbf16, #tpu.memory_space<vmem>>, %arg5: memref<1x8x4x8x4xbf16, #tpu.memory_space<vmem>>, %arg6: memref<1x8x4x8x4xbf16, #tpu.memory_space<vmem>>, %arg7: memref<3x3x4x4xbf16, #tpu.memory_space<vmem>>, %arg8: memref<4x3x3x4x4xbf16, #tpu.memory_space<vmem>>, %arg9: memref<4x32x8xbf16, #tpu.memory_space<vmem>>, %arg10: memref<1x4xf32, #tpu.memory_space<vmem>>, %arg11: memref<1x4xf32, #tpu.memory_space<vmem>>, %arg12: memref<1x8x16x4xbf16, #tpu.memory_space<vmem>>, %arg13: memref<320x4xbf16, #tpu.memory_space<vmem>>, %arg14: memref<10x4x8x4xbf16, #tpu.memory_space<vmem>>, %arg15: memref<320x4xbf16, #tpu.memory_space<vmem>>) attributes {dimension_semantics = [#tpu.dimension_semantics<parallel>, #tpu.dimension_semantics<parallel>, #tpu.dimension_semantics<parallel>], iteration_bounds = array<i64: 2, 1, 2>, scalar_prefetch = 0 : i64, scratch_operands = 3 : i64, tpu.core_type = #tpu.core_type<tc>, window_params = [{transform_indices = @transform_0, window_bounds = array<i64: 1, 8, 32, 4>}, {transform_indices = @transform_1, window_bounds = array<i64: 1, 8, 32, 4>}, {transform_indices = @transform_2, window_bounds = array<i64: 1, 8, 4, 8, 4>}, {transform_indices = @transform_3, window_bounds = array<i64: 1, 8, 4, 8, 4>}, {transform_indices = @transform_4, window_bounds = array<i64: 3, 3, 4, 4>}, {transform_indices = @transform_5, window_bounds = array<i64: 4, 3, 3, 4, 4>}, {pipeline_mode = #tpu.pipeline_mode<synchronous>, transform_indices = @transform_6, window_bounds = array<i64: 4, 32, 8>}, {transform_indices = @transform_7, window_bounds = array<i64: 1, 4>}, {transform_indices = @transform_8, window_bounds = array<i64: 1, 4>}, {transform_indices = @transform_9, window_bounds = array<i64: 1, 8, 16, 4>}]} {
    %c0 = arith.constant 0 : index
    %c0_0 = arith.constant 0 : index
    %c0_1 = arith.constant 0 : index
    %c0_2 = arith.constant 0 : index
    %0 = vector.load %arg3[%c0, %c0_0, %c0_1, %c0_2] : memref<1x8x32x4xbf16, #tpu.memory_space<vmem>>, vector<1x1x32x4xbf16>
    %1 = vector.shape_cast %0 : vector<1x1x32x4xbf16> to vector<32x4xbf16>
    %c0_3 = arith.constant 0 : index
    %c0_4 = arith.constant 0 : index
    %2 = vector.load %arg13[%c0_3, %c0_4] : memref<320x4xbf16, #tpu.memory_space<vmem>>, vector<32x4xbf16>
    tpu.vector_store %arg13[%c0_3, %c0_4], %1 {strides = array<i32>} : memref<320x4xbf16, #tpu.memory_space<vmem>>, vector<32x4xbf16>,
    %c0_5 = arith.constant 0 : index
    %c0_6 = arith.constant 0 : index
    %c0_7 = arith.constant 0 : index
    %c0_8 = arith.constant 0 : index
    %c0_9 = arith.constant 0 : index
    %3 = vector.load %arg5[%c0_5, %c0_6, %c0_7, %c0_8, %c0_9] : memref<1x8x4x8x4xbf16, #tpu.memory_space<vmem>>, vector<1x1x4x8x4xbf16>
    %4 = vector.shape_cast %3 : vector<1x1x4x8x4xbf16> to vector<4x8x4xbf16>
    %c0_10 = arith.constant 0 : index
    %c0_11 = arith.constant 0 : index
    %c0_12 = arith.constant 0 : index
    %c0_13 = arith.constant 0 : index
    %5 = vector.load %arg14[%c0_10, %c0_11, %c0_12, %c0_13] : memref<10x4x8x4xbf16, #tpu.memory_space<vmem>>, vector<1x4x8x4xbf16>
    %6 = vector.shape_cast %5 : vector<1x4x8x4xbf16> to vector<4x8x4xbf16>
    %7 = vector.shape_cast %4 : vector<4x8x4xbf16> to vector<1x4x8x4xbf16>
    tpu.vector_store %arg14[%c0_10, %c0_11, %c0_12, %c0_13], %7 {strides = array<i32>} : memref<10x4x8x4xbf16, #tpu.memory_space<vmem>>, vector<1x4x8x4xbf16>,
    %c0_14 = arith.constant 0 : index
    %c1 = arith.constant 1 : index
    %c0_15 = arith.constant 0 : index
    %c0_16 = arith.constant 0 : index
    %8 = vector.load %arg3[%c0_14, %c1, %c0_15, %c0_16] : memref<1x8x32x4xbf16, #tpu.memory_space<vmem>>, vector<1x1x32x4xbf16>
    %9 = vector.shape_cast %8 : vector<1x1x32x4xbf16> to vector<32x4xbf16>
    %c32 = arith.constant 32 : index
    %c0_17 = arith.constant 0 : index
    %10 = vector.load %arg13[%c32, %c0_17] : memref<320x4xbf16, #tpu.memory_space<vmem>>, vector<32x4xbf16>
    tpu.vector_store %arg13[%c32, %c0_17], %9 {strides = array<i32>} : memref<320x4xbf16, #tpu.memory_space<vmem>>, vector<32x4xbf16>,
    %c0_18 = arith.constant 0 : index
    %c1_19 = arith.constant 1 : index
    %c0_20 = arith.constant 0 : index
    %c0_21 = arith.constant 0 : index
    %c0_22 = arith.constant 0 : index
    %11 = vector.load %arg5[%c0_18, %c1_19, %c0_20, %c0_21, %c0_22] : memref<1x8x4x8x4xbf16, #tpu.memory_space<vmem>>, vector<1x1x4x8x4xbf16>
    %12 = vector.shape_cast %11 : vector<1x1x4x8x4xbf16> to vector<4x8x4xbf16>
    %c1_23 = arith.constant 1 : index
    %c0_24 = arith.constant 0 : index
    %c0_25 = arith.constant 0 : index
    %c0_26 = arith.constant 0 : index
    %13 = vector.load %arg14[%c1_23, %c0_24, %c0_25, %c0_26] : memref<10x4x8x4xbf16, #tpu.memory_space<vmem>>, vector<1x4x8x4xbf16>
    %14 = vector.shape_cast %13 : vector<1x4x8x4xbf16> to vector<4x8x4xbf16>
    %15 = vector.shape_cast %12 : vector<4x8x4xbf16> to vector<1x4x8x4xbf16>
    tpu.vector_store %arg14[%c1_23, %c0_24, %c0_25, %c0_26], %15 {strides = array<i32>} : memref<10x4x8x4xbf16, #tpu.memory_space<vmem>>, vector<1x4x8x4xbf16>,
    %c0_27 = arith.constant 0 : index
    %c2 = arith.constant 2 : index
    %c0_28 = arith.constant 0 : index
    %c0_29 = arith.constant 0 : index
    %16 = vector.load %arg3[%c0_27, %c2, %c0_28, %c0_29] : memref<1x8x32x4xbf16, #tpu.memory_space<vmem>>, vector<1x1x32x4xbf16>
    %17 = vector.shape_cast %16 : vector<1x1x32x4xbf16> to vector<32x4xbf16>
    %c64 = arith.constant 64 : index
    %c0_30 = arith.constant 0 : index
    %18 = vector.load %arg13[%c64, %c0_30] : memref<320x4xbf16, #tpu.memory_space<vmem>>, vector<32x4xbf16>
    tpu.vector_store %arg13[%c64, %c0_30], %17 {strides = array<i32>} : memref<320x4xbf16, #tpu.memory_space<vmem>>, vector<32x4xbf16>,
    %c0_31 = arith.constant 0 : index
    %c2_32 = arith.constant 2 : index
    %c0_33 = arith.constant 0 : index
    %c0_34 = arith.constant 0 : index
    %c0_35 = arith.constant 0 : index
    %19 = vector.load %arg5[%c0_31, %c2_32, %c0_33, %c0_34, %c0_35] : memref<1x8x4x8x4xbf16, #tpu.memory_space<vmem>>, vector<1x1x4x8x4xbf16>
    %20 = vector.shape_cast %19 : vector<1x1x4x8x4xbf16> to vector<4x8x4xbf16>
    %c2_36 = arith.constant 2 : index
    %c0_37 = arith.constant 0 : index
    %c0_38 = arith.constant 0 : index
    %c0_39 = arith.constant 0 : index
    %21 = vector.load %arg14[%c2_36, %c0_37, %c0_38, %c0_39] : memref<10x4x8x4xbf16, #tpu.memory_space<vmem>>, vector<1x4x8x4xbf16>
    %22 = vector.shape_cast %21 : vector<1x4x8x4xbf16> to vector<4x8x4xbf16>
    %23 = vector.shape_cast %20 : vector<4x8x4xbf16> to vector<1x4x8x4xbf16>
    tpu.vector_store %arg14[%c2_36, %c0_37, %c0_38, %c0_39], %23 {strides = array<i32>} : memref<10x4x8x4xbf16, #tpu.memory_space<vmem>>, vector<1x4x8x4xbf16>,
    %c0_40 = arith.constant 0 : index
    %c3 = arith.constant 3 : index
    %c0_41 = arith.constant 0 : index
    %c0_42 = arith.constant 0 : index
    %24 = vector.load %arg3[%c0_40, %c3, %c0_41, %c0_42] : memref<1x8x32x4xbf16, #tpu.memory_space<vmem>>, vector<1x1x32x4xbf16>
    %25 = vector.shape_cast %24 : vector<1x1x32x4xbf16> to vector<32x4xbf16>
    %c96 = arith.constant 96 : index
    %c0_43 = arith.constant 0 : index
    %26 = vector.load %arg13[%c96, %c0_43] : memref<320x4xbf16, #tpu.memory_space<vmem>>, vector<32x4xbf16>
    tpu.vector_store %arg13[%c96, %c0_43], %25 {strides = array<i32>} : memref<320x4xbf16, #tpu.memory_space<vmem>>, vector<32x4xbf16>,
    %c0_44 = arith.constant 0 : index
    %c3_45 = arith.constant 3 : index
    %c0_46 = arith.constant 0 : index
    %c0_47 = arith.constant 0 : index
    %c0_48 = arith.constant 0 : index
    %27 = vector.load %arg5[%c0_44, %c3_45, %c0_46, %c0_47, %c0_48] : memref<1x8x4x8x4xbf16, #tpu.memory_space<vmem>>, vector<1x1x4x8x4xbf16>
    %28 = vector.shape_cast %27 : vector<1x1x4x8x4xbf16> to vector<4x8x4xbf16>
    %c3_49 = arith.constant 3 : index
    %c0_50 = arith.constant 0 : index
    %c0_51 = arith.constant 0 : index
    %c0_52 = arith.constant 0 : index
    %29 = vector.load %arg14[%c3_49, %c0_50, %c0_51, %c0_52] : memref<10x4x8x4xbf16, #tpu.memory_space<vmem>>, vector<1x4x8x4xbf16>
    %30 = vector.shape_cast %29 : vector<1x4x8x4xbf16> to vector<4x8x4xbf16>
    %31 = vector.shape_cast %28 : vector<4x8x4xbf16> to vector<1x4x8x4xbf16>
    tpu.vector_store %arg14[%c3_49, %c0_50, %c0_51, %c0_52], %31 {strides = array<i32>} : memref<10x4x8x4xbf16, #tpu.memory_space<vmem>>, vector<1x4x8x4xbf16>,
    %c0_53 = arith.constant 0 : index
    %c4 = arith.constant 4 : index
    %c0_54 = arith.constant 0 : index
    %c0_55 = arith.constant 0 : index
    %32 = vector.load %arg3[%c0_53, %c4, %c0_54, %c0_55] : memref<1x8x32x4xbf16, #tpu.memory_space<vmem>>, vector<1x1x32x4xbf16>
    %33 = vector.shape_cast %32 : vector<1x1x32x4xbf16> to vector<32x4xbf16>
    %c128 = arith.constant 128 : index
    %c0_56 = arith.constant 0 : index
    %34 = vector.load %arg13[%c128, %c0_56] : memref<320x4xbf16, #tpu.memory_space<vmem>>, vector<32x4xbf16>
    tpu.vector_store %arg13[%c128, %c0_56], %33 {strides = array<i32>} : memref<320x4xbf16, #tpu.memory_space<vmem>>, vector<32x4xbf16>,
    %c0_57 = arith.constant 0 : index
    %c4_58 = arith.constant 4 : index
    %c0_59 = arith.constant 0 : index
    %c0_60 = arith.constant 0 : index
    %c0_61 = arith.constant 0 : index
    %35 = vector.load %arg5[%c0_57, %c4_58, %c0_59, %c0_60, %c0_61] : memref<1x8x4x8x4xbf16, #tpu.memory_space<vmem>>, vector<1x1x4x8x4xbf16>
    %36 = vector.shape_cast %35 : vector<1x1x4x8x4xbf16> to vector<4x8x4xbf16>
    %c4_62 = arith.constant 4 : index
    %c0_63 = arith.constant 0 : index
    %c0_64 = arith.constant 0 : index
    %c0_65 = arith.constant 0 : index
    %37 = vector.load %arg14[%c4_62, %c0_63, %c0_64, %c0_65] : memref<10x4x8x4xbf16, #tpu.memory_space<vmem>>, vector<1x4x8x4xbf16>
    %38 = vector.shape_cast %37 : vector<1x4x8x4xbf16> to vector<4x8x4xbf16>
    %39 = vector.shape_cast %36 : vector<4x8x4xbf16> to vector<1x4x8x4xbf16>
    tpu.vector_store %arg14[%c4_62, %c0_63, %c0_64, %c0_65], %39 {strides = array<i32>} : memref<10x4x8x4xbf16, #tpu.memory_space<vmem>>, vector<1x4x8x4xbf16>,
    %c0_66 = arith.constant 0 : index
    %c5 = arith.constant 5 : index
    %c0_67 = arith.constant 0 : index
    %c0_68 = arith.constant 0 : index
    %40 = vector.load %arg3[%c0_66, %c5, %c0_67, %c0_68] : memref<1x8x32x4xbf16, #tpu.memory_space<vmem>>, vector<1x1x32x4xbf16>
    %41 = vector.shape_cast %40 : vector<1x1x32x4xbf16> to vector<32x4xbf16>
    %c160 = arith.constant 160 : index
    %c0_69 = arith.constant 0 : index
    %42 = vector.load %arg13[%c160, %c0_69] : memref<320x4xbf16, #tpu.memory_space<vmem>>, vector<32x4xbf16>
    tpu.vector_store %arg13[%c160, %c0_69], %41 {strides = array<i32>} : memref<320x4xbf16, #tpu.memory_space<vmem>>, vector<32x4xbf16>,
    %c0_70 = arith.constant 0 : index
    %c5_71 = arith.constant 5 : index
    %c0_72 = arith.constant 0 : index
    %c0_73 = arith.constant 0 : index
    %c0_74 = arith.constant 0 : index
    %43 = vector.load %arg5[%c0_70, %c5_71, %c0_72, %c0_73, %c0_74] : memref<1x8x4x8x4xbf16, #tpu.memory_space<vmem>>, vector<1x1x4x8x4xbf16>
    %44 = vector.shape_cast %43 : vector<1x1x4x8x4xbf16> to vector<4x8x4xbf16>
    %c5_75 = arith.constant 5 : index
    %c0_76 = arith.constant 0 : index
    %c0_77 = arith.constant 0 : index
    %c0_78 = arith.constant 0 : index
    %45 = vector.load %arg14[%c5_75, %c0_76, %c0_77, %c0_78] : memref<10x4x8x4xbf16, #tpu.memory_space<vmem>>, vector<1x4x8x4xbf16>
    %46 = vector.shape_cast %45 : vector<1x4x8x4xbf16> to vector<4x8x4xbf16>
    %47 = vector.shape_cast %44 : vector<4x8x4xbf16> to vector<1x4x8x4xbf16>
    tpu.vector_store %arg14[%c5_75, %c0_76, %c0_77, %c0_78], %47 {strides = array<i32>} : memref<10x4x8x4xbf16, #tpu.memory_space<vmem>>, vector<1x4x8x4xbf16>,
    %c0_79 = arith.constant 0 : index
    %c6 = arith.constant 6 : index
    %c0_80 = arith.constant 0 : index
    %c0_81 = arith.constant 0 : index
    %48 = vector.load %arg3[%c0_79, %c6, %c0_80, %c0_81] : memref<1x8x32x4xbf16, #tpu.memory_space<vmem>>, vector<1x1x32x4xbf16>
    %49 = vector.shape_cast %48 : vector<1x1x32x4xbf16> to vector<32x4xbf16>
    %c192 = arith.constant 192 : index
    %c0_82 = arith.constant 0 : index
    %50 = vector.load %arg13[%c192, %c0_82] : memref<320x4xbf16, #tpu.memory_space<vmem>>, vector<32x4xbf16>
    tpu.vector_store %arg13[%c192, %c0_82], %49 {strides = array<i32>} : memref<320x4xbf16, #tpu.memory_space<vmem>>, vector<32x4xbf16>,
    %c0_83 = arith.constant 0 : index
    %c6_84 = arith.constant 6 : index
    %c0_85 = arith.constant 0 : index
    %c0_86 = arith.constant 0 : index
    %c0_87 = arith.constant 0 : index
    %51 = vector.load %arg5[%c0_83, %c6_84, %c0_85, %c0_86, %c0_87] : memref<1x8x4x8x4xbf16, #tpu.memory_space<vmem>>, vector<1x1x4x8x4xbf16>
    %52 = vector.shape_cast %51 : vector<1x1x4x8x4xbf16> to vector<4x8x4xbf16>
    %c6_88 = arith.constant 6 : index
    %c0_89 = arith.constant 0 : index
    %c0_90 = arith.constant 0 : index
    %c0_91 = arith.constant 0 : index
    %53 = vector.load %arg14[%c6_88, %c0_89, %c0_90, %c0_91] : memref<10x4x8x4xbf16, #tpu.memory_space<vmem>>, vector<1x4x8x4xbf16>
    %54 = vector.shape_cast %53 : vector<1x4x8x4xbf16> to vector<4x8x4xbf16>
    %55 = vector.shape_cast %52 : vector<4x8x4xbf16> to vector<1x4x8x4xbf16>
    tpu.vector_store %arg14[%c6_88, %c0_89, %c0_90, %c0_91], %55 {strides = array<i32>} : memref<10x4x8x4xbf16, #tpu.memory_space<vmem>>, vector<1x4x8x4xbf16>,
    %c0_92 = arith.constant 0 : index
    %c7 = arith.constant 7 : index
    %c0_93 = arith.constant 0 : index
    %c0_94 = arith.constant 0 : index
    %56 = vector.load %arg3[%c0_92, %c7, %c0_93, %c0_94] : memref<1x8x32x4xbf16, #tpu.memory_space<vmem>>, vector<1x1x32x4xbf16>
    %57 = vector.shape_cast %56 : vector<1x1x32x4xbf16> to vector<32x4xbf16>
    %c224 = arith.constant 224 : index
    %c0_95 = arith.constant 0 : index
    %58 = vector.load %arg13[%c224, %c0_95] : memref<320x4xbf16, #tpu.memory_space<vmem>>, vector<32x4xbf16>
    tpu.vector_store %arg13[%c224, %c0_95], %57 {strides = array<i32>} : memref<320x4xbf16, #tpu.memory_space<vmem>>, vector<32x4xbf16>,
    %c0_96 = arith.constant 0 : index
    %c7_97 = arith.constant 7 : index
    %c0_98 = arith.constant 0 : index
    %c0_99 = arith.constant 0 : index
    %c0_100 = arith.constant 0 : index
    %59 = vector.load %arg5[%c0_96, %c7_97, %c0_98, %c0_99, %c0_100] : memref<1x8x4x8x4xbf16, #tpu.memory_space<vmem>>, vector<1x1x4x8x4xbf16>
    %60 = vector.shape_cast %59 : vector<1x1x4x8x4xbf16> to vector<4x8x4xbf16>
    %c7_101 = arith.constant 7 : index
    %c0_102 = arith.constant 0 : index
    %c0_103 = arith.constant 0 : index
    %c0_104 = arith.constant 0 : index
    %61 = vector.load %arg14[%c7_101, %c0_102, %c0_103, %c0_104] : memref<10x4x8x4xbf16, #tpu.memory_space<vmem>>, vector<1x4x8x4xbf16>
    %62 = vector.shape_cast %61 : vector<1x4x8x4xbf16> to vector<4x8x4xbf16>
    %63 = vector.shape_cast %60 : vector<4x8x4xbf16> to vector<1x4x8x4xbf16>
    tpu.vector_store %arg14[%c7_101, %c0_102, %c0_103, %c0_104], %63 {strides = array<i32>} : memref<10x4x8x4xbf16, #tpu.memory_space<vmem>>, vector<1x4x8x4xbf16>,
    %c0_105 = arith.constant 0 : index
    %c0_106 = arith.constant 0 : index
    %c0_107 = arith.constant 0 : index
    %c0_108 = arith.constant 0 : index
    %64 = vector.load %arg4[%c0_105, %c0_106, %c0_107, %c0_108] : memref<1x8x32x4xbf16, #tpu.memory_space<vmem>>, vector<1x1x32x4xbf16>
    %65 = vector.shape_cast %64 : vector<1x1x32x4xbf16> to vector<32x4xbf16>
    %c256 = arith.constant 256 : index
    %c0_109 = arith.constant 0 : index
    %66 = vector.load %arg13[%c256, %c0_109] : memref<320x4xbf16, #tpu.memory_space<vmem>>, vector<32x4xbf16>
    tpu.vector_store %arg13[%c256, %c0_109], %65 {strides = array<i32>} : memref<320x4xbf16, #tpu.memory_space<vmem>>, vector<32x4xbf16>,
    %c0_110 = arith.constant 0 : index
    %c0_111 = arith.constant 0 : index
    %c0_112 = arith.constant 0 : index
    %c0_113 = arith.constant 0 : index
    %c0_114 = arith.constant 0 : index
    %67 = vector.load %arg6[%c0_110, %c0_111, %c0_112, %c0_113, %c0_114] : memref<1x8x4x8x4xbf16, #tpu.memory_space<vmem>>, vector<1x1x4x8x4xbf16>
    %68 = vector.shape_cast %67 : vector<1x1x4x8x4xbf16> to vector<4x8x4xbf16>
    %c8 = arith.constant 8 : index
    %c0_115 = arith.constant 0 : index
    %c0_116 = arith.constant 0 : index
    %c0_117 = arith.constant 0 : index
    %69 = vector.load %arg14[%c8, %c0_115, %c0_116, %c0_117] : memref<10x4x8x4xbf16, #tpu.memory_space<vmem>>, vector<1x4x8x4xbf16>
    %70 = vector.shape_cast %69 : vector<1x4x8x4xbf16> to vector<4x8x4xbf16>
    %71 = vector.shape_cast %68 : vector<4x8x4xbf16> to vector<1x4x8x4xbf16>
    tpu.vector_store %arg14[%c8, %c0_115, %c0_116, %c0_117], %71 {strides = array<i32>} : memref<10x4x8x4xbf16, #tpu.memory_space<vmem>>, vector<1x4x8x4xbf16>,
    %c0_118 = arith.constant 0 : index
    %c1_119 = arith.constant 1 : index
    %c0_120 = arith.constant 0 : index
    %c0_121 = arith.constant 0 : index
    %72 = vector.load %arg4[%c0_118, %c1_119, %c0_120, %c0_121] : memref<1x8x32x4xbf16, #tpu.memory_space<vmem>>, vector<1x1x32x4xbf16>
    %73 = vector.shape_cast %72 : vector<1x1x32x4xbf16> to vector<32x4xbf16>
    %c288 = arith.constant 288 : index
    %c0_122 = arith.constant 0 : index
    %74 = vector.load %arg13[%c288, %c0_122] : memref<320x4xbf16, #tpu.memory_space<vmem>>, vector<32x4xbf16>
    tpu.vector_store %arg13[%c288, %c0_122], %73 {strides = array<i32>} : memref<320x4xbf16, #tpu.memory_space<vmem>>, vector<32x4xbf16>,
    %c0_123 = arith.constant 0 : index
    %c1_124 = arith.constant 1 : index
    %c0_125 = arith.constant 0 : index
    %c0_126 = arith.constant 0 : index
    %c0_127 = arith.constant 0 : index
    %75 = vector.load %arg6[%c0_123, %c1_124, %c0_125, %c0_126, %c0_127] : memref<1x8x4x8x4xbf16, #tpu.memory_space<vmem>>, vector<1x1x4x8x4xbf16>
    %76 = vector.shape_cast %75 : vector<1x1x4x8x4xbf16> to vector<4x8x4xbf16>
    %c9 = arith.constant 9 : index
    %c0_128 = arith.constant 0 : index
    %c0_129 = arith.constant 0 : index
    %c0_130 = arith.constant 0 : index
    %77 = vector.load %arg14[%c9, %c0_128, %c0_129, %c0_130] : memref<10x4x8x4xbf16, #tpu.memory_space<vmem>>, vector<1x4x8x4xbf16>
    %78 = vector.shape_cast %77 : vector<1x4x8x4xbf16> to vector<4x8x4xbf16>
    %79 = vector.shape_cast %76 : vector<4x8x4xbf16> to vector<1x4x8x4xbf16>
    tpu.vector_store %arg14[%c9, %c0_128, %c0_129, %c0_130], %79 {strides = array<i32>} : memref<10x4x8x4xbf16, #tpu.memory_space<vmem>>, vector<1x4x8x4xbf16>,
    %cst = arith.constant 0.000000e+00 : f32
    %80 = vector.broadcast %cst : f32 to vector<256x4xf32>
    %cst_131 = arith.constant 0.000000e+00 : f32
    %81 = vector.broadcast %cst_131 : f32 to vector<256x4xf32>
    %cst_132 = arith.constant 0.000000e+00 : f32
    %82 = vector.broadcast %cst_132 : f32 to vector<256x4xf32>
    %c0_133 = arith.constant 0 : index
    %c0_134 = arith.constant 0 : index
    %83 = vector.load %arg13[%c0_133, %c0_134] : memref<320x4xbf16, #tpu.memory_space<vmem>>, vector<256x4xbf16>
    %c0_135 = arith.constant 0 : index
    %c0_136 = arith.constant 0 : index
    %c0_137 = arith.constant 0 : index
    %c0_138 = arith.constant 0 : index
    %84 = vector.load %arg7[%c0_135, %c0_136, %c0_137, %c0_138] : memref<3x3x4x4xbf16, #tpu.memory_space<vmem>>, vector<1x1x4x4xbf16>
    %85 = vector.shape_cast %84 : vector<1x1x4x4xbf16> to vector<4x4xbf16>
    %cst_139 = arith.constant dense<0.000000e+00> : vector<256x4xf32>
    %86 = tpu.matmul %83, %85, %cst_139 {dimension_numbers = #tpu.dot_dimension_numbers<[1], [0], [0], [1], [0, 0, 1, 1], [], []>} : vector<256x4xbf16>, vector<4x4xbf16>, vector<256x4xf32> -> vector<256x4xf32>
    %87 = arith.addf %80, %86 : vector<256x4xf32>
    %c0_140 = arith.constant 0 : index
    %c1_141 = arith.constant 1 : index
    %c0_142 = arith.constant 0 : index
    %c0_143 = arith.constant 0 : index
    %88 = vector.load %arg7[%c0_140, %c1_141, %c0_142, %c0_143] : memref<3x3x4x4xbf16, #tpu.memory_space<vmem>>, vector<1x1x4x4xbf16>
    %89 = vector.shape_cast %88 : vector<1x1x4x4xbf16> to vector<4x4xbf16>
    %cst_144 = arith.constant dense<0.000000e+00> : vector<256x4xf32>
    %90 = tpu.matmul %83, %89, %cst_144 {dimension_numbers = #tpu.dot_dimension_numbers<[1], [0], [0], [1], [0, 0, 1, 1], [], []>} : vector<256x4xbf16>, vector<4x4xbf16>, vector<256x4xf32> -> vector<256x4xf32>
    %91 = arith.addf %81, %90 : vector<256x4xf32>
    %c0_145 = arith.constant 0 : index
    %c2_146 = arith.constant 2 : index
    %c0_147 = arith.constant 0 : index
    %c0_148 = arith.constant 0 : index
    %92 = vector.load %arg7[%c0_145, %c2_146, %c0_147, %c0_148] : memref<3x3x4x4xbf16, #tpu.memory_space<vmem>>, vector<1x1x4x4xbf16>
    %93 = vector.shape_cast %92 : vector<1x1x4x4xbf16> to vector<4x4xbf16>
    %cst_149 = arith.constant dense<0.000000e+00> : vector<256x4xf32>
    %94 = tpu.matmul %83, %93, %cst_149 {dimension_numbers = #tpu.dot_dimension_numbers<[1], [0], [0], [1], [0, 0, 1, 1], [], []>} : vector<256x4xbf16>, vector<4x4xbf16>, vector<256x4xf32> -> vector<256x4xf32>
    %95 = arith.addf %82, %94 : vector<256x4xf32>
    %c32_150 = arith.constant 32 : index
    %c0_151 = arith.constant 0 : index
    %96 = vector.load %arg13[%c32_150, %c0_151] : memref<320x4xbf16, #tpu.memory_space<vmem>>, vector<256x4xbf16>
    %c1_152 = arith.constant 1 : index
    %c0_153 = arith.constant 0 : index
    %c0_154 = arith.constant 0 : index
    %c0_155 = arith.constant 0 : index
    %97 = vector.load %arg7[%c1_152, %c0_153, %c0_154, %c0_155] : memref<3x3x4x4xbf16, #tpu.memory_space<vmem>>, vector<1x1x4x4xbf16>
    %98 = vector.shape_cast %97 : vector<1x1x4x4xbf16> to vector<4x4xbf16>
    %cst_156 = arith.constant dense<0.000000e+00> : vector<256x4xf32>
    %99 = tpu.matmul %96, %98, %cst_156 {dimension_numbers = #tpu.dot_dimension_numbers<[1], [0], [0], [1], [0, 0, 1, 1], [], []>} : vector<256x4xbf16>, vector<4x4xbf16>, vector<256x4xf32> -> vector<256x4xf32>
    %100 = arith.addf %87, %99 : vector<256x4xf32>
    %c1_157 = arith.constant 1 : index
    %c1_158 = arith.constant 1 : index
    %c0_159 = arith.constant 0 : index
    %c0_160 = arith.constant 0 : index
    %101 = vector.load %arg7[%c1_157, %c1_158, %c0_159, %c0_160] : memref<3x3x4x4xbf16, #tpu.memory_space<vmem>>, vector<1x1x4x4xbf16>
    %102 = vector.shape_cast %101 : vector<1x1x4x4xbf16> to vector<4x4xbf16>
    %cst_161 = arith.constant dense<0.000000e+00> : vector<256x4xf32>
    %103 = tpu.matmul %96, %102, %cst_161 {dimension_numbers = #tpu.dot_dimension_numbers<[1], [0], [0], [1], [0, 0, 1, 1], [], []>} : vector<256x4xbf16>, vector<4x4xbf16>, vector<256x4xf32> -> vector<256x4xf32>
    %104 = arith.addf %91, %103 : vector<256x4xf32>
    %c1_162 = arith.constant 1 : index
    %c2_163 = arith.constant 2 : index
    %c0_164 = arith.constant 0 : index
    %c0_165 = arith.constant 0 : index
    %105 = vector.load %arg7[%c1_162, %c2_163, %c0_164, %c0_165] : memref<3x3x4x4xbf16, #tpu.memory_space<vmem>>, vector<1x1x4x4xbf16>
    %106 = vector.shape_cast %105 : vector<1x1x4x4xbf16> to vector<4x4xbf16>
    %cst_166 = arith.constant dense<0.000000e+00> : vector<256x4xf32>
    %107 = tpu.matmul %96, %106, %cst_166 {dimension_numbers = #tpu.dot_dimension_numbers<[1], [0], [0], [1], [0, 0, 1, 1], [], []>} : vector<256x4xbf16>, vector<4x4xbf16>, vector<256x4xf32> -> vector<256x4xf32>
    %108 = arith.addf %95, %107 : vector<256x4xf32>
    %c64_167 = arith.constant 64 : index
    %c0_168 = arith.constant 0 : index
    %109 = vector.load %arg13[%c64_167, %c0_168] : memref<320x4xbf16, #tpu.memory_space<vmem>>, vector<256x4xbf16>
    %c2_169 = arith.constant 2 : index
    %c0_170 = arith.constant 0 : index
    %c0_171 = arith.constant 0 : index
    %c0_172 = arith.constant 0 : index
    %110 = vector.load %arg7[%c2_169, %c0_170, %c0_171, %c0_172] : memref<3x3x4x4xbf16, #tpu.memory_space<vmem>>, vector<1x1x4x4xbf16>
    %111 = vector.shape_cast %110 : vector<1x1x4x4xbf16> to vector<4x4xbf16>
    %cst_173 = arith.constant dense<0.000000e+00> : vector<256x4xf32>
    %112 = tpu.matmul %109, %111, %cst_173 {dimension_numbers = #tpu.dot_dimension_numbers<[1], [0], [0], [1], [0, 0, 1, 1], [], []>} : vector<256x4xbf16>, vector<4x4xbf16>, vector<256x4xf32> -> vector<256x4xf32>
    %113 = arith.addf %100, %112 : vector<256x4xf32>
    %c2_174 = arith.constant 2 : index
    %c1_175 = arith.constant 1 : index
    %c0_176 = arith.constant 0 : index
    %c0_177 = arith.constant 0 : index
    %114 = vector.load %arg7[%c2_174, %c1_175, %c0_176, %c0_177] : memref<3x3x4x4xbf16, #tpu.memory_space<vmem>>, vector<1x1x4x4xbf16>
    %115 = vector.shape_cast %114 : vector<1x1x4x4xbf16> to vector<4x4xbf16>
    %cst_178 = arith.constant dense<0.000000e+00> : vector<256x4xf32>
    %116 = tpu.matmul %109, %115, %cst_178 {dimension_numbers = #tpu.dot_dimension_numbers<[1], [0], [0], [1], [0, 0, 1, 1], [], []>} : vector<256x4xbf16>, vector<4x4xbf16>, vector<256x4xf32> -> vector<256x4xf32>
    %117 = arith.addf %104, %116 : vector<256x4xf32>
    %c2_179 = arith.constant 2 : index
    %c2_180 = arith.constant 2 : index
    %c0_181 = arith.constant 0 : index
    %c0_182 = arith.constant 0 : index
    %118 = vector.load %arg7[%c2_179, %c2_180, %c0_181, %c0_182] : memref<3x3x4x4xbf16, #tpu.memory_space<vmem>>, vector<1x1x4x4xbf16>
    %119 = vector.shape_cast %118 : vector<1x1x4x4xbf16> to vector<4x4xbf16>
    %cst_183 = arith.constant dense<0.000000e+00> : vector<256x4xf32>
    %120 = tpu.matmul %109, %119, %cst_183 {dimension_numbers = #tpu.dot_dimension_numbers<[1], [0], [0], [1], [0, 0, 1, 1], [], []>} : vector<256x4xbf16>, vector<4x4xbf16>, vector<256x4xf32> -> vector<256x4xf32>
    %121 = arith.addf %108, %120 : vector<256x4xf32>
    %c0_184 = arith.constant 0 : index
    %c0_185 = arith.constant 0 : index
    %c0_186 = arith.constant 0 : index
    %122 = vector.load %arg9[%c0_184, %c0_185, %c0_186] : memref<4x32x8xbf16, #tpu.memory_space<vmem>>, vector<1x32x8xbf16>
    %123 = vector.shape_cast %122 : vector<1x32x8xbf16> to vector<32x8xbf16>
    %c0_187 = arith.constant 0 : index
    %c0_188 = arith.constant 0 : index
    %c0_189 = arith.constant 0 : index
    %c0_190 = arith.constant 0 : index
    %124 = vector.load %arg14[%c0_187, %c0_188, %c0_189, %c0_190] : memref<10x4x8x4xbf16, #tpu.memory_space<vmem>>, vector<1x1x8x4xbf16>
    %125 = vector.shape_cast %124 : vector<1x1x8x4xbf16> to vector<8x4xbf16>
    %cst_191 = arith.constant dense<0.000000e+00> : vector<32x4xf32>
    %126 = tpu.matmul %123, %125, %cst_191 {dimension_numbers = #tpu.dot_dimension_numbers<[1], [0], [0], [1], [0, 0, 1, 1], [], []>} : vector<32x8xbf16>, vector<8x4xbf16>, vector<32x4xf32> -> vector<32x4xf32>
    %127 = arith.truncf %126 : vector<32x4xf32> to vector<32x4xbf16>
    %c0_192 = arith.constant 0 : index
    %c0_193 = arith.constant 0 : index
    %128 = vector.load %arg15[%c0_192, %c0_193] : memref<320x4xbf16, #tpu.memory_space<vmem>>, vector<32x4xbf16>
    tpu.vector_store %arg15[%c0_192, %c0_193], %127 {strides = array<i32>} : memref<320x4xbf16, #tpu.memory_space<vmem>>, vector<32x4xbf16>,
    %c1_194 = arith.constant 1 : index
    %c0_195 = arith.constant 0 : index
    %c0_196 = arith.constant 0 : index
    %c0_197 = arith.constant 0 : index
    %129 = vector.load %arg14[%c1_194, %c0_195, %c0_196, %c0_197] : memref<10x4x8x4xbf16, #tpu.memory_space<vmem>>, vector<1x1x8x4xbf16>
    %130 = vector.shape_cast %129 : vector<1x1x8x4xbf16> to vector<8x4xbf16>
    %cst_198 = arith.constant dense<0.000000e+00> : vector<32x4xf32>
    %131 = tpu.matmul %123, %130, %cst_198 {dimension_numbers = #tpu.dot_dimension_numbers<[1], [0], [0], [1], [0, 0, 1, 1], [], []>} : vector<32x8xbf16>, vector<8x4xbf16>, vector<32x4xf32> -> vector<32x4xf32>
    %132 = arith.truncf %131 : vector<32x4xf32> to vector<32x4xbf16>
    %c32_199 = arith.constant 32 : index
    %c0_200 = arith.constant 0 : index
    %133 = vector.load %arg15[%c32_199, %c0_200] : memref<320x4xbf16, #tpu.memory_space<vmem>>, vector<32x4xbf16>
    tpu.vector_store %arg15[%c32_199, %c0_200], %132 {strides = array<i32>} : memref<320x4xbf16, #tpu.memory_space<vmem>>, vector<32x4xbf16>,
    %c2_201 = arith.constant 2 : index
    %c0_202 = arith.constant 0 : index
    %c0_203 = arith.constant 0 : index
    %c0_204 = arith.constant 0 : index
    %134 = vector.load %arg14[%c2_201, %c0_202, %c0_203, %c0_204] : memref<10x4x8x4xbf16, #tpu.memory_space<vmem>>, vector<1x1x8x4xbf16>
    %135 = vector.shape_cast %134 : vector<1x1x8x4xbf16> to vector<8x4xbf16>
    %cst_205 = arith.constant dense<0.000000e+00> : vector<32x4xf32>
    %136 = tpu.matmul %123, %135, %cst_205 {dimension_numbers = #tpu.dot_dimension_numbers<[1], [0], [0], [1], [0, 0, 1, 1], [], []>} : vector<32x8xbf16>, vector<8x4xbf16>, vector<32x4xf32> -> vector<32x4xf32>
    %137 = arith.truncf %136 : vector<32x4xf32> to vector<32x4xbf16>
    %c64_206 = arith.constant 64 : index
    %c0_207 = arith.constant 0 : index
    %138 = vector.load %arg15[%c64_206, %c0_207] : memref<320x4xbf16, #tpu.memory_space<vmem>>, vector<32x4xbf16>
    tpu.vector_store %arg15[%c64_206, %c0_207], %137 {strides = array<i32>} : memref<320x4xbf16, #tpu.memory_space<vmem>>, vector<32x4xbf16>,
    %c3_208 = arith.constant 3 : index
    %c0_209 = arith.constant 0 : index
    %c0_210 = arith.constant 0 : index
    %c0_211 = arith.constant 0 : index
    %139 = vector.load %arg14[%c3_208, %c0_209, %c0_210, %c0_211] : memref<10x4x8x4xbf16, #tpu.memory_space<vmem>>, vector<1x1x8x4xbf16>
    %140 = vector.shape_cast %139 : vector<1x1x8x4xbf16> to vector<8x4xbf16>
    %cst_212 = arith.constant dense<0.000000e+00> : vector<32x4xf32>
    %141 = tpu.matmul %123, %140, %cst_212 {dimension_numbers = #tpu.dot_dimension_numbers<[1], [0], [0], [1], [0, 0, 1, 1], [], []>} : vector<32x8xbf16>, vector<8x4xbf16>, vector<32x4xf32> -> vector<32x4xf32>
    %142 = arith.truncf %141 : vector<32x4xf32> to vector<32x4xbf16>
    %c96_213 = arith.constant 96 : index
    %c0_214 = arith.constant 0 : index
    %143 = vector.load %arg15[%c96_213, %c0_214] : memref<320x4xbf16, #tpu.memory_space<vmem>>, vector<32x4xbf16>
    tpu.vector_store %arg15[%c96_213, %c0_214], %142 {strides = array<i32>} : memref<320x4xbf16, #tpu.memory_space<vmem>>, vector<32x4xbf16>,
    %c4_215 = arith.constant 4 : index
    %c0_216 = arith.constant 0 : index
    %c0_217 = arith.constant 0 : index
    %c0_218 = arith.constant 0 : index
    %144 = vector.load %arg14[%c4_215, %c0_216, %c0_217, %c0_218] : memref<10x4x8x4xbf16, #tpu.memory_space<vmem>>, vector<1x1x8x4xbf16>
    %145 = vector.shape_cast %144 : vector<1x1x8x4xbf16> to vector<8x4xbf16>
    %cst_219 = arith.constant dense<0.000000e+00> : vector<32x4xf32>
    %146 = tpu.matmul %123, %145, %cst_219 {dimension_numbers = #tpu.dot_dimension_numbers<[1], [0], [0], [1], [0, 0, 1, 1], [], []>} : vector<32x8xbf16>, vector<8x4xbf16>, vector<32x4xf32> -> vector<32x4xf32>
    %147 = arith.truncf %146 : vector<32x4xf32> to vector<32x4xbf16>
    %c128_220 = arith.constant 128 : index
    %c0_221 = arith.constant 0 : index
    %148 = vector.load %arg15[%c128_220, %c0_221] : memref<320x4xbf16, #tpu.memory_space<vmem>>, vector<32x4xbf16>
    tpu.vector_store %arg15[%c128_220, %c0_221], %147 {strides = array<i32>} : memref<320x4xbf16, #tpu.memory_space<vmem>>, vector<32x4xbf16>,
    %c5_222 = arith.constant 5 : index
    %c0_223 = arith.constant 0 : index
    %c0_224 = arith.constant 0 : index
    %c0_225 = arith.constant 0 : index
    %149 = vector.load %arg14[%c5_222, %c0_223, %c0_224, %c0_225] : memref<10x4x8x4xbf16, #tpu.memory_space<vmem>>, vector<1x1x8x4xbf16>
    %150 = vector.shape_cast %149 : vector<1x1x8x4xbf16> to vector<8x4xbf16>
    %cst_226 = arith.constant dense<0.000000e+00> : vector<32x4xf32>
    %151 = tpu.matmul %123, %150, %cst_226 {dimension_numbers = #tpu.dot_dimension_numbers<[1], [0], [0], [1], [0, 0, 1, 1], [], []>} : vector<32x8xbf16>, vector<8x4xbf16>, vector<32x4xf32> -> vector<32x4xf32>
    %152 = arith.truncf %151 : vector<32x4xf32> to vector<32x4xbf16>
    %c160_227 = arith.constant 160 : index
    %c0_228 = arith.constant 0 : index
    %153 = vector.load %arg15[%c160_227, %c0_228] : memref<320x4xbf16, #tpu.memory_space<vmem>>, vector<32x4xbf16>
    tpu.vector_store %arg15[%c160_227, %c0_228], %152 {strides = array<i32>} : memref<320x4xbf16, #tpu.memory_space<vmem>>, vector<32x4xbf16>,
    %c6_229 = arith.constant 6 : index
    %c0_230 = arith.constant 0 : index
    %c0_231 = arith.constant 0 : index
    %c0_232 = arith.constant 0 : index
    %154 = vector.load %arg14[%c6_229, %c0_230, %c0_231, %c0_232] : memref<10x4x8x4xbf16, #tpu.memory_space<vmem>>, vector<1x1x8x4xbf16>
    %155 = vector.shape_cast %154 : vector<1x1x8x4xbf16> to vector<8x4xbf16>
    %cst_233 = arith.constant dense<0.000000e+00> : vector<32x4xf32>
    %156 = tpu.matmul %123, %155, %cst_233 {dimension_numbers = #tpu.dot_dimension_numbers<[1], [0], [0], [1], [0, 0, 1, 1], [], []>} : vector<32x8xbf16>, vector<8x4xbf16>, vector<32x4xf32> -> vector<32x4xf32>
    %157 = arith.truncf %156 : vector<32x4xf32> to vector<32x4xbf16>
    %c192_234 = arith.constant 192 : index
    %c0_235 = arith.constant 0 : index
    %158 = vector.load %arg15[%c192_234, %c0_235] : memref<320x4xbf16, #tpu.memory_space<vmem>>, vector<32x4xbf16>
    tpu.vector_store %arg15[%c192_234, %c0_235], %157 {strides = array<i32>} : memref<320x4xbf16, #tpu.memory_space<vmem>>, vector<32x4xbf16>,
    %c7_236 = arith.constant 7 : index
    %c0_237 = arith.constant 0 : index
    %c0_238 = arith.constant 0 : index
    %c0_239 = arith.constant 0 : index
    %159 = vector.load %arg14[%c7_236, %c0_237, %c0_238, %c0_239] : memref<10x4x8x4xbf16, #tpu.memory_space<vmem>>, vector<1x1x8x4xbf16>
    %160 = vector.shape_cast %159 : vector<1x1x8x4xbf16> to vector<8x4xbf16>
    %cst_240 = arith.constant dense<0.000000e+00> : vector<32x4xf32>
    %161 = tpu.matmul %123, %160, %cst_240 {dimension_numbers = #tpu.dot_dimension_numbers<[1], [0], [0], [1], [0, 0, 1, 1], [], []>} : vector<32x8xbf16>, vector<8x4xbf16>, vector<32x4xf32> -> vector<32x4xf32>
    %162 = arith.truncf %161 : vector<32x4xf32> to vector<32x4xbf16>
    %c224_241 = arith.constant 224 : index
    %c0_242 = arith.constant 0 : index
    %163 = vector.load %arg15[%c224_241, %c0_242] : memref<320x4xbf16, #tpu.memory_space<vmem>>, vector<32x4xbf16>
    tpu.vector_store %arg15[%c224_241, %c0_242], %162 {strides = array<i32>} : memref<320x4xbf16, #tpu.memory_space<vmem>>, vector<32x4xbf16>,
    %c8_243 = arith.constant 8 : index
    %c0_244 = arith.constant 0 : index
    %c0_245 = arith.constant 0 : index
    %c0_246 = arith.constant 0 : index
    %164 = vector.load %arg14[%c8_243, %c0_244, %c0_245, %c0_246] : memref<10x4x8x4xbf16, #tpu.memory_space<vmem>>, vector<1x1x8x4xbf16>
    %165 = vector.shape_cast %164 : vector<1x1x8x4xbf16> to vector<8x4xbf16>
    %cst_247 = arith.constant dense<0.000000e+00> : vector<32x4xf32>
    %166 = tpu.matmul %123, %165, %cst_247 {dimension_numbers = #tpu.dot_dimension_numbers<[1], [0], [0], [1], [0, 0, 1, 1], [], []>} : vector<32x8xbf16>, vector<8x4xbf16>, vector<32x4xf32> -> vector<32x4xf32>
    %167 = arith.truncf %166 : vector<32x4xf32> to vector<32x4xbf16>
    %c256_248 = arith.constant 256 : index
    %c0_249 = arith.constant 0 : index
    %168 = vector.load %arg15[%c256_248, %c0_249] : memref<320x4xbf16, #tpu.memory_space<vmem>>, vector<32x4xbf16>
    tpu.vector_store %arg15[%c256_248, %c0_249], %167 {strides = array<i32>} : memref<320x4xbf16, #tpu.memory_space<vmem>>, vector<32x4xbf16>,
    %c9_250 = arith.constant 9 : index
    %c0_251 = arith.constant 0 : index
    %c0_252 = arith.constant 0 : index
    %c0_253 = arith.constant 0 : index
    %169 = vector.load %arg14[%c9_250, %c0_251, %c0_252, %c0_253] : memref<10x4x8x4xbf16, #tpu.memory_space<vmem>>, vector<1x1x8x4xbf16>
    %170 = vector.shape_cast %169 : vector<1x1x8x4xbf16> to vector<8x4xbf16>
    %cst_254 = arith.constant dense<0.000000e+00> : vector<32x4xf32>
    %171 = tpu.matmul %123, %170, %cst_254 {dimension_numbers = #tpu.dot_dimension_numbers<[1], [0], [0], [1], [0, 0, 1, 1], [], []>} : vector<32x8xbf16>, vector<8x4xbf16>, vector<32x4xf32> -> vector<32x4xf32>
    %172 = arith.truncf %171 : vector<32x4xf32> to vector<32x4xbf16>
    %c288_255 = arith.constant 288 : index
    %c0_256 = arith.constant 0 : index
    %173 = vector.load %arg15[%c288_255, %c0_256] : memref<320x4xbf16, #tpu.memory_space<vmem>>, vector<32x4xbf16>
    tpu.vector_store %arg15[%c288_255, %c0_256], %172 {strides = array<i32>} : memref<320x4xbf16, #tpu.memory_space<vmem>>, vector<32x4xbf16>,
    %c0_257 = arith.constant 0 : index
    %c0_258 = arith.constant 0 : index
    %174 = vector.load %arg15[%c0_257, %c0_258] : memref<320x4xbf16, #tpu.memory_space<vmem>>, vector<256x4xbf16>
    %c0_259 = arith.constant 0 : index
    %c0_260 = arith.constant 0 : index
    %c0_261 = arith.constant 0 : index
    %c0_262 = arith.constant 0 : index
    %c0_263 = arith.constant 0 : index
    %175 = vector.load %arg8[%c0_259, %c0_260, %c0_261, %c0_262, %c0_263] : memref<4x3x3x4x4xbf16, #tpu.memory_space<vmem>>, vector<1x1x1x4x4xbf16>
    %176 = vector.shape_cast %175 : vector<1x1x1x4x4xbf16> to vector<4x4xbf16>
    %cst_264 = arith.constant dense<0.000000e+00> : vector<256x4xf32>
    %177 = tpu.matmul %174, %176, %cst_264 {dimension_numbers = #tpu.dot_dimension_numbers<[1], [0], [0], [1], [0, 0, 1, 1], [], []>} : vector<256x4xbf16>, vector<4x4xbf16>, vector<256x4xf32> -> vector<256x4xf32>
    %178 = arith.addf %113, %177 : vector<256x4xf32>
    %c0_265 = arith.constant 0 : index
    %c0_266 = arith.constant 0 : index
    %c1_267 = arith.constant 1 : index
    %c0_268 = arith.constant 0 : index
    %c0_269 = arith.constant 0 : index
    %179 = vector.load %arg8[%c0_265, %c0_266, %c1_267, %c0_268, %c0_269] : memref<4x3x3x4x4xbf16, #tpu.memory_space<vmem>>, vector<1x1x1x4x4xbf16>
    %180 = vector.shape_cast %179 : vector<1x1x1x4x4xbf16> to vector<4x4xbf16>
    %cst_270 = arith.constant dense<0.000000e+00> : vector<256x4xf32>
    %181 = tpu.matmul %174, %180, %cst_270 {dimension_numbers = #tpu.dot_dimension_numbers<[1], [0], [0], [1], [0, 0, 1, 1], [], []>} : vector<256x4xbf16>, vector<4x4xbf16>, vector<256x4xf32> -> vector<256x4xf32>
    %182 = arith.addf %117, %181 : vector<256x4xf32>
    %c0_271 = arith.constant 0 : index
    %c0_272 = arith.constant 0 : index
    %c2_273 = arith.constant 2 : index
    %c0_274 = arith.constant 0 : index
    %c0_275 = arith.constant 0 : index
    %183 = vector.load %arg8[%c0_271, %c0_272, %c2_273, %c0_274, %c0_275] : memref<4x3x3x4x4xbf16, #tpu.memory_space<vmem>>, vector<1x1x1x4x4xbf16>
    %184 = vector.shape_cast %183 : vector<1x1x1x4x4xbf16> to vector<4x4xbf16>
    %cst_276 = arith.constant dense<0.000000e+00> : vector<256x4xf32>
    %185 = tpu.matmul %174, %184, %cst_276 {dimension_numbers = #tpu.dot_dimension_numbers<[1], [0], [0], [1], [0, 0, 1, 1], [], []>} : vector<256x4xbf16>, vector<4x4xbf16>, vector<256x4xf32> -> vector<256x4xf32>
    %186 = arith.addf %121, %185 : vector<256x4xf32>
    %c32_277 = arith.constant 32 : index
    %c0_278 = arith.constant 0 : index
    %187 = vector.load %arg15[%c32_277, %c0_278] : memref<320x4xbf16, #tpu.memory_space<vmem>>, vector<256x4xbf16>
    %c0_279 = arith.constant 0 : index
    %c1_280 = arith.constant 1 : index
    %c0_281 = arith.constant 0 : index
    %c0_282 = arith.constant 0 : index
    %c0_283 = arith.constant 0 : index
    %188 = vector.load %arg8[%c0_279, %c1_280, %c0_281, %c0_282, %c0_283] : memref<4x3x3x4x4xbf16, #tpu.memory_space<vmem>>, vector<1x1x1x4x4xbf16>
    %189 = vector.shape_cast %188 : vector<1x1x1x4x4xbf16> to vector<4x4xbf16>
    %cst_284 = arith.constant dense<0.000000e+00> : vector<256x4xf32>
    %190 = tpu.matmul %187, %189, %cst_284 {dimension_numbers = #tpu.dot_dimension_numbers<[1], [0], [0], [1], [0, 0, 1, 1], [], []>} : vector<256x4xbf16>, vector<4x4xbf16>, vector<256x4xf32> -> vector<256x4xf32>
    %191 = arith.addf %178, %190 : vector<256x4xf32>
    %c0_285 = arith.constant 0 : index
    %c1_286 = arith.constant 1 : index
    %c1_287 = arith.constant 1 : index
    %c0_288 = arith.constant 0 : index
    %c0_289 = arith.constant 0 : index
    %192 = vector.load %arg8[%c0_285, %c1_286, %c1_287, %c0_288, %c0_289] : memref<4x3x3x4x4xbf16, #tpu.memory_space<vmem>>, vector<1x1x1x4x4xbf16>
    %193 = vector.shape_cast %192 : vector<1x1x1x4x4xbf16> to vector<4x4xbf16>
    %cst_290 = arith.constant dense<0.000000e+00> : vector<256x4xf32>
    %194 = tpu.matmul %187, %193, %cst_290 {dimension_numbers = #tpu.dot_dimension_numbers<[1], [0], [0], [1], [0, 0, 1, 1], [], []>} : vector<256x4xbf16>, vector<4x4xbf16>, vector<256x4xf32> -> vector<256x4xf32>
    %195 = arith.addf %182, %194 : vector<256x4xf32>
    %c0_291 = arith.constant 0 : index
    %c1_292 = arith.constant 1 : index
    %c2_293 = arith.constant 2 : index
    %c0_294 = arith.constant 0 : index
    %c0_295 = arith.constant 0 : index
    %196 = vector.load %arg8[%c0_291, %c1_292, %c2_293, %c0_294, %c0_295] : memref<4x3x3x4x4xbf16, #tpu.memory_space<vmem>>, vector<1x1x1x4x4xbf16>
    %197 = vector.shape_cast %196 : vector<1x1x1x4x4xbf16> to vector<4x4xbf16>
    %cst_296 = arith.constant dense<0.000000e+00> : vector<256x4xf32>
    %198 = tpu.matmul %187, %197, %cst_296 {dimension_numbers = #tpu.dot_dimension_numbers<[1], [0], [0], [1], [0, 0, 1, 1], [], []>} : vector<256x4xbf16>, vector<4x4xbf16>, vector<256x4xf32> -> vector<256x4xf32>
    %199 = arith.addf %186, %198 : vector<256x4xf32>
    %c64_297 = arith.constant 64 : index
    %c0_298 = arith.constant 0 : index
    %200 = vector.load %arg15[%c64_297, %c0_298] : memref<320x4xbf16, #tpu.memory_space<vmem>>, vector<256x4xbf16>
    %c0_299 = arith.constant 0 : index
    %c2_300 = arith.constant 2 : index
    %c0_301 = arith.constant 0 : index
    %c0_302 = arith.constant 0 : index
    %c0_303 = arith.constant 0 : index
    %201 = vector.load %arg8[%c0_299, %c2_300, %c0_301, %c0_302, %c0_303] : memref<4x3x3x4x4xbf16, #tpu.memory_space<vmem>>, vector<1x1x1x4x4xbf16>
    %202 = vector.shape_cast %201 : vector<1x1x1x4x4xbf16> to vector<4x4xbf16>
    %cst_304 = arith.constant dense<0.000000e+00> : vector<256x4xf32>
    %203 = tpu.matmul %200, %202, %cst_304 {dimension_numbers = #tpu.dot_dimension_numbers<[1], [0], [0], [1], [0, 0, 1, 1], [], []>} : vector<256x4xbf16>, vector<4x4xbf16>, vector<256x4xf32> -> vector<256x4xf32>
    %204 = arith.addf %191, %203 : vector<256x4xf32>
    %c0_305 = arith.constant 0 : index
    %c2_306 = arith.constant 2 : index
    %c1_307 = arith.constant 1 : index
    %c0_308 = arith.constant 0 : index
    %c0_309 = arith.constant 0 : index
    %205 = vector.load %arg8[%c0_305, %c2_306, %c1_307, %c0_308, %c0_309] : memref<4x3x3x4x4xbf16, #tpu.memory_space<vmem>>, vector<1x1x1x4x4xbf16>
    %206 = vector.shape_cast %205 : vector<1x1x1x4x4xbf16> to vector<4x4xbf16>
    %cst_310 = arith.constant dense<0.000000e+00> : vector<256x4xf32>
    %207 = tpu.matmul %200, %206, %cst_310 {dimension_numbers = #tpu.dot_dimension_numbers<[1], [0], [0], [1], [0, 0, 1, 1], [], []>} : vector<256x4xbf16>, vector<4x4xbf16>, vector<256x4xf32> -> vector<256x4xf32>
    %208 = arith.addf %195, %207 : vector<256x4xf32>
    %c0_311 = arith.constant 0 : index
    %c2_312 = arith.constant 2 : index
    %c2_313 = arith.constant 2 : index
    %c0_314 = arith.constant 0 : index
    %c0_315 = arith.constant 0 : index
    %209 = vector.load %arg8[%c0_311, %c2_312, %c2_313, %c0_314, %c0_315] : memref<4x3x3x4x4xbf16, #tpu.memory_space<vmem>>, vector<1x1x1x4x4xbf16>
    %210 = vector.shape_cast %209 : vector<1x1x1x4x4xbf16> to vector<4x4xbf16>
    %cst_316 = arith.constant dense<0.000000e+00> : vector<256x4xf32>
    %211 = tpu.matmul %200, %210, %cst_316 {dimension_numbers = #tpu.dot_dimension_numbers<[1], [0], [0], [1], [0, 0, 1, 1], [], []>} : vector<256x4xbf16>, vector<4x4xbf16>, vector<256x4xf32> -> vector<256x4xf32>
    %212 = arith.addf %199, %211 : vector<256x4xf32>
    %c1_317 = arith.constant 1 : index
    %c0_318 = arith.constant 0 : index
    %c0_319 = arith.constant 0 : index
    %213 = vector.load %arg9[%c1_317, %c0_318, %c0_319] : memref<4x32x8xbf16, #tpu.memory_space<vmem>>, vector<1x32x8xbf16>
    %214 = vector.shape_cast %213 : vector<1x32x8xbf16> to vector<32x8xbf16>
    %c0_320 = arith.constant 0 : index
    %c1_321 = arith.constant 1 : index
    %c0_322 = arith.constant 0 : index
    %c0_323 = arith.constant 0 : index
    %215 = vector.load %arg14[%c0_320, %c1_321, %c0_322, %c0_323] : memref<10x4x8x4xbf16, #tpu.memory_space<vmem>>, vector<1x1x8x4xbf16>
    %216 = vector.shape_cast %215 : vector<1x1x8x4xbf16> to vector<8x4xbf16>
    %cst_324 = arith.constant dense<0.000000e+00> : vector<32x4xf32>
    %217 = tpu.matmul %214, %216, %cst_324 {dimension_numbers = #tpu.dot_dimension_numbers<[1], [0], [0], [1], [0, 0, 1, 1], [], []>} : vector<32x8xbf16>, vector<8x4xbf16>, vector<32x4xf32> -> vector<32x4xf32>
    %218 = arith.truncf %217 : vector<32x4xf32> to vector<32x4xbf16>
    %c0_325 = arith.constant 0 : index
    %c0_326 = arith.constant 0 : index
    %219 = vector.load %arg15[%c0_325, %c0_326] : memref<320x4xbf16, #tpu.memory_space<vmem>>, vector<32x4xbf16>
    tpu.vector_store %arg15[%c0_325, %c0_326], %218 {strides = array<i32>} : memref<320x4xbf16, #tpu.memory_space<vmem>>, vector<32x4xbf16>,
    %c1_327 = arith.constant 1 : index
    %c1_328 = arith.constant 1 : index
    %c0_329 = arith.constant 0 : index
    %c0_330 = arith.constant 0 : index
    %220 = vector.load %arg14[%c1_327, %c1_328, %c0_329, %c0_330] : memref<10x4x8x4xbf16, #tpu.memory_space<vmem>>, vector<1x1x8x4xbf16>
    %221 = vector.shape_cast %220 : vector<1x1x8x4xbf16> to vector<8x4xbf16>
    %cst_331 = arith.constant dense<0.000000e+00> : vector<32x4xf32>
    %222 = tpu.matmul %214, %221, %cst_331 {dimension_numbers = #tpu.dot_dimension_numbers<[1], [0], [0], [1], [0, 0, 1, 1], [], []>} : vector<32x8xbf16>, vector<8x4xbf16>, vector<32x4xf32> -> vector<32x4xf32>
    %223 = arith.truncf %222 : vector<32x4xf32> to vector<32x4xbf16>
    %c32_332 = arith.constant 32 : index
    %c0_333 = arith.constant 0 : index
    %224 = vector.load %arg15[%c32_332, %c0_333] : memref<320x4xbf16, #tpu.memory_space<vmem>>, vector<32x4xbf16>
    tpu.vector_store %arg15[%c32_332, %c0_333], %223 {strides = array<i32>} : memref<320x4xbf16, #tpu.memory_space<vmem>>, vector<32x4xbf16>,
    %c2_334 = arith.constant 2 : index
    %c1_335 = arith.constant 1 : index
    %c0_336 = arith.constant 0 : index
    %c0_337 = arith.constant 0 : index
    %225 = vector.load %arg14[%c2_334, %c1_335, %c0_336, %c0_337] : memref<10x4x8x4xbf16, #tpu.memory_space<vmem>>, vector<1x1x8x4xbf16>
    %226 = vector.shape_cast %225 : vector<1x1x8x4xbf16> to vector<8x4xbf16>
    %cst_338 = arith.constant dense<0.000000e+00> : vector<32x4xf32>
    %227 = tpu.matmul %214, %226, %cst_338 {dimension_numbers = #tpu.dot_dimension_numbers<[1], [0], [0], [1], [0, 0, 1, 1], [], []>} : vector<32x8xbf16>, vector<8x4xbf16>, vector<32x4xf32> -> vector<32x4xf32>
    %228 = arith.truncf %227 : vector<32x4xf32> to vector<32x4xbf16>
    %c64_339 = arith.constant 64 : index
    %c0_340 = arith.constant 0 : index
    %229 = vector.load %arg15[%c64_339, %c0_340] : memref<320x4xbf16, #tpu.memory_space<vmem>>, vector<32x4xbf16>
    tpu.vector_store %arg15[%c64_339, %c0_340], %228 {strides = array<i32>} : memref<320x4xbf16, #tpu.memory_space<vmem>>, vector<32x4xbf16>,
    %c3_341 = arith.constant 3 : index
    %c1_342 = arith.constant 1 : index
    %c0_343 = arith.constant 0 : index
    %c0_344 = arith.constant 0 : index
    %230 = vector.load %arg14[%c3_341, %c1_342, %c0_343, %c0_344] : memref<10x4x8x4xbf16, #tpu.memory_space<vmem>>, vector<1x1x8x4xbf16>
    %231 = vector.shape_cast %230 : vector<1x1x8x4xbf16> to vector<8x4xbf16>
    %cst_345 = arith.constant dense<0.000000e+00> : vector<32x4xf32>
    %232 = tpu.matmul %214, %231, %cst_345 {dimension_numbers = #tpu.dot_dimension_numbers<[1], [0], [0], [1], [0, 0, 1, 1], [], []>} : vector<32x8xbf16>, vector<8x4xbf16>, vector<32x4xf32> -> vector<32x4xf32>
    %233 = arith.truncf %232 : vector<32x4xf32> to vector<32x4xbf16>
    %c96_346 = arith.constant 96 : index
    %c0_347 = arith.constant 0 : index
    %234 = vector.load %arg15[%c96_346, %c0_347] : memref<320x4xbf16, #tpu.memory_space<vmem>>, vector<32x4xbf16>
    tpu.vector_store %arg15[%c96_346, %c0_347], %233 {strides = array<i32>} : memref<320x4xbf16, #tpu.memory_space<vmem>>, vector<32x4xbf16>,
    %c4_348 = arith.constant 4 : index
    %c1_349 = arith.constant 1 : index
    %c0_350 = arith.constant 0 : index
    %c0_351 = arith.constant 0 : index
    %235 = vector.load %arg14[%c4_348, %c1_349, %c0_350, %c0_351] : memref<10x4x8x4xbf16, #tpu.memory_space<vmem>>, vector<1x1x8x4xbf16>
    %236 = vector.shape_cast %235 : vector<1x1x8x4xbf16> to vector<8x4xbf16>
    %cst_352 = arith.constant dense<0.000000e+00> : vector<32x4xf32>
    %237 = tpu.matmul %214, %236, %cst_352 {dimension_numbers = #tpu.dot_dimension_numbers<[1], [0], [0], [1], [0, 0, 1, 1], [], []>} : vector<32x8xbf16>, vector<8x4xbf16>, vector<32x4xf32> -> vector<32x4xf32>
    %238 = arith.truncf %237 : vector<32x4xf32> to vector<32x4xbf16>
    %c128_353 = arith.constant 128 : index
    %c0_354 = arith.constant 0 : index
    %239 = vector.load %arg15[%c128_353, %c0_354] : memref<320x4xbf16, #tpu.memory_space<vmem>>, vector<32x4xbf16>
    tpu.vector_store %arg15[%c128_353, %c0_354], %238 {strides = array<i32>} : memref<320x4xbf16, #tpu.memory_space<vmem>>, vector<32x4xbf16>,
    %c5_355 = arith.constant 5 : index
    %c1_356 = arith.constant 1 : index
    %c0_357 = arith.constant 0 : index
    %c0_358 = arith.constant 0 : index
    %240 = vector.load %arg14[%c5_355, %c1_356, %c0_357, %c0_358] : memref<10x4x8x4xbf16, #tpu.memory_space<vmem>>, vector<1x1x8x4xbf16>
    %241 = vector.shape_cast %240 : vector<1x1x8x4xbf16> to vector<8x4xbf16>
    %cst_359 = arith.constant dense<0.000000e+00> : vector<32x4xf32>
    %242 = tpu.matmul %214, %241, %cst_359 {dimension_numbers = #tpu.dot_dimension_numbers<[1], [0], [0], [1], [0, 0, 1, 1], [], []>} : vector<32x8xbf16>, vector<8x4xbf16>, vector<32x4xf32> -> vector<32x4xf32>
    %243 = arith.truncf %242 : vector<32x4xf32> to vector<32x4xbf16>
    %c160_360 = arith.constant 160 : index
    %c0_361 = arith.constant 0 : index
    %244 = vector.load %arg15[%c160_360, %c0_361] : memref<320x4xbf16, #tpu.memory_space<vmem>>, vector<32x4xbf16>
    tpu.vector_store %arg15[%c160_360, %c0_361], %243 {strides = array<i32>} : memref<320x4xbf16, #tpu.memory_space<vmem>>, vector<32x4xbf16>,
    %c6_362 = arith.constant 6 : index
    %c1_363 = arith.constant 1 : index
    %c0_364 = arith.constant 0 : index
    %c0_365 = arith.constant 0 : index
    %245 = vector.load %arg14[%c6_362, %c1_363, %c0_364, %c0_365] : memref<10x4x8x4xbf16, #tpu.memory_space<vmem>>, vector<1x1x8x4xbf16>
    %246 = vector.shape_cast %245 : vector<1x1x8x4xbf16> to vector<8x4xbf16>
    %cst_366 = arith.constant dense<0.000000e+00> : vector<32x4xf32>
    %247 = tpu.matmul %214, %246, %cst_366 {dimension_numbers = #tpu.dot_dimension_numbers<[1], [0], [0], [1], [0, 0, 1, 1], [], []>} : vector<32x8xbf16>, vector<8x4xbf16>, vector<32x4xf32> -> vector<32x4xf32>
    %248 = arith.truncf %247 : vector<32x4xf32> to vector<32x4xbf16>
    %c192_367 = arith.constant 192 : index
    %c0_368 = arith.constant 0 : index
    %249 = vector.load %arg15[%c192_367, %c0_368] : memref<320x4xbf16, #tpu.memory_space<vmem>>, vector<32x4xbf16>
    tpu.vector_store %arg15[%c192_367, %c0_368], %248 {strides = array<i32>} : memref<320x4xbf16, #tpu.memory_space<vmem>>, vector<32x4xbf16>,
    %c7_369 = arith.constant 7 : index
    %c1_370 = arith.constant 1 : index
    %c0_371 = arith.constant 0 : index
    %c0_372 = arith.constant 0 : index
    %250 = vector.load %arg14[%c7_369, %c1_370, %c0_371, %c0_372] : memref<10x4x8x4xbf16, #tpu.memory_space<vmem>>, vector<1x1x8x4xbf16>
    %251 = vector.shape_cast %250 : vector<1x1x8x4xbf16> to vector<8x4xbf16>
    %cst_373 = arith.constant dense<0.000000e+00> : vector<32x4xf32>
    %252 = tpu.matmul %214, %251, %cst_373 {dimension_numbers = #tpu.dot_dimension_numbers<[1], [0], [0], [1], [0, 0, 1, 1], [], []>} : vector<32x8xbf16>, vector<8x4xbf16>, vector<32x4xf32> -> vector<32x4xf32>
    %253 = arith.truncf %252 : vector<32x4xf32> to vector<32x4xbf16>
    %c224_374 = arith.constant 224 : index
    %c0_375 = arith.constant 0 : index
    %254 = vector.load %arg15[%c224_374, %c0_375] : memref<320x4xbf16, #tpu.memory_space<vmem>>, vector<32x4xbf16>
    tpu.vector_store %arg15[%c224_374, %c0_375], %253 {strides = array<i32>} : memref<320x4xbf16, #tpu.memory_space<vmem>>, vector<32x4xbf16>,
    %c8_376 = arith.constant 8 : index
    %c1_377 = arith.constant 1 : index
    %c0_378 = arith.constant 0 : index
    %c0_379 = arith.constant 0 : index
    %255 = vector.load %arg14[%c8_376, %c1_377, %c0_378, %c0_379] : memref<10x4x8x4xbf16, #tpu.memory_space<vmem>>, vector<1x1x8x4xbf16>
    %256 = vector.shape_cast %255 : vector<1x1x8x4xbf16> to vector<8x4xbf16>
    %cst_380 = arith.constant dense<0.000000e+00> : vector<32x4xf32>
    %257 = tpu.matmul %214, %256, %cst_380 {dimension_numbers = #tpu.dot_dimension_numbers<[1], [0], [0], [1], [0, 0, 1, 1], [], []>} : vector<32x8xbf16>, vector<8x4xbf16>, vector<32x4xf32> -> vector<32x4xf32>
    %258 = arith.truncf %257 : vector<32x4xf32> to vector<32x4xbf16>
    %c256_381 = arith.constant 256 : index
    %c0_382 = arith.constant 0 : index
    %259 = vector.load %arg15[%c256_381, %c0_382] : memref<320x4xbf16, #tpu.memory_space<vmem>>, vector<32x4xbf16>
    tpu.vector_store %arg15[%c256_381, %c0_382], %258 {strides = array<i32>} : memref<320x4xbf16, #tpu.memory_space<vmem>>, vector<32x4xbf16>,
    %c9_383 = arith.constant 9 : index
    %c1_384 = arith.constant 1 : index
    %c0_385 = arith.constant 0 : index
    %c0_386 = arith.constant 0 : index
    %260 = vector.load %arg14[%c9_383, %c1_384, %c0_385, %c0_386] : memref<10x4x8x4xbf16, #tpu.memory_space<vmem>>, vector<1x1x8x4xbf16>
    %261 = vector.shape_cast %260 : vector<1x1x8x4xbf16> to vector<8x4xbf16>
    %cst_387 = arith.constant dense<0.000000e+00> : vector<32x4xf32>
    %262 = tpu.matmul %214, %261, %cst_387 {dimension_numbers = #tpu.dot_dimension_numbers<[1], [0], [0], [1], [0, 0, 1, 1], [], []>} : vector<32x8xbf16>, vector<8x4xbf16>, vector<32x4xf32> -> vector<32x4xf32>
    %263 = arith.truncf %262 : vector<32x4xf32> to vector<32x4xbf16>
    %c288_388 = arith.constant 288 : index
    %c0_389 = arith.constant 0 : index
    %264 = vector.load %arg15[%c288_388, %c0_389] : memref<320x4xbf16, #tpu.memory_space<vmem>>, vector<32x4xbf16>
    tpu.vector_store %arg15[%c288_388, %c0_389], %263 {strides = array<i32>} : memref<320x4xbf16, #tpu.memory_space<vmem>>, vector<32x4xbf16>,
    %c0_390 = arith.constant 0 : index
    %c0_391 = arith.constant 0 : index
    %265 = vector.load %arg15[%c0_390, %c0_391] : memref<320x4xbf16, #tpu.memory_space<vmem>>, vector<256x4xbf16>
    %c1_392 = arith.constant 1 : index
    %c0_393 = arith.constant 0 : index
    %c0_394 = arith.constant 0 : index
    %c0_395 = arith.constant 0 : index
    %c0_396 = arith.constant 0 : index
    %266 = vector.load %arg8[%c1_392, %c0_393, %c0_394, %c0_395, %c0_396] : memref<4x3x3x4x4xbf16, #tpu.memory_space<vmem>>, vector<1x1x1x4x4xbf16>
    %267 = vector.shape_cast %266 : vector<1x1x1x4x4xbf16> to vector<4x4xbf16>
    %cst_397 = arith.constant dense<0.000000e+00> : vector<256x4xf32>
    %268 = tpu.matmul %265, %267, %cst_397 {dimension_numbers = #tpu.dot_dimension_numbers<[1], [0], [0], [1], [0, 0, 1, 1], [], []>} : vector<256x4xbf16>, vector<4x4xbf16>, vector<256x4xf32> -> vector<256x4xf32>
    %269 = arith.addf %204, %268 : vector<256x4xf32>
    %c1_398 = arith.constant 1 : index
    %c0_399 = arith.constant 0 : index
    %c1_400 = arith.constant 1 : index
    %c0_401 = arith.constant 0 : index
    %c0_402 = arith.constant 0 : index
    %270 = vector.load %arg8[%c1_398, %c0_399, %c1_400, %c0_401, %c0_402] : memref<4x3x3x4x4xbf16, #tpu.memory_space<vmem>>, vector<1x1x1x4x4xbf16>
    %271 = vector.shape_cast %270 : vector<1x1x1x4x4xbf16> to vector<4x4xbf16>
    %cst_403 = arith.constant dense<0.000000e+00> : vector<256x4xf32>
    %272 = tpu.matmul %265, %271, %cst_403 {dimension_numbers = #tpu.dot_dimension_numbers<[1], [0], [0], [1], [0, 0, 1, 1], [], []>} : vector<256x4xbf16>, vector<4x4xbf16>, vector<256x4xf32> -> vector<256x4xf32>
    %273 = arith.addf %208, %272 : vector<256x4xf32>
    %c1_404 = arith.constant 1 : index
    %c0_405 = arith.constant 0 : index
    %c2_406 = arith.constant 2 : index
    %c0_407 = arith.constant 0 : index
    %c0_408 = arith.constant 0 : index
    %274 = vector.load %arg8[%c1_404, %c0_405, %c2_406, %c0_407, %c0_408] : memref<4x3x3x4x4xbf16, #tpu.memory_space<vmem>>, vector<1x1x1x4x4xbf16>
    %275 = vector.shape_cast %274 : vector<1x1x1x4x4xbf16> to vector<4x4xbf16>
    %cst_409 = arith.constant dense<0.000000e+00> : vector<256x4xf32>
    %276 = tpu.matmul %265, %275, %cst_409 {dimension_numbers = #tpu.dot_dimension_numbers<[1], [0], [0], [1], [0, 0, 1, 1], [], []>} : vector<256x4xbf16>, vector<4x4xbf16>, vector<256x4xf32> -> vector<256x4xf32>
    %277 = arith.addf %212, %276 : vector<256x4xf32>
    %c32_410 = arith.constant 32 : index
    %c0_411 = arith.constant 0 : index
    %278 = vector.load %arg15[%c32_410, %c0_411] : memref<320x4xbf16, #tpu.memory_space<vmem>>, vector<256x4xbf16>
    %c1_412 = arith.constant 1 : index
    %c1_413 = arith.constant 1 : index
    %c0_414 = arith.constant 0 : index
    %c0_415 = arith.constant 0 : index
    %c0_416 = arith.constant 0 : index
    %279 = vector.load %arg8[%c1_412, %c1_413, %c0_414, %c0_415, %c0_416] : memref<4x3x3x4x4xbf16, #tpu.memory_space<vmem>>, vector<1x1x1x4x4xbf16>
    %280 = vector.shape_cast %279 : vector<1x1x1x4x4xbf16> to vector<4x4xbf16>
    %cst_417 = arith.constant dense<0.000000e+00> : vector<256x4xf32>
    %281 = tpu.matmul %278, %280, %cst_417 {dimension_numbers = #tpu.dot_dimension_numbers<[1], [0], [0], [1], [0, 0, 1, 1], [], []>} : vector<256x4xbf16>, vector<4x4xbf16>, vector<256x4xf32> -> vector<256x4xf32>
    %282 = arith.addf %269, %281 : vector<256x4xf32>
    %c1_418 = arith.constant 1 : index
    %c1_419 = arith.constant 1 : index
    %c1_420 = arith.constant 1 : index
    %c0_421 = arith.constant 0 : index
    %c0_422 = arith.constant 0 : index
    %283 = vector.load %arg8[%c1_418, %c1_419, %c1_420, %c0_421, %c0_422] : memref<4x3x3x4x4xbf16, #tpu.memory_space<vmem>>, vector<1x1x1x4x4xbf16>
    %284 = vector.shape_cast %283 : vector<1x1x1x4x4xbf16> to vector<4x4xbf16>
    %cst_423 = arith.constant dense<0.000000e+00> : vector<256x4xf32>
    %285 = tpu.matmul %278, %284, %cst_423 {dimension_numbers = #tpu.dot_dimension_numbers<[1], [0], [0], [1], [0, 0, 1, 1], [], []>} : vector<256x4xbf16>, vector<4x4xbf16>, vector<256x4xf32> -> vector<256x4xf32>
    %286 = arith.addf %273, %285 : vector<256x4xf32>
    %c1_424 = arith.constant 1 : index
    %c1_425 = arith.constant 1 : index
    %c2_426 = arith.constant 2 : index
    %c0_427 = arith.constant 0 : index
    %c0_428 = arith.constant 0 : index
    %287 = vector.load %arg8[%c1_424, %c1_425, %c2_426, %c0_427, %c0_428] : memref<4x3x3x4x4xbf16, #tpu.memory_space<vmem>>, vector<1x1x1x4x4xbf16>
    %288 = vector.shape_cast %287 : vector<1x1x1x4x4xbf16> to vector<4x4xbf16>
    %cst_429 = arith.constant dense<0.000000e+00> : vector<256x4xf32>
    %289 = tpu.matmul %278, %288, %cst_429 {dimension_numbers = #tpu.dot_dimension_numbers<[1], [0], [0], [1], [0, 0, 1, 1], [], []>} : vector<256x4xbf16>, vector<4x4xbf16>, vector<256x4xf32> -> vector<256x4xf32>
    %290 = arith.addf %277, %289 : vector<256x4xf32>
    %c64_430 = arith.constant 64 : index
    %c0_431 = arith.constant 0 : index
    %291 = vector.load %arg15[%c64_430, %c0_431] : memref<320x4xbf16, #tpu.memory_space<vmem>>, vector<256x4xbf16>
    %c1_432 = arith.constant 1 : index
    %c2_433 = arith.constant 2 : index
    %c0_434 = arith.constant 0 : index
    %c0_435 = arith.constant 0 : index
    %c0_436 = arith.constant 0 : index
    %292 = vector.load %arg8[%c1_432, %c2_433, %c0_434, %c0_435, %c0_436] : memref<4x3x3x4x4xbf16, #tpu.memory_space<vmem>>, vector<1x1x1x4x4xbf16>
    %293 = vector.shape_cast %292 : vector<1x1x1x4x4xbf16> to vector<4x4xbf16>
    %cst_437 = arith.constant dense<0.000000e+00> : vector<256x4xf32>
    %294 = tpu.matmul %291, %293, %cst_437 {dimension_numbers = #tpu.dot_dimension_numbers<[1], [0], [0], [1], [0, 0, 1, 1], [], []>} : vector<256x4xbf16>, vector<4x4xbf16>, vector<256x4xf32> -> vector<256x4xf32>
    %295 = arith.addf %282, %294 : vector<256x4xf32>
    %c1_438 = arith.constant 1 : index
    %c2_439 = arith.constant 2 : index
    %c1_440 = arith.constant 1 : index
    %c0_441 = arith.constant 0 : index
    %c0_442 = arith.constant 0 : index
    %296 = vector.load %arg8[%c1_438, %c2_439, %c1_440, %c0_441, %c0_442] : memref<4x3x3x4x4xbf16, #tpu.memory_space<vmem>>, vector<1x1x1x4x4xbf16>
    %297 = vector.shape_cast %296 : vector<1x1x1x4x4xbf16> to vector<4x4xbf16>
    %cst_443 = arith.constant dense<0.000000e+00> : vector<256x4xf32>
    %298 = tpu.matmul %291, %297, %cst_443 {dimension_numbers = #tpu.dot_dimension_numbers<[1], [0], [0], [1], [0, 0, 1, 1], [], []>} : vector<256x4xbf16>, vector<4x4xbf16>, vector<256x4xf32> -> vector<256x4xf32>
    %299 = arith.addf %286, %298 : vector<256x4xf32>
    %c1_444 = arith.constant 1 : index
    %c2_445 = arith.constant 2 : index
    %c2_446 = arith.constant 2 : index
    %c0_447 = arith.constant 0 : index
    %c0_448 = arith.constant 0 : index
    %300 = vector.load %arg8[%c1_444, %c2_445, %c2_446, %c0_447, %c0_448] : memref<4x3x3x4x4xbf16, #tpu.memory_space<vmem>>, vector<1x1x1x4x4xbf16>
    %301 = vector.shape_cast %300 : vector<1x1x1x4x4xbf16> to vector<4x4xbf16>
    %cst_449 = arith.constant dense<0.000000e+00> : vector<256x4xf32>
    %302 = tpu.matmul %291, %301, %cst_449 {dimension_numbers = #tpu.dot_dimension_numbers<[1], [0], [0], [1], [0, 0, 1, 1], [], []>} : vector<256x4xbf16>, vector<4x4xbf16>, vector<256x4xf32> -> vector<256x4xf32>
    %303 = arith.addf %290, %302 : vector<256x4xf32>
    %c2_450 = arith.constant 2 : index
    %c0_451 = arith.constant 0 : index
    %c0_452 = arith.constant 0 : index
    %304 = vector.load %arg9[%c2_450, %c0_451, %c0_452] : memref<4x32x8xbf16, #tpu.memory_space<vmem>>, vector<1x32x8xbf16>
    %305 = vector.shape_cast %304 : vector<1x32x8xbf16> to vector<32x8xbf16>
    %c0_453 = arith.constant 0 : index
    %c2_454 = arith.constant 2 : index
    %c0_455 = arith.constant 0 : index
    %c0_456 = arith.constant 0 : index
    %306 = vector.load %arg14[%c0_453, %c2_454, %c0_455, %c0_456] : memref<10x4x8x4xbf16, #tpu.memory_space<vmem>>, vector<1x1x8x4xbf16>
    %307 = vector.shape_cast %306 : vector<1x1x8x4xbf16> to vector<8x4xbf16>
    %cst_457 = arith.constant dense<0.000000e+00> : vector<32x4xf32>
    %308 = tpu.matmul %305, %307, %cst_457 {dimension_numbers = #tpu.dot_dimension_numbers<[1], [0], [0], [1], [0, 0, 1, 1], [], []>} : vector<32x8xbf16>, vector<8x4xbf16>, vector<32x4xf32> -> vector<32x4xf32>
    %309 = arith.truncf %308 : vector<32x4xf32> to vector<32x4xbf16>
    %c0_458 = arith.constant 0 : index
    %c0_459 = arith.constant 0 : index
    %310 = vector.load %arg15[%c0_458, %c0_459] : memref<320x4xbf16, #tpu.memory_space<vmem>>, vector<32x4xbf16>
    tpu.vector_store %arg15[%c0_458, %c0_459], %309 {strides = array<i32>} : memref<320x4xbf16, #tpu.memory_space<vmem>>, vector<32x4xbf16>,
    %c1_460 = arith.constant 1 : index
    %c2_461 = arith.constant 2 : index
    %c0_462 = arith.constant 0 : index
    %c0_463 = arith.constant 0 : index
    %311 = vector.load %arg14[%c1_460, %c2_461, %c0_462, %c0_463] : memref<10x4x8x4xbf16, #tpu.memory_space<vmem>>, vector<1x1x8x4xbf16>
    %312 = vector.shape_cast %311 : vector<1x1x8x4xbf16> to vector<8x4xbf16>
    %cst_464 = arith.constant dense<0.000000e+00> : vector<32x4xf32>
    %313 = tpu.matmul %305, %312, %cst_464 {dimension_numbers = #tpu.dot_dimension_numbers<[1], [0], [0], [1], [0, 0, 1, 1], [], []>} : vector<32x8xbf16>, vector<8x4xbf16>, vector<32x4xf32> -> vector<32x4xf32>
    %314 = arith.truncf %313 : vector<32x4xf32> to vector<32x4xbf16>
    %c32_465 = arith.constant 32 : index
    %c0_466 = arith.constant 0 : index
    %315 = vector.load %arg15[%c32_465, %c0_466] : memref<320x4xbf16, #tpu.memory_space<vmem>>, vector<32x4xbf16>
    tpu.vector_store %arg15[%c32_465, %c0_466], %314 {strides = array<i32>} : memref<320x4xbf16, #tpu.memory_space<vmem>>, vector<32x4xbf16>,
    %c2_467 = arith.constant 2 : index
    %c2_468 = arith.constant 2 : index
    %c0_469 = arith.constant 0 : index
    %c0_470 = arith.constant 0 : index
    %316 = vector.load %arg14[%c2_467, %c2_468, %c0_469, %c0_470] : memref<10x4x8x4xbf16, #tpu.memory_space<vmem>>, vector<1x1x8x4xbf16>
    %317 = vector.shape_cast %316 : vector<1x1x8x4xbf16> to vector<8x4xbf16>
    %cst_471 = arith.constant dense<0.000000e+00> : vector<32x4xf32>
    %318 = tpu.matmul %305, %317, %cst_471 {dimension_numbers = #tpu.dot_dimension_numbers<[1], [0], [0], [1], [0, 0, 1, 1], [], []>} : vector<32x8xbf16>, vector<8x4xbf16>, vector<32x4xf32> -> vector<32x4xf32>
    %319 = arith.truncf %318 : vector<32x4xf32> to vector<32x4xbf16>
    %c64_472 = arith.constant 64 : index
    %c0_473 = arith.constant 0 : index
    %320 = vector.load %arg15[%c64_472, %c0_473] : memref<320x4xbf16, #tpu.memory_space<vmem>>, vector<32x4xbf16>
    tpu.vector_store %arg15[%c64_472, %c0_473], %319 {strides = array<i32>} : memref<320x4xbf16, #tpu.memory_space<vmem>>, vector<32x4xbf16>,
    %c3_474 = arith.constant 3 : index
    %c2_475 = arith.constant 2 : index
    %c0_476 = arith.constant 0 : index
    %c0_477 = arith.constant 0 : index
    %321 = vector.load %arg14[%c3_474, %c2_475, %c0_476, %c0_477] : memref<10x4x8x4xbf16, #tpu.memory_space<vmem>>, vector<1x1x8x4xbf16>
    %322 = vector.shape_cast %321 : vector<1x1x8x4xbf16> to vector<8x4xbf16>
    %cst_478 = arith.constant dense<0.000000e+00> : vector<32x4xf32>
    %323 = tpu.matmul %305, %322, %cst_478 {dimension_numbers = #tpu.dot_dimension_numbers<[1], [0], [0], [1], [0, 0, 1, 1], [], []>} : vector<32x8xbf16>, vector<8x4xbf16>, vector<32x4xf32> -> vector<32x4xf32>
    %324 = arith.truncf %323 : vector<32x4xf32> to vector<32x4xbf16>
    %c96_479 = arith.constant 96 : index
    %c0_480 = arith.constant 0 : index
    %325 = vector.load %arg15[%c96_479, %c0_480] : memref<320x4xbf16, #tpu.memory_space<vmem>>, vector<32x4xbf16>
    tpu.vector_store %arg15[%c96_479, %c0_480], %324 {strides = array<i32>} : memref<320x4xbf16, #tpu.memory_space<vmem>>, vector<32x4xbf16>,
    %c4_481 = arith.constant 4 : index
    %c2_482 = arith.constant 2 : index
    %c0_483 = arith.constant 0 : index
    %c0_484 = arith.constant 0 : index
    %326 = vector.load %arg14[%c4_481, %c2_482, %c0_483, %c0_484] : memref<10x4x8x4xbf16, #tpu.memory_space<vmem>>, vector<1x1x8x4xbf16>
    %327 = vector.shape_cast %326 : vector<1x1x8x4xbf16> to vector<8x4xbf16>
    %cst_485 = arith.constant dense<0.000000e+00> : vector<32x4xf32>
    %328 = tpu.matmul %305, %327, %cst_485 {dimension_numbers = #tpu.dot_dimension_numbers<[1], [0], [0], [1], [0, 0, 1, 1], [], []>} : vector<32x8xbf16>, vector<8x4xbf16>, vector<32x4xf32> -> vector<32x4xf32>
    %329 = arith.truncf %328 : vector<32x4xf32> to vector<32x4xbf16>
    %c128_486 = arith.constant 128 : index
    %c0_487 = arith.constant 0 : index
    %330 = vector.load %arg15[%c128_486, %c0_487] : memref<320x4xbf16, #tpu.memory_space<vmem>>, vector<32x4xbf16>
    tpu.vector_store %arg15[%c128_486, %c0_487], %329 {strides = array<i32>} : memref<320x4xbf16, #tpu.memory_space<vmem>>, vector<32x4xbf16>,
    %c5_488 = arith.constant 5 : index
    %c2_489 = arith.constant 2 : index
    %c0_490 = arith.constant 0 : index
    %c0_491 = arith.constant 0 : index
    %331 = vector.load %arg14[%c5_488, %c2_489, %c0_490, %c0_491] : memref<10x4x8x4xbf16, #tpu.memory_space<vmem>>, vector<1x1x8x4xbf16>
    %332 = vector.shape_cast %331 : vector<1x1x8x4xbf16> to vector<8x4xbf16>
    %cst_492 = arith.constant dense<0.000000e+00> : vector<32x4xf32>
    %333 = tpu.matmul %305, %332, %cst_492 {dimension_numbers = #tpu.dot_dimension_numbers<[1], [0], [0], [1], [0, 0, 1, 1], [], []>} : vector<32x8xbf16>, vector<8x4xbf16>, vector<32x4xf32> -> vector<32x4xf32>
    %334 = arith.truncf %333 : vector<32x4xf32> to vector<32x4xbf16>
    %c160_493 = arith.constant 160 : index
    %c0_494 = arith.constant 0 : index
    %335 = vector.load %arg15[%c160_493, %c0_494] : memref<320x4xbf16, #tpu.memory_space<vmem>>, vector<32x4xbf16>
    tpu.vector_store %arg15[%c160_493, %c0_494], %334 {strides = array<i32>} : memref<320x4xbf16, #tpu.memory_space<vmem>>, vector<32x4xbf16>,
    %c6_495 = arith.constant 6 : index
    %c2_496 = arith.constant 2 : index
    %c0_497 = arith.constant 0 : index
    %c0_498 = arith.constant 0 : index
    %336 = vector.load %arg14[%c6_495, %c2_496, %c0_497, %c0_498] : memref<10x4x8x4xbf16, #tpu.memory_space<vmem>>, vector<1x1x8x4xbf16>
    %337 = vector.shape_cast %336 : vector<1x1x8x4xbf16> to vector<8x4xbf16>
    %cst_499 = arith.constant dense<0.000000e+00> : vector<32x4xf32>
    %338 = tpu.matmul %305, %337, %cst_499 {dimension_numbers = #tpu.dot_dimension_numbers<[1], [0], [0], [1], [0, 0, 1, 1], [], []>} : vector<32x8xbf16>, vector<8x4xbf16>, vector<32x4xf32> -> vector<32x4xf32>
    %339 = arith.truncf %338 : vector<32x4xf32> to vector<32x4xbf16>
    %c192_500 = arith.constant 192 : index
    %c0_501 = arith.constant 0 : index
    %340 = vector.load %arg15[%c192_500, %c0_501] : memref<320x4xbf16, #tpu.memory_space<vmem>>, vector<32x4xbf16>
    tpu.vector_store %arg15[%c192_500, %c0_501], %339 {strides = array<i32>} : memref<320x4xbf16, #tpu.memory_space<vmem>>, vector<32x4xbf16>,
    %c7_502 = arith.constant 7 : index
    %c2_503 = arith.constant 2 : index
    %c0_504 = arith.constant 0 : index
    %c0_505 = arith.constant 0 : index
    %341 = vector.load %arg14[%c7_502, %c2_503, %c0_504, %c0_505] : memref<10x4x8x4xbf16, #tpu.memory_space<vmem>>, vector<1x1x8x4xbf16>
    %342 = vector.shape_cast %341 : vector<1x1x8x4xbf16> to vector<8x4xbf16>
    %cst_506 = arith.constant dense<0.000000e+00> : vector<32x4xf32>
    %343 = tpu.matmul %305, %342, %cst_506 {dimension_numbers = #tpu.dot_dimension_numbers<[1], [0], [0], [1], [0, 0, 1, 1], [], []>} : vector<32x8xbf16>, vector<8x4xbf16>, vector<32x4xf32> -> vector<32x4xf32>
    %344 = arith.truncf %343 : vector<32x4xf32> to vector<32x4xbf16>
    %c224_507 = arith.constant 224 : index
    %c0_508 = arith.constant 0 : index
    %345 = vector.load %arg15[%c224_507, %c0_508] : memref<320x4xbf16, #tpu.memory_space<vmem>>, vector<32x4xbf16>
    tpu.vector_store %arg15[%c224_507, %c0_508], %344 {strides = array<i32>} : memref<320x4xbf16, #tpu.memory_space<vmem>>, vector<32x4xbf16>,
    %c8_509 = arith.constant 8 : index
    %c2_510 = arith.constant 2 : index
    %c0_511 = arith.constant 0 : index
    %c0_512 = arith.constant 0 : index
    %346 = vector.load %arg14[%c8_509, %c2_510, %c0_511, %c0_512] : memref<10x4x8x4xbf16, #tpu.memory_space<vmem>>, vector<1x1x8x4xbf16>
    %347 = vector.shape_cast %346 : vector<1x1x8x4xbf16> to vector<8x4xbf16>
    %cst_513 = arith.constant dense<0.000000e+00> : vector<32x4xf32>
    %348 = tpu.matmul %305, %347, %cst_513 {dimension_numbers = #tpu.dot_dimension_numbers<[1], [0], [0], [1], [0, 0, 1, 1], [], []>} : vector<32x8xbf16>, vector<8x4xbf16>, vector<32x4xf32> -> vector<32x4xf32>
    %349 = arith.truncf %348 : vector<32x4xf32> to vector<32x4xbf16>
    %c256_514 = arith.constant 256 : index
    %c0_515 = arith.constant 0 : index
    %350 = vector.load %arg15[%c256_514, %c0_515] : memref<320x4xbf16, #tpu.memory_space<vmem>>, vector<32x4xbf16>
    tpu.vector_store %arg15[%c256_514, %c0_515], %349 {strides = array<i32>} : memref<320x4xbf16, #tpu.memory_space<vmem>>, vector<32x4xbf16>,
    %c9_516 = arith.constant 9 : index
    %c2_517 = arith.constant 2 : index
    %c0_518 = arith.constant 0 : index
    %c0_519 = arith.constant 0 : index
    %351 = vector.load %arg14[%c9_516, %c2_517, %c0_518, %c0_519] : memref<10x4x8x4xbf16, #tpu.memory_space<vmem>>, vector<1x1x8x4xbf16>
    %352 = vector.shape_cast %351 : vector<1x1x8x4xbf16> to vector<8x4xbf16>
    %cst_520 = arith.constant dense<0.000000e+00> : vector<32x4xf32>
    %353 = tpu.matmul %305, %352, %cst_520 {dimension_numbers = #tpu.dot_dimension_numbers<[1], [0], [0], [1], [0, 0, 1, 1], [], []>} : vector<32x8xbf16>, vector<8x4xbf16>, vector<32x4xf32> -> vector<32x4xf32>
    %354 = arith.truncf %353 : vector<32x4xf32> to vector<32x4xbf16>
    %c288_521 = arith.constant 288 : index
    %c0_522 = arith.constant 0 : index
    %355 = vector.load %arg15[%c288_521, %c0_522] : memref<320x4xbf16, #tpu.memory_space<vmem>>, vector<32x4xbf16>
    tpu.vector_store %arg15[%c288_521, %c0_522], %354 {strides = array<i32>} : memref<320x4xbf16, #tpu.memory_space<vmem>>, vector<32x4xbf16>,
    %c0_523 = arith.constant 0 : index
    %c0_524 = arith.constant 0 : index
    %356 = vector.load %arg15[%c0_523, %c0_524] : memref<320x4xbf16, #tpu.memory_space<vmem>>, vector<256x4xbf16>
    %c2_525 = arith.constant 2 : index
    %c0_526 = arith.constant 0 : index
    %c0_527 = arith.constant 0 : index
    %c0_528 = arith.constant 0 : index
    %c0_529 = arith.constant 0 : index
    %357 = vector.load %arg8[%c2_525, %c0_526, %c0_527, %c0_528, %c0_529] : memref<4x3x3x4x4xbf16, #tpu.memory_space<vmem>>, vector<1x1x1x4x4xbf16>
    %358 = vector.shape_cast %357 : vector<1x1x1x4x4xbf16> to vector<4x4xbf16>
    %cst_530 = arith.constant dense<0.000000e+00> : vector<256x4xf32>
    %359 = tpu.matmul %356, %358, %cst_530 {dimension_numbers = #tpu.dot_dimension_numbers<[1], [0], [0], [1], [0, 0, 1, 1], [], []>} : vector<256x4xbf16>, vector<4x4xbf16>, vector<256x4xf32> -> vector<256x4xf32>
    %360 = arith.addf %295, %359 : vector<256x4xf32>
    %c2_531 = arith.constant 2 : index
    %c0_532 = arith.constant 0 : index
    %c1_533 = arith.constant 1 : index
    %c0_534 = arith.constant 0 : index
    %c0_535 = arith.constant 0 : index
    %361 = vector.load %arg8[%c2_531, %c0_532, %c1_533, %c0_534, %c0_535] : memref<4x3x3x4x4xbf16, #tpu.memory_space<vmem>>, vector<1x1x1x4x4xbf16>
    %362 = vector.shape_cast %361 : vector<1x1x1x4x4xbf16> to vector<4x4xbf16>
    %cst_536 = arith.constant dense<0.000000e+00> : vector<256x4xf32>
    %363 = tpu.matmul %356, %362, %cst_536 {dimension_numbers = #tpu.dot_dimension_numbers<[1], [0], [0], [1], [0, 0, 1, 1], [], []>} : vector<256x4xbf16>, vector<4x4xbf16>, vector<256x4xf32> -> vector<256x4xf32>
    %364 = arith.addf %299, %363 : vector<256x4xf32>
    %c2_537 = arith.constant 2 : index
    %c0_538 = arith.constant 0 : index
    %c2_539 = arith.constant 2 : index
    %c0_540 = arith.constant 0 : index
    %c0_541 = arith.constant 0 : index
    %365 = vector.load %arg8[%c2_537, %c0_538, %c2_539, %c0_540, %c0_541] : memref<4x3x3x4x4xbf16, #tpu.memory_space<vmem>>, vector<1x1x1x4x4xbf16>
    %366 = vector.shape_cast %365 : vector<1x1x1x4x4xbf16> to vector<4x4xbf16>
    %cst_542 = arith.constant dense<0.000000e+00> : vector<256x4xf32>
    %367 = tpu.matmul %356, %366, %cst_542 {dimension_numbers = #tpu.dot_dimension_numbers<[1], [0], [0], [1], [0, 0, 1, 1], [], []>} : vector<256x4xbf16>, vector<4x4xbf16>, vector<256x4xf32> -> vector<256x4xf32>
    %368 = arith.addf %303, %367 : vector<256x4xf32>
    %c32_543 = arith.constant 32 : index
    %c0_544 = arith.constant 0 : index
    %369 = vector.load %arg15[%c32_543, %c0_544] : memref<320x4xbf16, #tpu.memory_space<vmem>>, vector<256x4xbf16>
    %c2_545 = arith.constant 2 : index
    %c1_546 = arith.constant 1 : index
    %c0_547 = arith.constant 0 : index
    %c0_548 = arith.constant 0 : index
    %c0_549 = arith.constant 0 : index
    %370 = vector.load %arg8[%c2_545, %c1_546, %c0_547, %c0_548, %c0_549] : memref<4x3x3x4x4xbf16, #tpu.memory_space<vmem>>, vector<1x1x1x4x4xbf16>
    %371 = vector.shape_cast %370 : vector<1x1x1x4x4xbf16> to vector<4x4xbf16>
    %cst_550 = arith.constant dense<0.000000e+00> : vector<256x4xf32>
    %372 = tpu.matmul %369, %371, %cst_550 {dimension_numbers = #tpu.dot_dimension_numbers<[1], [0], [0], [1], [0, 0, 1, 1], [], []>} : vector<256x4xbf16>, vector<4x4xbf16>, vector<256x4xf32> -> vector<256x4xf32>
    %373 = arith.addf %360, %372 : vector<256x4xf32>
    %c2_551 = arith.constant 2 : index
    %c1_552 = arith.constant 1 : index
    %c1_553 = arith.constant 1 : index
    %c0_554 = arith.constant 0 : index
    %c0_555 = arith.constant 0 : index
    %374 = vector.load %arg8[%c2_551, %c1_552, %c1_553, %c0_554, %c0_555] : memref<4x3x3x4x4xbf16, #tpu.memory_space<vmem>>, vector<1x1x1x4x4xbf16>
    %375 = vector.shape_cast %374 : vector<1x1x1x4x4xbf16> to vector<4x4xbf16>
    %cst_556 = arith.constant dense<0.000000e+00> : vector<256x4xf32>
    %376 = tpu.matmul %369, %375, %cst_556 {dimension_numbers = #tpu.dot_dimension_numbers<[1], [0], [0], [1], [0, 0, 1, 1], [], []>} : vector<256x4xbf16>, vector<4x4xbf16>, vector<256x4xf32> -> vector<256x4xf32>
    %377 = arith.addf %364, %376 : vector<256x4xf32>
    %c2_557 = arith.constant 2 : index
    %c1_558 = arith.constant 1 : index
    %c2_559 = arith.constant 2 : index
    %c0_560 = arith.constant 0 : index
    %c0_561 = arith.constant 0 : index
    %378 = vector.load %arg8[%c2_557, %c1_558, %c2_559, %c0_560, %c0_561] : memref<4x3x3x4x4xbf16, #tpu.memory_space<vmem>>, vector<1x1x1x4x4xbf16>
    %379 = vector.shape_cast %378 : vector<1x1x1x4x4xbf16> to vector<4x4xbf16>
    %cst_562 = arith.constant dense<0.000000e+00> : vector<256x4xf32>
    %380 = tpu.matmul %369, %379, %cst_562 {dimension_numbers = #tpu.dot_dimension_numbers<[1], [0], [0], [1], [0, 0, 1, 1], [], []>} : vector<256x4xbf16>, vector<4x4xbf16>, vector<256x4xf32> -> vector<256x4xf32>
    %381 = arith.addf %368, %380 : vector<256x4xf32>
    %c64_563 = arith.constant 64 : index
    %c0_564 = arith.constant 0 : index
    %382 = vector.load %arg15[%c64_563, %c0_564] : memref<320x4xbf16, #tpu.memory_space<vmem>>, vector<256x4xbf16>
    %c2_565 = arith.constant 2 : index
    %c2_566 = arith.constant 2 : index
    %c0_567 = arith.constant 0 : index
    %c0_568 = arith.constant 0 : index
    %c0_569 = arith.constant 0 : index
    %383 = vector.load %arg8[%c2_565, %c2_566, %c0_567, %c0_568, %c0_569] : memref<4x3x3x4x4xbf16, #tpu.memory_space<vmem>>, vector<1x1x1x4x4xbf16>
    %384 = vector.shape_cast %383 : vector<1x1x1x4x4xbf16> to vector<4x4xbf16>
    %cst_570 = arith.constant dense<0.000000e+00> : vector<256x4xf32>
    %385 = tpu.matmul %382, %384, %cst_570 {dimension_numbers = #tpu.dot_dimension_numbers<[1], [0], [0], [1], [0, 0, 1, 1], [], []>} : vector<256x4xbf16>, vector<4x4xbf16>, vector<256x4xf32> -> vector<256x4xf32>
    %386 = arith.addf %373, %385 : vector<256x4xf32>
    %c2_571 = arith.constant 2 : index
    %c2_572 = arith.constant 2 : index
    %c1_573 = arith.constant 1 : index
    %c0_574 = arith.constant 0 : index
    %c0_575 = arith.constant 0 : index
    %387 = vector.load %arg8[%c2_571, %c2_572, %c1_573, %c0_574, %c0_575] : memref<4x3x3x4x4xbf16, #tpu.memory_space<vmem>>, vector<1x1x1x4x4xbf16>
    %388 = vector.shape_cast %387 : vector<1x1x1x4x4xbf16> to vector<4x4xbf16>
    %cst_576 = arith.constant dense<0.000000e+00> : vector<256x4xf32>
    %389 = tpu.matmul %382, %388, %cst_576 {dimension_numbers = #tpu.dot_dimension_numbers<[1], [0], [0], [1], [0, 0, 1, 1], [], []>} : vector<256x4xbf16>, vector<4x4xbf16>, vector<256x4xf32> -> vector<256x4xf32>
    %390 = arith.addf %377, %389 : vector<256x4xf32>
    %c2_577 = arith.constant 2 : index
    %c2_578 = arith.constant 2 : index
    %c2_579 = arith.constant 2 : index
    %c0_580 = arith.constant 0 : index
    %c0_581 = arith.constant 0 : index
    %391 = vector.load %arg8[%c2_577, %c2_578, %c2_579, %c0_580, %c0_581] : memref<4x3x3x4x4xbf16, #tpu.memory_space<vmem>>, vector<1x1x1x4x4xbf16>
    %392 = vector.shape_cast %391 : vector<1x1x1x4x4xbf16> to vector<4x4xbf16>
    %cst_582 = arith.constant dense<0.000000e+00> : vector<256x4xf32>
    %393 = tpu.matmul %382, %392, %cst_582 {dimension_numbers = #tpu.dot_dimension_numbers<[1], [0], [0], [1], [0, 0, 1, 1], [], []>} : vector<256x4xbf16>, vector<4x4xbf16>, vector<256x4xf32> -> vector<256x4xf32>
    %394 = arith.addf %381, %393 : vector<256x4xf32>
    %c3_583 = arith.constant 3 : index
    %c0_584 = arith.constant 0 : index
    %c0_585 = arith.constant 0 : index
    %395 = vector.load %arg9[%c3_583, %c0_584, %c0_585] : memref<4x32x8xbf16, #tpu.memory_space<vmem>>, vector<1x32x8xbf16>
    %396 = vector.shape_cast %395 : vector<1x32x8xbf16> to vector<32x8xbf16>
    %c0_586 = arith.constant 0 : index
    %c3_587 = arith.constant 3 : index
    %c0_588 = arith.constant 0 : index
    %c0_589 = arith.constant 0 : index
    %397 = vector.load %arg14[%c0_586, %c3_587, %c0_588, %c0_589] : memref<10x4x8x4xbf16, #tpu.memory_space<vmem>>, vector<1x1x8x4xbf16>
    %398 = vector.shape_cast %397 : vector<1x1x8x4xbf16> to vector<8x4xbf16>
    %cst_590 = arith.constant dense<0.000000e+00> : vector<32x4xf32>
    %399 = tpu.matmul %396, %398, %cst_590 {dimension_numbers = #tpu.dot_dimension_numbers<[1], [0], [0], [1], [0, 0, 1, 1], [], []>} : vector<32x8xbf16>, vector<8x4xbf16>, vector<32x4xf32> -> vector<32x4xf32>
    %400 = arith.truncf %399 : vector<32x4xf32> to vector<32x4xbf16>
    %c0_591 = arith.constant 0 : index
    %c0_592 = arith.constant 0 : index
    %401 = vector.load %arg15[%c0_591, %c0_592] : memref<320x4xbf16, #tpu.memory_space<vmem>>, vector<32x4xbf16>
    tpu.vector_store %arg15[%c0_591, %c0_592], %400 {strides = array<i32>} : memref<320x4xbf16, #tpu.memory_space<vmem>>, vector<32x4xbf16>,
    %c1_593 = arith.constant 1 : index
    %c3_594 = arith.constant 3 : index
    %c0_595 = arith.constant 0 : index
    %c0_596 = arith.constant 0 : index
    %402 = vector.load %arg14[%c1_593, %c3_594, %c0_595, %c0_596] : memref<10x4x8x4xbf16, #tpu.memory_space<vmem>>, vector<1x1x8x4xbf16>
    %403 = vector.shape_cast %402 : vector<1x1x8x4xbf16> to vector<8x4xbf16>
    %cst_597 = arith.constant dense<0.000000e+00> : vector<32x4xf32>
    %404 = tpu.matmul %396, %403, %cst_597 {dimension_numbers = #tpu.dot_dimension_numbers<[1], [0], [0], [1], [0, 0, 1, 1], [], []>} : vector<32x8xbf16>, vector<8x4xbf16>, vector<32x4xf32> -> vector<32x4xf32>
    %405 = arith.truncf %404 : vector<32x4xf32> to vector<32x4xbf16>
    %c32_598 = arith.constant 32 : index
    %c0_599 = arith.constant 0 : index
    %406 = vector.load %arg15[%c32_598, %c0_599] : memref<320x4xbf16, #tpu.memory_space<vmem>>, vector<32x4xbf16>
    tpu.vector_store %arg15[%c32_598, %c0_599], %405 {strides = array<i32>} : memref<320x4xbf16, #tpu.memory_space<vmem>>, vector<32x4xbf16>,
    %c2_600 = arith.constant 2 : index
    %c3_601 = arith.constant 3 : index
    %c0_602 = arith.constant 0 : index
    %c0_603 = arith.constant 0 : index
    %407 = vector.load %arg14[%c2_600, %c3_601, %c0_602, %c0_603] : memref<10x4x8x4xbf16, #tpu.memory_space<vmem>>, vector<1x1x8x4xbf16>
    %408 = vector.shape_cast %407 : vector<1x1x8x4xbf16> to vector<8x4xbf16>
    %cst_604 = arith.constant dense<0.000000e+00> : vector<32x4xf32>
    %409 = tpu.matmul %396, %408, %cst_604 {dimension_numbers = #tpu.dot_dimension_numbers<[1], [0], [0], [1], [0, 0, 1, 1], [], []>} : vector<32x8xbf16>, vector<8x4xbf16>, vector<32x4xf32> -> vector<32x4xf32>
    %410 = arith.truncf %409 : vector<32x4xf32> to vector<32x4xbf16>
    %c64_605 = arith.constant 64 : index
    %c0_606 = arith.constant 0 : index
    %411 = vector.load %arg15[%c64_605, %c0_606] : memref<320x4xbf16, #tpu.memory_space<vmem>>, vector<32x4xbf16>
    tpu.vector_store %arg15[%c64_605, %c0_606], %410 {strides = array<i32>} : memref<320x4xbf16, #tpu.memory_space<vmem>>, vector<32x4xbf16>,
    %c3_607 = arith.constant 3 : index
    %c3_608 = arith.constant 3 : index
    %c0_609 = arith.constant 0 : index
    %c0_610 = arith.constant 0 : index
    %412 = vector.load %arg14[%c3_607, %c3_608, %c0_609, %c0_610] : memref<10x4x8x4xbf16, #tpu.memory_space<vmem>>, vector<1x1x8x4xbf16>
    %413 = vector.shape_cast %412 : vector<1x1x8x4xbf16> to vector<8x4xbf16>
    %cst_611 = arith.constant dense<0.000000e+00> : vector<32x4xf32>
    %414 = tpu.matmul %396, %413, %cst_611 {dimension_numbers = #tpu.dot_dimension_numbers<[1], [0], [0], [1], [0, 0, 1, 1], [], []>} : vector<32x8xbf16>, vector<8x4xbf16>, vector<32x4xf32> -> vector<32x4xf32>
    %415 = arith.truncf %414 : vector<32x4xf32> to vector<32x4xbf16>
    %c96_612 = arith.constant 96 : index
    %c0_613 = arith.constant 0 : index
    %416 = vector.load %arg15[%c96_612, %c0_613] : memref<320x4xbf16, #tpu.memory_space<vmem>>, vector<32x4xbf16>
    tpu.vector_store %arg15[%c96_612, %c0_613], %415 {strides = array<i32>} : memref<320x4xbf16, #tpu.memory_space<vmem>>, vector<32x4xbf16>,
    %c4_614 = arith.constant 4 : index
    %c3_615 = arith.constant 3 : index
    %c0_616 = arith.constant 0 : index
    %c0_617 = arith.constant 0 : index
    %417 = vector.load %arg14[%c4_614, %c3_615, %c0_616, %c0_617] : memref<10x4x8x4xbf16, #tpu.memory_space<vmem>>, vector<1x1x8x4xbf16>
    %418 = vector.shape_cast %417 : vector<1x1x8x4xbf16> to vector<8x4xbf16>
    %cst_618 = arith.constant dense<0.000000e+00> : vector<32x4xf32>
    %419 = tpu.matmul %396, %418, %cst_618 {dimension_numbers = #tpu.dot_dimension_numbers<[1], [0], [0], [1], [0, 0, 1, 1], [], []>} : vector<32x8xbf16>, vector<8x4xbf16>, vector<32x4xf32> -> vector<32x4xf32>
    %420 = arith.truncf %419 : vector<32x4xf32> to vector<32x4xbf16>
    %c128_619 = arith.constant 128 : index
    %c0_620 = arith.constant 0 : index
    %421 = vector.load %arg15[%c128_619, %c0_620] : memref<320x4xbf16, #tpu.memory_space<vmem>>, vector<32x4xbf16>
    tpu.vector_store %arg15[%c128_619, %c0_620], %420 {strides = array<i32>} : memref<320x4xbf16, #tpu.memory_space<vmem>>, vector<32x4xbf16>,
    %c5_621 = arith.constant 5 : index
    %c3_622 = arith.constant 3 : index
    %c0_623 = arith.constant 0 : index
    %c0_624 = arith.constant 0 : index
    %422 = vector.load %arg14[%c5_621, %c3_622, %c0_623, %c0_624] : memref<10x4x8x4xbf16, #tpu.memory_space<vmem>>, vector<1x1x8x4xbf16>
    %423 = vector.shape_cast %422 : vector<1x1x8x4xbf16> to vector<8x4xbf16>
    %cst_625 = arith.constant dense<0.000000e+00> : vector<32x4xf32>
    %424 = tpu.matmul %396, %423, %cst_625 {dimension_numbers = #tpu.dot_dimension_numbers<[1], [0], [0], [1], [0, 0, 1, 1], [], []>} : vector<32x8xbf16>, vector<8x4xbf16>, vector<32x4xf32> -> vector<32x4xf32>
    %425 = arith.truncf %424 : vector<32x4xf32> to vector<32x4xbf16>
    %c160_626 = arith.constant 160 : index
    %c0_627 = arith.constant 0 : index
    %426 = vector.load %arg15[%c160_626, %c0_627] : memref<320x4xbf16, #tpu.memory_space<vmem>>, vector<32x4xbf16>
    tpu.vector_store %arg15[%c160_626, %c0_627], %425 {strides = array<i32>} : memref<320x4xbf16, #tpu.memory_space<vmem>>, vector<32x4xbf16>,
    %c6_628 = arith.constant 6 : index
    %c3_629 = arith.constant 3 : index
    %c0_630 = arith.constant 0 : index
    %c0_631 = arith.constant 0 : index
    %427 = vector.load %arg14[%c6_628, %c3_629, %c0_630, %c0_631] : memref<10x4x8x4xbf16, #tpu.memory_space<vmem>>, vector<1x1x8x4xbf16>
    %428 = vector.shape_cast %427 : vector<1x1x8x4xbf16> to vector<8x4xbf16>
    %cst_632 = arith.constant dense<0.000000e+00> : vector<32x4xf32>
    %429 = tpu.matmul %396, %428, %cst_632 {dimension_numbers = #tpu.dot_dimension_numbers<[1], [0], [0], [1], [0, 0, 1, 1], [], []>} : vector<32x8xbf16>, vector<8x4xbf16>, vector<32x4xf32> -> vector<32x4xf32>
    %430 = arith.truncf %429 : vector<32x4xf32> to vector<32x4xbf16>
    %c192_633 = arith.constant 192 : index
    %c0_634 = arith.constant 0 : index
    %431 = vector.load %arg15[%c192_633, %c0_634] : memref<320x4xbf16, #tpu.memory_space<vmem>>, vector<32x4xbf16>
    tpu.vector_store %arg15[%c192_633, %c0_634], %430 {strides = array<i32>} : memref<320x4xbf16, #tpu.memory_space<vmem>>, vector<32x4xbf16>,
    %c7_635 = arith.constant 7 : index
    %c3_636 = arith.constant 3 : index
    %c0_637 = arith.constant 0 : index
    %c0_638 = arith.constant 0 : index
    %432 = vector.load %arg14[%c7_635, %c3_636, %c0_637, %c0_638] : memref<10x4x8x4xbf16, #tpu.memory_space<vmem>>, vector<1x1x8x4xbf16>
    %433 = vector.shape_cast %432 : vector<1x1x8x4xbf16> to vector<8x4xbf16>
    %cst_639 = arith.constant dense<0.000000e+00> : vector<32x4xf32>
    %434 = tpu.matmul %396, %433, %cst_639 {dimension_numbers = #tpu.dot_dimension_numbers<[1], [0], [0], [1], [0, 0, 1, 1], [], []>} : vector<32x8xbf16>, vector<8x4xbf16>, vector<32x4xf32> -> vector<32x4xf32>
    %435 = arith.truncf %434 : vector<32x4xf32> to vector<32x4xbf16>
    %c224_640 = arith.constant 224 : index
    %c0_641 = arith.constant 0 : index
    %436 = vector.load %arg15[%c224_640, %c0_641] : memref<320x4xbf16, #tpu.memory_space<vmem>>, vector<32x4xbf16>
    tpu.vector_store %arg15[%c224_640, %c0_641], %435 {strides = array<i32>} : memref<320x4xbf16, #tpu.memory_space<vmem>>, vector<32x4xbf16>,
    %c8_642 = arith.constant 8 : index
    %c3_643 = arith.constant 3 : index
    %c0_644 = arith.constant 0 : index
    %c0_645 = arith.constant 0 : index
    %437 = vector.load %arg14[%c8_642, %c3_643, %c0_644, %c0_645] : memref<10x4x8x4xbf16, #tpu.memory_space<vmem>>, vector<1x1x8x4xbf16>
    %438 = vector.shape_cast %437 : vector<1x1x8x4xbf16> to vector<8x4xbf16>
    %cst_646 = arith.constant dense<0.000000e+00> : vector<32x4xf32>
    %439 = tpu.matmul %396, %438, %cst_646 {dimension_numbers = #tpu.dot_dimension_numbers<[1], [0], [0], [1], [0, 0, 1, 1], [], []>} : vector<32x8xbf16>, vector<8x4xbf16>, vector<32x4xf32> -> vector<32x4xf32>
    %440 = arith.truncf %439 : vector<32x4xf32> to vector<32x4xbf16>
    %c256_647 = arith.constant 256 : index
    %c0_648 = arith.constant 0 : index
    %441 = vector.load %arg15[%c256_647, %c0_648] : memref<320x4xbf16, #tpu.memory_space<vmem>>, vector<32x4xbf16>
    tpu.vector_store %arg15[%c256_647, %c0_648], %440 {strides = array<i32>} : memref<320x4xbf16, #tpu.memory_space<vmem>>, vector<32x4xbf16>,
    %c9_649 = arith.constant 9 : index
    %c3_650 = arith.constant 3 : index
    %c0_651 = arith.constant 0 : index
    %c0_652 = arith.constant 0 : index
    %442 = vector.load %arg14[%c9_649, %c3_650, %c0_651, %c0_652] : memref<10x4x8x4xbf16, #tpu.memory_space<vmem>>, vector<1x1x8x4xbf16>
    %443 = vector.shape_cast %442 : vector<1x1x8x4xbf16> to vector<8x4xbf16>
    %cst_653 = arith.constant dense<0.000000e+00> : vector<32x4xf32>
    %444 = tpu.matmul %396, %443, %cst_653 {dimension_numbers = #tpu.dot_dimension_numbers<[1], [0], [0], [1], [0, 0, 1, 1], [], []>} : vector<32x8xbf16>, vector<8x4xbf16>, vector<32x4xf32> -> vector<32x4xf32>
    %445 = arith.truncf %444 : vector<32x4xf32> to vector<32x4xbf16>
    %c288_654 = arith.constant 288 : index
    %c0_655 = arith.constant 0 : index
    %446 = vector.load %arg15[%c288_654, %c0_655] : memref<320x4xbf16, #tpu.memory_space<vmem>>, vector<32x4xbf16>
    tpu.vector_store %arg15[%c288_654, %c0_655], %445 {strides = array<i32>} : memref<320x4xbf16, #tpu.memory_space<vmem>>, vector<32x4xbf16>,
    %c0_656 = arith.constant 0 : index
    %c0_657 = arith.constant 0 : index
    %447 = vector.load %arg15[%c0_656, %c0_657] : memref<320x4xbf16, #tpu.memory_space<vmem>>, vector<256x4xbf16>
    %c3_658 = arith.constant 3 : index
    %c0_659 = arith.constant 0 : index
    %c0_660 = arith.constant 0 : index
    %c0_661 = arith.constant 0 : index
    %c0_662 = arith.constant 0 : index
    %448 = vector.load %arg8[%c3_658, %c0_659, %c0_660, %c0_661, %c0_662] : memref<4x3x3x4x4xbf16, #tpu.memory_space<vmem>>, vector<1x1x1x4x4xbf16>
    %449 = vector.shape_cast %448 : vector<1x1x1x4x4xbf16> to vector<4x4xbf16>
    %cst_663 = arith.constant dense<0.000000e+00> : vector<256x4xf32>
    %450 = tpu.matmul %447, %449, %cst_663 {dimension_numbers = #tpu.dot_dimension_numbers<[1], [0], [0], [1], [0, 0, 1, 1], [], []>} : vector<256x4xbf16>, vector<4x4xbf16>, vector<256x4xf32> -> vector<256x4xf32>
    %451 = arith.addf %386, %450 : vector<256x4xf32>
    %c3_664 = arith.constant 3 : index
    %c0_665 = arith.constant 0 : index
    %c1_666 = arith.constant 1 : index
    %c0_667 = arith.constant 0 : index
    %c0_668 = arith.constant 0 : index
    %452 = vector.load %arg8[%c3_664, %c0_665, %c1_666, %c0_667, %c0_668] : memref<4x3x3x4x4xbf16, #tpu.memory_space<vmem>>, vector<1x1x1x4x4xbf16>
    %453 = vector.shape_cast %452 : vector<1x1x1x4x4xbf16> to vector<4x4xbf16>
    %cst_669 = arith.constant dense<0.000000e+00> : vector<256x4xf32>
    %454 = tpu.matmul %447, %453, %cst_669 {dimension_numbers = #tpu.dot_dimension_numbers<[1], [0], [0], [1], [0, 0, 1, 1], [], []>} : vector<256x4xbf16>, vector<4x4xbf16>, vector<256x4xf32> -> vector<256x4xf32>
    %455 = arith.addf %390, %454 : vector<256x4xf32>
    %c3_670 = arith.constant 3 : index
    %c0_671 = arith.constant 0 : index
    %c2_672 = arith.constant 2 : index
    %c0_673 = arith.constant 0 : index
    %c0_674 = arith.constant 0 : index
    %456 = vector.load %arg8[%c3_670, %c0_671, %c2_672, %c0_673, %c0_674] : memref<4x3x3x4x4xbf16, #tpu.memory_space<vmem>>, vector<1x1x1x4x4xbf16>
    %457 = vector.shape_cast %456 : vector<1x1x1x4x4xbf16> to vector<4x4xbf16>
    %cst_675 = arith.constant dense<0.000000e+00> : vector<256x4xf32>
    %458 = tpu.matmul %447, %457, %cst_675 {dimension_numbers = #tpu.dot_dimension_numbers<[1], [0], [0], [1], [0, 0, 1, 1], [], []>} : vector<256x4xbf16>, vector<4x4xbf16>, vector<256x4xf32> -> vector<256x4xf32>
    %459 = arith.addf %394, %458 : vector<256x4xf32>
    %c32_676 = arith.constant 32 : index
    %c0_677 = arith.constant 0 : index
    %460 = vector.load %arg15[%c32_676, %c0_677] : memref<320x4xbf16, #tpu.memory_space<vmem>>, vector<256x4xbf16>
    %c3_678 = arith.constant 3 : index
    %c1_679 = arith.constant 1 : index
    %c0_680 = arith.constant 0 : index
    %c0_681 = arith.constant 0 : index
    %c0_682 = arith.constant 0 : index
    %461 = vector.load %arg8[%c3_678, %c1_679, %c0_680, %c0_681, %c0_682] : memref<4x3x3x4x4xbf16, #tpu.memory_space<vmem>>, vector<1x1x1x4x4xbf16>
    %462 = vector.shape_cast %461 : vector<1x1x1x4x4xbf16> to vector<4x4xbf16>
    %cst_683 = arith.constant dense<0.000000e+00> : vector<256x4xf32>
    %463 = tpu.matmul %460, %462, %cst_683 {dimension_numbers = #tpu.dot_dimension_numbers<[1], [0], [0], [1], [0, 0, 1, 1], [], []>} : vector<256x4xbf16>, vector<4x4xbf16>, vector<256x4xf32> -> vector<256x4xf32>
    %464 = arith.addf %451, %463 : vector<256x4xf32>
    %c3_684 = arith.constant 3 : index
    %c1_685 = arith.constant 1 : index
    %c1_686 = arith.constant 1 : index
    %c0_687 = arith.constant 0 : index
    %c0_688 = arith.constant 0 : index
    %465 = vector.load %arg8[%c3_684, %c1_685, %c1_686, %c0_687, %c0_688] : memref<4x3x3x4x4xbf16, #tpu.memory_space<vmem>>, vector<1x1x1x4x4xbf16>
    %466 = vector.shape_cast %465 : vector<1x1x1x4x4xbf16> to vector<4x4xbf16>
    %cst_689 = arith.constant dense<0.000000e+00> : vector<256x4xf32>
    %467 = tpu.matmul %460, %466, %cst_689 {dimension_numbers = #tpu.dot_dimension_numbers<[1], [0], [0], [1], [0, 0, 1, 1], [], []>} : vector<256x4xbf16>, vector<4x4xbf16>, vector<256x4xf32> -> vector<256x4xf32>
    %468 = arith.addf %455, %467 : vector<256x4xf32>
    %c3_690 = arith.constant 3 : index
    %c1_691 = arith.constant 1 : index
    %c2_692 = arith.constant 2 : index
    %c0_693 = arith.constant 0 : index
    %c0_694 = arith.constant 0 : index
    %469 = vector.load %arg8[%c3_690, %c1_691, %c2_692, %c0_693, %c0_694] : memref<4x3x3x4x4xbf16, #tpu.memory_space<vmem>>, vector<1x1x1x4x4xbf16>
    %470 = vector.shape_cast %469 : vector<1x1x1x4x4xbf16> to vector<4x4xbf16>
    %cst_695 = arith.constant dense<0.000000e+00> : vector<256x4xf32>
    %471 = tpu.matmul %460, %470, %cst_695 {dimension_numbers = #tpu.dot_dimension_numbers<[1], [0], [0], [1], [0, 0, 1, 1], [], []>} : vector<256x4xbf16>, vector<4x4xbf16>, vector<256x4xf32> -> vector<256x4xf32>
    %472 = arith.addf %459, %471 : vector<256x4xf32>
    %c64_696 = arith.constant 64 : index
    %c0_697 = arith.constant 0 : index
    %473 = vector.load %arg15[%c64_696, %c0_697] : memref<320x4xbf16, #tpu.memory_space<vmem>>, vector<256x4xbf16>
    %c3_698 = arith.constant 3 : index
    %c2_699 = arith.constant 2 : index
    %c0_700 = arith.constant 0 : index
    %c0_701 = arith.constant 0 : index
    %c0_702 = arith.constant 0 : index
    %474 = vector.load %arg8[%c3_698, %c2_699, %c0_700, %c0_701, %c0_702] : memref<4x3x3x4x4xbf16, #tpu.memory_space<vmem>>, vector<1x1x1x4x4xbf16>
    %475 = vector.shape_cast %474 : vector<1x1x1x4x4xbf16> to vector<4x4xbf16>
    %cst_703 = arith.constant dense<0.000000e+00> : vector<256x4xf32>
    %476 = tpu.matmul %473, %475, %cst_703 {dimension_numbers = #tpu.dot_dimension_numbers<[1], [0], [0], [1], [0, 0, 1, 1], [], []>} : vector<256x4xbf16>, vector<4x4xbf16>, vector<256x4xf32> -> vector<256x4xf32>
    %477 = arith.addf %464, %476 : vector<256x4xf32>
    %c3_704 = arith.constant 3 : index
    %c2_705 = arith.constant 2 : index
    %c1_706 = arith.constant 1 : index
    %c0_707 = arith.constant 0 : index
    %c0_708 = arith.constant 0 : index
    %478 = vector.load %arg8[%c3_704, %c2_705, %c1_706, %c0_707, %c0_708] : memref<4x3x3x4x4xbf16, #tpu.memory_space<vmem>>, vector<1x1x1x4x4xbf16>
    %479 = vector.shape_cast %478 : vector<1x1x1x4x4xbf16> to vector<4x4xbf16>
    %cst_709 = arith.constant dense<0.000000e+00> : vector<256x4xf32>
    %480 = tpu.matmul %473, %479, %cst_709 {dimension_numbers = #tpu.dot_dimension_numbers<[1], [0], [0], [1], [0, 0, 1, 1], [], []>} : vector<256x4xbf16>, vector<4x4xbf16>, vector<256x4xf32> -> vector<256x4xf32>
    %481 = arith.addf %468, %480 : vector<256x4xf32>
    %c3_710 = arith.constant 3 : index
    %c2_711 = arith.constant 2 : index
    %c2_712 = arith.constant 2 : index
    %c0_713 = arith.constant 0 : index
    %c0_714 = arith.constant 0 : index
    %482 = vector.load %arg8[%c3_710, %c2_711, %c2_712, %c0_713, %c0_714] : memref<4x3x3x4x4xbf16, #tpu.memory_space<vmem>>, vector<1x1x1x4x4xbf16>
    %483 = vector.shape_cast %482 : vector<1x1x1x4x4xbf16> to vector<4x4xbf16>
    %cst_715 = arith.constant dense<0.000000e+00> : vector<256x4xf32>
    %484 = tpu.matmul %473, %483, %cst_715 {dimension_numbers = #tpu.dot_dimension_numbers<[1], [0], [0], [1], [0, 0, 1, 1], [], []>} : vector<256x4xbf16>, vector<4x4xbf16>, vector<256x4xf32> -> vector<256x4xf32>
    %485 = arith.addf %472, %484 : vector<256x4xf32>
    %c0_716 = arith.constant 0 : index
    %c0_717 = arith.constant 0 : index
    %486 = vector.load %arg10[%c0_716, %c0_717] : memref<1x4xf32, #tpu.memory_space<vmem>>, vector<1x4xf32>
    %c0_718 = arith.constant 0 : index
    %c0_719 = arith.constant 0 : index
    %487 = vector.load %arg11[%c0_718, %c0_719] : memref<1x4xf32, #tpu.memory_space<vmem>>, vector<1x4xf32>
    %488 = vector.extract_strided_slice %477 {offsets = [0, 0], sizes = [16, 4], strides = [1, 1]} : vector<256x4xf32> to vector<16x4xf32>
    %489 = vector.extract_strided_slice %481 {offsets = [1, 0], sizes = [16, 4], strides = [1, 1]} : vector<256x4xf32> to vector<16x4xf32>
    %490 = arith.addf %488, %489 : vector<16x4xf32>
    %491 = vector.extract_strided_slice %485 {offsets = [2, 0], sizes = [16, 4], strides = [1, 1]} : vector<256x4xf32> to vector<16x4xf32>
    %492 = arith.addf %490, %491 : vector<16x4xf32>
    %493 = vector.broadcast %486 : vector<1x4xf32> to vector<16x4xf32>
    %494 = arith.mulf %492, %493 : vector<16x4xf32>
    %495 = vector.broadcast %487 : vector<1x4xf32> to vector<16x4xf32>
    %496 = arith.addf %494, %495 : vector<16x4xf32>
    %cst_720 = arith.constant 0.000000e+00 : f32
    %497 = vector.broadcast %cst_720 : f32 to vector<16x4xf32>
    %498 = arith.maximumf %496, %497 : vector<16x4xf32>
    %499 = arith.truncf %498 : vector<16x4xf32> to vector<16x4xbf16>
    %c0_721 = arith.constant 0 : index
    %c0_722 = arith.constant 0 : index
    %c0_723 = arith.constant 0 : index
    %c0_724 = arith.constant 0 : index
    %500 = vector.load %arg12[%c0_721, %c0_722, %c0_723, %c0_724] : memref<1x8x16x4xbf16, #tpu.memory_space<vmem>>, vector<1x1x16x4xbf16>
    %501 = vector.shape_cast %500 : vector<1x1x16x4xbf16> to vector<16x4xbf16>
    %502 = vector.shape_cast %499 : vector<16x4xbf16> to vector<1x1x16x4xbf16>
    tpu.vector_store %arg12[%c0_721, %c0_722, %c0_723, %c0_724], %502 {strides = array<i32>} : memref<1x8x16x4xbf16, #tpu.memory_space<vmem>>, vector<1x1x16x4xbf16>,
    %503 = vector.extract_strided_slice %477 {offsets = [32, 0], sizes = [16, 4], strides = [1, 1]} : vector<256x4xf32> to vector<16x4xf32>
    %504 = vector.extract_strided_slice %481 {offsets = [33, 0], sizes = [16, 4], strides = [1, 1]} : vector<256x4xf32> to vector<16x4xf32>
    %505 = arith.addf %503, %504 : vector<16x4xf32>
    %506 = vector.extract_strided_slice %485 {offsets = [34, 0], sizes = [16, 4], strides = [1, 1]} : vector<256x4xf32> to vector<16x4xf32>
    %507 = arith.addf %505, %506 : vector<16x4xf32>
    %508 = vector.broadcast %486 : vector<1x4xf32> to vector<16x4xf32>
    %509 = arith.mulf %507, %508 : vector<16x4xf32>
    %510 = vector.broadcast %487 : vector<1x4xf32> to vector<16x4xf32>
    %511 = arith.addf %509, %510 : vector<16x4xf32>
    %cst_725 = arith.constant 0.000000e+00 : f32
    %512 = vector.broadcast %cst_725 : f32 to vector<16x4xf32>
    %513 = arith.maximumf %511, %512 : vector<16x4xf32>
    %514 = arith.truncf %513 : vector<16x4xf32> to vector<16x4xbf16>
    %c0_726 = arith.constant 0 : index
    %c1_727 = arith.constant 1 : index
    %c0_728 = arith.constant 0 : index
    %c0_729 = arith.constant 0 : index
    %515 = vector.load %arg12[%c0_726, %c1_727, %c0_728, %c0_729] : memref<1x8x16x4xbf16, #tpu.memory_space<vmem>>, vector<1x1x16x4xbf16>
    %516 = vector.shape_cast %515 : vector<1x1x16x4xbf16> to vector<16x4xbf16>
    %517 = vector.shape_cast %514 : vector<16x4xbf16> to vector<1x1x16x4xbf16>
    tpu.vector_store %arg12[%c0_726, %c1_727, %c0_728, %c0_729], %517 {strides = array<i32>} : memref<1x8x16x4xbf16, #tpu.memory_space<vmem>>, vector<1x1x16x4xbf16>,
    %518 = vector.extract_strided_slice %477 {offsets = [64, 0], sizes = [16, 4], strides = [1, 1]} : vector<256x4xf32> to vector<16x4xf32>
    %519 = vector.extract_strided_slice %481 {offsets = [65, 0], sizes = [16, 4], strides = [1, 1]} : vector<256x4xf32> to vector<16x4xf32>
    %520 = arith.addf %518, %519 : vector<16x4xf32>
    %521 = vector.extract_strided_slice %485 {offsets = [66, 0], sizes = [16, 4], strides = [1, 1]} : vector<256x4xf32> to vector<16x4xf32>
    %522 = arith.addf %520, %521 : vector<16x4xf32>
    %523 = vector.broadcast %486 : vector<1x4xf32> to vector<16x4xf32>
    %524 = arith.mulf %522, %523 : vector<16x4xf32>
    %525 = vector.broadcast %487 : vector<1x4xf32> to vector<16x4xf32>
    %526 = arith.addf %524, %525 : vector<16x4xf32>
    %cst_730 = arith.constant 0.000000e+00 : f32
    %527 = vector.broadcast %cst_730 : f32 to vector<16x4xf32>
    %528 = arith.maximumf %526, %527 : vector<16x4xf32>
    %529 = arith.truncf %528 : vector<16x4xf32> to vector<16x4xbf16>
    %c0_731 = arith.constant 0 : index
    %c2_732 = arith.constant 2 : index
    %c0_733 = arith.constant 0 : index
    %c0_734 = arith.constant 0 : index
    %530 = vector.load %arg12[%c0_731, %c2_732, %c0_733, %c0_734] : memref<1x8x16x4xbf16, #tpu.memory_space<vmem>>, vector<1x1x16x4xbf16>
    %531 = vector.shape_cast %530 : vector<1x1x16x4xbf16> to vector<16x4xbf16>
    %532 = vector.shape_cast %529 : vector<16x4xbf16> to vector<1x1x16x4xbf16>
    tpu.vector_store %arg12[%c0_731, %c2_732, %c0_733, %c0_734], %532 {strides = array<i32>} : memref<1x8x16x4xbf16, #tpu.memory_space<vmem>>, vector<1x1x16x4xbf16>,
    %533 = vector.extract_strided_slice %477 {offsets = [96, 0], sizes = [16, 4], strides = [1, 1]} : vector<256x4xf32> to vector<16x4xf32>
    %534 = vector.extract_strided_slice %481 {offsets = [97, 0], sizes = [16, 4], strides = [1, 1]} : vector<256x4xf32> to vector<16x4xf32>
    %535 = arith.addf %533, %534 : vector<16x4xf32>
    %536 = vector.extract_strided_slice %485 {offsets = [98, 0], sizes = [16, 4], strides = [1, 1]} : vector<256x4xf32> to vector<16x4xf32>
    %537 = arith.addf %535, %536 : vector<16x4xf32>
    %538 = vector.broadcast %486 : vector<1x4xf32> to vector<16x4xf32>
    %539 = arith.mulf %537, %538 : vector<16x4xf32>
    %540 = vector.broadcast %487 : vector<1x4xf32> to vector<16x4xf32>
    %541 = arith.addf %539, %540 : vector<16x4xf32>
    %cst_735 = arith.constant 0.000000e+00 : f32
    %542 = vector.broadcast %cst_735 : f32 to vector<16x4xf32>
    %543 = arith.maximumf %541, %542 : vector<16x4xf32>
    %544 = arith.truncf %543 : vector<16x4xf32> to vector<16x4xbf16>
    %c0_736 = arith.constant 0 : index
    %c3_737 = arith.constant 3 : index
    %c0_738 = arith.constant 0 : index
    %c0_739 = arith.constant 0 : index
    %545 = vector.load %arg12[%c0_736, %c3_737, %c0_738, %c0_739] : memref<1x8x16x4xbf16, #tpu.memory_space<vmem>>, vector<1x1x16x4xbf16>
    %546 = vector.shape_cast %545 : vector<1x1x16x4xbf16> to vector<16x4xbf16>
    %547 = vector.shape_cast %544 : vector<16x4xbf16> to vector<1x1x16x4xbf16>
    tpu.vector_store %arg12[%c0_736, %c3_737, %c0_738, %c0_739], %547 {strides = array<i32>} : memref<1x8x16x4xbf16, #tpu.memory_space<vmem>>, vector<1x1x16x4xbf16>,
    %548 = vector.extract_strided_slice %477 {offsets = [128, 0], sizes = [16, 4], strides = [1, 1]} : vector<256x4xf32> to vector<16x4xf32>
    %549 = vector.extract_strided_slice %481 {offsets = [129, 0], sizes = [16, 4], strides = [1, 1]} : vector<256x4xf32> to vector<16x4xf32>
    %550 = arith.addf %548, %549 : vector<16x4xf32>
    %551 = vector.extract_strided_slice %485 {offsets = [130, 0], sizes = [16, 4], strides = [1, 1]} : vector<256x4xf32> to vector<16x4xf32>
    %552 = arith.addf %550, %551 : vector<16x4xf32>
    %553 = vector.broadcast %486 : vector<1x4xf32> to vector<16x4xf32>
    %554 = arith.mulf %552, %553 : vector<16x4xf32>
    %555 = vector.broadcast %487 : vector<1x4xf32> to vector<16x4xf32>
    %556 = arith.addf %554, %555 : vector<16x4xf32>
    %cst_740 = arith.constant 0.000000e+00 : f32
    %557 = vector.broadcast %cst_740 : f32 to vector<16x4xf32>
    %558 = arith.maximumf %556, %557 : vector<16x4xf32>
    %559 = arith.truncf %558 : vector<16x4xf32> to vector<16x4xbf16>
    %c0_741 = arith.constant 0 : index
    %c4_742 = arith.constant 4 : index
    %c0_743 = arith.constant 0 : index
    %c0_744 = arith.constant 0 : index
    %560 = vector.load %arg12[%c0_741, %c4_742, %c0_743, %c0_744] : memref<1x8x16x4xbf16, #tpu.memory_space<vmem>>, vector<1x1x16x4xbf16>
    %561 = vector.shape_cast %560 : vector<1x1x16x4xbf16> to vector<16x4xbf16>
    %562 = vector.shape_cast %559 : vector<16x4xbf16> to vector<1x1x16x4xbf16>
    tpu.vector_store %arg12[%c0_741, %c4_742, %c0_743, %c0_744], %562 {strides = array<i32>} : memref<1x8x16x4xbf16, #tpu.memory_space<vmem>>, vector<1x1x16x4xbf16>,
    %563 = vector.extract_strided_slice %477 {offsets = [160, 0], sizes = [16, 4], strides = [1, 1]} : vector<256x4xf32> to vector<16x4xf32>
    %564 = vector.extract_strided_slice %481 {offsets = [161, 0], sizes = [16, 4], strides = [1, 1]} : vector<256x4xf32> to vector<16x4xf32>
    %565 = arith.addf %563, %564 : vector<16x4xf32>
    %566 = vector.extract_strided_slice %485 {offsets = [162, 0], sizes = [16, 4], strides = [1, 1]} : vector<256x4xf32> to vector<16x4xf32>
    %567 = arith.addf %565, %566 : vector<16x4xf32>
    %568 = vector.broadcast %486 : vector<1x4xf32> to vector<16x4xf32>
    %569 = arith.mulf %567, %568 : vector<16x4xf32>
    %570 = vector.broadcast %487 : vector<1x4xf32> to vector<16x4xf32>
    %571 = arith.addf %569, %570 : vector<16x4xf32>
    %cst_745 = arith.constant 0.000000e+00 : f32
    %572 = vector.broadcast %cst_745 : f32 to vector<16x4xf32>
    %573 = arith.maximumf %571, %572 : vector<16x4xf32>
    %574 = arith.truncf %573 : vector<16x4xf32> to vector<16x4xbf16>
    %c0_746 = arith.constant 0 : index
    %c5_747 = arith.constant 5 : index
    %c0_748 = arith.constant 0 : index
    %c0_749 = arith.constant 0 : index
    %575 = vector.load %arg12[%c0_746, %c5_747, %c0_748, %c0_749] : memref<1x8x16x4xbf16, #tpu.memory_space<vmem>>, vector<1x1x16x4xbf16>
    %576 = vector.shape_cast %575 : vector<1x1x16x4xbf16> to vector<16x4xbf16>
    %577 = vector.shape_cast %574 : vector<16x4xbf16> to vector<1x1x16x4xbf16>
    tpu.vector_store %arg12[%c0_746, %c5_747, %c0_748, %c0_749], %577 {strides = array<i32>} : memref<1x8x16x4xbf16, #tpu.memory_space<vmem>>, vector<1x1x16x4xbf16>,
    %578 = vector.extract_strided_slice %477 {offsets = [192, 0], sizes = [16, 4], strides = [1, 1]} : vector<256x4xf32> to vector<16x4xf32>
    %579 = vector.extract_strided_slice %481 {offsets = [193, 0], sizes = [16, 4], strides = [1, 1]} : vector<256x4xf32> to vector<16x4xf32>
    %580 = arith.addf %578, %579 : vector<16x4xf32>
    %581 = vector.extract_strided_slice %485 {offsets = [194, 0], sizes = [16, 4], strides = [1, 1]} : vector<256x4xf32> to vector<16x4xf32>
    %582 = arith.addf %580, %581 : vector<16x4xf32>
    %583 = vector.broadcast %486 : vector<1x4xf32> to vector<16x4xf32>
    %584 = arith.mulf %582, %583 : vector<16x4xf32>
    %585 = vector.broadcast %487 : vector<1x4xf32> to vector<16x4xf32>
    %586 = arith.addf %584, %585 : vector<16x4xf32>
    %cst_750 = arith.constant 0.000000e+00 : f32
    %587 = vector.broadcast %cst_750 : f32 to vector<16x4xf32>
    %588 = arith.maximumf %586, %587 : vector<16x4xf32>
    %589 = arith.truncf %588 : vector<16x4xf32> to vector<16x4xbf16>
    %c0_751 = arith.constant 0 : index
    %c6_752 = arith.constant 6 : index
    %c0_753 = arith.constant 0 : index
    %c0_754 = arith.constant 0 : index
    %590 = vector.load %arg12[%c0_751, %c6_752, %c0_753, %c0_754] : memref<1x8x16x4xbf16, #tpu.memory_space<vmem>>, vector<1x1x16x4xbf16>
    %591 = vector.shape_cast %590 : vector<1x1x16x4xbf16> to vector<16x4xbf16>
    %592 = vector.shape_cast %589 : vector<16x4xbf16> to vector<1x1x16x4xbf16>
    tpu.vector_store %arg12[%c0_751, %c6_752, %c0_753, %c0_754], %592 {strides = array<i32>} : memref<1x8x16x4xbf16, #tpu.memory_space<vmem>>, vector<1x1x16x4xbf16>,
    %593 = vector.extract_strided_slice %477 {offsets = [224, 0], sizes = [16, 4], strides = [1, 1]} : vector<256x4xf32> to vector<16x4xf32>
    %594 = vector.extract_strided_slice %481 {offsets = [225, 0], sizes = [16, 4], strides = [1, 1]} : vector<256x4xf32> to vector<16x4xf32>
    %595 = arith.addf %593, %594 : vector<16x4xf32>
    %596 = vector.extract_strided_slice %485 {offsets = [226, 0], sizes = [16, 4], strides = [1, 1]} : vector<256x4xf32> to vector<16x4xf32>
    %597 = arith.addf %595, %596 : vector<16x4xf32>
    %598 = vector.broadcast %486 : vector<1x4xf32> to vector<16x4xf32>
    %599 = arith.mulf %597, %598 : vector<16x4xf32>
    %600 = vector.broadcast %487 : vector<1x4xf32> to vector<16x4xf32>
    %601 = arith.addf %599, %600 : vector<16x4xf32>
    %cst_755 = arith.constant 0.000000e+00 : f32
    %602 = vector.broadcast %cst_755 : f32 to vector<16x4xf32>
    %603 = arith.maximumf %601, %602 : vector<16x4xf32>
    %604 = arith.truncf %603 : vector<16x4xf32> to vector<16x4xbf16>
    %c0_756 = arith.constant 0 : index
    %c7_757 = arith.constant 7 : index
    %c0_758 = arith.constant 0 : index
    %c0_759 = arith.constant 0 : index
    %605 = vector.load %arg12[%c0_756, %c7_757, %c0_758, %c0_759] : memref<1x8x16x4xbf16, #tpu.memory_space<vmem>>, vector<1x1x16x4xbf16>
    %606 = vector.shape_cast %605 : vector<1x1x16x4xbf16> to vector<16x4xbf16>
    %607 = vector.shape_cast %604 : vector<16x4xbf16> to vector<1x1x16x4xbf16>
    tpu.vector_store %arg12[%c0_756, %c7_757, %c0_758, %c0_759], %607 {strides = array<i32>} : memref<1x8x16x4xbf16, #tpu.memory_space<vmem>>, vector<1x1x16x4xbf16>,
    return
  }
  func.func @transform_0(%arg0: i32, %arg1: i32, %arg2: i32) -> (i32, i32, i32, i32) {
    %c0_i32 = arith.constant 0 : i32
    %c0_i32_0 = arith.constant 0 : i32
    %c0_i32_1 = arith.constant 0 : i32
    return %arg0, %arg2, %c0_i32, %c0_i32_0 : i32, i32, i32, i32
  }
  func.func @transform_1(%arg0: i32, %arg1: i32, %arg2: i32) -> (i32, i32, i32, i32) {
    %c1_i32 = arith.constant 1 : i32
    %0 = arith.addi %arg2, %c1_i32 : i32
    %c0_i32 = arith.constant 0 : i32
    %c0_i32_0 = arith.constant 0 : i32
    %c0_i32_1 = arith.constant 0 : i32
    return %arg0, %0, %c0_i32, %c0_i32_0 : i32, i32, i32, i32
  }
  func.func @transform_2(%arg0: i32, %arg1: i32, %arg2: i32) -> (i32, i32, i32, i32, i32) {
    %c0_i32 = arith.constant 0 : i32
    %c0_i32_0 = arith.constant 0 : i32
    %c0_i32_1 = arith.constant 0 : i32
    %c0_i32_2 = arith.constant 0 : i32
    return %arg0, %arg2, %c0_i32, %c0_i32_0, %c0_i32_1 : i32, i32, i32, i32, i32
  }
  func.func @transform_3(%arg0: i32, %arg1: i32, %arg2: i32) -> (i32, i32, i32, i32, i32) {
    %c1_i32 = arith.constant 1 : i32
    %0 = arith.addi %arg2, %c1_i32 : i32
    %c0_i32 = arith.constant 0 : i32
    %c0_i32_0 = arith.constant 0 : i32
    %c0_i32_1 = arith.constant 0 : i32
    %c0_i32_2 = arith.constant 0 : i32
    return %arg0, %0, %c0_i32, %c0_i32_0, %c0_i32_1 : i32, i32, i32, i32, i32
  }
  func.func @transform_4(%arg0: i32, %arg1: i32, %arg2: i32) -> (i32, i32, i32, i32) {
    %c0_i32 = arith.constant 0 : i32
    %c0_i32_0 = arith.constant 0 : i32
    %c0_i32_1 = arith.constant 0 : i32
    %c0_i32_2 = arith.constant 0 : i32
    return %c0_i32, %c0_i32_0, %c0_i32_1, %arg1 : i32, i32, i32, i32
  }
  func.func @transform_5(%arg0: i32, %arg1: i32, %arg2: i32) -> (i32, i32, i32, i32, i32) {
    %c0_i32 = arith.constant 0 : i32
    %c0_i32_0 = arith.constant 0 : i32
    %c0_i32_1 = arith.constant 0 : i32
    %c0_i32_2 = arith.constant 0 : i32
    %c0_i32_3 = arith.constant 0 : i32
    return %c0_i32, %c0_i32_0, %c0_i32_1, %c0_i32_2, %arg1 : i32, i32, i32, i32, i32
  }
  func.func @transform_6(%arg0: i32, %arg1: i32, %arg2: i32) -> (i32, i32, i32) {
    %c0_i32 = arith.constant 0 : i32
    %c0_i32_0 = arith.constant 0 : i32
    %c0_i32_1 = arith.constant 0 : i32
    %c0_i32_2 = arith.constant 0 : i32
    return %c0_i32, %c0_i32_0, %c0_i32_1 : i32, i32, i32
  }
  func.func @transform_7(%arg0: i32, %arg1: i32, %arg2: i32) -> (i32, i32) {
    %c0_i32 = arith.constant 0 : i32
    %c0_i32_0 = arith.constant 0 : i32
    return %c0_i32, %arg1 : i32, i32
  }
  func.func @transform_8(%arg0: i32, %arg1: i32, %arg2: i32) -> (i32, i32) {
    %c0_i32 = arith.constant 0 : i32
    %c0_i32_0 = arith.constant 0 : i32
    return %c0_i32, %arg1 : i32, i32
  }
  func.func @transform_9(%arg0: i32, %arg1: i32, %arg2: i32) -> (i32, i32, i32, i32) {
    %c0_i32 = arith.constant 0 : i32
    %c0_i32_0 = arith.constant 0 : i32
    return %arg0, %arg2, %c0_i32, %arg1 : i32, i32, i32, i32
  }
}

</mosaic_0001>

<llo_original>
// kernel: _lambda_.2
$region0: #{_lambda_.2}
  #allocation0 [shape = 'u32[]', space=smem, size = 0x4, offset = 0x4, fixed_abs, tag = 'smem constant byte address 0x4 - core index']
  #allocation1 [shape = 'u32[72,128]{1,0:T(1,128)}', space=vmem, size = 0x9000, scoped, tag = 'internal scratch']
  %s0 = inlined_call_operand.vmem [shape: bf16[2,4,40,4], index: 0, kind: input, shape index: {}]
  %s1 = inlined_call_operand.vmem [shape: bf16[4,4,4], index: 1, kind: input, shape index: {}]
  %s2 = inlined_call_operand.vmem [shape: f32[4,1,4], index: 2, kind: input, shape index: {}]
  %s3 = inlined_call_operand.vmem [shape: f32[4,1,4], index: 3, kind: input, shape index: {}]
  %s4 = inlined_call_operand.vmem [shape: bf16[2,4,40,4], index: 4, kind: output, shape index: {}]
  %s5 = sld [smem:[#allocation0]]
  $region49: #{_lambda_.2} parent=0
    _
  %s7 = ssub.s32 1, %s5
  %s8 = scalar_select 0, %s7, %s5
  loop: start=0, step=1, limit=10
  $region2: #{_lambda_.2} parent=0 // loop_pre_header
    _
  $region3: #{_lambda_.2} parent=0 // loop_header
    %s10 = sphi 0, %s14
    %p11 = scmp.ge.s32.totalorder %s10, 10
    %s17 = sphi 0, %s29
    %s18 = sphi 0, %s25
    %s19 = sphi 0, %s17
    %s20 = sphi 0, %s18
    %s21 = sphi 0, %s19
    %s22 = sphi 0, %s20
    %s34 = sphi 0, %s36
    %s37 = sphi 0, %s34
    %s38 = sphi 0, %s37
    %s54 = sphi 0, %s38
    %s60 = sphi 0, %s62
    %s63 = sphi 0, %s60
    %s64 = sphi 0, %s63
    %s80 = sphi 0, %s64
    %s86 = sphi 0, %s88
    %s89 = sphi 0, %s86
    %s90 = sphi 0, %s89
    %s106 = sphi 0, %s90
    %s112 = sphi 0, %s114
    %s115 = sphi 0, %s112
    %s116 = sphi 0, %s115
    %s132 = sphi 0, %s116
    %s140 = sphi 0, %s142
    %s143 = sphi 0, %s140
    %s144 = sphi 0, %s143
    %s160 = sphi 0, %s144
  $region4: #{_lambda_.2} parent=0 // loop_header_branch
    %13 = sbr.rel (%p11) target = $region8
  $region5: #{_lambda_.2} parent=0 // loop_body
    %s15 = ssub.s32 %s10, 1
    %s16 = ssub.s32 %s10, 2
    %s23 = sadd.s32 1, %s18
    %p24 = scmp.ge.s32.totalorder %s23, 4
    %s25 = scalar_select %p24, 0, %s23
    %s26 = sadd.s32 1, %s17
    %s27 = scalar_select %p24, %s26, %s17
    %p28 = scmp.ge.s32.totalorder %s27, 2
    %s29 = scalar_select %p28, 0, %s27
    %s30 = ssub.s32 %s17, %s29
    %s31 = ssub.s32 %s18, %s25
    %s32 = sor.u32 %s30, %s31
    %p33 = scmp.eq.s32.totalorder %s32, 0
    %s35 = sadd.s32 %s34, 1
    %s36 = scalar_select %p33, %s34, %s35
    %p39 = pneg %p33
    %p40 = scmp.eq.s32.totalorder %s10, 7
    %p41 = por %p39, %p40
    %p42 = scmp.ne.s32.totalorder %s34, %s37
    %p43 = scmp.eq.s32.totalorder %s10, 0
    %p44 = por %p42, %p43
    %p45 = scmp.ne.s32.totalorder %s34, %s37
    %p46 = scmp.eq.s32.totalorder %s15, 7
    %p47 = por %p45, %p46
    %p48 = scmp.ne.s32.totalorder %s37, %s38
    %p49 = scmp.eq.s32.totalorder %s15, 0
    %p50 = por %p48, %p49
    %p51 = scmp.ne.s32.totalorder %s37, %s38
    %p52 = scmp.eq.s32.totalorder %s16, 7
    %p53 = por %p51, %p52
    %p55 = scmp.ne.s32.totalorder %s38, %s54
    %p56 = scmp.eq.s32.totalorder %s16, 0
    %p57 = por %p55, %p56
    %s58 = ssub.s32 %s18, %s25
    %p59 = scmp.eq.s32.totalorder %s58, 0
    %s61 = sadd.s32 %s60, 1
    %s62 = scalar_select %p59, %s60, %s61
    %p65 = pneg %p59
    %p66 = scmp.eq.s32.totalorder %s10, 7
    %p67 = por %p65, %p66
    %p68 = scmp.ne.s32.totalorder %s60, %s63
    %p69 = scmp.eq.s32.totalorder %s10, 0
    %p70 = por %p68, %p69
    %p71 = scmp.ne.s32.totalorder %s60, %s63
    %p72 = scmp.eq.s32.totalorder %s15, 7
    %p73 = por %p71, %p72
    %p74 = scmp.ne.s32.totalorder %s63, %s64
    %p75 = scmp.eq.s32.totalorder %s15, 0
    %p76 = por %p74, %p75
    %p77 = scmp.ne.s32.totalorder %s63, %s64
    %p78 = scmp.eq.s32.totalorder %s16, 7
    %p79 = por %p77, %p78
    %p81 = scmp.ne.s32.totalorder %s64, %s80
    %p82 = scmp.eq.s32.totalorder %s16, 0
    %p83 = por %p81, %p82
    %s84 = ssub.s32 %s18, %s25
    %p85 = scmp.eq.s32.totalorder %s84, 0
    %s87 = sadd.s32 %s86, 1
    %s88 = scalar_select %p85, %s86, %s87
    %p91 = pneg %p85
    %p92 = scmp.eq.s32.totalorder %s10, 7
    %p93 = por %p91, %p92
    %p94 = scmp.ne.s32.totalorder %s86, %s89
    %p95 = scmp.eq.s32.totalorder %s10, 0
    %p96 = por %p94, %p95
    %p97 = scmp.ne.s32.totalorder %s86, %s89
    %p98 = scmp.eq.s32.totalorder %s15, 7
    %p99 = por %p97, %p98
    %p100 = scmp.ne.s32.totalorder %s89, %s90
    %p101 = scmp.eq.s32.totalorder %s15, 0
    %p102 = por %p100, %p101
    %p103 = scmp.ne.s32.totalorder %s89, %s90
    %p104 = scmp.eq.s32.totalorder %s16, 7
    %p105 = por %p103, %p104
    %p107 = scmp.ne.s32.totalorder %s90, %s106
    %p108 = scmp.eq.s32.totalorder %s16, 0
    %p109 = por %p107, %p108
    %s110 = ssub.s32 %s18, %s25
    %p111 = scmp.eq.s32.totalorder %s110, 0
    %s113 = sadd.s32 %s112, 1
    %s114 = scalar_select %p111, %s112, %s113
    %p117 = pneg %p111
    %p118 = scmp.eq.s32.totalorder %s10, 7
    %p119 = por %p117, %p118
    %p120 = scmp.ne.s32.totalorder %s112, %s115
    %p121 = scmp.eq.s32.totalorder %s10, 0
    %p122 = por %p120, %p121
    %p123 = scmp.ne.s32.totalorder %s112, %s115
    %p124 = scmp.eq.s32.totalorder %s15, 7
    %p125 = por %p123, %p124
    %p126 = scmp.ne.s32.totalorder %s115, %s116
    %p127 = scmp.eq.s32.totalorder %s15, 0
    %p128 = por %p126, %p127
    %p129 = scmp.ne.s32.totalorder %s115, %s116
    %p130 = scmp.eq.s32.totalorder %s16, 7
    %p131 = por %p129, %p130
    %p133 = scmp.ne.s32.totalorder %s116, %s132
    %p134 = scmp.eq.s32.totalorder %s16, 0
    %p135 = por %p133, %p134
    %s136 = ssub.s32 %s17, %s29
    %s137 = ssub.s32 %s18, %s25
    %s138 = sor.u32 %s136, %s137
    %p139 = scmp.eq.s32.totalorder %s138, 0
    %s141 = sadd.s32 %s140, 1
    %s142 = scalar_select %p139, %s140, %s141
    %p145 = pneg %p139
    %p146 = scmp.eq.s32.totalorder %s10, 7
    %p147 = por %p145, %p146
    %p148 = scmp.ne.s32.totalorder %s140, %s143
    %p149 = scmp.eq.s32.totalorder %s10, 0
    %p150 = por %p148, %p149
    %p151 = scmp.ne.s32.totalorder %s140, %s143
    %p152 = scmp.eq.s32.totalorder %s15, 7
    %p153 = por %p151, %p152
    %p154 = scmp.ne.s32.totalorder %s143, %s144
    %p155 = scmp.eq.s32.totalorder %s15, 0
    %p156 = por %p154, %p155
    %p157 = scmp.ne.s32.totalorder %s143, %s144
    %p158 = scmp.eq.s32.totalorder %s16, 7
    %p159 = por %p157, %p158
    %p161 = scmp.ne.s32.totalorder %s144, %s160
    %p162 = scmp.eq.s32.totalorder %s16, 0
    %p163 = por %p161, %p162
    %p164 = scmp.le.s32.totalorder 1, %s10
    %p165 = scmp.lt.s32.totalorder %s10, 9
    %p166 = pnand %p164, %p165
    %p167 = pneg %p166
    // Predicated region
    $region9: #{_lambda_.2} parent=5 // pred_check
      _
    $region10: #{_lambda_.2} parent=5 // pred_check_branch
      %169 = sbr.rel (%p166) target = $region12
    $region11: #{_lambda_.2} parent=5 // pred_region
      %s170 = ssub.s32 %s10, 1
    $region12: #{_lambda_.2} parent=5 // pred_fallthru
      _
    %p171 = scmp.lt.s32.totalorder %s10, 8
    // Predicated region
    $region13: #{_lambda_.2} parent=5 // pred_check
      %p172 = pneg %p171
    $region14: #{_lambda_.2} parent=5 // pred_check_branch
      %174 = sbr.rel (%p172) target = $region16
    $region15: #{_lambda_.2} parent=5 // pred_region
      // Predicated region
      $region17: #{_lambda_.2} parent=15 // pred_check
        %p175 = pneg %p44
      $region18: #{_lambda_.2} parent=15 // pred_check_branch
        %177 = sbr.rel (%p175) target = $region20
      $region19: #{_lambda_.2} parent=15 // pred_region
        %p178 = scmp.lt.s32.totalorder %s17, 1
        %s179 = scalar_select %p178, %s17, 1
        %p180 = scmp.lt.s32.totalorder %s18, 3
        %s181 = scalar_select %p180, %s18, 3
        %s182 = smul.addr %s181, 5
        %s183 = smul.addr %s179, 20
        %s184 = sadd.s32 %s182, %s183
        %s185 = smul.addr %s184, 4
        %s186 = scalar_lea.vmem %s0, %s185
      $region20: #{_lambda_.2} parent=15 // pred_fallthru
        _
      // Predicated region
      $region21: #{_lambda_.2} parent=15 // pred_check
        %p187 = pneg %p70
      $region22: #{_lambda_.2} parent=15 // pred_check_branch
        %189 = sbr.rel (%p187) target = $region24
      $region23: #{_lambda_.2} parent=15 // pred_region
        %p190 = scmp.lt.s32.totalorder %s18, 3
        %s191 = scalar_select %p190, %s18, 3
        %s192 = smul.addr %s191, 2
        %s193 = scalar_lea.vmem %s1, %s192
      $region24: #{_lambda_.2} parent=15 // pred_fallthru
        _
      // Predicated region
      $region25: #{_lambda_.2} parent=15 // pred_check
        %p194 = pneg %p96
      $region26: #{_lambda_.2} parent=15 // pred_check_branch
        %196 = sbr.rel (%p194) target = $region28
      $region27: #{_lambda_.2} parent=15 // pred_region
        %p197 = scmp.lt.s32.totalorder %s18, 3
        %s198 = scalar_select %p197, %s18, 3
        %s199 = scalar_lea.vmem %s2, %s198
      $region28: #{_lambda_.2} parent=15 // pred_fallthru
        _
      // Predicated region
      $region29: #{_lambda_.2} parent=15 // pred_check
        %p200 = pneg %p122
      $region30: #{_lambda_.2} parent=15 // pred_check_branch
        %202 = sbr.rel (%p200) target = $region32
      $region31: #{_lambda_.2} parent=15 // pred_region
        %p203 = scmp.lt.s32.totalorder %s18, 3
        %s204 = scalar_select %p203, %s18, 3
        %s205 = scalar_lea.vmem %s3, %s204
      $region32: #{_lambda_.2} parent=15 // pred_fallthru
        _
    $region16: #{_lambda_.2} parent=5 // pred_fallthru
      _
    %p206 = scmp.le.s32.totalorder 1, %s10
    %p207 = scmp.lt.s32.totalorder %s10, 9
    %p208 = pnand %p206, %p207
    %p209 = pneg %p208
    // Predicated region
    $region33: #{_lambda_.2} parent=5 // pred_check
      _
    $region34: #{_lambda_.2} parent=5 // pred_check_branch
      %211 = sbr.rel (%p208) target = $region36
    $region35: #{_lambda_.2} parent=5 // pred_region
      %s212 = ssub.s32 %s10, 1
      %p213 = scmp.lt.s32.totalorder %s19, 1
      %s214 = scalar_select %p213, %s19, 1
      %p215 = scmp.lt.s32.totalorder %s20, 3
      %s216 = scalar_select %p215, %s20, 3
      %s217 = smul.addr %s216, 5
      %s218 = smul.addr %s214, 20
      %s219 = sadd.s32 %s217, %s218
      %s220 = smul.addr %s219, 4
      %s221 = scalar_lea.vmem %s0, %s220
      %p222 = pneg %p50
      %p223 = pneg %p47
      %p224 = scmp.lt.s32.totalorder %s20, 3
      %s225 = scalar_select %p224, %s20, 3
      %s226 = smul.addr %s225, 2
      %s227 = scalar_lea.vmem %s1, %s226
      %p228 = pneg %p76
      %p229 = pneg %p73
      %p230 = scmp.lt.s32.totalorder %s20, 3
      %s231 = scalar_select %p230, %s20, 3
      %s232 = scalar_lea.vmem %s2, %s231
      %p233 = pneg %p102
      %p234 = pneg %p99
      %p235 = scmp.lt.s32.totalorder %s20, 3
      %s236 = scalar_select %p235, %s20, 3
      %s237 = scalar_lea.vmem %s3, %s236
      %p238 = pneg %p128
      %p239 = pneg %p125
      %p240 = pneg %p156
      %p241 = pneg %p153
      %p242 = scmp.lt.s32.totalorder %s19, 1
      %s243 = scalar_select %p242, %s19, 1
      %p244 = scmp.lt.s32.totalorder %s20, 3
      %s245 = scalar_select %p244, %s20, 3
      %s246 = smul.addr %s245, 5
      %s247 = smul.addr %s243, 20
      %s248 = sadd.s32 %s246, %s247
      %s249 = smul.addr %s248, 4
      %s250 = scalar_lea.vmem %s4, %s249
      %p251 = scmp.lt.s32.totalorder %s19, 1
      %s252 = scalar_select %p251, %s19, 1
      %p253 = scmp.lt.s32.totalorder %s20, 3
      %s254 = scalar_select %p253, %s20, 3
      %s255 = smul.addr %s254, 5
      %s256 = smul.addr %s252, 20
      %s257 = sadd.s32 %s255, %s256
      %s258 = smul.addr %s257, 4
      %s259 = scalar_lea.vmem %s0, %s258
      %p260 = scmp.lt.s32.totalorder %s20, 3
      %s261 = scalar_select %p260, %s20, 3
      %s262 = smul.addr %s261, 2
      %s263 = scalar_lea.vmem %s1, %s262
      %p264 = scmp.lt.s32.totalorder %s20, 3
      %s265 = scalar_select %p264, %s20, 3
      %s266 = scalar_lea.vmem %s2, %s265
      %p267 = scmp.lt.s32.totalorder %s20, 3
      %s268 = scalar_select %p267, %s20, 3
      %s269 = scalar_lea.vmem %s3, %s268
      %p270 = scmp.lt.s32.totalorder %s19, 1
      %s271 = scalar_select %p270, %s19, 1
      %p272 = scmp.lt.s32.totalorder %s20, 3
      %s273 = scalar_select %p272, %s20, 3
      %s274 = smul.addr %s273, 5
      %s275 = smul.addr %s271, 20
      %s276 = sadd.s32 %s274, %s275
      %s277 = smul.addr %s276, 4
      %s278 = scalar_lea.vmem %s4, %s277
      %v280 = vld [vmem:[%s259] sm:$0xf]
      %v281 = vld [vmem:[%s259 + $0x4] sm:$0xf]
      %v282 = vld [vmem:[%s259 + $0x8] sm:$0xf]
      %v283 = vld [vmem:[%s259 + $0xc] sm:$0xf]
      %v284 = vld [vmem:[%s259 + $0x10] sm:$0xf]
      %v285 = vld [vmem:[%s263] sm:$0x3]
      %v291 = vunpack.c.l.b16 %v280
      %v292 = vunpack.c.l.b16 %v281
      %v293 = vunpack.c.l.b16 %v282
      %v294 = vunpack.c.l.b16 %v283
      %v295 = vunpack.c.l.b16 %v284
      %v296 = vpack.c.b16 %v292, %v291
      %v297 = vpack.c.b16 %v294, %v293
      %v298 = vpack.c.b16 %v295, %v295
      %vm299 = vcmask 31744
      %v301 = vsel %vm299, %v296, 0
      %v304 = vsel %vm299, %v297, 0
      %v307 = vsel %vm299, %v298, 0
      %vm309 = vcmask 1041408
      %v311 = vsel %vm309, %v285, 0
      %313 = vmatpush.bf16.msra.mxu0 0
      %314 = vmatpush.bf16.msra.mxu0 0
      %315 = vmatpush.bf16.msra.mxu0 0
      %316 = vmatpush.bf16.msra.mxu0 0
      %317 = vmatpush.bf16.msra.mxu0 0
      %318 = vmatpush.bf16.msra.mxu0 0
      %319 = vmatpush.bf16.msra.mxu0 0
      %320 = vmatpush.bf16.msra.mxu0 %v311
      %321 = vmatmul.bf16.gmra.mxu0 %v301
      %v322 = vpop.f32.mrf.mxu0
      %v323 = vadd.f32 0.0, %v322
      %v324 = vpop.f32.mrf.mxu0
      %v325 = vadd.f32 0.0, %v324
      %326 = vmatmul.bf16.gmra.mxu0 %v304
      %v327 = vpop.f32.mrf.mxu0
      %v328 = vadd.f32 0.0, %v327
      %v329 = vpop.f32.mrf.mxu0
      %v330 = vadd.f32 0.0, %v329
      %331 = vmatmul.bf16.gmra.mxu0 %v307
      %v332 = vpop.f32.mrf.mxu0
      %v333 = vadd.f32 0.0, %v332
      %v334 = vpop.f32.mrf.mxu0
      %335 = vdwg.mxu0
      %v336 = vld [vmem:[%s266] sm:$0x1]
      %v338 = vperm.slane %v336, 0
      %v340 = vmul.f32 %v323, %v338
      %v341 = vmul.f32 %v325, %v338
      %v342 = vmul.f32 %v328, %v338
      %v343 = vmul.f32 %v330, %v338
      %v344 = vmul.f32 %v333, %v338
      %v345 = vld [vmem:[%s269] sm:$0x1]
      %v347 = vperm.slane %v345, 0
      %v349 = vadd.f32 %v340, %v347
      %v350 = vadd.f32 %v341, %v347
      %v351 = vadd.f32 %v342, %v347
      %v352 = vadd.f32 %v343, %v347
      %v353 = vadd.f32 %v344, %v347
      %v354 = vmax.f32 %v349, 0.0
      %v355 = vmax.f32 %v350, 0.0
      %v356 = vmax.f32 %v351, 0.0
      %v357 = vmax.f32 %v352, 0.0
      %v358 = vmax.f32 %v353, 0.0
      %v359 = vpack.c.bf16 %v354, %v354
      %v360 = vpack.c.bf16 %v355, %v355
      %v361 = vpack.c.bf16 %v356, %v356
      %v362 = vpack.c.bf16 %v357, %v357
      %v363 = vpack.c.bf16 %v358, %v358
      %vm364 = vcmask 27648
      %365 = vst.msk [vmem:[%s278] sm:$0xf] %vm364, %v359
      %366 = vst.msk [vmem:[%s278 + $0x4] sm:$0xf] %vm364, %v360
      %367 = vst.msk [vmem:[%s278 + $0x8] sm:$0xf] %vm364, %v361
      %368 = vst.msk [vmem:[%s278 + $0xc] sm:$0xf] %vm364, %v362
      %369 = vst.msk [vmem:[%s278 + $0x10] sm:$0xf] %vm364, %v363
      %p370 = scmp.lt.s32.totalorder %s19, 1
      %s371 = scalar_select %p370, %s19, 1
      %p372 = scmp.lt.s32.totalorder %s20, 3
      %s373 = scalar_select %p372, %s20, 3
      %s374 = smul.addr %s373, 5
      %s375 = smul.addr %s371, 20
      %s376 = sadd.s32 %s374, %s375
      %s377 = smul.addr %s376, 4
      %s378 = scalar_lea.vmem %s4, %s377
      // Predicated region
      $region37: #{_lambda_.2} parent=35 // pred_check
        %p379 = pneg %p153
      $region38: #{_lambda_.2} parent=35 // pred_check_branch
        %381 = sbr.rel (%p379) target = $region40
      $region39: #{_lambda_.2} parent=35 // pred_region
        _
      $region40: #{_lambda_.2} parent=35 // pred_fallthru
        _
    $region36: #{_lambda_.2} parent=5 // pred_fallthru
      _
    %p382 = scmp.le.s32.totalorder 2, %s10
    // Predicated region
    $region41: #{_lambda_.2} parent=5 // pred_check
      %p383 = pneg %p382
    $region42: #{_lambda_.2} parent=5 // pred_check_branch
      %385 = sbr.rel (%p383) target = $region44
    $region43: #{_lambda_.2} parent=5 // pred_region
      %s386 = ssub.s32 %s10, 2
      // Predicated region
      $region45: #{_lambda_.2} parent=43 // pred_check
        %p387 = pneg %p159
      $region46: #{_lambda_.2} parent=43 // pred_check_branch
        %389 = sbr.rel (%p387) target = $region48
      $region47: #{_lambda_.2} parent=43 // pred_region
        %p390 = scmp.lt.s32.totalorder %s21, 1
        %s391 = scalar_select %p390, %s21, 1
        %p392 = scmp.lt.s32.totalorder %s22, 3
        %s393 = scalar_select %p392, %s22, 3
        %s394 = smul.addr %s393, 5
        %s395 = smul.addr %s391, 20
        %s396 = sadd.s32 %s394, %s395
        %s397 = smul.addr %s396, 4
        %s398 = scalar_lea.vmem %s4, %s397
      $region48: #{_lambda_.2} parent=43 // pred_fallthru
        _
    $region44: #{_lambda_.2} parent=5 // pred_fallthru
      _
  $region6: #{_lambda_.2} parent=0 // loop_footer
    %s14 = sadd.s32 1, %s10
  $region7: #{_lambda_.2} parent=0 // loop_footer_branch
    %9 = sbr.rel target = $region3
  $region8: #{_lambda_.2} parent=0 // loop_exit
    _

// kernel: _lambda_.3
$region0: #{_lambda_.3}
  #allocation0 [shape = 'u32[]', space=smem, size = 0x4, offset = 0x4, fixed_abs, tag = 'smem constant byte address 0x4 - core index']
  #allocation1 [shape = 'u32[72,128]{1,0:T(1,128)}', space=vmem, size = 0x9000, scoped, tag = 'internal scratch']
  #allocation2 [shape = 'bf16[320,4]{1,0:T(8,128)(2,1)}', space=vmem, size = 0x14000, scoped, tag = 'scratch operand']
  #allocation3 [shape = 'bf16[10,4,8,4]{3,2,1,0:T(8,128)(2,1)}', space=vmem, size = 0x14000, scoped, tag = 'scratch operand']
  #allocation4 [shape = 'bf16[320,4]{1,0:T(8,128)(2,1)}', space=vmem, size = 0x14000, scoped, tag = 'scratch operand']
  %s0 = inlined_call_operand.vmem [shape: bf16[2,24,32,4], index: 0, kind: input, shape index: {}, may-alias: {0,1}]
  %s1 = inlined_call_operand.vmem [shape: bf16[2,24,32,4], index: 1, kind: input, shape index: {}, may-alias: {0,1}]
  %s2 = inlined_call_operand.vmem [shape: bf16[2,24,4,8,4], index: 2, kind: input, shape index: {}, may-alias: {2,3}]
  %s3 = inlined_call_operand.vmem [shape: bf16[2,24,4,8,4], index: 3, kind: input, shape index: {}, may-alias: {2,3}]
  %s4 = inlined_call_operand.vmem [shape: bf16[3,3,4,4], index: 4, kind: input, shape index: {}]
  %s5 = inlined_call_operand.vmem [shape: bf16[4,3,3,4,4], index: 5, kind: input, shape index: {}]
  %s6 = inlined_call_operand.vmem [shape: bf16[4,32,8], index: 6, kind: input, shape index: {}]
  %s7 = inlined_call_operand.vmem [shape: f32[1,4], index: 7, kind: input, shape index: {}]
  %s8 = inlined_call_operand.vmem [shape: f32[1,4], index: 8, kind: input, shape index: {}]
  %s9 = inlined_call_operand.vmem [shape: bf16[2,16,16,4], index: 9, kind: output, shape index: {}]
  %s10 = sld [smem:[#allocation0]]
  $region69: #{_lambda_.3} parent=0
    _
  %s12 = ssub.s32 1, %s10
  %s13 = scalar_select 0, %s12, %s10
  loop: start=0, step=1, limit=6
  $region2: #{_lambda_.3} parent=0 // loop_pre_header
    _
  $region3: #{_lambda_.3} parent=0 // loop_header
    %s15 = sphi 0, %s19
    %p16 = scmp.ge.s32.totalorder %s15, 6
    %s22 = sphi 0, %s41
    %s23 = sphi 0, %s37
    %s24 = sphi 0, %s33
    %s25 = sphi 0, %s22
    %s26 = sphi 0, %s23
    %s27 = sphi 0, %s24
    %s28 = sphi 0, %s25
    %s29 = sphi 0, %s26
    %s30 = sphi 0, %s27
    %s46 = sphi 0, %s48
    %s49 = sphi 0, %s46
    %s50 = sphi 0, %s49
    %s66 = sphi 0, %s50
    %s76 = sphi 0, %s78
    %s79 = sphi 0, %s76
    %s80 = sphi 0, %s79
    %s96 = sphi 0, %s80
    %s104 = sphi 0, %s106
    %s107 = sphi 0, %s104
    %s108 = sphi 0, %s107
    %s124 = sphi 0, %s108
    %s134 = sphi 0, %s136
    %s137 = sphi 0, %s134
    %s138 = sphi 0, %s137
    %s154 = sphi 0, %s138
    %s160 = sphi 0, %s162
    %s163 = sphi 0, %s160
    %s164 = sphi 0, %s163
    %s180 = sphi 0, %s164
    %s186 = sphi 0, %s188
    %s189 = sphi 0, %s186
    %s190 = sphi 0, %s189
    %s206 = sphi 0, %s190
    %s210 = sphi 0, %s210
    %s212 = sphi 0, %s210
    %s213 = sphi 0, %s212
    %s227 = sphi 0, %s213
    %s233 = sphi 0, %s235
    %s236 = sphi 0, %s233
    %s237 = sphi 0, %s236
    %s253 = sphi 0, %s237
    %s259 = sphi 0, %s261
    %s262 = sphi 0, %s259
    %s263 = sphi 0, %s262
    %s279 = sphi 0, %s263
    %s289 = sphi 0, %s291
    %s292 = sphi 0, %s289
    %s293 = sphi 0, %s292
    %s309 = sphi 0, %s293
  $region4: #{_lambda_.3} parent=0 // loop_header_branch
    %18 = sbr.rel (%p16) target = $region8
  $region5: #{_lambda_.3} parent=0 // loop_body
    %s20 = ssub.s32 %s15, 1
    %s21 = ssub.s32 %s15, 2
    %s31 = sadd.s32 1, %s24
    %p32 = scmp.ge.s32.totalorder %s31, 2
    %s33 = scalar_select %p32, 0, %s31
    %s34 = sadd.s32 1, %s23
    %s35 = scalar_select %p32, %s34, %s23
    %p36 = scmp.ge.s32.totalorder %s35, 1
    %s37 = scalar_select %p36, 0, %s35
    %s38 = sadd.s32 1, %s22
    %s39 = scalar_select %p36, %s38, %s22
    %p40 = scmp.ge.s32.totalorder %s39, 2
    %s41 = scalar_select %p40, 0, %s39
    %s42 = ssub.s32 %s22, %s41
    %s43 = ssub.s32 %s24, %s33
    %s44 = sor.u32 %s42, %s43
    %p45 = scmp.eq.s32.totalorder %s44, 0
    %s47 = sadd.s32 %s46, 1
    %s48 = scalar_select %p45, %s46, %s47
    %p51 = pneg %p45
    %p52 = scmp.eq.s32.totalorder %s15, 3
    %p53 = por %p51, %p52
    %p54 = scmp.ne.s32.totalorder %s46, %s49
    %p55 = scmp.eq.s32.totalorder %s15, 0
    %p56 = por %p54, %p55
    %p57 = scmp.ne.s32.totalorder %s46, %s49
    %p58 = scmp.eq.s32.totalorder %s20, 3
    %p59 = por %p57, %p58
    %p60 = scmp.ne.s32.totalorder %s49, %s50
    %p61 = scmp.eq.s32.totalorder %s20, 0
    %p62 = por %p60, %p61
    %p63 = scmp.ne.s32.totalorder %s49, %s50
    %p64 = scmp.eq.s32.totalorder %s21, 3
    %p65 = por %p63, %p64
    %p67 = scmp.ne.s32.totalorder %s50, %s66
    %p68 = scmp.eq.s32.totalorder %s21, 0
    %p69 = por %p67, %p68
    %s70 = sadd.s32 %s24, 1
    %s71 = sadd.s32 %s33, 1
    %s72 = ssub.s32 %s22, %s41
    %s73 = ssub.s32 %s70, %s71
    %s74 = sor.u32 %s72, %s73
    %p75 = scmp.eq.s32.totalorder %s74, 0
    %s77 = sadd.s32 %s76, 1
    %s78 = scalar_select %p75, %s76, %s77
    %p81 = pneg %p75
    %p82 = scmp.eq.s32.totalorder %s15, 3
    %p83 = por %p81, %p82
    %p84 = scmp.ne.s32.totalorder %s76, %s79
    %p85 = scmp.eq.s32.totalorder %s15, 0
    %p86 = por %p84, %p85
    %p87 = scmp.ne.s32.totalorder %s76, %s79
    %p88 = scmp.eq.s32.totalorder %s20, 3
    %p89 = por %p87, %p88
    %p90 = scmp.ne.s32.totalorder %s79, %s80
    %p91 = scmp.eq.s32.totalorder %s20, 0
    %p92 = por %p90, %p91
    %p93 = scmp.ne.s32.totalorder %s79, %s80
    %p94 = scmp.eq.s32.totalorder %s21, 3
    %p95 = por %p93, %p94
    %p97 = scmp.ne.s32.totalorder %s80, %s96
    %p98 = scmp.eq.s32.totalorder %s21, 0
    %p99 = por %p97, %p98
    %s100 = ssub.s32 %s22, %s41
    %s101 = ssub.s32 %s24, %s33
    %s102 = sor.u32 %s100, %s101
    %p103 = scmp.eq.s32.totalorder %s102, 0
    %s105 = sadd.s32 %s104, 1
    %s106 = scalar_select %p103, %s104, %s105
    %p109 = pneg %p103
    %p110 = scmp.eq.s32.totalorder %s15, 3
    %p111 = por %p109, %p110
    %p112 = scmp.ne.s32.totalorder %s104, %s107
    %p113 = scmp.eq.s32.totalorder %s15, 0
    %p114 = por %p112, %p113
    %p115 = scmp.ne.s32.totalorder %s104, %s107
    %p116 = scmp.eq.s32.totalorder %s20, 3
    %p117 = por %p115, %p116
    %p118 = scmp.ne.s32.totalorder %s107, %s108
    %p119 = scmp.eq.s32.totalorder %s20, 0
    %p120 = por %p118, %p119
    %p121 = scmp.ne.s32.totalorder %s107, %s108
    %p122 = scmp.eq.s32.totalorder %s21, 3
    %p123 = por %p121, %p122
    %p125 = scmp.ne.s32.totalorder %s108, %s124
    %p126 = scmp.eq.s32.totalorder %s21, 0
    %p127 = por %p125, %p126
    %s128 = sadd.s32 %s24, 1
    %s129 = sadd.s32 %s33, 1
    %s130 = ssub.s32 %s22, %s41
    %s131 = ssub.s32 %s128, %s129
    %s132 = sor.u32 %s130, %s131
    %p133 = scmp.eq.s32.totalorder %s132, 0
    %s135 = sadd.s32 %s134, 1
    %s136 = scalar_select %p133, %s134, %s135
    %p139 = pneg %p133
    %p140 = scmp.eq.s32.totalorder %s15, 3
    %p141 = por %p139, %p140
    %p142 = scmp.ne.s32.totalorder %s134, %s137
    %p143 = scmp.eq.s32.totalorder %s15, 0
    %p144 = por %p142, %p143
    %p145 = scmp.ne.s32.totalorder %s134, %s137
    %p146 = scmp.eq.s32.totalorder %s20, 3
    %p147 = por %p145, %p146
    %p148 = scmp.ne.s32.totalorder %s137, %s138
    %p149 = scmp.eq.s32.totalorder %s20, 0
    %p150 = por %p148, %p149
    %p151 = scmp.ne.s32.totalorder %s137, %s138
    %p152 = scmp.eq.s32.totalorder %s21, 3
    %p153 = por %p151, %p152
    %p155 = scmp.ne.s32.totalorder %s138, %s154
    %p156 = scmp.eq.s32.totalorder %s21, 0
    %p157 = por %p155, %p156
    %s158 = ssub.s32 %s23, %s37
    %p159 = scmp.eq.s32.totalorder %s158, 0
    %s161 = sadd.s32 %s160, 1
    %s162 = scalar_select %p159, %s160, %s161
    %p165 = pneg %p159
    %p166 = scmp.eq.s32.totalorder %s15, 3
    %p167 = por %p165, %p166
    %p168 = scmp.ne.s32.totalorder %s160, %s163
    %p169 = scmp.eq.s32.totalorder %s15, 0
    %p170 = por %p168, %p169
    %p171 = scmp.ne.s32.totalorder %s160, %s163
    %p172 = scmp.eq.s32.totalorder %s20, 3
    %p173 = por %p171, %p172
    %p174 = scmp.ne.s32.totalorder %s163, %s164
    %p175 = scmp.eq.s32.totalorder %s20, 0
    %p176 = por %p174, %p175
    %p177 = scmp.ne.s32.totalorder %s163, %s164
    %p178 = scmp.eq.s32.totalorder %s21, 3
    %p179 = por %p177, %p178
    %p181 = scmp.ne.s32.totalorder %s164, %s180
    %p182 = scmp.eq.s32.totalorder %s21, 0
    %p183 = por %p181, %p182
    %s184 = ssub.s32 %s23, %s37
    %p185 = scmp.eq.s32.totalorder %s184, 0
    %s187 = sadd.s32 %s186, 1
    %s188 = scalar_select %p185, %s186, %s187
    %p191 = pneg %p185
    %p192 = scmp.eq.s32.totalorder %s15, 3
    %p193 = por %p191, %p192
    %p194 = scmp.ne.s32.totalorder %s186, %s189
    %p195 = scmp.eq.s32.totalorder %s15, 0
    %p196 = por %p194, %p195
    %p197 = scmp.ne.s32.totalorder %s186, %s189
    %p198 = scmp.eq.s32.totalorder %s20, 3
    %p199 = por %p197, %p198
    %p200 = scmp.ne.s32.totalorder %s189, %s190
    %p201 = scmp.eq.s32.totalorder %s20, 0
    %p202 = por %p200, %p201
    %p203 = scmp.ne.s32.totalorder %s189, %s190
    %p204 = scmp.eq.s32.totalorder %s21, 3
    %p205 = por %p203, %p204
    %p207 = scmp.ne.s32.totalorder %s190, %s206
    %p208 = scmp.eq.s32.totalorder %s21, 0
    %p209 = por %p207, %p208
    %s211 = sadd.s32 %s210, 1
    %p214 = scmp.eq.s32.totalorder %s15, 3
    %p215 = scmp.ne.s32.totalorder %s210, %s212
    %p216 = scmp.eq.s32.totalorder %s15, 0
    %p217 = por %p215, %p216
    %p218 = scmp.ne.s32.totalorder %s210, %s212
    %p219 = scmp.eq.s32.totalorder %s20, 3
    %p220 = por %p218, %p219
    %p221 = scmp.ne.s32.totalorder %s212, %s213
    %p222 = scmp.eq.s32.totalorder %s20, 0
    %p223 = por %p221, %p222
    %p224 = scmp.ne.s32.totalorder %s212, %s213
    %p225 = scmp.eq.s32.totalorder %s21, 3
    %p226 = por %p224, %p225
    %p228 = scmp.ne.s32.totalorder %s213, %s227
    %p229 = scmp.eq.s32.totalorder %s21, 0
    %p230 = por %p228, %p229
    %s231 = ssub.s32 %s23, %s37
    %p232 = scmp.eq.s32.totalorder %s231, 0
    %s234 = sadd.s32 %s233, 1
    %s235 = scalar_select %p232, %s233, %s234
    %p238 = pneg %p232
    %p239 = scmp.eq.s32.totalorder %s15, 3
    %p240 = por %p238, %p239
    %p241 = scmp.ne.s32.totalorder %s233, %s236
    %p242 = scmp.eq.s32.totalorder %s15, 0
    %p243 = por %p241, %p242
    %p244 = scmp.ne.s32.totalorder %s233, %s236
    %p245 = scmp.eq.s32.totalorder %s20, 3
    %p246 = por %p244, %p245
    %p247 = scmp.ne.s32.totalorder %s236, %s237
    %p248 = scmp.eq.s32.totalorder %s20, 0
    %p249 = por %p247, %p248
    %p250 = scmp.ne.s32.totalorder %s236, %s237
    %p251 = scmp.eq.s32.totalorder %s21, 3
    %p252 = por %p250, %p251
    %p254 = scmp.ne.s32.totalorder %s237, %s253
    %p255 = scmp.eq.s32.totalorder %s21, 0
    %p256 = por %p254, %p255
    %s257 = ssub.s32 %s23, %s37
    %p258 = scmp.eq.s32.totalorder %s257, 0
    %s260 = sadd.s32 %s259, 1
    %s261 = scalar_select %p258, %s259, %s260
    %p264 = pneg %p258
    %p265 = scmp.eq.s32.totalorder %s15, 3
    %p266 = por %p264, %p265
    %p267 = scmp.ne.s32.totalorder %s259, %s262
    %p268 = scmp.eq.s32.totalorder %s15, 0
    %p269 = por %p267, %p268
    %p270 = scmp.ne.s32.totalorder %s259, %s262
    %p271 = scmp.eq.s32.totalorder %s20, 3
    %p272 = por %p270, %p271
    %p273 = scmp.ne.s32.totalorder %s262, %s263
    %p274 = scmp.eq.s32.totalorder %s20, 0
    %p275 = por %p273, %p274
    %p276 = scmp.ne.s32.totalorder %s262, %s263
    %p277 = scmp.eq.s32.totalorder %s21, 3
    %p278 = por %p276, %p277
    %p280 = scmp.ne.s32.totalorder %s263, %s279
    %p281 = scmp.eq.s32.totalorder %s21, 0
    %p282 = por %p280, %p281
    %s283 = ssub.s32 %s22, %s41
    %s284 = ssub.s32 %s24, %s33
    %s285 = sor.u32 %s283, %s284
    %s286 = ssub.s32 %s23, %s37
    %s287 = sor.u32 %s285, %s286
    %p288 = scmp.eq.s32.totalorder %s287, 0
    %s290 = sadd.s32 %s289, 1
    %s291 = scalar_select %p288, %s289, %s290
    %p294 = pneg %p288
    %p295 = scmp.eq.s32.totalorder %s15, 3
    %p296 = por %p294, %p295
    %p297 = scmp.ne.s32.totalorder %s289, %s292
    %p298 = scmp.eq.s32.totalorder %s15, 0
    %p299 = por %p297, %p298
    %p300 = scmp.ne.s32.totalorder %s289, %s292
    %p301 = scmp.eq.s32.totalorder %s20, 3
    %p302 = por %p300, %p301
    %p303 = scmp.ne.s32.totalorder %s292, %s293
    %p304 = scmp.eq.s32.totalorder %s20, 0
    %p305 = por %p303, %p304
    %p306 = scmp.ne.s32.totalorder %s292, %s293
    %p307 = scmp.eq.s32.totalorder %s21, 3
    %p308 = por %p306, %p307
    %p310 = scmp.ne.s32.totalorder %s293, %s309
    %p311 = scmp.eq.s32.totalorder %s21, 0
    %p312 = por %p310, %p311
    %p313 = scmp.le.s32.totalorder 1, %s15
    %p314 = scmp.lt.s32.totalorder %s15, 5
    %p315 = pnand %p313, %p314
    %p316 = pneg %p315
    // Predicated region
    $region9: #{_lambda_.3} parent=5 // pred_check
      _
    $region10: #{_lambda_.3} parent=5 // pred_check_branch
      %318 = sbr.rel (%p315) target = $region12
    $region11: #{_lambda_.3} parent=5 // pred_region
      %s319 = ssub.s32 %s15, 1
      // Predicated region
      $region13: #{_lambda_.3} parent=11 // pred_check
        %p320 = pneg %p176
      $region14: #{_lambda_.3} parent=11 // pred_check_branch
        %322 = sbr.rel (%p320) target = $region16
      $region15: #{_lambda_.3} parent=11 // pred_region
        %p323 = scmp.lt.s32.totalorder %s26, 0
        %s324 = scalar_select %p323, %s26, 0
        %s325 = smul.addr %s324, 2
        %s326 = scalar_lea.vmem %s4, %s325
      $region16: #{_lambda_.3} parent=11 // pred_fallthru
        _
      // Predicated region
      $region17: #{_lambda_.3} parent=11 // pred_check
        %p327 = pneg %p202
      $region18: #{_lambda_.3} parent=11 // pred_check_branch
        %329 = sbr.rel (%p327) target = $region20
      $region19: #{_lambda_.3} parent=11 // pred_region
        %p330 = scmp.lt.s32.totalorder %s26, 0
        %s331 = scalar_select %p330, %s26, 0
        %s332 = smul.addr %s331, 2
        %s333 = scalar_lea.vmem %s5, %s332
      $region20: #{_lambda_.3} parent=11 // pred_fallthru
        _
      // Predicated region
      $region21: #{_lambda_.3} parent=11 // pred_check
        %p334 = pneg %p223
      $region22: #{_lambda_.3} parent=11 // pred_check_branch
        %336 = sbr.rel (%p334) target = $region24
      $region23: #{_lambda_.3} parent=11 // pred_region
        _
      $region24: #{_lambda_.3} parent=11 // pred_fallthru
        _
      // Predicated region
      $region25: #{_lambda_.3} parent=11 // pred_check
        %p337 = pneg %p249
      $region26: #{_lambda_.3} parent=11 // pred_check_branch
        %339 = sbr.rel (%p337) target = $region28
      $region27: #{_lambda_.3} parent=11 // pred_region
        %p340 = scmp.lt.s32.totalorder %s26, 0
        %s341 = scalar_select %p340, %s26, 0
        %s342 = scalar_lea.vmem %s7, %s341
      $region28: #{_lambda_.3} parent=11 // pred_fallthru
        _
      // Predicated region
      $region29: #{_lambda_.3} parent=11 // pred_check
        %p343 = pneg %p275
      $region30: #{_lambda_.3} parent=11 // pred_check_branch
        %345 = sbr.rel (%p343) target = $region32
      $region31: #{_lambda_.3} parent=11 // pred_region
        %p346 = scmp.lt.s32.totalorder %s26, 0
        %s347 = scalar_select %p346, %s26, 0
        %s348 = scalar_lea.vmem %s8, %s347
      $region32: #{_lambda_.3} parent=11 // pred_fallthru
        _
    $region12: #{_lambda_.3} parent=5 // pred_fallthru
      _
    %p349 = scmp.lt.s32.totalorder %s15, 4
    // Predicated region
    $region33: #{_lambda_.3} parent=5 // pred_check
      %p350 = pneg %p349
    $region34: #{_lambda_.3} parent=5 // pred_check_branch
      %352 = sbr.rel (%p350) target = $region36
    $region35: #{_lambda_.3} parent=5 // pred_region
      // Predicated region
      $region37: #{_lambda_.3} parent=35 // pred_check
        %p353 = pneg %p56
      $region38: #{_lambda_.3} parent=35 // pred_check_branch
        %355 = sbr.rel (%p353) target = $region40
      $region39: #{_lambda_.3} parent=35 // pred_region
        %s356 = smul.u32 8, %s24
        %p357 = scmp.lt.s32.totalorder %s22, 1
        %s358 = scalar_select %p357, %s22, 1
        %p359 = scmp.lt.s32.totalorder %s356, 23
        %s360 = scalar_select %p359, %s356, 23
        %s361 = smul.addr %s360, 4
        %s362 = smul.addr %s358, 96
        %s363 = sadd.s32 %s361, %s362
        %s364 = smul.addr %s363, 4
        %s365 = scalar_lea.vmem %s0, %s364
        %s366 = smul.u32 8, %s24
      $region40: #{_lambda_.3} parent=35 // pred_fallthru
        _
      // Predicated region
      $region41: #{_lambda_.3} parent=35 // pred_check
        %p367 = pneg %p86
      $region42: #{_lambda_.3} parent=35 // pred_check_branch
        %369 = sbr.rel (%p367) target = $region44
      $region43: #{_lambda_.3} parent=35 // pred_region
        %s370 = sadd.s32 %s24, 1
        %s371 = smul.u32 8, %s370
        %p372 = scmp.lt.s32.totalorder %s22, 1
        %s373 = scalar_select %p372, %s22, 1
        %p374 = scmp.lt.s32.totalorder %s371, 23
        %s375 = scalar_select %p374, %s371, 23
        %s376 = smul.addr %s375, 4
        %s377 = smul.addr %s373, 96
        %s378 = sadd.s32 %s376, %s377
        %s379 = smul.addr %s378, 4
        %s380 = scalar_lea.vmem %s1, %s379
        %s381 = sadd.s32 %s24, 1
        %s382 = smul.u32 8, %s381
      $region44: #{_lambda_.3} parent=35 // pred_fallthru
        _
      // Predicated region
      $region45: #{_lambda_.3} parent=35 // pred_check
        %p383 = pneg %p114
      $region46: #{_lambda_.3} parent=35 // pred_check_branch
        %385 = sbr.rel (%p383) target = $region48
      $region47: #{_lambda_.3} parent=35 // pred_region
        %s386 = smul.u32 8, %s24
        %p387 = scmp.lt.s32.totalorder %s22, 1
        %s388 = scalar_select %p387, %s22, 1
        %p389 = scmp.lt.s32.totalorder %s386, 23
        %s390 = scalar_select %p389, %s386, 23
        %s391 = smul.addr %s390, 4
        %s392 = smul.addr %s388, 96
        %s393 = sadd.s32 %s391, %s392
        %s394 = smul.addr %s393, 4
        %s395 = scalar_lea.vmem %s2, %s394
        %s396 = smul.u32 8, %s24
      $region48: #{_lambda_.3} parent=35 // pred_fallthru
        _
      // Predicated region
      $region49: #{_lambda_.3} parent=35 // pred_check
        %p397 = pneg %p144
      $region50: #{_lambda_.3} parent=35 // pred_check_branch
        %399 = sbr.rel (%p397) target = $region52
      $region51: #{_lambda_.3} parent=35 // pred_region
        %s400 = sadd.s32 %s24, 1
        %s401 = smul.u32 8, %s400
        %p402 = scmp.lt.s32.totalorder %s22, 1
        %s403 = scalar_select %p402, %s22, 1
        %p404 = scmp.lt.s32.totalorder %s401, 23
        %s405 = scalar_select %p404, %s401, 23
        %s406 = smul.addr %s405, 4
        %s407 = smul.addr %s403, 96
        %s408 = sadd.s32 %s406, %s407
        %s409 = smul.addr %s408, 4
        %s410 = scalar_lea.vmem %s3, %s409
        %s411 = sadd.s32 %s24, 1
        %s412 = smul.u32 8, %s411
      $region52: #{_lambda_.3} parent=35 // pred_fallthru
        _
    $region36: #{_lambda_.3} parent=5 // pred_fallthru
      _
    %p413 = scmp.le.s32.totalorder 1, %s15
    %p414 = scmp.lt.s32.totalorder %s15, 5
    %p415 = pnand %p413, %p414
    %p416 = pneg %p415
    // Predicated region
    $region53: #{_lambda_.3} parent=5 // pred_check
      _
    $region54: #{_lambda_.3} parent=5 // pred_check_branch
      %418 = sbr.rel (%p415) target = $region56
    $region55: #{_lambda_.3} parent=5 // pred_region
      %s419 = ssub.s32 %s15, 1
      %s420 = smul.u32 8, %s27
      %p421 = scmp.lt.s32.totalorder %s25, 1
      %s422 = scalar_select %p421, %s25, 1
      %p423 = scmp.lt.s32.totalorder %s420, 23
      %s424 = scalar_select %p423, %s420, 23
      %s425 = smul.addr %s424, 4
      %s426 = smul.addr %s422, 96
      %s427 = sadd.s32 %s425, %s426
      %s428 = smul.addr %s427, 4
      %s429 = scalar_lea.vmem %s0, %s428
      %p430 = pneg %p62
      %p431 = pneg %p59
      %s432 = sadd.s32 %s27, 1
      %s433 = smul.u32 8, %s432
      %p434 = scmp.lt.s32.totalorder %s25, 1
      %s435 = scalar_select %p434, %s25, 1
      %p436 = scmp.lt.s32.totalorder %s433, 23
      %s437 = scalar_select %p436, %s433, 23
      %s438 = smul.addr %s437, 4
      %s439 = smul.addr %s435, 96
      %s440 = sadd.s32 %s438, %s439
      %s441 = smul.addr %s440, 4
      %s442 = scalar_lea.vmem %s1, %s441
      %p443 = pneg %p92
      %p444 = pneg %p89
      %s445 = smul.u32 8, %s27
      %p446 = scmp.lt.s32.totalorder %s25, 1
      %s447 = scalar_select %p446, %s25, 1
      %p448 = scmp.lt.s32.totalorder %s445, 23
      %s449 = scalar_select %p448, %s445, 23
      %s450 = smul.addr %s449, 4
      %s451 = smul.addr %s447, 96
      %s452 = sadd.s32 %s450, %s451
      %s453 = smul.addr %s452, 4
      %s454 = scalar_lea.vmem %s2, %s453
      %p455 = pneg %p120
      %p456 = pneg %p117
      %s457 = sadd.s32 %s27, 1
      %s458 = smul.u32 8, %s457
      %p459 = scmp.lt.s32.totalorder %s25, 1
      %s460 = scalar_select %p459, %s25, 1
      %p461 = scmp.lt.s32.totalorder %s458, 23
      %s462 = scalar_select %p461, %s458, 23
      %s463 = smul.addr %s462, 4
      %s464 = smul.addr %s460, 96
      %s465 = sadd.s32 %s463, %s464
      %s466 = smul.addr %s465, 4
      %s467 = scalar_lea.vmem %s3, %s466
      %p468 = pneg %p150
      %p469 = pneg %p147
      %p470 = scmp.lt.s32.totalorder %s26, 0
      %s471 = scalar_select %p470, %s26, 0
      %s472 = smul.addr %s471, 2
      %s473 = scalar_lea.vmem %s4, %s472
      %p474 = pneg %p176
      %p475 = pneg %p173
      %p476 = scmp.lt.s32.totalorder %s26, 0
      %s477 = scalar_select %p476, %s26, 0
      %s478 = smul.addr %s477, 2
      %s479 = scalar_lea.vmem %s5, %s478
      %p480 = pneg %p202
      %p481 = pneg %p199
      %p482 = pneg %p223
      %p483 = pneg %p220
      %p484 = scmp.lt.s32.totalorder %s26, 0
      %s485 = scalar_select %p484, %s26, 0
      %s486 = scalar_lea.vmem %s7, %s485
      %p487 = pneg %p249
      %p488 = pneg %p246
      %p489 = scmp.lt.s32.totalorder %s26, 0
      %s490 = scalar_select %p489, %s26, 0
      %s491 = scalar_lea.vmem %s8, %s490
      %p492 = pneg %p275
      %p493 = pneg %p272
      %p494 = pneg %p305
      %p495 = pneg %p302
      %s496 = smul.u32 8, %s27
      %p497 = scmp.lt.s32.totalorder %s25, 1
      %s498 = scalar_select %p497, %s25, 1
      %p499 = scmp.lt.s32.totalorder %s496, 15
      %s500 = scalar_select %p499, %s496, 15
      %p501 = scmp.lt.s32.totalorder %s26, 0
      %s502 = scalar_select %p501, %s26, 0
      %s503 = smul.addr %s500, 2
      %s504 = sadd.s32 %s502, %s503
      %s505 = smul.addr %s498, 32
      %s506 = sadd.s32 %s504, %s505
      %s507 = smul.addr %s506, 4
      %s508 = scalar_lea.vmem %s9, %s507
      %s509 = smul.u32 8, %s27
      %p510 = scmp.lt.s32.totalorder %s25, 1
      %s511 = scalar_select %p510, %s25, 1
      %p512 = scmp.lt.s32.totalorder %s509, 23
      %s513 = scalar_select %p512, %s509, 23
      %s514 = smul.addr %s513, 4
      %s515 = smul.addr %s511, 96
      %s516 = sadd.s32 %s514, %s515
      %s517 = smul.addr %s516, 4
      %s518 = scalar_lea.vmem %s0, %s517
      %s519 = smul.u32 8, %s27
      %s520 = sadd.s32 %s27, 1
      %s521 = smul.u32 8, %s520
      %p522 = scmp.lt.s32.totalorder %s25, 1
      %s523 = scalar_select %p522, %s25, 1
      %p524 = scmp.lt.s32.totalorder %s521, 23
      %s525 = scalar_select %p524, %s521, 23
      %s526 = smul.addr %s525, 4
      %s527 = smul.addr %s523, 96
      %s528 = sadd.s32 %s526, %s527
      %s529 = smul.addr %s528, 4
      %s530 = scalar_lea.vmem %s1, %s529
      %s531 = sadd.s32 %s27, 1
      %s532 = smul.u32 8, %s531
      %s533 = smul.u32 8, %s27
      %p534 = scmp.lt.s32.totalorder %s25, 1
      %s535 = scalar_select %p534, %s25, 1
      %p536 = scmp.lt.s32.totalorder %s533, 23
      %s537 = scalar_select %p536, %s533, 23
      %s538 = smul.addr %s537, 4
      %s539 = smul.addr %s535, 96
      %s540 = sadd.s32 %s538, %s539
      %s541 = smul.addr %s540, 4
      %s542 = scalar_lea.vmem %s2, %s541
      %s543 = smul.u32 8, %s27
      %s544 = sadd.s32 %s27, 1
      %s545 = smul.u32 8, %s544
      %p546 = scmp.lt.s32.totalorder %s25, 1
      %s547 = scalar_select %p546, %s25, 1
      %p548 = scmp.lt.s32.totalorder %s545, 23
      %s549 = scalar_select %p548, %s545, 23
      %s550 = smul.addr %s549, 4
      %s551 = smul.addr %s547, 96
      %s552 = sadd.s32 %s550, %s551
      %s553 = smul.addr %s552, 4
      %s554 = scalar_lea.vmem %s3, %s553
      %s555 = sadd.s32 %s27, 1
      %s556 = smul.u32 8, %s555
      %p557 = scmp.lt.s32.totalorder %s26, 0
      %s558 = scalar_select %p557, %s26, 0
      %s559 = smul.addr %s558, 2
      %s560 = scalar_lea.vmem %s4, %s559
      %p561 = scmp.lt.s32.totalorder %s26, 0
      %s562 = scalar_select %p561, %s26, 0
      %s563 = smul.addr %s562, 2
      %s564 = scalar_lea.vmem %s5, %s563
      %p565 = scmp.lt.s32.totalorder %s26, 0
      %s566 = scalar_select %p565, %s26, 0
      %s567 = scalar_lea.vmem %s7, %s566
      %p568 = scmp.lt.s32.totalorder %s26, 0
      %s569 = scalar_select %p568, %s26, 0
      %s570 = scalar_lea.vmem %s8, %s569
      %s571 = smul.u32 8, %s27
      %p572 = scmp.lt.s32.totalorder %s25, 1
      %s573 = scalar_select %p572, %s25, 1
      %p574 = scmp.lt.s32.totalorder %s571, 15
      %s575 = scalar_select %p574, %s571, 15
      %p576 = scmp.lt.s32.totalorder %s26, 0
      %s577 = scalar_select %p576, %s26, 0
      %s578 = smul.addr %s575, 2
      %s579 = sadd.s32 %s577, %s578
      %s580 = smul.addr %s573, 32
      %s581 = sadd.s32 %s579, %s580
      %s582 = smul.addr %s581, 4
      %s583 = scalar_lea.vmem %s9, %s582
      %s584 = smul.u32 8, %s27
      %v586 = vld [vmem:[%s518] sm:$0xf]
      %v587 = vld [vmem:[%s518 + $0x4] sm:$0xf]
      %v588 = vld [vmem:[%s518 + $0x8] sm:$0xf]
      %v589 = vld [vmem:[%s518 + $0xc] sm:$0xf]
      %vm590 = vcmask 27648
      %591 = vst.msk [vmem:[#allocation2] sm:$0xf] %vm590, %v586
      %592 = vst.msk [vmem:[#allocation2 + $0x4] sm:$0xf] %vm590, %v587
      %593 = vst.msk [vmem:[#allocation2 + $0x8] sm:$0xf] %vm590, %v588
      %594 = vst.msk [vmem:[#allocation2 + $0xc] sm:$0xf] %vm590, %v589
      %v595 = vld [vmem:[%s542] sm:$0xf]
      %v596 = vld [vmem:[%s542 + $0x4] sm:$0xf]
      %v597 = vld [vmem:[%s542 + $0x8] sm:$0xf]
      %v598 = vld [vmem:[%s542 + $0xc] sm:$0xf]
      %599 = vst.msk [vmem:[#allocation3] sm:$0xf] %vm590, %v595
      %600 = vst.msk [vmem:[#allocation3 + $0x4] sm:$0xf] %vm590, %v596
      %601 = vst.msk [vmem:[#allocation3 + $0x8] sm:$0xf] %vm590, %v597
      %602 = vst.msk [vmem:[#allocation3 + $0xc] sm:$0xf] %vm590, %v598
      %s603 = scalar_lea.vmem %s518, 16
      %v604 = vld [vmem:[%s603] sm:$0xf]
      %v605 = vld [vmem:[%s603 + $0x4] sm:$0xf]
      %v606 = vld [vmem:[%s603 + $0x8] sm:$0xf]
      %v607 = vld [vmem:[%s603 + $0xc] sm:$0xf]
      %608 = vst.msk [vmem:[#allocation2 + $0x10] sm:$0xf] %vm590, %v604
      %609 = vst.msk [vmem:[#allocation2 + $0x14] sm:$0xf] %vm590, %v605
      %610 = vst.msk [vmem:[#allocation2 + $0x18] sm:$0xf] %vm590, %v606
      %611 = vst.msk [vmem:[#allocation2 + $0x1c] sm:$0xf] %vm590, %v607
      %s612 = scalar_lea.vmem %s542, 16
      %v613 = vld [vmem:[%s612] sm:$0xf]
      %v614 = vld [vmem:[%s612 + $0x4] sm:$0xf]
      %v615 = vld [vmem:[%s612 + $0x8] sm:$0xf]
      %v616 = vld [vmem:[%s612 + $0xc] sm:$0xf]
      %s617 = scalar_lea.vmem [#allocation3], 16
      %618 = vst.msk [vmem:[%s617] sm:$0xf] %vm590, %v613
      %619 = vst.msk [vmem:[%s617 + $0x4] sm:$0xf] %vm590, %v614
      %620 = vst.msk [vmem:[%s617 + $0x8] sm:$0xf] %vm590, %v615
      %621 = vst.msk [vmem:[%s617 + $0xc] sm:$0xf] %vm590, %v616
      %s622 = scalar_lea.vmem %s518, 32
      %v623 = vld [vmem:[%s622] sm:$0xf]
      %v624 = vld [vmem:[%s622 + $0x4] sm:$0xf]
      %v625 = vld [vmem:[%s622 + $0x8] sm:$0xf]
      %v626 = vld [vmem:[%s622 + $0xc] sm:$0xf]
      %627 = vst.msk [vmem:[#allocation2 + $0x20] sm:$0xf] %vm590, %v623
      %628 = vst.msk [vmem:[#allocation2 + $0x24] sm:$0xf] %vm590, %v624
      %629 = vst.msk [vmem:[#allocation2 + $0x28] sm:$0xf] %vm590, %v625
      %630 = vst.msk [vmem:[#allocation2 + $0x2c] sm:$0xf] %vm590, %v626
      %s631 = scalar_lea.vmem %s542, 32
      %v632 = vld [vmem:[%s631] sm:$0xf]
      %v633 = vld [vmem:[%s631 + $0x4] sm:$0xf]
      %v634 = vld [vmem:[%s631 + $0x8] sm:$0xf]
      %v635 = vld [vmem:[%s631 + $0xc] sm:$0xf]
      %s636 = scalar_lea.vmem [#allocation3], 32
      %637 = vst.msk [vmem:[%s636] sm:$0xf] %vm590, %v632
      %638 = vst.msk [vmem:[%s636 + $0x4] sm:$0xf] %vm590, %v633
      %639 = vst.msk [vmem:[%s636 + $0x8] sm:$0xf] %vm590, %v634
      %640 = vst.msk [vmem:[%s636 + $0xc] sm:$0xf] %vm590, %v635
      %s641 = scalar_lea.vmem %s518, 48
      %v642 = vld [vmem:[%s641] sm:$0xf]
      %v643 = vld [vmem:[%s641 + $0x4] sm:$0xf]
      %v644 = vld [vmem:[%s641 + $0x8] sm:$0xf]
      %v645 = vld [vmem:[%s641 + $0xc] sm:$0xf]
      %646 = vst.msk [vmem:[#allocation2 + $0x30] sm:$0xf] %vm590, %v642
      %647 = vst.msk [vmem:[#allocation2 + $0x34] sm:$0xf] %vm590, %v643
      %648 = vst.msk [vmem:[#allocation2 + $0x38] sm:$0xf] %vm590, %v644
      %649 = vst.msk [vmem:[#allocation2 + $0x3c] sm:$0xf] %vm590, %v645
      %s650 = scalar_lea.vmem %s542, 48
      %v651 = vld [vmem:[%s650] sm:$0xf]
      %v652 = vld [vmem:[%s650 + $0x4] sm:$0xf]
      %v653 = vld [vmem:[%s650 + $0x8] sm:$0xf]
      %v654 = vld [vmem:[%s650 + $0xc] sm:$0xf]
      %s655 = scalar_lea.vmem [#allocation3], 48
      %656 = vst.msk [vmem:[%s655] sm:$0xf] %vm590, %v651
      %657 = vst.msk [vmem:[%s655 + $0x4] sm:$0xf] %vm590, %v652
      %658 = vst.msk [vmem:[%s655 + $0x8] sm:$0xf] %vm590, %v653
      %659 = vst.msk [vmem:[%s655 + $0xc] sm:$0xf] %vm590, %v654
      %s660 = scalar_lea.vmem %s518, 64
      %v661 = vld [vmem:[%s660] sm:$0xf]
      %v662 = vld [vmem:[%s660 + $0x4] sm:$0xf]
      %v663 = vld [vmem:[%s660 + $0x8] sm:$0xf]
      %v664 = vld [vmem:[%s660 + $0xc] sm:$0xf]
      %665 = vst.msk [vmem:[#allocation2 + $0x40] sm:$0xf] %vm590, %v661
      %666 = vst.msk [vmem:[#allocation2 + $0x44] sm:$0xf] %vm590, %v662
      %667 = vst.msk [vmem:[#allocation2 + $0x48] sm:$0xf] %vm590, %v663
      %668 = vst.msk [vmem:[#allocation2 + $0x4c] sm:$0xf] %vm590, %v664
      %s669 = scalar_lea.vmem %s542, 64
      %v670 = vld [vmem:[%s669] sm:$0xf]
      %v671 = vld [vmem:[%s669 + $0x4] sm:$0xf]
      %v672 = vld [vmem:[%s669 + $0x8] sm:$0xf]
      %v673 = vld [vmem:[%s669 + $0xc] sm:$0xf]
      %s674 = scalar_lea.vmem [#allocation3], 64
      %675 = vst.msk [vmem:[%s674] sm:$0xf] %vm590, %v670
      %676 = vst.msk [vmem:[%s674 + $0x4] sm:$0xf] %vm590, %v671
      %677 = vst.msk [vmem:[%s674 + $0x8] sm:$0xf] %vm590, %v672
      %678 = vst.msk [vmem:[%s674 + $0xc] sm:$0xf] %vm590, %v673
      %s679 = scalar_lea.vmem %s518, 80
      %v680 = vld [vmem:[%s679] sm:$0xf]
      %v681 = vld [vmem:[%s679 + $0x4] sm:$0xf]
      %v682 = vld [vmem:[%s679 + $0x8] sm:$0xf]
      %v683 = vld [vmem:[%s679 + $0xc] sm:$0xf]
      %684 = vst.msk [vmem:[#allocation2 + $0x50] sm:$0xf] %vm590, %v680
      %685 = vst.msk [vmem:[#allocation2 + $0x54] sm:$0xf] %vm590, %v681
      %686 = vst.msk [vmem:[#allocation2 + $0x58] sm:$0xf] %vm590, %v682
      %687 = vst.msk [vmem:[#allocation2 + $0x5c] sm:$0xf] %vm590, %v683
      %s688 = scalar_lea.vmem %s542, 80
      %v689 = vld [vmem:[%s688] sm:$0xf]
      %v690 = vld [vmem:[%s688 + $0x4] sm:$0xf]
      %v691 = vld [vmem:[%s688 + $0x8] sm:$0xf]
      %v692 = vld [vmem:[%s688 + $0xc] sm:$0xf]
      %s693 = scalar_lea.vmem [#allocation3], 80
      %694 = vst.msk [vmem:[%s693] sm:$0xf] %vm590, %v689
      %695 = vst.msk [vmem:[%s693 + $0x4] sm:$0xf] %vm590, %v690
      %696 = vst.msk [vmem:[%s693 + $0x8] sm:$0xf] %vm590, %v691
      %697 = vst.msk [vmem:[%s693 + $0xc] sm:$0xf] %vm590, %v692
      %s698 = scalar_lea.vmem %s518, 96
      %v699 = vld [vmem:[%s698] sm:$0xf]
      %v700 = vld [vmem:[%s698 + $0x4] sm:$0xf]
      %v701 = vld [vmem:[%s698 + $0x8] sm:$0xf]
      %v702 = vld [vmem:[%s698 + $0xc] sm:$0xf]
      %703 = vst.msk [vmem:[#allocation2 + $0x60] sm:$0xf] %vm590, %v699
      %704 = vst.msk [vmem:[#allocation2 + $0x64] sm:$0xf] %vm590, %v700
      %705 = vst.msk [vmem:[#allocation2 + $0x68] sm:$0xf] %vm590, %v701
      %706 = vst.msk [vmem:[#allocation2 + $0x6c] sm:$0xf] %vm590, %v702
      %s707 = scalar_lea.vmem %s542, 96
      %v708 = vld [vmem:[%s707] sm:$0xf]
      %v709 = vld [vmem:[%s707 + $0x4] sm:$0xf]
      %v710 = vld [vmem:[%s707 + $0x8] sm:$0xf]
      %v711 = vld [vmem:[%s707 + $0xc] sm:$0xf]
      %s712 = scalar_lea.vmem [#allocation3], 96
      %713 = vst.msk [vmem:[%s712] sm:$0xf] %vm590, %v708
      %714 = vst.msk [vmem:[%s712 + $0x4] sm:$0xf] %vm590, %v709
      %715 = vst.msk [vmem:[%s712 + $0x8] sm:$0xf] %vm590, %v710
      %716 = vst.msk [vmem:[%s712 + $0xc] sm:$0xf] %vm590, %v711
      %s717 = scalar_lea.vmem %s518, 112
      %v718 = vld [vmem:[%s717] sm:$0xf]
      %v719 = vld [vmem:[%s717 + $0x4] sm:$0xf]
      %v720 = vld [vmem:[%s717 + $0x8] sm:$0xf]
      %v721 = vld [vmem:[%s717 + $0xc] sm:$0xf]
      %722 = vst.msk [vmem:[#allocation2 + $0x70] sm:$0xf] %vm590, %v718
      %723 = vst.msk [vmem:[#allocation2 + $0x74] sm:$0xf] %vm590, %v719
      %724 = vst.msk [vmem:[#allocation2 + $0x78] sm:$0xf] %vm590, %v720
      %725 = vst.msk [vmem:[#allocation2 + $0x7c] sm:$0xf] %vm590, %v721
      %s726 = scalar_lea.vmem %s542, 112
      %v727 = vld [vmem:[%s726] sm:$0xf]
      %v728 = vld [vmem:[%s726 + $0x4] sm:$0xf]
      %v729 = vld [vmem:[%s726 + $0x8] sm:$0xf]
      %v730 = vld [vmem:[%s726 + $0xc] sm:$0xf]
      %s731 = scalar_lea.vmem [#allocation3], 112
      %732 = vst.msk [vmem:[%s731] sm:$0xf] %vm590, %v727
      %733 = vst.msk [vmem:[%s731 + $0x4] sm:$0xf] %vm590, %v728
      %734 = vst.msk [vmem:[%s731 + $0x8] sm:$0xf] %vm590, %v729
      %735 = vst.msk [vmem:[%s731 + $0xc] sm:$0xf] %vm590, %v730
      %v736 = vld [vmem:[%s530] sm:$0xf]
      %v737 = vld [vmem:[%s530 + $0x4] sm:$0xf]
      %v738 = vld [vmem:[%s530 + $0x8] sm:$0xf]
      %v739 = vld [vmem:[%s530 + $0xc] sm:$0xf]
      %740 = vst.msk [vmem:[#allocation2 + $0x80] sm:$0xf] %vm590, %v736
      %741 = vst.msk [vmem:[#allocation2 + $0x84] sm:$0xf] %vm590, %v737
      %742 = vst.msk [vmem:[#allocation2 + $0x88] sm:$0xf] %vm590, %v738
      %743 = vst.msk [vmem:[#allocation2 + $0x8c] sm:$0xf] %vm590, %v739
      %v744 = vld [vmem:[%s554] sm:$0xf]
      %v745 = vld [vmem:[%s554 + $0x4] sm:$0xf]
      %v746 = vld [vmem:[%s554 + $0x8] sm:$0xf]
      %v747 = vld [vmem:[%s554 + $0xc] sm:$0xf]
      %s748 = scalar_lea.vmem [#allocation3], 128
      %749 = vst.msk [vmem:[%s748] sm:$0xf] %vm590, %v744
      %750 = vst.msk [vmem:[%s748 + $0x4] sm:$0xf] %vm590, %v745
      %751 = vst.msk [vmem:[%s748 + $0x8] sm:$0xf] %vm590, %v746
      %752 = vst.msk [vmem:[%s748 + $0xc] sm:$0xf] %vm590, %v747
      %s753 = scalar_lea.vmem %s530, 16
      %v754 = vld [vmem:[%s753] sm:$0xf]
      %v755 = vld [vmem:[%s753 + $0x4] sm:$0xf]
      %v756 = vld [vmem:[%s753 + $0x8] sm:$0xf]
      %v757 = vld [vmem:[%s753 + $0xc] sm:$0xf]
      %758 = vst.msk [vmem:[#allocation2 + $0x90] sm:$0xf] %vm590, %v754
      %759 = vst.msk [vmem:[#allocation2 + $0x94] sm:$0xf] %vm590, %v755
      %760 = vst.msk [vmem:[#allocation2 + $0x98] sm:$0xf] %vm590, %v756
      %761 = vst.msk [vmem:[#allocation2 + $0x9c] sm:$0xf] %vm590, %v757
      %s762 = scalar_lea.vmem %s554, 16
      %v763 = vld [vmem:[%s762] sm:$0xf]
      %v764 = vld [vmem:[%s762 + $0x4] sm:$0xf]
      %v765 = vld [vmem:[%s762 + $0x8] sm:$0xf]
      %v766 = vld [vmem:[%s762 + $0xc] sm:$0xf]
      %s767 = scalar_lea.vmem [#allocation3], 144
      %768 = vst.msk [vmem:[%s767] sm:$0xf] %vm590, %v763
      %769 = vst.msk [vmem:[%s767 + $0x4] sm:$0xf] %vm590, %v764
      %770 = vst.msk [vmem:[%s767 + $0x8] sm:$0xf] %vm590, %v765
      %771 = vst.msk [vmem:[%s767 + $0xc] sm:$0xf] %vm590, %v766
      %v772 = vld [vmem:[#allocation2] sm:$0xf]
      %v773 = vld [vmem:[#allocation2 + $0x4] sm:$0xf]
      %v774 = vld [vmem:[#allocation2 + $0x8] sm:$0xf]
      %v775 = vld [vmem:[#allocation2 + $0xc] sm:$0xf]
      %v776 = vld [vmem:[#allocation2 + $0x10] sm:$0xf]
      %v777 = vld [vmem:[#allocation2 + $0x14] sm:$0xf]
      %v778 = vld [vmem:[#allocation2 + $0x18] sm:$0xf]
      %v779 = vld [vmem:[#allocation2 + $0x1c] sm:$0xf]
      %v780 = vld [vmem:[#allocation2 + $0x20] sm:$0xf]
      %v781 = vld [vmem:[#allocation2 + $0x24] sm:$0xf]
      %v782 = vld [vmem:[#allocation2 + $0x28] sm:$0xf]
      %v783 = vld [vmem:[#allocation2 + $0x2c] sm:$0xf]
      %v784 = vld [vmem:[#allocation2 + $0x30] sm:$0xf]
      %v785 = vld [vmem:[#allocation2 + $0x34] sm:$0xf]
      %v786 = vld [vmem:[#allocation2 + $0x38] sm:$0xf]
      %v787 = vld [vmem:[#allocation2 + $0x3c] sm:$0xf]
      %v788 = vld [vmem:[#allocation2 + $0x40] sm:$0xf]
      %v789 = vld [vmem:[#allocation2 + $0x44] sm:$0xf]
      %v790 = vld [vmem:[#allocation2 + $0x48] sm:$0xf]
      %v791 = vld [vmem:[#allocation2 + $0x4c] sm:$0xf]
      %v792 = vld [vmem:[#allocation2 + $0x50] sm:$0xf]
      %v793 = vld [vmem:[#allocation2 + $0x54] sm:$0xf]
      %v794 = vld [vmem:[#allocation2 + $0x58] sm:$0xf]
      %v795 = vld [vmem:[#allocation2 + $0x5c] sm:$0xf]
      %v796 = vld [vmem:[#allocation2 + $0x60] sm:$0xf]
      %v797 = vld [vmem:[#allocation2 + $0x64] sm:$0xf]
      %v798 = vld [vmem:[#allocation2 + $0x68] sm:$0xf]
      %v799 = vld [vmem:[#allocation2 + $0x6c] sm:$0xf]
      %v800 = vld [vmem:[#allocation2 + $0x70] sm:$0xf]
      %v801 = vld [vmem:[#allocation2 + $0x74] sm:$0xf]
      %v802 = vld [vmem:[#allocation2 + $0x78] sm:$0xf]
      %v803 = vld [vmem:[#allocation2 + $0x7c] sm:$0xf]
      %v804 = vld [vmem:[%s560] sm:$0x3]
      %s805 = scalar_lea.vmem %s560, 2
      %v806 = vld [vmem:[%s805] sm:$0x3]
      %s807 = scalar_lea.vmem %s560, 4
      %v808 = vld [vmem:[%s807] sm:$0x3]
      %v809 = vld [vmem:[#allocation2 + $0x80] sm:$0xf]
      %v810 = vld [vmem:[#allocation2 + $0x84] sm:$0xf]
      %v811 = vld [vmem:[#allocation2 + $0x88] sm:$0xf]
      %v812 = vld [vmem:[#allocation2 + $0x8c] sm:$0xf]
      %s813 = scalar_lea.vmem %s560, 6
      %v814 = vld [vmem:[%s813] sm:$0x3]
      %v847 = vunpack.c.l.b16 %v776
      %v848 = vunpack.c.l.b16 %v777
      %v849 = vunpack.c.l.b16 %v778
      %v850 = vunpack.c.l.b16 %v779
      %v851 = vunpack.c.l.b16 %v780
      %v852 = vunpack.c.l.b16 %v781
      %v853 = vunpack.c.l.b16 %v782
      %v854 = vunpack.c.l.b16 %v783
      %v855 = vunpack.c.l.b16 %v784
      %v856 = vunpack.c.l.b16 %v785
      %v857 = vunpack.c.l.b16 %v786
      %v858 = vunpack.c.l.b16 %v787
      %v859 = vunpack.c.l.b16 %v788
      %v860 = vunpack.c.l.b16 %v789
      %v861 = vunpack.c.l.b16 %v790
      %v862 = vunpack.c.l.b16 %v791
      %v863 = vunpack.c.l.b16 %v792
      %v864 = vunpack.c.l.b16 %v793
      %v865 = vunpack.c.l.b16 %v794
      %v866 = vunpack.c.l.b16 %v795
      %v867 = vunpack.c.l.b16 %v796
      %v868 = vunpack.c.l.b16 %v797
      %v869 = vunpack.c.l.b16 %v798
      %v870 = vunpack.c.l.b16 %v799
      %v871 = vunpack.c.l.b16 %v800
      %v872 = vunpack.c.l.b16 %v801
      %v873 = vunpack.c.l.b16 %v802
      %v874 = vunpack.c.l.b16 %v803
      %v875 = vunpack.c.l.b16 %v809
      %v876 = vunpack.c.l.b16 %v810
      %v877 = vunpack.c.l.b16 %v811
      %v878 = vunpack.c.l.b16 %v812
      %v879 = vpack.c.b16 %v848, %v847
      %v880 = vpack.c.b16 %v850, %v849
      %v881 = vpack.c.b16 %v852, %v851
      %v882 = vpack.c.b16 %v854, %v853
      %v883 = vpack.c.b16 %v856, %v855
      %v884 = vpack.c.b16 %v858, %v857
      %v885 = vpack.c.b16 %v860, %v859
      %v886 = vpack.c.b16 %v862, %v861
      %v887 = vpack.c.b16 %v864, %v863
      %v888 = vpack.c.b16 %v866, %v865
      %v889 = vpack.c.b16 %v868, %v867
      %v890 = vpack.c.b16 %v870, %v869
      %v891 = vpack.c.b16 %v872, %v871
      %v892 = vpack.c.b16 %v874, %v873
      %v893 = vpack.c.b16 %v876, %v875
      %v894 = vpack.c.b16 %v878, %v877
      %vm895 = vcmask 31744
      %v897 = vsel %vm895, %v879, 0
      %v900 = vsel %vm895, %v880, 0
      %v903 = vsel %vm895, %v881, 0
      %v906 = vsel %vm895, %v882, 0
      %v909 = vsel %vm895, %v883, 0
      %v912 = vsel %vm895, %v884, 0
      %v915 = vsel %vm895, %v885, 0
      %v918 = vsel %vm895, %v886, 0
      %v921 = vsel %vm895, %v887, 0
      %v924 = vsel %vm895, %v888, 0
      %v927 = vsel %vm895, %v889, 0
      %v930 = vsel %vm895, %v890, 0
      %v933 = vsel %vm895, %v891, 0
      %v936 = vsel %vm895, %v892, 0
      %v939 = vsel %vm895, %v893, 0
      %v942 = vsel %vm895, %v894, 0
      %vm944 = vcmask 1041408
      %v946 = vsel %vm944, %v814, 0
      %948 = vmatpush.bf16.msra.mxu0 0
      %949 = vmatpush.bf16.msra.mxu0 0
      %950 = vmatpush.bf16.msra.mxu0 0
      %951 = vmatpush.bf16.msra.mxu0 0
      %952 = vmatpush.bf16.msra.mxu0 0
      %953 = vmatpush.bf16.msra.mxu0 0
      %954 = vmatpush.bf16.msra.mxu0 0
      %955 = vmatpush.bf16.msra.mxu0 %v946
      %956 = vmatmul.bf16.gmra.mxu0 %v897
      %v957 = vpop.f32.mrf.mxu0
      %v958 = vadd.f32 0.0, %v957
      %v959 = vpop.f32.mrf.mxu0
      %v960 = vadd.f32 0.0, %v959
      %961 = vmatmul.bf16.gmra.mxu0 %v900
      %v962 = vpop.f32.mrf.mxu0
      %v963 = vpop.f32.mrf.mxu0
      %964 = vmatmul.bf16.gmra.mxu0 %v903
      %v965 = vpop.f32.mrf.mxu0
      %v966 = vadd.f32 0.0, %v965
      %v967 = vpop.f32.mrf.mxu0
      %v968 = vadd.f32 0.0, %v967
      %969 = vmatmul.bf16.gmra.mxu0 %v906
      %v970 = vpop.f32.mrf.mxu0
      %v971 = vpop.f32.mrf.mxu0
      %972 = vmatmul.bf16.gmra.mxu0 %v909
      %v973 = vpop.f32.mrf.mxu0
      %v974 = vadd.f32 0.0, %v973
      %v975 = vpop.f32.mrf.mxu0
      %v976 = vadd.f32 0.0, %v975
      %977 = vmatmul.bf16.gmra.mxu0 %v912
      %v978 = vpop.f32.mrf.mxu0
      %v979 = vpop.f32.mrf.mxu0
      %980 = vmatmul.bf16.gmra.mxu0 %v915
      %v981 = vpop.f32.mrf.mxu0
      %v982 = vadd.f32 0.0, %v981
      %v983 = vpop.f32.mrf.mxu0
      %v984 = vadd.f32 0.0, %v983
      %985 = vmatmul.bf16.gmra.mxu0 %v918
      %v986 = vpop.f32.mrf.mxu0
      %v987 = vpop.f32.mrf.mxu0
      %988 = vmatmul.bf16.gmra.mxu0 %v921
      %v989 = vpop.f32.mrf.mxu0
      %v990 = vadd.f32 0.0, %v989
      %v991 = vpop.f32.mrf.mxu0
      %v992 = vadd.f32 0.0, %v991
      %993 = vmatmul.bf16.gmra.mxu0 %v924
      %v994 = vpop.f32.mrf.mxu0
      %v995 = vpop.f32.mrf.mxu0
      %996 = vmatmul.bf16.gmra.mxu0 %v927
      %v997 = vpop.f32.mrf.mxu0
      %v998 = vadd.f32 0.0, %v997
      %v999 = vpop.f32.mrf.mxu0
      %v1000 = vadd.f32 0.0, %v999
      %1001 = vmatmul.bf16.gmra.mxu0 %v930
      %v1002 = vpop.f32.mrf.mxu0
      %v1003 = vpop.f32.mrf.mxu0
      %1004 = vmatmul.bf16.gmra.mxu0 %v933
      %v1005 = vpop.f32.mrf.mxu0
      %v1006 = vadd.f32 0.0, %v1005
      %v1007 = vpop.f32.mrf.mxu0
      %v1008 = vadd.f32 0.0, %v1007
      %1009 = vmatmul.bf16.gmra.mxu0 %v936
      %v1010 = vpop.f32.mrf.mxu0
      %v1011 = vpop.f32.mrf.mxu0
      %1012 = vmatmul.bf16.gmra.mxu0 %v939
      %v1013 = vpop.f32.mrf.mxu0
      %v1014 = vadd.f32 0.0, %v1013
      %v1015 = vpop.f32.mrf.mxu0
      %v1016 = vadd.f32 0.0, %v1015
      %1017 = vmatmul.bf16.gmra.mxu0 %v942
      %v1018 = vpop.f32.mrf.mxu0
      %v1019 = vpop.f32.mrf.mxu0
      %1020 = vdwg.mxu0
      %v1025 = vunpack.c.l.b16 %v772
      %v1026 = vunpack.c.l.b16 %v773
      %v1027 = vunpack.c.l.b16 %v774
      %v1028 = vunpack.c.l.b16 %v775
      %v1029 = vpack.c.b16 %v1026, %v1025
      %v1030 = vpack.c.b16 %v1028, %v1027
      %v1032 = vsel %vm895, %v1029, 0
      %v1035 = vsel %vm895, %v1030, 0
      %v1038 = vsel %vm944, %v804, 0
      %1040 = vmatpush.bf16.msra.mxu0 0
      %1041 = vmatpush.bf16.msra.mxu0 0
      %1042 = vmatpush.bf16.msra.mxu0 0
      %1043 = vmatpush.bf16.msra.mxu0 0
      %1044 = vmatpush.bf16.msra.mxu0 0
      %1045 = vmatpush.bf16.msra.mxu0 0
      %1046 = vmatpush.bf16.msra.mxu0 0
      %1047 = vmatpush.bf16.msra.mxu0 %v1038
      %1048 = vmatmul.bf16.gmra.mxu0 %v1032
      %v1049 = vpop.f32.mrf.mxu0
      %v1050 = vadd.f32 %v958, %v1049
      %v1051 = vpop.f32.mrf.mxu0
      %v1052 = vadd.f32 %v960, %v1051
      %1053 = vmatmul.bf16.gmra.mxu0 %v1035
      %v1054 = vpop.f32.mrf.mxu0
      %v1055 = vpop.f32.mrf.mxu0
      %1056 = vmatmul.bf16.gmra.mxu0 %v897
      %v1057 = vpop.f32.mrf.mxu0
      %v1058 = vadd.f32 %v966, %v1057
      %v1059 = vpop.f32.mrf.mxu0
      %v1060 = vadd.f32 %v968, %v1059
      %1061 = vmatmul.bf16.gmra.mxu0 %v900
      %v1062 = vpop.f32.mrf.mxu0
      %v1063 = vpop.f32.mrf.mxu0
      %1064 = vmatmul.bf16.gmra.mxu0 %v903
      %v1065 = vpop.f32.mrf.mxu0
      %v1066 = vadd.f32 %v974, %v1065
      %v1067 = vpop.f32.mrf.mxu0
      %v1068 = vadd.f32 %v976, %v1067
      %1069 = vmatmul.bf16.gmra.mxu0 %v906
      %v1070 = vpop.f32.mrf.mxu0
      %v1071 = vpop.f32.mrf.mxu0
      %1072 = vmatmul.bf16.gmra.mxu0 %v909
      %v1073 = vpop.f32.mrf.mxu0
      %v1074 = vadd.f32 %v982, %v1073
      %v1075 = vpop.f32.mrf.mxu0
      %v1076 = vadd.f32 %v984, %v1075
      %1077 = vmatmul.bf16.gmra.mxu0 %v912
      %v1078 = vpop.f32.mrf.mxu0
      %v1079 = vpop.f32.mrf.mxu0
      %1080 = vmatmul.bf16.gmra.mxu0 %v915
      %v1081 = vpop.f32.mrf.mxu0
      %v1082 = vadd.f32 %v990, %v1081
      %v1083 = vpop.f32.mrf.mxu0
      %v1084 = vadd.f32 %v992, %v1083
      %1085 = vmatmul.bf16.gmra.mxu0 %v918
      %v1086 = vpop.f32.mrf.mxu0
      %v1087 = vpop.f32.mrf.mxu0
      %1088 = vmatmul.bf16.gmra.mxu0 %v921
      %v1089 = vpop.f32.mrf.mxu0
      %v1090 = vadd.f32 %v998, %v1089
      %v1091 = vpop.f32.mrf.mxu0
      %v1092 = vadd.f32 %v1000, %v1091
      %1093 = vmatmul.bf16.gmra.mxu0 %v924
      %v1094 = vpop.f32.mrf.mxu0
      %v1095 = vpop.f32.mrf.mxu0
      %1096 = vmatmul.bf16.gmra.mxu0 %v927
      %v1097 = vpop.f32.mrf.mxu0
      %v1098 = vadd.f32 %v1006, %v1097
      %v1099 = vpop.f32.mrf.mxu0
      %v1100 = vadd.f32 %v1008, %v1099
      %1101 = vmatmul.bf16.gmra.mxu0 %v930
      %v1102 = vpop.f32.mrf.mxu0
      %v1103 = vpop.f32.mrf.mxu0
      %1104 = vmatmul.bf16.gmra.mxu0 %v933
      %v1105 = vpop.f32.mrf.mxu0
      %v1106 = vadd.f32 %v1014, %v1105
      %v1107 = vpop.f32.mrf.mxu0
      %v1108 = vadd.f32 %v1016, %v1107
      %1109 = vmatmul.bf16.gmra.mxu0 %v936
      %v1110 = vpop.f32.mrf.mxu0
      %v1111 = vpop.f32.mrf.mxu0
      %1112 = vdwg.mxu0
      %s1113 = scalar_lea.vmem %s560, 8
      %v1114 = vld [vmem:[%s1113] sm:$0x3]
      %v1116 = vsel %vm944, %v1114, 0
      %1118 = vmatpush.bf16.msra.mxu0 0
      %1119 = vmatpush.bf16.msra.mxu0 0
      %1120 = vmatpush.bf16.msra.mxu0 0
      %1121 = vmatpush.bf16.msra.mxu0 0
      %1122 = vmatpush.bf16.msra.mxu0 0
      %1123 = vmatpush.bf16.msra.mxu0 0
      %1124 = vmatpush.bf16.msra.mxu0 0
      %1125 = vmatpush.bf16.msra.mxu0 %v1116
      %1126 = vmatmul.bf16.gmra.mxu0 %v897
      %v1127 = vpop.f32.mrf.mxu0
      %v1128 = vadd.f32 0.0, %v1127
      %v1129 = vpop.f32.mrf.mxu0
      %v1130 = vadd.f32 0.0, %v1129
      %1131 = vmatmul.bf16.gmra.mxu0 %v900
      %v1132 = vpop.f32.mrf.mxu0
      %v1133 = vadd.f32 0.0, %v1132
      %v1134 = vpop.f32.mrf.mxu0
      %1135 = vmatmul.bf16.gmra.mxu0 %v903
      %v1136 = vpop.f32.mrf.mxu0
      %v1137 = vadd.f32 0.0, %v1136
      %v1138 = vpop.f32.mrf.mxu0
      %v1139 = vadd.f32 0.0, %v1138
      %1140 = vmatmul.bf16.gmra.mxu0 %v906
      %v1141 = vpop.f32.mrf.mxu0
      %v1142 = vadd.f32 0.0, %v1141
      %v1143 = vpop.f32.mrf.mxu0
      %1144 = vmatmul.bf16.gmra.mxu0 %v909
      %v1145 = vpop.f32.mrf.mxu0
      %v1146 = vadd.f32 0.0, %v1145
      %v1147 = vpop.f32.mrf.mxu0
      %v1148 = vadd.f32 0.0, %v1147
      %1149 = vmatmul.bf16.gmra.mxu0 %v912
      %v1150 = vpop.f32.mrf.mxu0
      %v1151 = vadd.f32 0.0, %v1150
      %v1152 = vpop.f32.mrf.mxu0
      %1153 = vmatmul.bf16.gmra.mxu0 %v915
      %v1154 = vpop.f32.mrf.mxu0
      %v1155 = vadd.f32 0.0, %v1154
      %v1156 = vpop.f32.mrf.mxu0
      %v1157 = vadd.f32 0.0, %v1156
      %1158 = vmatmul.bf16.gmra.mxu0 %v918
      %v1159 = vpop.f32.mrf.mxu0
      %v1160 = vadd.f32 0.0, %v1159
      %v1161 = vpop.f32.mrf.mxu0
      %1162 = vmatmul.bf16.gmra.mxu0 %v921
      %v1163 = vpop.f32.mrf.mxu0
      %v1164 = vadd.f32 0.0, %v1163
      %v1165 = vpop.f32.mrf.mxu0
      %v1166 = vadd.f32 0.0, %v1165
      %1167 = vmatmul.bf16.gmra.mxu0 %v924
      %v1168 = vpop.f32.mrf.mxu0
      %v1169 = vadd.f32 0.0, %v1168
      %v1170 = vpop.f32.mrf.mxu0
      %1171 = vmatmul.bf16.gmra.mxu0 %v927
      %v1172 = vpop.f32.mrf.mxu0
      %v1173 = vadd.f32 0.0, %v1172
      %v1174 = vpop.f32.mrf.mxu0
      %v1175 = vadd.f32 0.0, %v1174
      %1176 = vmatmul.bf16.gmra.mxu0 %v930
      %v1177 = vpop.f32.mrf.mxu0
      %v1178 = vadd.f32 0.0, %v1177
      %v1179 = vpop.f32.mrf.mxu0
      %1180 = vmatmul.bf16.gmra.mxu0 %v933
      %v1181 = vpop.f32.mrf.mxu0
      %v1182 = vadd.f32 0.0, %v1181
      %v1183 = vpop.f32.mrf.mxu0
      %v1184 = vadd.f32 0.0, %v1183
      %1185 = vmatmul.bf16.gmra.mxu0 %v936
      %v1186 = vpop.f32.mrf.mxu0
      %v1187 = vadd.f32 0.0, %v1186
      %v1188 = vpop.f32.mrf.mxu0
      %1189 = vmatmul.bf16.gmra.mxu0 %v939
      %v1190 = vpop.f32.mrf.mxu0
      %v1191 = vadd.f32 0.0, %v1190
      %v1192 = vpop.f32.mrf.mxu0
      %v1193 = vadd.f32 0.0, %v1192
      %1194 = vmatmul.bf16.gmra.mxu0 %v942
      %v1195 = vpop.f32.mrf.mxu0
      %v1196 = vadd.f32 0.0, %v1195
      %v1197 = vpop.f32.mrf.mxu0
      %1198 = vdwg.mxu0
      %v1200 = vsel %vm944, %v806, 0
      %1202 = vmatpush.bf16.msra.mxu0 0
      %1203 = vmatpush.bf16.msra.mxu0 0
      %1204 = vmatpush.bf16.msra.mxu0 0
      %1205 = vmatpush.bf16.msra.mxu0 0
      %1206 = vmatpush.bf16.msra.mxu0 0
      %1207 = vmatpush.bf16.msra.mxu0 0
      %1208 = vmatpush.bf16.msra.mxu0 0
      %1209 = vmatpush.bf16.msra.mxu0 %v1200
      %1210 = vmatmul.bf16.gmra.mxu0 %v1032
      %v1211 = vpop.f32.mrf.mxu0
      %v1212 = vadd.f32 %v1128, %v1211
      %v1213 = vpop.f32.mrf.mxu0
      %v1214 = vadd.f32 %v1130, %v1213
      %1215 = vmatmul.bf16.gmra.mxu0 %v1035
      %v1216 = vpop.f32.mrf.mxu0
      %v1217 = vadd.f32 %v1133, %v1216
      %v1218 = vpop.f32.mrf.mxu0
      %1219 = vmatmul.bf16.gmra.mxu0 %v897
      %v1220 = vpop.f32.mrf.mxu0
      %v1221 = vadd.f32 %v1137, %v1220
      %v1222 = vpop.f32.mrf.mxu0
      %v1223 = vadd.f32 %v1139, %v1222
      %1224 = vmatmul.bf16.gmra.mxu0 %v900
      %v1225 = vpop.f32.mrf.mxu0
      %v1226 = vadd.f32 %v1142, %v1225
      %v1227 = vpop.f32.mrf.mxu0
      %1228 = vmatmul.bf16.gmra.mxu0 %v903
      %v1229 = vpop.f32.mrf.mxu0
      %v1230 = vadd.f32 %v1146, %v1229
      %v1231 = vpop.f32.mrf.mxu0
      %v1232 = vadd.f32 %v1148, %v1231
      %1233 = vmatmul.bf16.gmra.mxu0 %v906
      %v1234 = vpop.f32.mrf.mxu0
      %v1235 = vadd.f32 %v1151, %v1234
      %v1236 = vpop.f32.mrf.mxu0
      %1237 = vmatmul.bf16.gmra.mxu0 %v909
      %v1238 = vpop.f32.mrf.mxu0
      %v1239 = vadd.f32 %v1155, %v1238
      %v1240 = vpop.f32.mrf.mxu0
      %v1241 = vadd.f32 %v1157, %v1240
      %1242 = vmatmul.bf16.gmra.mxu0 %v912
      %v1243 = vpop.f32.mrf.mxu0
      %v1244 = vadd.f32 %v1160, %v1243
      %v1245 = vpop.f32.mrf.mxu0
      %1246 = vmatmul.bf16.gmra.mxu0 %v915
      %v1247 = vpop.f32.mrf.mxu0
      %v1248 = vadd.f32 %v1164, %v1247
      %v1249 = vpop.f32.mrf.mxu0
      %v1250 = vadd.f32 %v1166, %v1249
      %1251 = vmatmul.bf16.gmra.mxu0 %v918
      %v1252 = vpop.f32.mrf.mxu0
      %v1253 = vadd.f32 %v1169, %v1252
      %v1254 = vpop.f32.mrf.mxu0
      %1255 = vmatmul.bf16.gmra.mxu0 %v921
      %v1256 = vpop.f32.mrf.mxu0
      %v1257 = vadd.f32 %v1173, %v1256
      %v1258 = vpop.f32.mrf.mxu0
      %v1259 = vadd.f32 %v1175, %v1258
      %1260 = vmatmul.bf16.gmra.mxu0 %v924
      %v1261 = vpop.f32.mrf.mxu0
      %v1262 = vadd.f32 %v1178, %v1261
      %v1263 = vpop.f32.mrf.mxu0
      %1264 = vmatmul.bf16.gmra.mxu0 %v927
      %v1265 = vpop.f32.mrf.mxu0
      %v1266 = vadd.f32 %v1182, %v1265
      %v1267 = vpop.f32.mrf.mxu0
      %v1268 = vadd.f32 %v1184, %v1267
      %1269 = vmatmul.bf16.gmra.mxu0 %v930
      %v1270 = vpop.f32.mrf.mxu0
      %v1271 = vadd.f32 %v1187, %v1270
      %v1272 = vpop.f32.mrf.mxu0
      %1273 = vmatmul.bf16.gmra.mxu0 %v933
      %v1274 = vpop.f32.mrf.mxu0
      %v1275 = vadd.f32 %v1191, %v1274
      %v1276 = vpop.f32.mrf.mxu0
      %v1277 = vadd.f32 %v1193, %v1276
      %1278 = vmatmul.bf16.gmra.mxu0 %v936
      %v1279 = vpop.f32.mrf.mxu0
      %v1280 = vadd.f32 %v1196, %v1279
      %v1281 = vpop.f32.mrf.mxu0
      %1282 = vdwg.mxu0
      %s1283 = scalar_lea.vmem %s560, 10
      %v1284 = vld [vmem:[%s1283] sm:$0x3]
      %v1286 = vsel %vm944, %v1284, 0
      %1288 = vmatpush.bf16.msra.mxu0 0
      %1289 = vmatpush.bf16.msra.mxu0 0
      %1290 = vmatpush.bf16.msra.mxu0 0
      %1291 = vmatpush.bf16.msra.mxu0 0
      %1292 = vmatpush.bf16.msra.mxu0 0
      %1293 = vmatpush.bf16.msra.mxu0 0
      %1294 = vmatpush.bf16.msra.mxu0 0
      %1295 = vmatpush.bf16.msra.mxu0 %v1286
      %1296 = vmatmul.bf16.gmra.mxu0 %v897
      %v1297 = vpop.f32.mrf.mxu0
      %v1298 = vadd.f32 0.0, %v1297
      %v1299 = vpop.f32.mrf.mxu0
      %v1300 = vadd.f32 0.0, %v1299
      %1301 = vmatmul.bf16.gmra.mxu0 %v900
      %v1302 = vpop.f32.mrf.mxu0
      %v1303 = vadd.f32 0.0, %v1302
      %v1304 = vpop.f32.mrf.mxu0
      %1305 = vmatmul.bf16.gmra.mxu0 %v903
      %v1306 = vpop.f32.mrf.mxu0
      %v1307 = vadd.f32 0.0, %v1306
      %v1308 = vpop.f32.mrf.mxu0
      %v1309 = vadd.f32 0.0, %v1308
      %1310 = vmatmul.bf16.gmra.mxu0 %v906
      %v1311 = vpop.f32.mrf.mxu0
      %v1312 = vadd.f32 0.0, %v1311
      %v1313 = vpop.f32.mrf.mxu0
      %1314 = vmatmul.bf16.gmra.mxu0 %v909
      %v1315 = vpop.f32.mrf.mxu0
      %v1316 = vadd.f32 0.0, %v1315
      %v1317 = vpop.f32.mrf.mxu0
      %v1318 = vadd.f32 0.0, %v1317
      %1319 = vmatmul.bf16.gmra.mxu0 %v912
      %v1320 = vpop.f32.mrf.mxu0
      %v1321 = vadd.f32 0.0, %v1320
      %v1322 = vpop.f32.mrf.mxu0
      %1323 = vmatmul.bf16.gmra.mxu0 %v915
      %v1324 = vpop.f32.mrf.mxu0
      %v1325 = vadd.f32 0.0, %v1324
      %v1326 = vpop.f32.mrf.mxu0
      %v1327 = vadd.f32 0.0, %v1326
      %1328 = vmatmul.bf16.gmra.mxu0 %v918
      %v1329 = vpop.f32.mrf.mxu0
      %v1330 = vadd.f32 0.0, %v1329
      %v1331 = vpop.f32.mrf.mxu0
      %1332 = vmatmul.bf16.gmra.mxu0 %v921
      %v1333 = vpop.f32.mrf.mxu0
      %v1334 = vadd.f32 0.0, %v1333
      %v1335 = vpop.f32.mrf.mxu0
      %v1336 = vadd.f32 0.0, %v1335
      %1337 = vmatmul.bf16.gmra.mxu0 %v924
      %v1338 = vpop.f32.mrf.mxu0
      %v1339 = vadd.f32 0.0, %v1338
      %v1340 = vpop.f32.mrf.mxu0
      %1341 = vmatmul.bf16.gmra.mxu0 %v927
      %v1342 = vpop.f32.mrf.mxu0
      %v1343 = vadd.f32 0.0, %v1342
      %v1344 = vpop.f32.mrf.mxu0
      %v1345 = vadd.f32 0.0, %v1344
      %1346 = vmatmul.bf16.gmra.mxu0 %v930
      %v1347 = vpop.f32.mrf.mxu0
      %v1348 = vadd.f32 0.0, %v1347
      %v1349 = vpop.f32.mrf.mxu0
      %1350 = vmatmul.bf16.gmra.mxu0 %v933
      %v1351 = vpop.f32.mrf.mxu0
      %v1352 = vadd.f32 0.0, %v1351
      %v1353 = vpop.f32.mrf.mxu0
      %v1354 = vadd.f32 0.0, %v1353
      %1355 = vmatmul.bf16.gmra.mxu0 %v936
      %v1356 = vpop.f32.mrf.mxu0
      %v1357 = vadd.f32 0.0, %v1356
      %v1358 = vpop.f32.mrf.mxu0
      %1359 = vmatmul.bf16.gmra.mxu0 %v939
      %v1360 = vpop.f32.mrf.mxu0
      %v1361 = vadd.f32 0.0, %v1360
      %v1362 = vpop.f32.mrf.mxu0
      %v1363 = vadd.f32 0.0, %v1362
      %1364 = vmatmul.bf16.gmra.mxu0 %v942
      %v1365 = vpop.f32.mrf.mxu0
      %v1366 = vadd.f32 0.0, %v1365
      %v1367 = vpop.f32.mrf.mxu0
      %1368 = vdwg.mxu0
      %v1370 = vsel %vm944, %v808, 0
      %1372 = vmatpush.bf16.msra.mxu0 0
      %1373 = vmatpush.bf16.msra.mxu0 0
      %1374 = vmatpush.bf16.msra.mxu0 0
      %1375 = vmatpush.bf16.msra.mxu0 0
      %1376 = vmatpush.bf16.msra.mxu0 0
      %1377 = vmatpush.bf16.msra.mxu0 0
      %1378 = vmatpush.bf16.msra.mxu0 0
      %1379 = vmatpush.bf16.msra.mxu0 %v1370
      %1380 = vmatmul.bf16.gmra.mxu0 %v1032
      %v1381 = vpop.f32.mrf.mxu0
      %v1382 = vadd.f32 %v1298, %v1381
      %v1383 = vpop.f32.mrf.mxu0
      %v1384 = vadd.f32 %v1300, %v1383
      %1385 = vmatmul.bf16.gmra.mxu0 %v1035
      %v1386 = vpop.f32.mrf.mxu0
      %v1387 = vadd.f32 %v1303, %v1386
      %v1388 = vpop.f32.mrf.mxu0
      %1389 = vmatmul.bf16.gmra.mxu0 %v897
      %v1390 = vpop.f32.mrf.mxu0
      %v1391 = vadd.f32 %v1307, %v1390
      %v1392 = vpop.f32.mrf.mxu0
      %v1393 = vadd.f32 %v1309, %v1392
      %1394 = vmatmul.bf16.gmra.mxu0 %v900
      %v1395 = vpop.f32.mrf.mxu0
      %v1396 = vadd.f32 %v1312, %v1395
      %v1397 = vpop.f32.mrf.mxu0
      %1398 = vmatmul.bf16.gmra.mxu0 %v903
      %v1399 = vpop.f32.mrf.mxu0
      %v1400 = vadd.f32 %v1316, %v1399
      %v1401 = vpop.f32.mrf.mxu0
      %v1402 = vadd.f32 %v1318, %v1401
      %1403 = vmatmul.bf16.gmra.mxu0 %v906
      %v1404 = vpop.f32.mrf.mxu0
      %v1405 = vadd.f32 %v1321, %v1404
      %v1406 = vpop.f32.mrf.mxu0
      %1407 = vmatmul.bf16.gmra.mxu0 %v909
      %v1408 = vpop.f32.mrf.mxu0
      %v1409 = vadd.f32 %v1325, %v1408
      %v1410 = vpop.f32.mrf.mxu0
      %v1411 = vadd.f32 %v1327, %v1410
      %1412 = vmatmul.bf16.gmra.mxu0 %v912
      %v1413 = vpop.f32.mrf.mxu0
      %v1414 = vadd.f32 %v1330, %v1413
      %v1415 = vpop.f32.mrf.mxu0
      %1416 = vmatmul.bf16.gmra.mxu0 %v915
      %v1417 = vpop.f32.mrf.mxu0
      %v1418 = vadd.f32 %v1334, %v1417
      %v1419 = vpop.f32.mrf.mxu0
      %v1420 = vadd.f32 %v1336, %v1419
      %1421 = vmatmul.bf16.gmra.mxu0 %v918
      %v1422 = vpop.f32.mrf.mxu0
      %v1423 = vadd.f32 %v1339, %v1422
      %v1424 = vpop.f32.mrf.mxu0
      %1425 = vmatmul.bf16.gmra.mxu0 %v921
      %v1426 = vpop.f32.mrf.mxu0
      %v1427 = vadd.f32 %v1343, %v1426
      %v1428 = vpop.f32.mrf.mxu0
      %v1429 = vadd.f32 %v1345, %v1428
      %1430 = vmatmul.bf16.gmra.mxu0 %v924
      %v1431 = vpop.f32.mrf.mxu0
      %v1432 = vadd.f32 %v1348, %v1431
      %v1433 = vpop.f32.mrf.mxu0
      %1434 = vmatmul.bf16.gmra.mxu0 %v927
      %v1435 = vpop.f32.mrf.mxu0
      %v1436 = vadd.f32 %v1352, %v1435
      %v1437 = vpop.f32.mrf.mxu0
      %v1438 = vadd.f32 %v1354, %v1437
      %1439 = vmatmul.bf16.gmra.mxu0 %v930
      %v1440 = vpop.f32.mrf.mxu0
      %v1441 = vadd.f32 %v1357, %v1440
      %v1442 = vpop.f32.mrf.mxu0
      %1443 = vmatmul.bf16.gmra.mxu0 %v933
      %v1444 = vpop.f32.mrf.mxu0
      %v1445 = vadd.f32 %v1361, %v1444
      %v1446 = vpop.f32.mrf.mxu0
      %v1447 = vadd.f32 %v1363, %v1446
      %1448 = vmatmul.bf16.gmra.mxu0 %v936
      %v1449 = vpop.f32.mrf.mxu0
      %v1450 = vadd.f32 %v1366, %v1449
      %v1451 = vpop.f32.mrf.mxu0
      %1452 = vdwg.mxu0
      %v1453 = vld [vmem:[#allocation2 + $0x20] sm:$0xf]
      %v1454 = vld [vmem:[#allocation2 + $0x24] sm:$0xf]
      %v1455 = vld [vmem:[#allocation2 + $0x28] sm:$0xf]
      %v1456 = vld [vmem:[#allocation2 + $0x2c] sm:$0xf]
      %v1457 = vld [vmem:[#allocation2 + $0x30] sm:$0xf]
      %v1458 = vld [vmem:[#allocation2 + $0x34] sm:$0xf]
      %v1459 = vld [vmem:[#allocation2 + $0x38] sm:$0xf]
      %v1460 = vld [vmem:[#allocation2 + $0x3c] sm:$0xf]
      %v1461 = vld [vmem:[#allocation2 + $0x40] sm:$0xf]
      %v1462 = vld [vmem:[#allocation2 + $0x44] sm:$0xf]
      %v1463 = vld [vmem:[#allocation2 + $0x48] sm:$0xf]
      %v1464 = vld [vmem:[#allocation2 + $0x4c] sm:$0xf]
      %v1465 = vld [vmem:[#allocation2 + $0x50] sm:$0xf]
      %v1466 = vld [vmem:[#allocation2 + $0x54] sm:$0xf]
      %v1467 = vld [vmem:[#allocation2 + $0x58] sm:$0xf]
      %v1468 = vld [vmem:[#allocation2 + $0x5c] sm:$0xf]
      %v1469 = vld [vmem:[#allocation2 + $0x60] sm:$0xf]
      %v1470 = vld [vmem:[#allocation2 + $0x64] sm:$0xf]
      %v1471 = vld [vmem:[#allocation2 + $0x68] sm:$0xf]
      %v1472 = vld [vmem:[#allocation2 + $0x6c] sm:$0xf]
      %v1473 = vld [vmem:[#allocation2 + $0x70] sm:$0xf]
      %v1474 = vld [vmem:[#allocation2 + $0x74] sm:$0xf]
      %v1475 = vld [vmem:[#allocation2 + $0x78] sm:$0xf]
      %v1476 = vld [vmem:[#allocation2 + $0x7c] sm:$0xf]
      %v1477 = vld [vmem:[#allocation2 + $0x80] sm:$0xf]
      %v1478 = vld [vmem:[#allocation2 + $0x84] sm:$0xf]
      %v1479 = vld [vmem:[#allocation2 + $0x88] sm:$0xf]
      %v1480 = vld [vmem:[#allocation2 + $0x8c] sm:$0xf]
      %v1481 = vld [vmem:[#allocation2 + $0x90] sm:$0xf]
      %v1482 = vld [vmem:[#allocation2 + $0x94] sm:$0xf]
      %v1483 = vld [vmem:[#allocation2 + $0x98] sm:$0xf]
      %v1484 = vld [vmem:[#allocation2 + $0x9c] sm:$0xf]
      %s1485 = scalar_lea.vmem %s560, 12
      %v1486 = vld [vmem:[%s1485] sm:$0x3]
      %v1519 = vunpack.c.l.b16 %v1453
      %v1520 = vunpack.c.l.b16 %v1454
      %v1521 = vunpack.c.l.b16 %v1455
      %v1522 = vunpack.c.l.b16 %v1456
      %v1523 = vunpack.c.l.b16 %v1457
      %v1524 = vunpack.c.l.b16 %v1458
      %v1525 = vunpack.c.l.b16 %v1459
      %v1526 = vunpack.c.l.b16 %v1460
      %v1527 = vunpack.c.l.b16 %v1461
      %v1528 = vunpack.c.l.b16 %v1462
      %v1529 = vunpack.c.l.b16 %v1463
      %v1530 = vunpack.c.l.b16 %v1464
      %v1531 = vunpack.c.l.b16 %v1465
      %v1532 = vunpack.c.l.b16 %v1466
      %v1533 = vunpack.c.l.b16 %v1467
      %v1534 = vunpack.c.l.b16 %v1468
      %v1535 = vunpack.c.l.b16 %v1469
      %v1536 = vunpack.c.l.b16 %v1470
      %v1537 = vunpack.c.l.b16 %v1471
      %v1538 = vunpack.c.l.b16 %v1472
      %v1539 = vunpack.c.l.b16 %v1473
      %v1540 = vunpack.c.l.b16 %v1474
      %v1541 = vunpack.c.l.b16 %v1475
      %v1542 = vunpack.c.l.b16 %v1476
      %v1543 = vunpack.c.l.b16 %v1477
      %v1544 = vunpack.c.l.b16 %v1478
      %v1545 = vunpack.c.l.b16 %v1479
      %v1546 = vunpack.c.l.b16 %v1480
      %v1547 = vunpack.c.l.b16 %v1481
      %v1548 = vunpack.c.l.b16 %v1482
      %v1549 = vunpack.c.l.b16 %v1483
      %v1550 = vunpack.c.l.b16 %v1484
      %v1551 = vpack.c.b16 %v1520, %v1519
      %v1552 = vpack.c.b16 %v1522, %v1521
      %v1553 = vpack.c.b16 %v1524, %v1523
      %v1554 = vpack.c.b16 %v1526, %v1525
      %v1555 = vpack.c.b16 %v1528, %v1527
      %v1556 = vpack.c.b16 %v1530, %v1529
      %v1557 = vpack.c.b16 %v1532, %v1531
      %v1558 = vpack.c.b16 %v1534, %v1533
      %v1559 = vpack.c.b16 %v1536, %v1535
      %v1560 = vpack.c.b16 %v1538, %v1537
      %v1561 = vpack.c.b16 %v1540, %v1539
      %v1562 = vpack.c.b16 %v1542, %v1541
      %v1563 = vpack.c.b16 %v1544, %v1543
      %v1564 = vpack.c.b16 %v1546, %v1545
      %v1565 = vpack.c.b16 %v1548, %v1547
      %v1566 = vpack.c.b16 %v1550, %v1549
      %v1568 = vsel %vm895, %v1551, 0
      %v1571 = vsel %vm895, %v1552, 0
      %v1574 = vsel %vm895, %v1553, 0
      %v1577 = vsel %vm895, %v1554, 0
      %v1580 = vsel %vm895, %v1555, 0
      %v1583 = vsel %vm895, %v1556, 0
      %v1586 = vsel %vm895, %v1557, 0
      %v1589 = vsel %vm895, %v1558, 0
      %v1592 = vsel %vm895, %v1559, 0
      %v1595 = vsel %vm895, %v1560, 0
      %v1598 = vsel %vm895, %v1561, 0
      %v1601 = vsel %vm895, %v1562, 0
      %v1604 = vsel %vm895, %v1563, 0
      %v1607 = vsel %vm895, %v1564, 0
      %v1610 = vsel %vm895, %v1565, 0
      %v1613 = vsel %vm895, %v1566, 0
      %v1616 = vsel %vm944, %v1486, 0
      %1618 = vmatpush.bf16.msra.mxu0 0
      %1619 = vmatpush.bf16.msra.mxu0 0
      %1620 = vmatpush.bf16.msra.mxu0 0
      %1621 = vmatpush.bf16.msra.mxu0 0
      %1622 = vmatpush.bf16.msra.mxu0 0
      %1623 = vmatpush.bf16.msra.mxu0 0
      %1624 = vmatpush.bf16.msra.mxu0 0
      %1625 = vmatpush.bf16.msra.mxu0 %v1616
      %1626 = vmatmul.bf16.gmra.mxu0 %v1568
      %v1627 = vpop.f32.mrf.mxu0
      %v1628 = vadd.f32 0.0, %v1627
      %v1629 = vpop.f32.mrf.mxu0
      %v1630 = vadd.f32 0.0, %v1629
      %1631 = vmatmul.bf16.gmra.mxu0 %v1571
      %v1632 = vpop.f32.mrf.mxu0
      %v1633 = vpop.f32.mrf.mxu0
      %1634 = vmatmul.bf16.gmra.mxu0 %v1574
      %v1635 = vpop.f32.mrf.mxu0
      %v1636 = vadd.f32 0.0, %v1635
      %v1637 = vpop.f32.mrf.mxu0
      %v1638 = vadd.f32 0.0, %v1637
      %1639 = vmatmul.bf16.gmra.mxu0 %v1577
      %v1640 = vpop.f32.mrf.mxu0
      %v1641 = vpop.f32.mrf.mxu0
      %1642 = vmatmul.bf16.gmra.mxu0 %v1580
      %v1643 = vpop.f32.mrf.mxu0
      %v1644 = vadd.f32 0.0, %v1643
      %v1645 = vpop.f32.mrf.mxu0
      %v1646 = vadd.f32 0.0, %v1645
      %1647 = vmatmul.bf16.gmra.mxu0 %v1583
      %v1648 = vpop.f32.mrf.mxu0
      %v1649 = vpop.f32.mrf.mxu0
      %1650 = vmatmul.bf16.gmra.mxu0 %v1586
      %v1651 = vpop.f32.mrf.mxu0
      %v1652 = vadd.f32 0.0, %v1651
      %v1653 = vpop.f32.mrf.mxu0
      %v1654 = vadd.f32 0.0, %v1653
      %1655 = vmatmul.bf16.gmra.mxu0 %v1589
      %v1656 = vpop.f32.mrf.mxu0
      %v1657 = vpop.f32.mrf.mxu0
      %1658 = vmatmul.bf16.gmra.mxu0 %v1592
      %v1659 = vpop.f32.mrf.mxu0
      %v1660 = vadd.f32 0.0, %v1659
      %v1661 = vpop.f32.mrf.mxu0
      %v1662 = vadd.f32 0.0, %v1661
      %1663 = vmatmul.bf16.gmra.mxu0 %v1595
      %v1664 = vpop.f32.mrf.mxu0
      %v1665 = vpop.f32.mrf.mxu0
      %1666 = vmatmul.bf16.gmra.mxu0 %v1598
      %v1667 = vpop.f32.mrf.mxu0
      %v1668 = vadd.f32 0.0, %v1667
      %v1669 = vpop.f32.mrf.mxu0
      %v1670 = vadd.f32 0.0, %v1669
      %1671 = vmatmul.bf16.gmra.mxu0 %v1601
      %v1672 = vpop.f32.mrf.mxu0
      %v1673 = vpop.f32.mrf.mxu0
      %1674 = vmatmul.bf16.gmra.mxu0 %v1604
      %v1675 = vpop.f32.mrf.mxu0
      %v1676 = vadd.f32 0.0, %v1675
      %v1677 = vpop.f32.mrf.mxu0
      %v1678 = vadd.f32 0.0, %v1677
      %1679 = vmatmul.bf16.gmra.mxu0 %v1607
      %v1680 = vpop.f32.mrf.mxu0
      %v1681 = vpop.f32.mrf.mxu0
      %1682 = vmatmul.bf16.gmra.mxu0 %v1610
      %v1683 = vpop.f32.mrf.mxu0
      %v1684 = vadd.f32 0.0, %v1683
      %v1685 = vpop.f32.mrf.mxu0
      %v1686 = vadd.f32 0.0, %v1685
      %1687 = vmatmul.bf16.gmra.mxu0 %v1613
      %v1688 = vpop.f32.mrf.mxu0
      %v1689 = vpop.f32.mrf.mxu0
      %1690 = vdwg.mxu0
      %v1691 = vadd.f32 %v1050, %v1628
      %v1692 = vadd.f32 %v1052, %v1630
      %v1693 = vadd.f32 %v1058, %v1636
      %v1694 = vadd.f32 %v1060, %v1638
      %v1695 = vadd.f32 %v1066, %v1644
      %v1696 = vadd.f32 %v1068, %v1646
      %v1697 = vadd.f32 %v1074, %v1652
      %v1698 = vadd.f32 %v1076, %v1654
      %v1699 = vadd.f32 %v1082, %v1660
      %v1700 = vadd.f32 %v1084, %v1662
      %v1701 = vadd.f32 %v1090, %v1668
      %v1702 = vadd.f32 %v1092, %v1670
      %v1703 = vadd.f32 %v1098, %v1676
      %v1704 = vadd.f32 %v1100, %v1678
      %v1705 = vadd.f32 %v1106, %v1684
      %v1706 = vadd.f32 %v1108, %v1686
      %s1707 = scalar_lea.vmem %s560, 14
      %v1708 = vld [vmem:[%s1707] sm:$0x3]
      %v1710 = vsel %vm944, %v1708, 0
      %1712 = vmatpush.bf16.msra.mxu0 0
      %1713 = vmatpush.bf16.msra.mxu0 0
      %1714 = vmatpush.bf16.msra.mxu0 0
      %1715 = vmatpush.bf16.msra.mxu0 0
      %1716 = vmatpush.bf16.msra.mxu0 0
      %1717 = vmatpush.bf16.msra.mxu0 0
      %1718 = vmatpush.bf16.msra.mxu0 0
      %1719 = vmatpush.bf16.msra.mxu0 %v1710
      %1720 = vmatmul.bf16.gmra.mxu0 %v1568
      %v1721 = vpop.f32.mrf.mxu0
      %v1722 = vadd.f32 0.0, %v1721
      %v1723 = vpop.f32.mrf.mxu0
      %v1724 = vadd.f32 0.0, %v1723
      %1725 = vmatmul.bf16.gmra.mxu0 %v1571
      %v1726 = vpop.f32.mrf.mxu0
      %v1727 = vadd.f32 0.0, %v1726
      %v1728 = vpop.f32.mrf.mxu0
      %1729 = vmatmul.bf16.gmra.mxu0 %v1574
      %v1730 = vpop.f32.mrf.mxu0
      %v1731 = vadd.f32 0.0, %v1730
      %v1732 = vpop.f32.mrf.mxu0
      %v1733 = vadd.f32 0.0, %v1732
      %1734 = vmatmul.bf16.gmra.mxu0 %v1577
      %v1735 = vpop.f32.mrf.mxu0
      %v1736 = vadd.f32 0.0, %v1735
      %v1737 = vpop.f32.mrf.mxu0
      %1738 = vmatmul.bf16.gmra.mxu0 %v1580
      %v1739 = vpop.f32.mrf.mxu0
      %v1740 = vadd.f32 0.0, %v1739
      %v1741 = vpop.f32.mrf.mxu0
      %v1742 = vadd.f32 0.0, %v1741
      %1743 = vmatmul.bf16.gmra.mxu0 %v1583
      %v1744 = vpop.f32.mrf.mxu0
      %v1745 = vadd.f32 0.0, %v1744
      %v1746 = vpop.f32.mrf.mxu0
      %1747 = vmatmul.bf16.gmra.mxu0 %v1586
      %v1748 = vpop.f32.mrf.mxu0
      %v1749 = vadd.f32 0.0, %v1748
      %v1750 = vpop.f32.mrf.mxu0
      %v1751 = vadd.f32 0.0, %v1750
      %1752 = vmatmul.bf16.gmra.mxu0 %v1589
      %v1753 = vpop.f32.mrf.mxu0
      %v1754 = vadd.f32 0.0, %v1753
      %v1755 = vpop.f32.mrf.mxu0
      %1756 = vmatmul.bf16.gmra.mxu0 %v1592
      %v1757 = vpop.f32.mrf.mxu0
      %v1758 = vadd.f32 0.0, %v1757
      %v1759 = vpop.f32.mrf.mxu0
      %v1760 = vadd.f32 0.0, %v1759
      %1761 = vmatmul.bf16.gmra.mxu0 %v1595
      %v1762 = vpop.f32.mrf.mxu0
      %v1763 = vadd.f32 0.0, %v1762
      %v1764 = vpop.f32.mrf.mxu0
      %1765 = vmatmul.bf16.gmra.mxu0 %v1598
      %v1766 = vpop.f32.mrf.mxu0
      %v1767 = vadd.f32 0.0, %v1766
      %v1768 = vpop.f32.mrf.mxu0
      %v1769 = vadd.f32 0.0, %v1768
      %1770 = vmatmul.bf16.gmra.mxu0 %v1601
      %v1771 = vpop.f32.mrf.mxu0
      %v1772 = vadd.f32 0.0, %v1771
      %v1773 = vpop.f32.mrf.mxu0
      %1774 = vmatmul.bf16.gmra.mxu0 %v1604
      %v1775 = vpop.f32.mrf.mxu0
      %v1776 = vadd.f32 0.0, %v1775
      %v1777 = vpop.f32.mrf.mxu0
      %v1778 = vadd.f32 0.0, %v1777
      %1779 = vmatmul.bf16.gmra.mxu0 %v1607
      %v1780 = vpop.f32.mrf.mxu0
      %v1781 = vadd.f32 0.0, %v1780
      %v1782 = vpop.f32.mrf.mxu0
      %1783 = vmatmul.bf16.gmra.mxu0 %v1610
      %v1784 = vpop.f32.mrf.mxu0
      %v1785 = vadd.f32 0.0, %v1784
      %v1786 = vpop.f32.mrf.mxu0
      %v1787 = vadd.f32 0.0, %v1786
      %1788 = vmatmul.bf16.gmra.mxu0 %v1613
      %v1789 = vpop.f32.mrf.mxu0
      %v1790 = vadd.f32 0.0, %v1789
      %v1791 = vpop.f32.mrf.mxu0
      %1792 = vdwg.mxu0
      %v1793 = vadd.f32 %v1212, %v1722
      %v1794 = vadd.f32 %v1214, %v1724
      %v1795 = vadd.f32 %v1217, %v1727
      %v1796 = vadd.f32 %v1221, %v1731
      %v1797 = vadd.f32 %v1223, %v1733
      %v1798 = vadd.f32 %v1226, %v1736
      %v1799 = vadd.f32 %v1230, %v1740
      %v1800 = vadd.f32 %v1232, %v1742
      %v1801 = vadd.f32 %v1235, %v1745
      %v1802 = vadd.f32 %v1239, %v1749
      %v1803 = vadd.f32 %v1241, %v1751
      %v1804 = vadd.f32 %v1244, %v1754
      %v1805 = vadd.f32 %v1248, %v1758
      %v1806 = vadd.f32 %v1250, %v1760
      %v1807 = vadd.f32 %v1253, %v1763
      %v1808 = vadd.f32 %v1257, %v1767
      %v1809 = vadd.f32 %v1259, %v1769
      %v1810 = vadd.f32 %v1262, %v1772
      %v1811 = vadd.f32 %v1266, %v1776
      %v1812 = vadd.f32 %v1268, %v1778
      %v1813 = vadd.f32 %v1271, %v1781
      %v1814 = vadd.f32 %v1275, %v1785
      %v1815 = vadd.f32 %v1277, %v1787
      %v1816 = vadd.f32 %v1280, %v1790
      %s1817 = scalar_lea.vmem %s560, 16
      %v1818 = vld [vmem:[%s1817] sm:$0x3]
      %v1820 = vsel %vm944, %v1818, 0
      %1822 = vmatpush.bf16.msra.mxu0 0
      %1823 = vmatpush.bf16.msra.mxu0 0
      %1824 = vmatpush.bf16.msra.mxu0 0
      %1825 = vmatpush.bf16.msra.mxu0 0
      %1826 = vmatpush.bf16.msra.mxu0 0
      %1827 = vmatpush.bf16.msra.mxu0 0
      %1828 = vmatpush.bf16.msra.mxu0 0
      %1829 = vmatpush.bf16.msra.mxu0 %v1820
      %1830 = vmatmul.bf16.gmra.mxu0 %v1568
      %v1831 = vpop.f32.mrf.mxu0
      %v1832 = vadd.f32 0.0, %v1831
      %v1833 = vpop.f32.mrf.mxu0
      %v1834 = vadd.f32 0.0, %v1833
      %1835 = vmatmul.bf16.gmra.mxu0 %v1571
      %v1836 = vpop.f32.mrf.mxu0
      %v1837 = vadd.f32 0.0, %v1836
      %v1838 = vpop.f32.mrf.mxu0
      %1839 = vmatmul.bf16.gmra.mxu0 %v1574
      %v1840 = vpop.f32.mrf.mxu0
      %v1841 = vadd.f32 0.0, %v1840
      %v1842 = vpop.f32.mrf.mxu0
      %v1843 = vadd.f32 0.0, %v1842
      %1844 = vmatmul.bf16.gmra.mxu0 %v1577
      %v1845 = vpop.f32.mrf.mxu0
      %v1846 = vadd.f32 0.0, %v1845
      %v1847 = vpop.f32.mrf.mxu0
      %1848 = vmatmul.bf16.gmra.mxu0 %v1580
      %v1849 = vpop.f32.mrf.mxu0
      %v1850 = vadd.f32 0.0, %v1849
      %v1851 = vpop.f32.mrf.mxu0
      %v1852 = vadd.f32 0.0, %v1851
      %1853 = vmatmul.bf16.gmra.mxu0 %v1583
      %v1854 = vpop.f32.mrf.mxu0
      %v1855 = vadd.f32 0.0, %v1854
      %v1856 = vpop.f32.mrf.mxu0
      %1857 = vmatmul.bf16.gmra.mxu0 %v1586
      %v1858 = vpop.f32.mrf.mxu0
      %v1859 = vadd.f32 0.0, %v1858
      %v1860 = vpop.f32.mrf.mxu0
      %v1861 = vadd.f32 0.0, %v1860
      %1862 = vmatmul.bf16.gmra.mxu0 %v1589
      %v1863 = vpop.f32.mrf.mxu0
      %v1864 = vadd.f32 0.0, %v1863
      %v1865 = vpop.f32.mrf.mxu0
      %1866 = vmatmul.bf16.gmra.mxu0 %v1592
      %v1867 = vpop.f32.mrf.mxu0
      %v1868 = vadd.f32 0.0, %v1867
      %v1869 = vpop.f32.mrf.mxu0
      %v1870 = vadd.f32 0.0, %v1869
      %1871 = vmatmul.bf16.gmra.mxu0 %v1595
      %v1872 = vpop.f32.mrf.mxu0
      %v1873 = vadd.f32 0.0, %v1872
      %v1874 = vpop.f32.mrf.mxu0
      %1875 = vmatmul.bf16.gmra.mxu0 %v1598
      %v1876 = vpop.f32.mrf.mxu0
      %v1877 = vadd.f32 0.0, %v1876
      %v1878 = vpop.f32.mrf.mxu0
      %v1879 = vadd.f32 0.0, %v1878
      %1880 = vmatmul.bf16.gmra.mxu0 %v1601
      %v1881 = vpop.f32.mrf.mxu0
      %v1882 = vadd.f32 0.0, %v1881
      %v1883 = vpop.f32.mrf.mxu0
      %1884 = vmatmul.bf16.gmra.mxu0 %v1604
      %v1885 = vpop.f32.mrf.mxu0
      %v1886 = vadd.f32 0.0, %v1885
      %v1887 = vpop.f32.mrf.mxu0
      %v1888 = vadd.f32 0.0, %v1887
      %1889 = vmatmul.bf16.gmra.mxu0 %v1607
      %v1890 = vpop.f32.mrf.mxu0
      %v1891 = vadd.f32 0.0, %v1890
      %v1892 = vpop.f32.mrf.mxu0
      %1893 = vmatmul.bf16.gmra.mxu0 %v1610
      %v1894 = vpop.f32.mrf.mxu0
      %v1895 = vadd.f32 0.0, %v1894
      %v1896 = vpop.f32.mrf.mxu0
      %v1897 = vadd.f32 0.0, %v1896
      %1898 = vmatmul.bf16.gmra.mxu0 %v1613
      %v1899 = vpop.f32.mrf.mxu0
      %v1900 = vadd.f32 0.0, %v1899
      %v1901 = vpop.f32.mrf.mxu0
      %1902 = vdwg.mxu0
      %v1903 = vadd.f32 %v1382, %v1832
      %v1904 = vadd.f32 %v1384, %v1834
      %v1905 = vadd.f32 %v1387, %v1837
      %v1906 = vadd.f32 %v1391, %v1841
      %v1907 = vadd.f32 %v1393, %v1843
      %v1908 = vadd.f32 %v1396, %v1846
      %v1909 = vadd.f32 %v1400, %v1850
      %v1910 = vadd.f32 %v1402, %v1852
      %v1911 = vadd.f32 %v1405, %v1855
      %v1912 = vadd.f32 %v1409, %v1859
      %v1913 = vadd.f32 %v1411, %v1861
      %v1914 = vadd.f32 %v1414, %v1864
      %v1915 = vadd.f32 %v1418, %v1868
      %v1916 = vadd.f32 %v1420, %v1870
      %v1917 = vadd.f32 %v1423, %v1873
      %v1918 = vadd.f32 %v1427, %v1877
      %v1919 = vadd.f32 %v1429, %v1879
      %v1920 = vadd.f32 %v1432, %v1882
      %v1921 = vadd.f32 %v1436, %v1886
      %v1922 = vadd.f32 %v1438, %v1888
      %v1923 = vadd.f32 %v1441, %v1891
      %v1924 = vadd.f32 %v1445, %v1895
      %v1925 = vadd.f32 %v1447, %v1897
      %v1926 = vadd.f32 %v1450, %v1900
      %v1927 = vld [vmem:[%s6] sm:$0xf]
      %v1928 = vld [vmem:[%s6 + $0x4] sm:$0xf]
      %v1929 = vld [vmem:[%s6 + $0x8] sm:$0xf]
      %v1930 = vld [vmem:[%s6 + $0xc] sm:$0xf]
      %v1931 = vld [vmem:[#allocation3] sm:$0xf]
      %v1936 = vunpack.c.l.b16 %v1927
      %v1937 = vunpack.c.l.b16 %v1928
      %v1938 = vunpack.c.l.b16 %v1929
      %v1939 = vunpack.c.l.b16 %v1930
      %v1940 = vpack.c.b16 %v1937, %v1936
      %v1941 = vpack.c.b16 %v1939, %v1938
      %vm1942 = vcmask 64512
      %v1944 = vsel %vm1942, %v1940, 0
      %v1947 = vsel %vm1942, %v1941, 0
      %vm1949 = vcmask 1043456
      %v1951 = vsel %vm1949, %v1931, 0
      %1953 = vmatpush.bf16.msra.mxu0 0
      %1954 = vmatpush.bf16.msra.mxu0 0
      %1955 = vmatpush.bf16.msra.mxu0 0
      %1956 = vmatpush.bf16.msra.mxu0 0
      %1957 = vmatpush.bf16.msra.mxu0 0
      %1958 = vmatpush.bf16.msra.mxu0 0
      %1959 = vmatpush.bf16.msra.mxu0 0
      %1960 = vmatpush.bf16.msra.mxu0 %v1951
      %1961 = vmatmul.bf16.gmra.mxu0 %v1944
      %v1962 = vpop.f32.mrf.mxu0
      %v1963 = vadd.f32 0.0, %v1962
      %v1964 = vpop.f32.mrf.mxu0
      %v1965 = vadd.f32 0.0, %v1964
      %1966 = vmatmul.bf16.gmra.mxu0 %v1947
      %v1967 = vpop.f32.mrf.mxu0
      %v1968 = vadd.f32 0.0, %v1967
      %v1969 = vpop.f32.mrf.mxu0
      %v1970 = vadd.f32 0.0, %v1969
      %1971 = vdwg.mxu0
      %v1972 = vpack.c.bf16 %v1963, %v1963
      %v1973 = vpack.c.bf16 %v1965, %v1965
      %v1974 = vpack.c.bf16 %v1968, %v1968
      %v1975 = vpack.c.bf16 %v1970, %v1970
      %1976 = vst.msk [vmem:[#allocation4] sm:$0xf] %vm590, %v1972
      %1977 = vst.msk [vmem:[#allocation4 + $0x4] sm:$0xf] %vm590, %v1973
      %1978 = vst.msk [vmem:[#allocation4 + $0x8] sm:$0xf] %vm590, %v1974
      %1979 = vst.msk [vmem:[#allocation4 + $0xc] sm:$0xf] %vm590, %v1975
      %v1980 = vld [vmem:[%s617] sm:$0xf]
      %v1982 = vsel %vm1949, %v1980, 0
      %1984 = vmatpush.bf16.msra.mxu0 0
      %1985 = vmatpush.bf16.msra.mxu0 0
      %1986 = vmatpush.bf16.msra.mxu0 0
      %1987 = vmatpush.bf16.msra.mxu0 0
      %1988 = vmatpush.bf16.msra.mxu0 0
      %1989 = vmatpush.bf16.msra.mxu0 0
      %1990 = vmatpush.bf16.msra.mxu0 0
      %1991 = vmatpush.bf16.msra.mxu0 %v1982
      %1992 = vmatmul.bf16.gmra.mxu0 %v1944
      %v1993 = vpop.f32.mrf.mxu0
      %v1994 = vadd.f32 0.0, %v1993
      %v1995 = vpop.f32.mrf.mxu0
      %v1996 = vadd.f32 0.0, %v1995
      %1997 = vmatmul.bf16.gmra.mxu0 %v1947
      %v1998 = vpop.f32.mrf.mxu0
      %v1999 = vadd.f32 0.0, %v1998
      %v2000 = vpop.f32.mrf.mxu0
      %v2001 = vadd.f32 0.0, %v2000
      %2002 = vdwg.mxu0
      %v2003 = vpack.c.bf16 %v1994, %v1994
      %v2004 = vpack.c.bf16 %v1996, %v1996
      %v2005 = vpack.c.bf16 %v1999, %v1999
      %v2006 = vpack.c.bf16 %v2001, %v2001
      %2007 = vst.msk [vmem:[#allocation4 + $0x10] sm:$0xf] %vm590, %v2003
      %2008 = vst.msk [vmem:[#allocation4 + $0x14] sm:$0xf] %vm590, %v2004
      %2009 = vst.msk [vmem:[#allocation4 + $0x18] sm:$0xf] %vm590, %v2005
      %2010 = vst.msk [vmem:[#allocation4 + $0x1c] sm:$0xf] %vm590, %v2006
      %v2011 = vld [vmem:[%s636] sm:$0xf]
      %v2013 = vsel %vm1949, %v2011, 0
      %2015 = vmatpush.bf16.msra.mxu0 0
      %2016 = vmatpush.bf16.msra.mxu0 0
      %2017 = vmatpush.bf16.msra.mxu0 0
      %2018 = vmatpush.bf16.msra.mxu0 0
      %2019 = vmatpush.bf16.msra.mxu0 0
      %2020 = vmatpush.bf16.msra.mxu0 0
      %2021 = vmatpush.bf16.msra.mxu0 0
      %2022 = vmatpush.bf16.msra.mxu0 %v2013
      %2023 = vmatmul.bf16.gmra.mxu0 %v1944
      %v2024 = vpop.f32.mrf.mxu0
      %v2025 = vadd.f32 0.0, %v2024
      %v2026 = vpop.f32.mrf.mxu0
      %v2027 = vadd.f32 0.0, %v2026
      %2028 = vmatmul.bf16.gmra.mxu0 %v1947
      %v2029 = vpop.f32.mrf.mxu0
      %v2030 = vadd.f32 0.0, %v2029
      %v2031 = vpop.f32.mrf.mxu0
      %v2032 = vadd.f32 0.0, %v2031
      %2033 = vdwg.mxu0
      %v2034 = vpack.c.bf16 %v2025, %v2025
      %v2035 = vpack.c.bf16 %v2027, %v2027
      %v2036 = vpack.c.bf16 %v2030, %v2030
      %v2037 = vpack.c.bf16 %v2032, %v2032
      %2038 = vst.msk [vmem:[#allocation4 + $0x20] sm:$0xf] %vm590, %v2034
      %2039 = vst.msk [vmem:[#allocation4 + $0x24] sm:$0xf] %vm590, %v2035
      %2040 = vst.msk [vmem:[#allocation4 + $0x28] sm:$0xf] %vm590, %v2036
      %2041 = vst.msk [vmem:[#allocation4 + $0x2c] sm:$0xf] %vm590, %v2037
      %v2042 = vld [vmem:[%s655] sm:$0xf]
      %v2044 = vsel %vm1949, %v2042, 0
      %2046 = vmatpush.bf16.msra.mxu0 0
      %2047 = vmatpush.bf16.msra.mxu0 0
      %2048 = vmatpush.bf16.msra.mxu0 0
      %2049 = vmatpush.bf16.msra.mxu0 0
      %2050 = vmatpush.bf16.msra.mxu0 0
      %2051 = vmatpush.bf16.msra.mxu0 0
      %2052 = vmatpush.bf16.msra.mxu0 0
      %2053 = vmatpush.bf16.msra.mxu0 %v2044
      %2054 = vmatmul.bf16.gmra.mxu0 %v1944
      %v2055 = vpop.f32.mrf.mxu0
      %v2056 = vadd.f32 0.0, %v2055
      %v2057 = vpop.f32.mrf.mxu0
      %v2058 = vadd.f32 0.0, %v2057
      %2059 = vmatmul.bf16.gmra.mxu0 %v1947
      %v2060 = vpop.f32.mrf.mxu0
      %v2061 = vadd.f32 0.0, %v2060
      %v2062 = vpop.f32.mrf.mxu0
      %v2063 = vadd.f32 0.0, %v2062
      %2064 = vdwg.mxu0
      %v2065 = vpack.c.bf16 %v2056, %v2056
      %v2066 = vpack.c.bf16 %v2058, %v2058
      %v2067 = vpack.c.bf16 %v2061, %v2061
      %v2068 = vpack.c.bf16 %v2063, %v2063
      %2069 = vst.msk [vmem:[#allocation4 + $0x30] sm:$0xf] %vm590, %v2065
      %2070 = vst.msk [vmem:[#allocation4 + $0x34] sm:$0xf] %vm590, %v2066
      %2071 = vst.msk [vmem:[#allocation4 + $0x38] sm:$0xf] %vm590, %v2067
      %2072 = vst.msk [vmem:[#allocation4 + $0x3c] sm:$0xf] %vm590, %v2068
      %v2073 = vld [vmem:[%s674] sm:$0xf]
      %v2075 = vsel %vm1949, %v2073, 0
      %2077 = vmatpush.bf16.msra.mxu0 0
      %2078 = vmatpush.bf16.msra.mxu0 0
      %2079 = vmatpush.bf16.msra.mxu0 0
      %2080 = vmatpush.bf16.msra.mxu0 0
      %2081 = vmatpush.bf16.msra.mxu0 0
      %2082 = vmatpush.bf16.msra.mxu0 0
      %2083 = vmatpush.bf16.msra.mxu0 0
      %2084 = vmatpush.bf16.msra.mxu0 %v2075
      %2085 = vmatmul.bf16.gmra.mxu0 %v1944
      %v2086 = vpop.f32.mrf.mxu0
      %v2087 = vadd.f32 0.0, %v2086
      %v2088 = vpop.f32.mrf.mxu0
      %v2089 = vadd.f32 0.0, %v2088
      %2090 = vmatmul.bf16.gmra.mxu0 %v1947
      %v2091 = vpop.f32.mrf.mxu0
      %v2092 = vadd.f32 0.0, %v2091
      %v2093 = vpop.f32.mrf.mxu0
      %v2094 = vadd.f32 0.0, %v2093
      %2095 = vdwg.mxu0
      %v2096 = vpack.c.bf16 %v2087, %v2087
      %v2097 = vpack.c.bf16 %v2089, %v2089
      %v2098 = vpack.c.bf16 %v2092, %v2092
      %v2099 = vpack.c.bf16 %v2094, %v2094
      %2100 = vst.msk [vmem:[#allocation4 + $0x40] sm:$0xf] %vm590, %v2096
      %2101 = vst.msk [vmem:[#allocation4 + $0x44] sm:$0xf] %vm590, %v2097
      %2102 = vst.msk [vmem:[#allocation4 + $0x48] sm:$0xf] %vm590, %v2098
      %2103 = vst.msk [vmem:[#allocation4 + $0x4c] sm:$0xf] %vm590, %v2099
      %v2104 = vld [vmem:[%s693] sm:$0xf]
      %v2106 = vsel %vm1949, %v2104, 0
      %2108 = vmatpush.bf16.msra.mxu0 0
      %2109 = vmatpush.bf16.msra.mxu0 0
      %2110 = vmatpush.bf16.msra.mxu0 0
      %2111 = vmatpush.bf16.msra.mxu0 0
      %2112 = vmatpush.bf16.msra.mxu0 0
      %2113 = vmatpush.bf16.msra.mxu0 0
      %2114 = vmatpush.bf16.msra.mxu0 0
      %2115 = vmatpush.bf16.msra.mxu0 %v2106
      %2116 = vmatmul.bf16.gmra.mxu0 %v1944
      %v2117 = vpop.f32.mrf.mxu0
      %v2118 = vadd.f32 0.0, %v2117
      %v2119 = vpop.f32.mrf.mxu0
      %v2120 = vadd.f32 0.0, %v2119
      %2121 = vmatmul.bf16.gmra.mxu0 %v1947
      %v2122 = vpop.f32.mrf.mxu0
      %v2123 = vadd.f32 0.0, %v2122
      %v2124 = vpop.f32.mrf.mxu0
      %v2125 = vadd.f32 0.0, %v2124
      %2126 = vdwg.mxu0
      %v2127 = vpack.c.bf16 %v2118, %v2118
      %v2128 = vpack.c.bf16 %v2120, %v2120
      %v2129 = vpack.c.bf16 %v2123, %v2123
      %v2130 = vpack.c.bf16 %v2125, %v2125
      %2131 = vst.msk [vmem:[#allocation4 + $0x50] sm:$0xf] %vm590, %v2127
      %2132 = vst.msk [vmem:[#allocation4 + $0x54] sm:$0xf] %vm590, %v2128
      %2133 = vst.msk [vmem:[#allocation4 + $0x58] sm:$0xf] %vm590, %v2129
      %2134 = vst.msk [vmem:[#allocation4 + $0x5c] sm:$0xf] %vm590, %v2130
      %v2135 = vld [vmem:[%s712] sm:$0xf]
      %v2137 = vsel %vm1949, %v2135, 0
      %2139 = vmatpush.bf16.msra.mxu0 0
      %2140 = vmatpush.bf16.msra.mxu0 0
      %2141 = vmatpush.bf16.msra.mxu0 0
      %2142 = vmatpush.bf16.msra.mxu0 0
      %2143 = vmatpush.bf16.msra.mxu0 0
      %2144 = vmatpush.bf16.msra.mxu0 0
      %2145 = vmatpush.bf16.msra.mxu0 0
      %2146 = vmatpush.bf16.msra.mxu0 %v2137
      %2147 = vmatmul.bf16.gmra.mxu0 %v1944
      %v2148 = vpop.f32.mrf.mxu0
      %v2149 = vadd.f32 0.0, %v2148
      %v2150 = vpop.f32.mrf.mxu0
      %v2151 = vadd.f32 0.0, %v2150
      %2152 = vmatmul.bf16.gmra.mxu0 %v1947
      %v2153 = vpop.f32.mrf.mxu0
      %v2154 = vadd.f32 0.0, %v2153
      %v2155 = vpop.f32.mrf.mxu0
      %v2156 = vadd.f32 0.0, %v2155
      %2157 = vdwg.mxu0
      %v2158 = vpack.c.bf16 %v2149, %v2149
      %v2159 = vpack.c.bf16 %v2151, %v2151
      %v2160 = vpack.c.bf16 %v2154, %v2154
      %v2161 = vpack.c.bf16 %v2156, %v2156
      %2162 = vst.msk [vmem:[#allocation4 + $0x60] sm:$0xf] %vm590, %v2158
      %2163 = vst.msk [vmem:[#allocation4 + $0x64] sm:$0xf] %vm590, %v2159
      %2164 = vst.msk [vmem:[#allocation4 + $0x68] sm:$0xf] %vm590, %v2160
      %2165 = vst.msk [vmem:[#allocation4 + $0x6c] sm:$0xf] %vm590, %v2161
      %v2166 = vld [vmem:[%s731] sm:$0xf]
      %v2168 = vsel %vm1949, %v2166, 0
      %2170 = vmatpush.bf16.msra.mxu0 0
      %2171 = vmatpush.bf16.msra.mxu0 0
      %2172 = vmatpush.bf16.msra.mxu0 0
      %2173 = vmatpush.bf16.msra.mxu0 0
      %2174 = vmatpush.bf16.msra.mxu0 0
      %2175 = vmatpush.bf16.msra.mxu0 0
      %2176 = vmatpush.bf16.msra.mxu0 0
      %2177 = vmatpush.bf16.msra.mxu0 %v2168
      %2178 = vmatmul.bf16.gmra.mxu0 %v1944
      %v2179 = vpop.f32.mrf.mxu0
      %v2180 = vadd.f32 0.0, %v2179
      %v2181 = vpop.f32.mrf.mxu0
      %v2182 = vadd.f32 0.0, %v2181
      %2183 = vmatmul.bf16.gmra.mxu0 %v1947
      %v2184 = vpop.f32.mrf.mxu0
      %v2185 = vadd.f32 0.0, %v2184
      %v2186 = vpop.f32.mrf.mxu0
      %v2187 = vadd.f32 0.0, %v2186
      %2188 = vdwg.mxu0
      %v2189 = vpack.c.bf16 %v2180, %v2180
      %v2190 = vpack.c.bf16 %v2182, %v2182
      %v2191 = vpack.c.bf16 %v2185, %v2185
      %v2192 = vpack.c.bf16 %v2187, %v2187
      %2193 = vst.msk [vmem:[#allocation4 + $0x70] sm:$0xf] %vm590, %v2189
      %2194 = vst.msk [vmem:[#allocation4 + $0x74] sm:$0xf] %vm590, %v2190
      %2195 = vst.msk [vmem:[#allocation4 + $0x78] sm:$0xf] %vm590, %v2191
      %2196 = vst.msk [vmem:[#allocation4 + $0x7c] sm:$0xf] %vm590, %v2192
      %v2197 = vld [vmem:[%s748] sm:$0xf]
      %v2199 = vsel %vm1949, %v2197, 0
      %2201 = vmatpush.bf16.msra.mxu0 0
      %2202 = vmatpush.bf16.msra.mxu0 0
      %2203 = vmatpush.bf16.msra.mxu0 0
      %2204 = vmatpush.bf16.msra.mxu0 0
      %2205 = vmatpush.bf16.msra.mxu0 0
      %2206 = vmatpush.bf16.msra.mxu0 0
      %2207 = vmatpush.bf16.msra.mxu0 0
      %2208 = vmatpush.bf16.msra.mxu0 %v2199
      %2209 = vmatmul.bf16.gmra.mxu0 %v1944
      %v2210 = vpop.f32.mrf.mxu0
      %v2211 = vadd.f32 0.0, %v2210
      %v2212 = vpop.f32.mrf.mxu0
      %v2213 = vadd.f32 0.0, %v2212
      %2214 = vmatmul.bf16.gmra.mxu0 %v1947
      %v2215 = vpop.f32.mrf.mxu0
      %v2216 = vadd.f32 0.0, %v2215
      %v2217 = vpop.f32.mrf.mxu0
      %v2218 = vadd.f32 0.0, %v2217
      %2219 = vdwg.mxu0
      %v2220 = vpack.c.bf16 %v2211, %v2211
      %v2221 = vpack.c.bf16 %v2213, %v2213
      %v2222 = vpack.c.bf16 %v2216, %v2216
      %v2223 = vpack.c.bf16 %v2218, %v2218
      %2224 = vst.msk [vmem:[#allocation4 + $0x80] sm:$0xf] %vm590, %v2220
      %2225 = vst.msk [vmem:[#allocation4 + $0x84] sm:$0xf] %vm590, %v2221
      %2226 = vst.msk [vmem:[#allocation4 + $0x88] sm:$0xf] %vm590, %v2222
      %2227 = vst.msk [vmem:[#allocation4 + $0x8c] sm:$0xf] %vm590, %v2223
      %v2228 = vld [vmem:[%s767] sm:$0xf]
      %v2230 = vsel %vm1949, %v2228, 0
      %2232 = vmatpush.bf16.msra.mxu0 0
      %2233 = vmatpush.bf16.msra.mxu0 0
      %2234 = vmatpush.bf16.msra.mxu0 0
      %2235 = vmatpush.bf16.msra.mxu0 0
      %2236 = vmatpush.bf16.msra.mxu0 0
      %2237 = vmatpush.bf16.msra.mxu0 0
      %2238 = vmatpush.bf16.msra.mxu0 0
      %2239 = vmatpush.bf16.msra.mxu0 %v2230
      %2240 = vmatmul.bf16.gmra.mxu0 %v1944
      %v2241 = vpop.f32.mrf.mxu0
      %v2242 = vadd.f32 0.0, %v2241
      %v2243 = vpop.f32.mrf.mxu0
      %v2244 = vadd.f32 0.0, %v2243
      %2245 = vmatmul.bf16.gmra.mxu0 %v1947
      %v2246 = vpop.f32.mrf.mxu0
      %v2247 = vadd.f32 0.0, %v2246
      %v2248 = vpop.f32.mrf.mxu0
      %v2249 = vadd.f32 0.0, %v2248
      %2250 = vdwg.mxu0
      %v2251 = vpack.c.bf16 %v2242, %v2242
      %v2252 = vpack.c.bf16 %v2244, %v2244
      %v2253 = vpack.c.bf16 %v2247, %v2247
      %v2254 = vpack.c.bf16 %v2249, %v2249
      %2255 = vst.msk [vmem:[#allocation4 + $0x90] sm:$0xf] %vm590, %v2251
      %2256 = vst.msk [vmem:[#allocation4 + $0x94] sm:$0xf] %vm590, %v2252
      %2257 = vst.msk [vmem:[#allocation4 + $0x98] sm:$0xf] %vm590, %v2253
      %2258 = vst.msk [vmem:[#allocation4 + $0x9c] sm:$0xf] %vm590, %v2254
      %v2259 = vld [vmem:[#allocation4] sm:$0xf]
      %v2260 = vld [vmem:[#allocation4 + $0x4] sm:$0xf]
      %v2261 = vld [vmem:[#allocation4 + $0x8] sm:$0xf]
      %v2262 = vld [vmem:[#allocation4 + $0xc] sm:$0xf]
      %v2263 = vld [vmem:[#allocation4 + $0x10] sm:$0xf]
      %v2264 = vld [vmem:[#allocation4 + $0x14] sm:$0xf]
      %v2265 = vld [vmem:[#allocation4 + $0x18] sm:$0xf]
      %v2266 = vld [vmem:[#allocation4 + $0x1c] sm:$0xf]
      %v2267 = vld [vmem:[#allocation4 + $0x20] sm:$0xf]
      %v2268 = vld [vmem:[#allocation4 + $0x24] sm:$0xf]
      %v2269 = vld [vmem:[#allocation4 + $0x28] sm:$0xf]
      %v2270 = vld [vmem:[#allocation4 + $0x2c] sm:$0xf]
      %v2271 = vld [vmem:[#allocation4 + $0x30] sm:$0xf]
      %v2272 = vld [vmem:[#allocation4 + $0x34] sm:$0xf]
      %v2273 = vld [vmem:[#allocation4 + $0x38] sm:$0xf]
      %v2274 = vld [vmem:[#allocation4 + $0x3c] sm:$0xf]
      %v2275 = vld [vmem:[#allocation4 + $0x40] sm:$0xf]
      %v2276 = vld [vmem:[#allocation4 + $0x44] sm:$0xf]
      %v2277 = vld [vmem:[#allocation4 + $0x48] sm:$0xf]
      %v2278 = vld [vmem:[#allocation4 + $0x4c] sm:$0xf]
      %v2279 = vld [vmem:[#allocation4 + $0x50] sm:$0xf]
      %v2280 = vld [vmem:[#allocation4 + $0x54] sm:$0xf]
      %v2281 = vld [vmem:[#allocation4 + $0x58] sm:$0xf]
      %v2282 = vld [vmem:[#allocation4 + $0x5c] sm:$0xf]
      %v2283 = vld [vmem:[#allocation4 + $0x60] sm:$0xf]
      %v2284 = vld [vmem:[#allocation4 + $0x64] sm:$0xf]
      %v2285 = vld [vmem:[#allocation4 + $0x68] sm:$0xf]
      %v2286 = vld [vmem:[#allocation4 + $0x6c] sm:$0xf]
      %v2287 = vld [vmem:[#allocation4 + $0x70] sm:$0xf]
      %v2288 = vld [vmem:[#allocation4 + $0x74] sm:$0xf]
      %v2289 = vld [vmem:[#allocation4 + $0x78] sm:$0xf]
      %v2290 = vld [vmem:[#allocation4 + $0x7c] sm:$0xf]
      %v2291 = vld [vmem:[%s564] sm:$0x3]
      %v2324 = vunpack.c.l.b16 %v2259
      %v2325 = vunpack.c.l.b16 %v2260
      %v2326 = vunpack.c.l.b16 %v2261
      %v2327 = vunpack.c.l.b16 %v2262
      %v2328 = vunpack.c.l.b16 %v2263
      %v2329 = vunpack.c.l.b16 %v2264
      %v2330 = vunpack.c.l.b16 %v2265
      %v2331 = vunpack.c.l.b16 %v2266
      %v2332 = vunpack.c.l.b16 %v2267
      %v2333 = vunpack.c.l.b16 %v2268
      %v2334 = vunpack.c.l.b16 %v2269
      %v2335 = vunpack.c.l.b16 %v2270
      %v2336 = vunpack.c.l.b16 %v2271
      %v2337 = vunpack.c.l.b16 %v2272
      %v2338 = vunpack.c.l.b16 %v2273
      %v2339 = vunpack.c.l.b16 %v2274
      %v2340 = vunpack.c.l.b16 %v2275
      %v2341 = vunpack.c.l.b16 %v2276
      %v2342 = vunpack.c.l.b16 %v2277
      %v2343 = vunpack.c.l.b16 %v2278
      %v2344 = vunpack.c.l.b16 %v2279
      %v2345 = vunpack.c.l.b16 %v2280
      %v2346 = vunpack.c.l.b16 %v2281
      %v2347 = vunpack.c.l.b16 %v2282
      %v2348 = vunpack.c.l.b16 %v2283
      %v2349 = vunpack.c.l.b16 %v2284
      %v2350 = vunpack.c.l.b16 %v2285
      %v2351 = vunpack.c.l.b16 %v2286
      %v2352 = vunpack.c.l.b16 %v2287
      %v2353 = vunpack.c.l.b16 %v2288
      %v2354 = vunpack.c.l.b16 %v2289
      %v2355 = vunpack.c.l.b16 %v2290
      %v2356 = vpack.c.b16 %v2325, %v2324
      %v2357 = vpack.c.b16 %v2327, %v2326
      %v2358 = vpack.c.b16 %v2329, %v2328
      %v2359 = vpack.c.b16 %v2331, %v2330
      %v2360 = vpack.c.b16 %v2333, %v2332
      %v2361 = vpack.c.b16 %v2335, %v2334
      %v2362 = vpack.c.b16 %v2337, %v2336
      %v2363 = vpack.c.b16 %v2339, %v2338
      %v2364 = vpack.c.b16 %v2341, %v2340
      %v2365 = vpack.c.b16 %v2343, %v2342
      %v2366 = vpack.c.b16 %v2345, %v2344
      %v2367 = vpack.c.b16 %v2347, %v2346
      %v2368 = vpack.c.b16 %v2349, %v2348
      %v2369 = vpack.c.b16 %v2351, %v2350
      %v2370 = vpack.c.b16 %v2353, %v2352
      %v2371 = vpack.c.b16 %v2355, %v2354
      %v2373 = vsel %vm895, %v2356, 0
      %v2376 = vsel %vm895, %v2357, 0
      %v2379 = vsel %vm895, %v2358, 0
      %v2382 = vsel %vm895, %v2359, 0
      %v2385 = vsel %vm895, %v2360, 0
      %v2388 = vsel %vm895, %v2361, 0
      %v2391 = vsel %vm895, %v2362, 0
      %v2394 = vsel %vm895, %v2363, 0
      %v2397 = vsel %vm895, %v2364, 0
      %v2400 = vsel %vm895, %v2365, 0
      %v2403 = vsel %vm895, %v2366, 0
      %v2406 = vsel %vm895, %v2367, 0
      %v2409 = vsel %vm895, %v2368, 0
      %v2412 = vsel %vm895, %v2369, 0
      %v2415 = vsel %vm895, %v2370, 0
      %v2418 = vsel %vm895, %v2371, 0
      %v2421 = vsel %vm944, %v2291, 0
      %2423 = vmatpush.bf16.msra.mxu0 0
      %2424 = vmatpush.bf16.msra.mxu0 0
      %2425 = vmatpush.bf16.msra.mxu0 0
      %2426 = vmatpush.bf16.msra.mxu0 0
      %2427 = vmatpush.bf16.msra.mxu0 0
      %2428 = vmatpush.bf16.msra.mxu0 0
      %2429 = vmatpush.bf16.msra.mxu0 0
      %2430 = vmatpush.bf16.msra.mxu0 %v2421
      %2431 = vmatmul.bf16.gmra.mxu0 %v2373
      %v2432 = vpop.f32.mrf.mxu0
      %v2433 = vadd.f32 0.0, %v2432
      %v2434 = vpop.f32.mrf.mxu0
      %v2435 = vadd.f32 0.0, %v2434
      %2436 = vmatmul.bf16.gmra.mxu0 %v2376
      %v2437 = vpop.f32.mrf.mxu0
      %v2438 = vpop.f32.mrf.mxu0
      %2439 = vmatmul.bf16.gmra.mxu0 %v2379
      %v2440 = vpop.f32.mrf.mxu0
      %v2441 = vadd.f32 0.0, %v2440
      %v2442 = vpop.f32.mrf.mxu0
      %v2443 = vadd.f32 0.0, %v2442
      %2444 = vmatmul.bf16.gmra.mxu0 %v2382
      %v2445 = vpop.f32.mrf.mxu0
      %v2446 = vpop.f32.mrf.mxu0
      %2447 = vmatmul.bf16.gmra.mxu0 %v2385
      %v2448 = vpop.f32.mrf.mxu0
      %v2449 = vadd.f32 0.0, %v2448
      %v2450 = vpop.f32.mrf.mxu0
      %v2451 = vadd.f32 0.0, %v2450
      %2452 = vmatmul.bf16.gmra.mxu0 %v2388
      %v2453 = vpop.f32.mrf.mxu0
      %v2454 = vpop.f32.mrf.mxu0
      %2455 = vmatmul.bf16.gmra.mxu0 %v2391
      %v2456 = vpop.f32.mrf.mxu0
      %v2457 = vadd.f32 0.0, %v2456
      %v2458 = vpop.f32.mrf.mxu0
      %v2459 = vadd.f32 0.0, %v2458
      %2460 = vmatmul.bf16.gmra.mxu0 %v2394
      %v2461 = vpop.f32.mrf.mxu0
      %v2462 = vpop.f32.mrf.mxu0
      %2463 = vmatmul.bf16.gmra.mxu0 %v2397
      %v2464 = vpop.f32.mrf.mxu0
      %v2465 = vadd.f32 0.0, %v2464
      %v2466 = vpop.f32.mrf.mxu0
      %v2467 = vadd.f32 0.0, %v2466
      %2468 = vmatmul.bf16.gmra.mxu0 %v2400
      %v2469 = vpop.f32.mrf.mxu0
      %v2470 = vpop.f32.mrf.mxu0
      %2471 = vmatmul.bf16.gmra.mxu0 %v2403
      %v2472 = vpop.f32.mrf.mxu0
      %v2473 = vadd.f32 0.0, %v2472
      %v2474 = vpop.f32.mrf.mxu0
      %v2475 = vadd.f32 0.0, %v2474
      %2476 = vmatmul.bf16.gmra.mxu0 %v2406
      %v2477 = vpop.f32.mrf.mxu0
      %v2478 = vpop.f32.mrf.mxu0
      %2479 = vmatmul.bf16.gmra.mxu0 %v2409
      %v2480 = vpop.f32.mrf.mxu0
      %v2481 = vadd.f32 0.0, %v2480
      %v2482 = vpop.f32.mrf.mxu0
      %v2483 = vadd.f32 0.0, %v2482
      %2484 = vmatmul.bf16.gmra.mxu0 %v2412
      %v2485 = vpop.f32.mrf.mxu0
      %v2486 = vpop.f32.mrf.mxu0
      %2487 = vmatmul.bf16.gmra.mxu0 %v2415
      %v2488 = vpop.f32.mrf.mxu0
      %v2489 = vadd.f32 0.0, %v2488
      %v2490 = vpop.f32.mrf.mxu0
      %v2491 = vadd.f32 0.0, %v2490
      %2492 = vmatmul.bf16.gmra.mxu0 %v2418
      %v2493 = vpop.f32.mrf.mxu0
      %v2494 = vpop.f32.mrf.mxu0
      %2495 = vdwg.mxu0
      %v2496 = vadd.f32 %v1691, %v2433
      %v2497 = vadd.f32 %v1692, %v2435
      %v2498 = vadd.f32 %v1693, %v2441
      %v2499 = vadd.f32 %v1694, %v2443
      %v2500 = vadd.f32 %v1695, %v2449
      %v2501 = vadd.f32 %v1696, %v2451
      %v2502 = vadd.f32 %v1697, %v2457
      %v2503 = vadd.f32 %v1698, %v2459
      %v2504 = vadd.f32 %v1699, %v2465
      %v2505 = vadd.f32 %v1700, %v2467
      %v2506 = vadd.f32 %v1701, %v2473
      %v2507 = vadd.f32 %v1702, %v2475
      %v2508 = vadd.f32 %v1703, %v2481
      %v2509 = vadd.f32 %v1704, %v2483
      %v2510 = vadd.f32 %v1705, %v2489
      %v2511 = vadd.f32 %v1706, %v2491
      %s2512 = scalar_lea.vmem %s564, 2
      %v2513 = vld [vmem:[%s2512] sm:$0x3]
      %v2515 = vsel %vm944, %v2513, 0
      %2517 = vmatpush.bf16.msra.mxu0 0
      %2518 = vmatpush.bf16.msra.mxu0 0
      %2519 = vmatpush.bf16.msra.mxu0 0
      %2520 = vmatpush.bf16.msra.mxu0 0
      %2521 = vmatpush.bf16.msra.mxu0 0
      %2522 = vmatpush.bf16.msra.mxu0 0
      %2523 = vmatpush.bf16.msra.mxu0 0
      %2524 = vmatpush.bf16.msra.mxu0 %v2515
      %2525 = vmatmul.bf16.gmra.mxu0 %v2373
      %v2526 = vpop.f32.mrf.mxu0
      %v2527 = vadd.f32 0.0, %v2526
      %v2528 = vpop.f32.mrf.mxu0
      %v2529 = vadd.f32 0.0, %v2528
      %2530 = vmatmul.bf16.gmra.mxu0 %v2376
      %v2531 = vpop.f32.mrf.mxu0
      %v2532 = vadd.f32 0.0, %v2531
      %v2533 = vpop.f32.mrf.mxu0
      %2534 = vmatmul.bf16.gmra.mxu0 %v2379
      %v2535 = vpop.f32.mrf.mxu0
      %v2536 = vadd.f32 0.0, %v2535
      %v2537 = vpop.f32.mrf.mxu0
      %v2538 = vadd.f32 0.0, %v2537
      %2539 = vmatmul.bf16.gmra.mxu0 %v2382
      %v2540 = vpop.f32.mrf.mxu0
      %v2541 = vadd.f32 0.0, %v2540
      %v2542 = vpop.f32.mrf.mxu0
      %2543 = vmatmul.bf16.gmra.mxu0 %v2385
      %v2544 = vpop.f32.mrf.mxu0
      %v2545 = vadd.f32 0.0, %v2544
      %v2546 = vpop.f32.mrf.mxu0
      %v2547 = vadd.f32 0.0, %v2546
      %2548 = vmatmul.bf16.gmra.mxu0 %v2388
      %v2549 = vpop.f32.mrf.mxu0
      %v2550 = vadd.f32 0.0, %v2549
      %v2551 = vpop.f32.mrf.mxu0
      %2552 = vmatmul.bf16.gmra.mxu0 %v2391
      %v2553 = vpop.f32.mrf.mxu0
      %v2554 = vadd.f32 0.0, %v2553
      %v2555 = vpop.f32.mrf.mxu0
      %v2556 = vadd.f32 0.0, %v2555
      %2557 = vmatmul.bf16.gmra.mxu0 %v2394
      %v2558 = vpop.f32.mrf.mxu0
      %v2559 = vadd.f32 0.0, %v2558
      %v2560 = vpop.f32.mrf.mxu0
      %2561 = vmatmul.bf16.gmra.mxu0 %v2397
      %v2562 = vpop.f32.mrf.mxu0
      %v2563 = vadd.f32 0.0, %v2562
      %v2564 = vpop.f32.mrf.mxu0
      %v2565 = vadd.f32 0.0, %v2564
      %2566 = vmatmul.bf16.gmra.mxu0 %v2400
      %v2567 = vpop.f32.mrf.mxu0
      %v2568 = vadd.f32 0.0, %v2567
      %v2569 = vpop.f32.mrf.mxu0
      %2570 = vmatmul.bf16.gmra.mxu0 %v2403
      %v2571 = vpop.f32.mrf.mxu0
      %v2572 = vadd.f32 0.0, %v2571
      %v2573 = vpop.f32.mrf.mxu0
      %v2574 = vadd.f32 0.0, %v2573
      %2575 = vmatmul.bf16.gmra.mxu0 %v2406
      %v2576 = vpop.f32.mrf.mxu0
      %v2577 = vadd.f32 0.0, %v2576
      %v2578 = vpop.f32.mrf.mxu0
      %2579 = vmatmul.bf16.gmra.mxu0 %v2409
      %v2580 = vpop.f32.mrf.mxu0
      %v2581 = vadd.f32 0.0, %v2580
      %v2582 = vpop.f32.mrf.mxu0
      %v2583 = vadd.f32 0.0, %v2582
      %2584 = vmatmul.bf16.gmra.mxu0 %v2412
      %v2585 = vpop.f32.mrf.mxu0
      %v2586 = vadd.f32 0.0, %v2585
      %v2587 = vpop.f32.mrf.mxu0
      %2588 = vmatmul.bf16.gmra.mxu0 %v2415
      %v2589 = vpop.f32.mrf.mxu0
      %v2590 = vadd.f32 0.0, %v2589
      %v2591 = vpop.f32.mrf.mxu0
      %v2592 = vadd.f32 0.0, %v2591
      %2593 = vmatmul.bf16.gmra.mxu0 %v2418
      %v2594 = vpop.f32.mrf.mxu0
      %v2595 = vadd.f32 0.0, %v2594
      %v2596 = vpop.f32.mrf.mxu0
      %2597 = vdwg.mxu0
      %v2598 = vadd.f32 %v1793, %v2527
      %v2599 = vadd.f32 %v1794, %v2529
      %v2600 = vadd.f32 %v1795, %v2532
      %v2601 = vadd.f32 %v1796, %v2536
      %v2602 = vadd.f32 %v1797, %v2538
      %v2603 = vadd.f32 %v1798, %v2541
      %v2604 = vadd.f32 %v1799, %v2545
      %v2605 = vadd.f32 %v1800, %v2547
      %v2606 = vadd.f32 %v1801, %v2550
      %v2607 = vadd.f32 %v1802, %v2554
      %v2608 = vadd.f32 %v1803, %v2556
      %v2609 = vadd.f32 %v1804, %v2559
      %v2610 = vadd.f32 %v1805, %v2563
      %v2611 = vadd.f32 %v1806, %v2565
      %v2612 = vadd.f32 %v1807, %v2568
      %v2613 = vadd.f32 %v1808, %v2572
      %v2614 = vadd.f32 %v1809, %v2574
      %v2615 = vadd.f32 %v1810, %v2577
      %v2616 = vadd.f32 %v1811, %v2581
      %v2617 = vadd.f32 %v1812, %v2583
      %v2618 = vadd.f32 %v1813, %v2586
      %v2619 = vadd.f32 %v1814, %v2590
      %v2620 = vadd.f32 %v1815, %v2592
      %v2621 = vadd.f32 %v1816, %v2595
      %s2622 = scalar_lea.vmem %s564, 4
      %v2623 = vld [vmem:[%s2622] sm:$0x3]
      %v2625 = vsel %vm944, %v2623, 0
      %2627 = vmatpush.bf16.msra.mxu0 0
      %2628 = vmatpush.bf16.msra.mxu0 0
      %2629 = vmatpush.bf16.msra.mxu0 0
      %2630 = vmatpush.bf16.msra.mxu0 0
      %2631 = vmatpush.bf16.msra.mxu0 0
      %2632 = vmatpush.bf16.msra.mxu0 0
      %2633 = vmatpush.bf16.msra.mxu0 0
      %2634 = vmatpush.bf16.msra.mxu0 %v2625
      %2635 = vmatmul.bf16.gmra.mxu0 %v2373
      %v2636 = vpop.f32.mrf.mxu0
      %v2637 = vadd.f32 0.0, %v2636
      %v2638 = vpop.f32.mrf.mxu0
      %v2639 = vadd.f32 0.0, %v2638
      %2640 = vmatmul.bf16.gmra.mxu0 %v2376
      %v2641 = vpop.f32.mrf.mxu0
      %v2642 = vadd.f32 0.0, %v2641
      %v2643 = vpop.f32.mrf.mxu0
      %2644 = vmatmul.bf16.gmra.mxu0 %v2379
      %v2645 = vpop.f32.mrf.mxu0
      %v2646 = vadd.f32 0.0, %v2645
      %v2647 = vpop.f32.mrf.mxu0
      %v2648 = vadd.f32 0.0, %v2647
      %2649 = vmatmul.bf16.gmra.mxu0 %v2382
      %v2650 = vpop.f32.mrf.mxu0
      %v2651 = vadd.f32 0.0, %v2650
      %v2652 = vpop.f32.mrf.mxu0
      %2653 = vmatmul.bf16.gmra.mxu0 %v2385
      %v2654 = vpop.f32.mrf.mxu0
      %v2655 = vadd.f32 0.0, %v2654
      %v2656 = vpop.f32.mrf.mxu0
      %v2657 = vadd.f32 0.0, %v2656
      %2658 = vmatmul.bf16.gmra.mxu0 %v2388
      %v2659 = vpop.f32.mrf.mxu0
      %v2660 = vadd.f32 0.0, %v2659
      %v2661 = vpop.f32.mrf.mxu0
      %2662 = vmatmul.bf16.gmra.mxu0 %v2391
      %v2663 = vpop.f32.mrf.mxu0
      %v2664 = vadd.f32 0.0, %v2663
      %v2665 = vpop.f32.mrf.mxu0
      %v2666 = vadd.f32 0.0, %v2665
      %2667 = vmatmul.bf16.gmra.mxu0 %v2394
      %v2668 = vpop.f32.mrf.mxu0
      %v2669 = vadd.f32 0.0, %v2668
      %v2670 = vpop.f32.mrf.mxu0
      %2671 = vmatmul.bf16.gmra.mxu0 %v2397
      %v2672 = vpop.f32.mrf.mxu0
      %v2673 = vadd.f32 0.0, %v2672
      %v2674 = vpop.f32.mrf.mxu0
      %v2675 = vadd.f32 0.0, %v2674
      %2676 = vmatmul.bf16.gmra.mxu0 %v2400
      %v2677 = vpop.f32.mrf.mxu0
      %v2678 = vadd.f32 0.0, %v2677
      %v2679 = vpop.f32.mrf.mxu0
      %2680 = vmatmul.bf16.gmra.mxu0 %v2403
      %v2681 = vpop.f32.mrf.mxu0
      %v2682 = vadd.f32 0.0, %v2681
      %v2683 = vpop.f32.mrf.mxu0
      %v2684 = vadd.f32 0.0, %v2683
      %2685 = vmatmul.bf16.gmra.mxu0 %v2406
      %v2686 = vpop.f32.mrf.mxu0
      %v2687 = vadd.f32 0.0, %v2686
      %v2688 = vpop.f32.mrf.mxu0
      %2689 = vmatmul.bf16.gmra.mxu0 %v2409
      %v2690 = vpop.f32.mrf.mxu0
      %v2691 = vadd.f32 0.0, %v2690
      %v2692 = vpop.f32.mrf.mxu0
      %v2693 = vadd.f32 0.0, %v2692
      %2694 = vmatmul.bf16.gmra.mxu0 %v2412
      %v2695 = vpop.f32.mrf.mxu0
      %v2696 = vadd.f32 0.0, %v2695
      %v2697 = vpop.f32.mrf.mxu0
      %2698 = vmatmul.bf16.gmra.mxu0 %v2415
      %v2699 = vpop.f32.mrf.mxu0
      %v2700 = vadd.f32 0.0, %v2699
      %v2701 = vpop.f32.mrf.mxu0
      %v2702 = vadd.f32 0.0, %v2701
      %2703 = vmatmul.bf16.gmra.mxu0 %v2418
      %v2704 = vpop.f32.mrf.mxu0
      %v2705 = vadd.f32 0.0, %v2704
      %v2706 = vpop.f32.mrf.mxu0
      %2707 = vdwg.mxu0
      %v2708 = vadd.f32 %v1903, %v2637
      %v2709 = vadd.f32 %v1904, %v2639
      %v2710 = vadd.f32 %v1905, %v2642
      %v2711 = vadd.f32 %v1906, %v2646
      %v2712 = vadd.f32 %v1907, %v2648
      %v2713 = vadd.f32 %v1908, %v2651
      %v2714 = vadd.f32 %v1909, %v2655
      %v2715 = vadd.f32 %v1910, %v2657
      %v2716 = vadd.f32 %v1911, %v2660
      %v2717 = vadd.f32 %v1912, %v2664
      %v2718 = vadd.f32 %v1913, %v2666
      %v2719 = vadd.f32 %v1914, %v2669
      %v2720 = vadd.f32 %v1915, %v2673
      %v2721 = vadd.f32 %v1916, %v2675
      %v2722 = vadd.f32 %v1917, %v2678
      %v2723 = vadd.f32 %v1918, %v2682
      %v2724 = vadd.f32 %v1919, %v2684
      %v2725 = vadd.f32 %v1920, %v2687
      %v2726 = vadd.f32 %v1921, %v2691
      %v2727 = vadd.f32 %v1922, %v2693
      %v2728 = vadd.f32 %v1923, %v2696
      %v2729 = vadd.f32 %v1924, %v2700
      %v2730 = vadd.f32 %v1925, %v2702
      %v2731 = vadd.f32 %v1926, %v2705
      %v2732 = vld [vmem:[#allocation4 + $0x10] sm:$0xf]
      %v2733 = vld [vmem:[#allocation4 + $0x14] sm:$0xf]
      %v2734 = vld [vmem:[#allocation4 + $0x18] sm:$0xf]
      %v2735 = vld [vmem:[#allocation4 + $0x1c] sm:$0xf]
      %v2736 = vld [vmem:[#allocation4 + $0x20] sm:$0xf]
      %v2737 = vld [vmem:[#allocation4 + $0x24] sm:$0xf]
      %v2738 = vld [vmem:[#allocation4 + $0x28] sm:$0xf]
      %v2739 = vld [vmem:[#allocation4 + $0x2c] sm:$0xf]
      %v2740 = vld [vmem:[#allocation4 + $0x30] sm:$0xf]
      %v2741 = vld [vmem:[#allocation4 + $0x34] sm:$0xf]
      %v2742 = vld [vmem:[#allocation4 + $0x38] sm:$0xf]
      %v2743 = vld [vmem:[#allocation4 + $0x3c] sm:$0xf]
      %v2744 = vld [vmem:[#allocation4 + $0x40] sm:$0xf]
      %v2745 = vld [vmem:[#allocation4 + $0x44] sm:$0xf]
      %v2746 = vld [vmem:[#allocation4 + $0x48] sm:$0xf]
      %v2747 = vld [vmem:[#allocation4 + $0x4c] sm:$0xf]
      %v2748 = vld [vmem:[#allocation4 + $0x50] sm:$0xf]
      %v2749 = vld [vmem:[#allocation4 + $0x54] sm:$0xf]
      %v2750 = vld [vmem:[#allocation4 + $0x58] sm:$0xf]
      %v2751 = vld [vmem:[#allocation4 + $0x5c] sm:$0xf]
      %v2752 = vld [vmem:[#allocation4 + $0x60] sm:$0xf]
      %v2753 = vld [vmem:[#allocation4 + $0x64] sm:$0xf]
      %v2754 = vld [vmem:[#allocation4 + $0x68] sm:$0xf]
      %v2755 = vld [vmem:[#allocation4 + $0x6c] sm:$0xf]
      %v2756 = vld [vmem:[#allocation4 + $0x70] sm:$0xf]
      %v2757 = vld [vmem:[#allocation4 + $0x74] sm:$0xf]
      %v2758 = vld [vmem:[#allocation4 + $0x78] sm:$0xf]
      %v2759 = vld [vmem:[#allocation4 + $0x7c] sm:$0xf]
      %v2760 = vld [vmem:[#allocation4 + $0x80] sm:$0xf]
      %v2761 = vld [vmem:[#allocation4 + $0x84] sm:$0xf]
      %v2762 = vld [vmem:[#allocation4 + $0x88] sm:$0xf]
      %v2763 = vld [vmem:[#allocation4 + $0x8c] sm:$0xf]
      %s2764 = scalar_lea.vmem %s564, 6
      %v2765 = vld [vmem:[%s2764] sm:$0x3]
      %v2798 = vunpack.c.l.b16 %v2732
      %v2799 = vunpack.c.l.b16 %v2733
      %v2800 = vunpack.c.l.b16 %v2734
      %v2801 = vunpack.c.l.b16 %v2735
      %v2802 = vunpack.c.l.b16 %v2736
      %v2803 = vunpack.c.l.b16 %v2737
      %v2804 = vunpack.c.l.b16 %v2738
      %v2805 = vunpack.c.l.b16 %v2739
      %v2806 = vunpack.c.l.b16 %v2740
      %v2807 = vunpack.c.l.b16 %v2741
      %v2808 = vunpack.c.l.b16 %v2742
      %v2809 = vunpack.c.l.b16 %v2743
      %v2810 = vunpack.c.l.b16 %v2744
      %v2811 = vunpack.c.l.b16 %v2745
      %v2812 = vunpack.c.l.b16 %v2746
      %v2813 = vunpack.c.l.b16 %v2747
      %v2814 = vunpack.c.l.b16 %v2748
      %v2815 = vunpack.c.l.b16 %v2749
      %v2816 = vunpack.c.l.b16 %v2750
      %v2817 = vunpack.c.l.b16 %v2751
      %v2818 = vunpack.c.l.b16 %v2752
      %v2819 = vunpack.c.l.b16 %v2753
      %v2820 = vunpack.c.l.b16 %v2754
      %v2821 = vunpack.c.l.b16 %v2755
      %v2822 = vunpack.c.l.b16 %v2756
      %v2823 = vunpack.c.l.b16 %v2757
      %v2824 = vunpack.c.l.b16 %v2758
      %v2825 = vunpack.c.l.b16 %v2759
      %v2826 = vunpack.c.l.b16 %v2760
      %v2827 = vunpack.c.l.b16 %v2761
      %v2828 = vunpack.c.l.b16 %v2762
      %v2829 = vunpack.c.l.b16 %v2763
      %v2830 = vpack.c.b16 %v2799, %v2798
      %v2831 = vpack.c.b16 %v2801, %v2800
      %v2832 = vpack.c.b16 %v2803, %v2802
      %v2833 = vpack.c.b16 %v2805, %v2804
      %v2834 = vpack.c.b16 %v2807, %v2806
      %v2835 = vpack.c.b16 %v2809, %v2808
      %v2836 = vpack.c.b16 %v2811, %v2810
      %v2837 = vpack.c.b16 %v2813, %v2812
      %v2838 = vpack.c.b16 %v2815, %v2814
      %v2839 = vpack.c.b16 %v2817, %v2816
      %v2840 = vpack.c.b16 %v2819, %v2818
      %v2841 = vpack.c.b16 %v2821, %v2820
      %v2842 = vpack.c.b16 %v2823, %v2822
      %v2843 = vpack.c.b16 %v2825, %v2824
      %v2844 = vpack.c.b16 %v2827, %v2826
      %v2845 = vpack.c.b16 %v2829, %v2828
      %v2847 = vsel %vm895, %v2830, 0
      %v2850 = vsel %vm895, %v2831, 0
      %v2853 = vsel %vm895, %v2832, 0
      %v2856 = vsel %vm895, %v2833, 0
      %v2859 = vsel %vm895, %v2834, 0
      %v2862 = vsel %vm895, %v2835, 0
      %v2865 = vsel %vm895, %v2836, 0
      %v2868 = vsel %vm895, %v2837, 0
      %v2871 = vsel %vm895, %v2838, 0
      %v2874 = vsel %vm895, %v2839, 0
      %v2877 = vsel %vm895, %v2840, 0
      %v2880 = vsel %vm895, %v2841, 0
      %v2883 = vsel %vm895, %v2842, 0
      %v2886 = vsel %vm895, %v2843, 0
      %v2889 = vsel %vm895, %v2844, 0
      %v2892 = vsel %vm895, %v2845, 0
      %v2895 = vsel %vm944, %v2765, 0
      %2897 = vmatpush.bf16.msra.mxu0 0
      %2898 = vmatpush.bf16.msra.mxu0 0
      %2899 = vmatpush.bf16.msra.mxu0 0
      %2900 = vmatpush.bf16.msra.mxu0 0
      %2901 = vmatpush.bf16.msra.mxu0 0
      %2902 = vmatpush.bf16.msra.mxu0 0
      %2903 = vmatpush.bf16.msra.mxu0 0
      %2904 = vmatpush.bf16.msra.mxu0 %v2895
      %2905 = vmatmul.bf16.gmra.mxu0 %v2847
      %v2906 = vpop.f32.mrf.mxu0
      %v2907 = vadd.f32 0.0, %v2906
      %v2908 = vpop.f32.mrf.mxu0
      %v2909 = vadd.f32 0.0, %v2908
      %2910 = vmatmul.bf16.gmra.mxu0 %v2850
      %v2911 = vpop.f32.mrf.mxu0
      %v2912 = vpop.f32.mrf.mxu0
      %2913 = vmatmul.bf16.gmra.mxu0 %v2853
      %v2914 = vpop.f32.mrf.mxu0
      %v2915 = vadd.f32 0.0, %v2914
      %v2916 = vpop.f32.mrf.mxu0
      %v2917 = vadd.f32 0.0, %v2916
      %2918 = vmatmul.bf16.gmra.mxu0 %v2856
      %v2919 = vpop.f32.mrf.mxu0
      %v2920 = vpop.f32.mrf.mxu0
      %2921 = vmatmul.bf16.gmra.mxu0 %v2859
      %v2922 = vpop.f32.mrf.mxu0
      %v2923 = vadd.f32 0.0, %v2922
      %v2924 = vpop.f32.mrf.mxu0
      %v2925 = vadd.f32 0.0, %v2924
      %2926 = vmatmul.bf16.gmra.mxu0 %v2862
      %v2927 = vpop.f32.mrf.mxu0
      %v2928 = vpop.f32.mrf.mxu0
      %2929 = vmatmul.bf16.gmra.mxu0 %v2865
      %v2930 = vpop.f32.mrf.mxu0
      %v2931 = vadd.f32 0.0, %v2930
      %v2932 = vpop.f32.mrf.mxu0
      %v2933 = vadd.f32 0.0, %v2932
      %2934 = vmatmul.bf16.gmra.mxu0 %v2868
      %v2935 = vpop.f32.mrf.mxu0
      %v2936 = vpop.f32.mrf.mxu0
      %2937 = vmatmul.bf16.gmra.mxu0 %v2871
      %v2938 = vpop.f32.mrf.mxu0
      %v2939 = vadd.f32 0.0, %v2938
      %v2940 = vpop.f32.mrf.mxu0
      %v2941 = vadd.f32 0.0, %v2940
      %2942 = vmatmul.bf16.gmra.mxu0 %v2874
      %v2943 = vpop.f32.mrf.mxu0
      %v2944 = vpop.f32.mrf.mxu0
      %2945 = vmatmul.bf16.gmra.mxu0 %v2877
      %v2946 = vpop.f32.mrf.mxu0
      %v2947 = vadd.f32 0.0, %v2946
      %v2948 = vpop.f32.mrf.mxu0
      %v2949 = vadd.f32 0.0, %v2948
      %2950 = vmatmul.bf16.gmra.mxu0 %v2880
      %v2951 = vpop.f32.mrf.mxu0
      %v2952 = vpop.f32.mrf.mxu0
      %2953 = vmatmul.bf16.gmra.mxu0 %v2883
      %v2954 = vpop.f32.mrf.mxu0
      %v2955 = vadd.f32 0.0, %v2954
      %v2956 = vpop.f32.mrf.mxu0
      %v2957 = vadd.f32 0.0, %v2956
      %2958 = vmatmul.bf16.gmra.mxu0 %v2886
      %v2959 = vpop.f32.mrf.mxu0
      %v2960 = vpop.f32.mrf.mxu0
      %2961 = vmatmul.bf16.gmra.mxu0 %v2889
      %v2962 = vpop.f32.mrf.mxu0
      %v2963 = vadd.f32 0.0, %v2962
      %v2964 = vpop.f32.mrf.mxu0
      %v2965 = vadd.f32 0.0, %v2964
      %2966 = vmatmul.bf16.gmra.mxu0 %v2892
      %v2967 = vpop.f32.mrf.mxu0
      %v2968 = vpop.f32.mrf.mxu0
      %2969 = vdwg.mxu0
      %v2970 = vadd.f32 %v2496, %v2907
      %v2971 = vadd.f32 %v2497, %v2909
      %v2972 = vadd.f32 %v2498, %v2915
      %v2973 = vadd.f32 %v2499, %v2917
      %v2974 = vadd.f32 %v2500, %v2923
      %v2975 = vadd.f32 %v2501, %v2925
      %v2976 = vadd.f32 %v2502, %v2931
      %v2977 = vadd.f32 %v2503, %v2933
      %v2978 = vadd.f32 %v2504, %v2939
      %v2979 = vadd.f32 %v2505, %v2941
      %v2980 = vadd.f32 %v2506, %v2947
      %v2981 = vadd.f32 %v2507, %v2949
      %v2982 = vadd.f32 %v2508, %v2955
      %v2983 = vadd.f32 %v2509, %v2957
      %v2984 = vadd.f32 %v2510, %v2963
      %v2985 = vadd.f32 %v2511, %v2965
      %s2986 = scalar_lea.vmem %s564, 8
      %v2987 = vld [vmem:[%s2986] sm:$0x3]
      %v2989 = vsel %vm944, %v2987, 0
      %2991 = vmatpush.bf16.msra.mxu0 0
      %2992 = vmatpush.bf16.msra.mxu0 0
      %2993 = vmatpush.bf16.msra.mxu0 0
      %2994 = vmatpush.bf16.msra.mxu0 0
      %2995 = vmatpush.bf16.msra.mxu0 0
      %2996 = vmatpush.bf16.msra.mxu0 0
      %2997 = vmatpush.bf16.msra.mxu0 0
      %2998 = vmatpush.bf16.msra.mxu0 %v2989
      %2999 = vmatmul.bf16.gmra.mxu0 %v2847
      %v3000 = vpop.f32.mrf.mxu0
      %v3001 = vadd.f32 0.0, %v3000
      %v3002 = vpop.f32.mrf.mxu0
      %v3003 = vadd.f32 0.0, %v3002
      %3004 = vmatmul.bf16.gmra.mxu0 %v2850
      %v3005 = vpop.f32.mrf.mxu0
      %v3006 = vadd.f32 0.0, %v3005
      %v3007 = vpop.f32.mrf.mxu0
      %3008 = vmatmul.bf16.gmra.mxu0 %v2853
      %v3009 = vpop.f32.mrf.mxu0
      %v3010 = vadd.f32 0.0, %v3009
      %v3011 = vpop.f32.mrf.mxu0
      %v3012 = vadd.f32 0.0, %v3011
      %3013 = vmatmul.bf16.gmra.mxu0 %v2856
      %v3014 = vpop.f32.mrf.mxu0
      %v3015 = vadd.f32 0.0, %v3014
      %v3016 = vpop.f32.mrf.mxu0
      %3017 = vmatmul.bf16.gmra.mxu0 %v2859
      %v3018 = vpop.f32.mrf.mxu0
      %v3019 = vadd.f32 0.0, %v3018
      %v3020 = vpop.f32.mrf.mxu0
      %v3021 = vadd.f32 0.0, %v3020
      %3022 = vmatmul.bf16.gmra.mxu0 %v2862
      %v3023 = vpop.f32.mrf.mxu0
      %v3024 = vadd.f32 0.0, %v3023
      %v3025 = vpop.f32.mrf.mxu0
      %3026 = vmatmul.bf16.gmra.mxu0 %v2865
      %v3027 = vpop.f32.mrf.mxu0
      %v3028 = vadd.f32 0.0, %v3027
      %v3029 = vpop.f32.mrf.mxu0
      %v3030 = vadd.f32 0.0, %v3029
      %3031 = vmatmul.bf16.gmra.mxu0 %v2868
      %v3032 = vpop.f32.mrf.mxu0
      %v3033 = vadd.f32 0.0, %v3032
      %v3034 = vpop.f32.mrf.mxu0
      %3035 = vmatmul.bf16.gmra.mxu0 %v2871
      %v3036 = vpop.f32.mrf.mxu0
      %v3037 = vadd.f32 0.0, %v3036
      %v3038 = vpop.f32.mrf.mxu0
      %v3039 = vadd.f32 0.0, %v3038
      %3040 = vmatmul.bf16.gmra.mxu0 %v2874
      %v3041 = vpop.f32.mrf.mxu0
      %v3042 = vadd.f32 0.0, %v3041
      %v3043 = vpop.f32.mrf.mxu0
      %3044 = vmatmul.bf16.gmra.mxu0 %v2877
      %v3045 = vpop.f32.mrf.mxu0
      %v3046 = vadd.f32 0.0, %v3045
      %v3047 = vpop.f32.mrf.mxu0
      %v3048 = vadd.f32 0.0, %v3047
      %3049 = vmatmul.bf16.gmra.mxu0 %v2880
      %v3050 = vpop.f32.mrf.mxu0
      %v3051 = vadd.f32 0.0, %v3050
      %v3052 = vpop.f32.mrf.mxu0
      %3053 = vmatmul.bf16.gmra.mxu0 %v2883
      %v3054 = vpop.f32.mrf.mxu0
      %v3055 = vadd.f32 0.0, %v3054
      %v3056 = vpop.f32.mrf.mxu0
      %v3057 = vadd.f32 0.0, %v3056
      %3058 = vmatmul.bf16.gmra.mxu0 %v2886
      %v3059 = vpop.f32.mrf.mxu0
      %v3060 = vadd.f32 0.0, %v3059
      %v3061 = vpop.f32.mrf.mxu0
      %3062 = vmatmul.bf16.gmra.mxu0 %v2889
      %v3063 = vpop.f32.mrf.mxu0
      %v3064 = vadd.f32 0.0, %v3063
      %v3065 = vpop.f32.mrf.mxu0
      %v3066 = vadd.f32 0.0, %v3065
      %3067 = vmatmul.bf16.gmra.mxu0 %v2892
      %v3068 = vpop.f32.mrf.mxu0
      %v3069 = vadd.f32 0.0, %v3068
      %v3070 = vpop.f32.mrf.mxu0
      %3071 = vdwg.mxu0
      %v3072 = vadd.f32 %v2598, %v3001
      %v3073 = vadd.f32 %v2599, %v3003
      %v3074 = vadd.f32 %v2600, %v3006
      %v3075 = vadd.f32 %v2601, %v3010
      %v3076 = vadd.f32 %v2602, %v3012
      %v3077 = vadd.f32 %v2603, %v3015
      %v3078 = vadd.f32 %v2604, %v3019
      %v3079 = vadd.f32 %v2605, %v3021
      %v3080 = vadd.f32 %v2606, %v3024
      %v3081 = vadd.f32 %v2607, %v3028
      %v3082 = vadd.f32 %v2608, %v3030
      %v3083 = vadd.f32 %v2609, %v3033
      %v3084 = vadd.f32 %v2610, %v3037
      %v3085 = vadd.f32 %v2611, %v3039
      %v3086 = vadd.f32 %v2612, %v3042
      %v3087 = vadd.f32 %v2613, %v3046
      %v3088 = vadd.f32 %v2614, %v3048
      %v3089 = vadd.f32 %v2615, %v3051
      %v3090 = vadd.f32 %v2616, %v3055
      %v3091 = vadd.f32 %v2617, %v3057
      %v3092 = vadd.f32 %v2618, %v3060
      %v3093 = vadd.f32 %v2619, %v3064
      %v3094 = vadd.f32 %v2620, %v3066
      %v3095 = vadd.f32 %v2621, %v3069
      %s3096 = scalar_lea.vmem %s564, 10
      %v3097 = vld [vmem:[%s3096] sm:$0x3]
      %v3099 = vsel %vm944, %v3097, 0
      %3101 = vmatpush.bf16.msra.mxu0 0
      %3102 = vmatpush.bf16.msra.mxu0 0
      %3103 = vmatpush.bf16.msra.mxu0 0
      %3104 = vmatpush.bf16.msra.mxu0 0
      %3105 = vmatpush.bf16.msra.mxu0 0
      %3106 = vmatpush.bf16.msra.mxu0 0
      %3107 = vmatpush.bf16.msra.mxu0 0
      %3108 = vmatpush.bf16.msra.mxu0 %v3099
      %3109 = vmatmul.bf16.gmra.mxu0 %v2847
      %v3110 = vpop.f32.mrf.mxu0
      %v3111 = vadd.f32 0.0, %v3110
      %v3112 = vpop.f32.mrf.mxu0
      %v3113 = vadd.f32 0.0, %v3112
      %3114 = vmatmul.bf16.gmra.mxu0 %v2850
      %v3115 = vpop.f32.mrf.mxu0
      %v3116 = vadd.f32 0.0, %v3115
      %v3117 = vpop.f32.mrf.mxu0
      %3118 = vmatmul.bf16.gmra.mxu0 %v2853
      %v3119 = vpop.f32.mrf.mxu0
      %v3120 = vadd.f32 0.0, %v3119
      %v3121 = vpop.f32.mrf.mxu0
      %v3122 = vadd.f32 0.0, %v3121
      %3123 = vmatmul.bf16.gmra.mxu0 %v2856
      %v3124 = vpop.f32.mrf.mxu0
      %v3125 = vadd.f32 0.0, %v3124
      %v3126 = vpop.f32.mrf.mxu0
      %3127 = vmatmul.bf16.gmra.mxu0 %v2859
      %v3128 = vpop.f32.mrf.mxu0
      %v3129 = vadd.f32 0.0, %v3128
      %v3130 = vpop.f32.mrf.mxu0
      %v3131 = vadd.f32 0.0, %v3130
      %3132 = vmatmul.bf16.gmra.mxu0 %v2862
      %v3133 = vpop.f32.mrf.mxu0
      %v3134 = vadd.f32 0.0, %v3133
      %v3135 = vpop.f32.mrf.mxu0
      %3136 = vmatmul.bf16.gmra.mxu0 %v2865
      %v3137 = vpop.f32.mrf.mxu0
      %v3138 = vadd.f32 0.0, %v3137
      %v3139 = vpop.f32.mrf.mxu0
      %v3140 = vadd.f32 0.0, %v3139
      %3141 = vmatmul.bf16.gmra.mxu0 %v2868
      %v3142 = vpop.f32.mrf.mxu0
      %v3143 = vadd.f32 0.0, %v3142
      %v3144 = vpop.f32.mrf.mxu0
      %3145 = vmatmul.bf16.gmra.mxu0 %v2871
      %v3146 = vpop.f32.mrf.mxu0
      %v3147 = vadd.f32 0.0, %v3146
      %v3148 = vpop.f32.mrf.mxu0
      %v3149 = vadd.f32 0.0, %v3148
      %3150 = vmatmul.bf16.gmra.mxu0 %v2874
      %v3151 = vpop.f32.mrf.mxu0
      %v3152 = vadd.f32 0.0, %v3151
      %v3153 = vpop.f32.mrf.mxu0
      %3154 = vmatmul.bf16.gmra.mxu0 %v2877
      %v3155 = vpop.f32.mrf.mxu0
      %v3156 = vadd.f32 0.0, %v3155
      %v3157 = vpop.f32.mrf.mxu0
      %v3158 = vadd.f32 0.0, %v3157
      %3159 = vmatmul.bf16.gmra.mxu0 %v2880
      %v3160 = vpop.f32.mrf.mxu0
      %v3161 = vadd.f32 0.0, %v3160
      %v3162 = vpop.f32.mrf.mxu0
      %3163 = vmatmul.bf16.gmra.mxu0 %v2883
      %v3164 = vpop.f32.mrf.mxu0
      %v3165 = vadd.f32 0.0, %v3164
      %v3166 = vpop.f32.mrf.mxu0
      %v3167 = vadd.f32 0.0, %v3166
      %3168 = vmatmul.bf16.gmra.mxu0 %v2886
      %v3169 = vpop.f32.mrf.mxu0
      %v3170 = vadd.f32 0.0, %v3169
      %v3171 = vpop.f32.mrf.mxu0
      %3172 = vmatmul.bf16.gmra.mxu0 %v2889
      %v3173 = vpop.f32.mrf.mxu0
      %v3174 = vadd.f32 0.0, %v3173
      %v3175 = vpop.f32.mrf.mxu0
      %v3176 = vadd.f32 0.0, %v3175
      %3177 = vmatmul.bf16.gmra.mxu0 %v2892
      %v3178 = vpop.f32.mrf.mxu0
      %v3179 = vadd.f32 0.0, %v3178
      %v3180 = vpop.f32.mrf.mxu0
      %3181 = vdwg.mxu0
      %v3182 = vadd.f32 %v2708, %v3111
      %v3183 = vadd.f32 %v2709, %v3113
      %v3184 = vadd.f32 %v2710, %v3116
      %v3185 = vadd.f32 %v2711, %v3120
      %v3186 = vadd.f32 %v2712, %v3122
      %v3187 = vadd.f32 %v2713, %v3125
      %v3188 = vadd.f32 %v2714, %v3129
      %v3189 = vadd.f32 %v2715, %v3131
      %v3190 = vadd.f32 %v2716, %v3134
      %v3191 = vadd.f32 %v2717, %v3138
      %v3192 = vadd.f32 %v2718, %v3140
      %v3193 = vadd.f32 %v2719, %v3143
      %v3194 = vadd.f32 %v2720, %v3147
      %v3195 = vadd.f32 %v2721, %v3149
      %v3196 = vadd.f32 %v2722, %v3152
      %v3197 = vadd.f32 %v2723, %v3156
      %v3198 = vadd.f32 %v2724, %v3158
      %v3199 = vadd.f32 %v2725, %v3161
      %v3200 = vadd.f32 %v2726, %v3165
      %v3201 = vadd.f32 %v2727, %v3167
      %v3202 = vadd.f32 %v2728, %v3170
      %v3203 = vadd.f32 %v2729, %v3174
      %v3204 = vadd.f32 %v2730, %v3176
      %v3205 = vadd.f32 %v2731, %v3179
      %v3206 = vld [vmem:[#allocation4 + $0x20] sm:$0xf]
      %v3207 = vld [vmem:[#allocation4 + $0x24] sm:$0xf]
      %v3208 = vld [vmem:[#allocation4 + $0x28] sm:$0xf]
      %v3209 = vld [vmem:[#allocation4 + $0x2c] sm:$0xf]
      %v3210 = vld [vmem:[#allocation4 + $0x30] sm:$0xf]
      %v3211 = vld [vmem:[#allocation4 + $0x34] sm:$0xf]
      %v3212 = vld [vmem:[#allocation4 + $0x38] sm:$0xf]
      %v3213 = vld [vmem:[#allocation4 + $0x3c] sm:$0xf]
      %v3214 = vld [vmem:[#allocation4 + $0x40] sm:$0xf]
      %v3215 = vld [vmem:[#allocation4 + $0x44] sm:$0xf]
      %v3216 = vld [vmem:[#allocation4 + $0x48] sm:$0xf]
      %v3217 = vld [vmem:[#allocation4 + $0x4c] sm:$0xf]
      %v3218 = vld [vmem:[#allocation4 + $0x50] sm:$0xf]
      %v3219 = vld [vmem:[#allocation4 + $0x54] sm:$0xf]
      %v3220 = vld [vmem:[#allocation4 + $0x58] sm:$0xf]
      %v3221 = vld [vmem:[#allocation4 + $0x5c] sm:$0xf]
      %v3222 = vld [vmem:[#allocation4 + $0x60] sm:$0xf]
      %v3223 = vld [vmem:[#allocation4 + $0x64] sm:$0xf]
      %v3224 = vld [vmem:[#allocation4 + $0x68] sm:$0xf]
      %v3225 = vld [vmem:[#allocation4 + $0x6c] sm:$0xf]
      %v3226 = vld [vmem:[#allocation4 + $0x70] sm:$0xf]
      %v3227 = vld [vmem:[#allocation4 + $0x74] sm:$0xf]
      %v3228 = vld [vmem:[#allocation4 + $0x78] sm:$0xf]
      %v3229 = vld [vmem:[#allocation4 + $0x7c] sm:$0xf]
      %v3230 = vld [vmem:[#allocation4 + $0x80] sm:$0xf]
      %v3231 = vld [vmem:[#allocation4 + $0x84] sm:$0xf]
      %v3232 = vld [vmem:[#allocation4 + $0x88] sm:$0xf]
      %v3233 = vld [vmem:[#allocation4 + $0x8c] sm:$0xf]
      %v3234 = vld [vmem:[#allocation4 + $0x90] sm:$0xf]
      %v3235 = vld [vmem:[#allocation4 + $0x94] sm:$0xf]
      %v3236 = vld [vmem:[#allocation4 + $0x98] sm:$0xf]
      %v3237 = vld [vmem:[#allocation4 + $0x9c] sm:$0xf]
      %s3238 = scalar_lea.vmem %s564, 12
      %v3239 = vld [vmem:[%s3238] sm:$0x3]
      %v3272 = vunpack.c.l.b16 %v3206
      %v3273 = vunpack.c.l.b16 %v3207
      %v3274 = vunpack.c.l.b16 %v3208
      %v3275 = vunpack.c.l.b16 %v3209
      %v3276 = vunpack.c.l.b16 %v3210
      %v3277 = vunpack.c.l.b16 %v3211
      %v3278 = vunpack.c.l.b16 %v3212
      %v3279 = vunpack.c.l.b16 %v3213
      %v3280 = vunpack.c.l.b16 %v3214
      %v3281 = vunpack.c.l.b16 %v3215
      %v3282 = vunpack.c.l.b16 %v3216
      %v3283 = vunpack.c.l.b16 %v3217
      %v3284 = vunpack.c.l.b16 %v3218
      %v3285 = vunpack.c.l.b16 %v3219
      %v3286 = vunpack.c.l.b16 %v3220
      %v3287 = vunpack.c.l.b16 %v3221
      %v3288 = vunpack.c.l.b16 %v3222
      %v3289 = vunpack.c.l.b16 %v3223
      %v3290 = vunpack.c.l.b16 %v3224
      %v3291 = vunpack.c.l.b16 %v3225
      %v3292 = vunpack.c.l.b16 %v3226
      %v3293 = vunpack.c.l.b16 %v3227
      %v3294 = vunpack.c.l.b16 %v3228
      %v3295 = vunpack.c.l.b16 %v3229
      %v3296 = vunpack.c.l.b16 %v3230
      %v3297 = vunpack.c.l.b16 %v3231
      %v3298 = vunpack.c.l.b16 %v3232
      %v3299 = vunpack.c.l.b16 %v3233
      %v3300 = vunpack.c.l.b16 %v3234
      %v3301 = vunpack.c.l.b16 %v3235
      %v3302 = vunpack.c.l.b16 %v3236
      %v3303 = vunpack.c.l.b16 %v3237
      %v3304 = vpack.c.b16 %v3273, %v3272
      %v3305 = vpack.c.b16 %v3275, %v3274
      %v3306 = vpack.c.b16 %v3277, %v3276
      %v3307 = vpack.c.b16 %v3279, %v3278
      %v3308 = vpack.c.b16 %v3281, %v3280
      %v3309 = vpack.c.b16 %v3283, %v3282
      %v3310 = vpack.c.b16 %v3285, %v3284
      %v3311 = vpack.c.b16 %v3287, %v3286
      %v3312 = vpack.c.b16 %v3289, %v3288
      %v3313 = vpack.c.b16 %v3291, %v3290
      %v3314 = vpack.c.b16 %v3293, %v3292
      %v3315 = vpack.c.b16 %v3295, %v3294
      %v3316 = vpack.c.b16 %v3297, %v3296
      %v3317 = vpack.c.b16 %v3299, %v3298
      %v3318 = vpack.c.b16 %v3301, %v3300
      %v3319 = vpack.c.b16 %v3303, %v3302
      %v3321 = vsel %vm895, %v3304, 0
      %v3324 = vsel %vm895, %v3305, 0
      %v3327 = vsel %vm895, %v3306, 0
      %v3330 = vsel %vm895, %v3307, 0
      %v3333 = vsel %vm895, %v3308, 0
      %v3336 = vsel %vm895, %v3309, 0
      %v3339 = vsel %vm895, %v3310, 0
      %v3342 = vsel %vm895, %v3311, 0
      %v3345 = vsel %vm895, %v3312, 0
      %v3348 = vsel %vm895, %v3313, 0
      %v3351 = vsel %vm895, %v3314, 0
      %v3354 = vsel %vm895, %v3315, 0
      %v3357 = vsel %vm895, %v3316, 0
      %v3360 = vsel %vm895, %v3317, 0
      %v3363 = vsel %vm895, %v3318, 0
      %v3366 = vsel %vm895, %v3319, 0
      %v3369 = vsel %vm944, %v3239, 0
      %3371 = vmatpush.bf16.msra.mxu0 0
      %3372 = vmatpush.bf16.msra.mxu0 0
      %3373 = vmatpush.bf16.msra.mxu0 0
      %3374 = vmatpush.bf16.msra.mxu0 0
      %3375 = vmatpush.bf16.msra.mxu0 0
      %3376 = vmatpush.bf16.msra.mxu0 0
      %3377 = vmatpush.bf16.msra.mxu0 0
      %3378 = vmatpush.bf16.msra.mxu0 %v3369
      %3379 = vmatmul.bf16.gmra.mxu0 %v3321
      %v3380 = vpop.f32.mrf.mxu0
      %v3381 = vadd.f32 0.0, %v3380
      %v3382 = vpop.f32.mrf.mxu0
      %v3383 = vadd.f32 0.0, %v3382
      %3384 = vmatmul.bf16.gmra.mxu0 %v3324
      %v3385 = vpop.f32.mrf.mxu0
      %v3386 = vpop.f32.mrf.mxu0
      %3387 = vmatmul.bf16.gmra.mxu0 %v3327
      %v3388 = vpop.f32.mrf.mxu0
      %v3389 = vadd.f32 0.0, %v3388
      %v3390 = vpop.f32.mrf.mxu0
      %v3391 = vadd.f32 0.0, %v3390
      %3392 = vmatmul.bf16.gmra.mxu0 %v3330
      %v3393 = vpop.f32.mrf.mxu0
      %v3394 = vpop.f32.mrf.mxu0
      %3395 = vmatmul.bf16.gmra.mxu0 %v3333
      %v3396 = vpop.f32.mrf.mxu0
      %v3397 = vadd.f32 0.0, %v3396
      %v3398 = vpop.f32.mrf.mxu0
      %v3399 = vadd.f32 0.0, %v3398
      %3400 = vmatmul.bf16.gmra.mxu0 %v3336
      %v3401 = vpop.f32.mrf.mxu0
      %v3402 = vpop.f32.mrf.mxu0
      %3403 = vmatmul.bf16.gmra.mxu0 %v3339
      %v3404 = vpop.f32.mrf.mxu0
      %v3405 = vadd.f32 0.0, %v3404
      %v3406 = vpop.f32.mrf.mxu0
      %v3407 = vadd.f32 0.0, %v3406
      %3408 = vmatmul.bf16.gmra.mxu0 %v3342
      %v3409 = vpop.f32.mrf.mxu0
      %v3410 = vpop.f32.mrf.mxu0
      %3411 = vmatmul.bf16.gmra.mxu0 %v3345
      %v3412 = vpop.f32.mrf.mxu0
      %v3413 = vadd.f32 0.0, %v3412
      %v3414 = vpop.f32.mrf.mxu0
      %v3415 = vadd.f32 0.0, %v3414
      %3416 = vmatmul.bf16.gmra.mxu0 %v3348
      %v3417 = vpop.f32.mrf.mxu0
      %v3418 = vpop.f32.mrf.mxu0
      %3419 = vmatmul.bf16.gmra.mxu0 %v3351
      %v3420 = vpop.f32.mrf.mxu0
      %v3421 = vadd.f32 0.0, %v3420
      %v3422 = vpop.f32.mrf.mxu0
      %v3423 = vadd.f32 0.0, %v3422
      %3424 = vmatmul.bf16.gmra.mxu0 %v3354
      %v3425 = vpop.f32.mrf.mxu0
      %v3426 = vpop.f32.mrf.mxu0
      %3427 = vmatmul.bf16.gmra.mxu0 %v3357
      %v3428 = vpop.f32.mrf.mxu0
      %v3429 = vadd.f32 0.0, %v3428
      %v3430 = vpop.f32.mrf.mxu0
      %v3431 = vadd.f32 0.0, %v3430
      %3432 = vmatmul.bf16.gmra.mxu0 %v3360
      %v3433 = vpop.f32.mrf.mxu0
      %v3434 = vpop.f32.mrf.mxu0
      %3435 = vmatmul.bf16.gmra.mxu0 %v3363
      %v3436 = vpop.f32.mrf.mxu0
      %v3437 = vadd.f32 0.0, %v3436
      %v3438 = vpop.f32.mrf.mxu0
      %v3439 = vadd.f32 0.0, %v3438
      %3440 = vmatmul.bf16.gmra.mxu0 %v3366
      %v3441 = vpop.f32.mrf.mxu0
      %v3442 = vpop.f32.mrf.mxu0
      %3443 = vdwg.mxu0
      %v3444 = vadd.f32 %v2970, %v3381
      %v3445 = vadd.f32 %v2971, %v3383
      %v3446 = vadd.f32 %v2972, %v3389
      %v3447 = vadd.f32 %v2973, %v3391
      %v3448 = vadd.f32 %v2974, %v3397
      %v3449 = vadd.f32 %v2975, %v3399
      %v3450 = vadd.f32 %v2976, %v3405
      %v3451 = vadd.f32 %v2977, %v3407
      %v3452 = vadd.f32 %v2978, %v3413
      %v3453 = vadd.f32 %v2979, %v3415
      %v3454 = vadd.f32 %v2980, %v3421
      %v3455 = vadd.f32 %v2981, %v3423
      %v3456 = vadd.f32 %v2982, %v3429
      %v3457 = vadd.f32 %v2983, %v3431
      %v3458 = vadd.f32 %v2984, %v3437
      %v3459 = vadd.f32 %v2985, %v3439
      %s3460 = scalar_lea.vmem %s564, 14
      %v3461 = vld [vmem:[%s3460] sm:$0x3]
      %v3463 = vsel %vm944, %v3461, 0
      %3465 = vmatpush.bf16.msra.mxu0 0
      %3466 = vmatpush.bf16.msra.mxu0 0
      %3467 = vmatpush.bf16.msra.mxu0 0
      %3468 = vmatpush.bf16.msra.mxu0 0
      %3469 = vmatpush.bf16.msra.mxu0 0
      %3470 = vmatpush.bf16.msra.mxu0 0
      %3471 = vmatpush.bf16.msra.mxu0 0
      %3472 = vmatpush.bf16.msra.mxu0 %v3463
      %3473 = vmatmul.bf16.gmra.mxu0 %v3321
      %v3474 = vpop.f32.mrf.mxu0
      %v3475 = vadd.f32 0.0, %v3474
      %v3476 = vpop.f32.mrf.mxu0
      %v3477 = vadd.f32 0.0, %v3476
      %3478 = vmatmul.bf16.gmra.mxu0 %v3324
      %v3479 = vpop.f32.mrf.mxu0
      %v3480 = vadd.f32 0.0, %v3479
      %v3481 = vpop.f32.mrf.mxu0
      %3482 = vmatmul.bf16.gmra.mxu0 %v3327
      %v3483 = vpop.f32.mrf.mxu0
      %v3484 = vadd.f32 0.0, %v3483
      %v3485 = vpop.f32.mrf.mxu0
      %v3486 = vadd.f32 0.0, %v3485
      %3487 = vmatmul.bf16.gmra.mxu0 %v3330
      %v3488 = vpop.f32.mrf.mxu0
      %v3489 = vadd.f32 0.0, %v3488
      %v3490 = vpop.f32.mrf.mxu0
      %3491 = vmatmul.bf16.gmra.mxu0 %v3333
      %v3492 = vpop.f32.mrf.mxu0
      %v3493 = vadd.f32 0.0, %v3492
      %v3494 = vpop.f32.mrf.mxu0
      %v3495 = vadd.f32 0.0, %v3494
      %3496 = vmatmul.bf16.gmra.mxu0 %v3336
      %v3497 = vpop.f32.mrf.mxu0
      %v3498 = vadd.f32 0.0, %v3497
      %v3499 = vpop.f32.mrf.mxu0
      %3500 = vmatmul.bf16.gmra.mxu0 %v3339
      %v3501 = vpop.f32.mrf.mxu0
      %v3502 = vadd.f32 0.0, %v3501
      %v3503 = vpop.f32.mrf.mxu0
      %v3504 = vadd.f32 0.0, %v3503
      %3505 = vmatmul.bf16.gmra.mxu0 %v3342
      %v3506 = vpop.f32.mrf.mxu0
      %v3507 = vadd.f32 0.0, %v3506
      %v3508 = vpop.f32.mrf.mxu0
      %3509 = vmatmul.bf16.gmra.mxu0 %v3345
      %v3510 = vpop.f32.mrf.mxu0
      %v3511 = vadd.f32 0.0, %v3510
      %v3512 = vpop.f32.mrf.mxu0
      %v3513 = vadd.f32 0.0, %v3512
      %3514 = vmatmul.bf16.gmra.mxu0 %v3348
      %v3515 = vpop.f32.mrf.mxu0
      %v3516 = vadd.f32 0.0, %v3515
      %v3517 = vpop.f32.mrf.mxu0
      %3518 = vmatmul.bf16.gmra.mxu0 %v3351
      %v3519 = vpop.f32.mrf.mxu0
      %v3520 = vadd.f32 0.0, %v3519
      %v3521 = vpop.f32.mrf.mxu0
      %v3522 = vadd.f32 0.0, %v3521
      %3523 = vmatmul.bf16.gmra.mxu0 %v3354
      %v3524 = vpop.f32.mrf.mxu0
      %v3525 = vadd.f32 0.0, %v3524
      %v3526 = vpop.f32.mrf.mxu0
      %3527 = vmatmul.bf16.gmra.mxu0 %v3357
      %v3528 = vpop.f32.mrf.mxu0
      %v3529 = vadd.f32 0.0, %v3528
      %v3530 = vpop.f32.mrf.mxu0
      %v3531 = vadd.f32 0.0, %v3530
      %3532 = vmatmul.bf16.gmra.mxu0 %v3360
      %v3533 = vpop.f32.mrf.mxu0
      %v3534 = vadd.f32 0.0, %v3533
      %v3535 = vpop.f32.mrf.mxu0
      %3536 = vmatmul.bf16.gmra.mxu0 %v3363
      %v3537 = vpop.f32.mrf.mxu0
      %v3538 = vadd.f32 0.0, %v3537
      %v3539 = vpop.f32.mrf.mxu0
      %v3540 = vadd.f32 0.0, %v3539
      %3541 = vmatmul.bf16.gmra.mxu0 %v3366
      %v3542 = vpop.f32.mrf.mxu0
      %v3543 = vadd.f32 0.0, %v3542
      %v3544 = vpop.f32.mrf.mxu0
      %3545 = vdwg.mxu0
      %v3546 = vadd.f32 %v3072, %v3475
      %v3547 = vadd.f32 %v3073, %v3477
      %v3548 = vadd.f32 %v3074, %v3480
      %v3549 = vadd.f32 %v3075, %v3484
      %v3550 = vadd.f32 %v3076, %v3486
      %v3551 = vadd.f32 %v3077, %v3489
      %v3552 = vadd.f32 %v3078, %v3493
      %v3553 = vadd.f32 %v3079, %v3495
      %v3554 = vadd.f32 %v3080, %v3498
      %v3555 = vadd.f32 %v3081, %v3502
      %v3556 = vadd.f32 %v3082, %v3504
      %v3557 = vadd.f32 %v3083, %v3507
      %v3558 = vadd.f32 %v3084, %v3511
      %v3559 = vadd.f32 %v3085, %v3513
      %v3560 = vadd.f32 %v3086, %v3516
      %v3561 = vadd.f32 %v3087, %v3520
      %v3562 = vadd.f32 %v3088, %v3522
      %v3563 = vadd.f32 %v3089, %v3525
      %v3564 = vadd.f32 %v3090, %v3529
      %v3565 = vadd.f32 %v3091, %v3531
      %v3566 = vadd.f32 %v3092, %v3534
      %v3567 = vadd.f32 %v3093, %v3538
      %v3568 = vadd.f32 %v3094, %v3540
      %v3569 = vadd.f32 %v3095, %v3543
      %s3570 = scalar_lea.vmem %s564, 16
      %v3571 = vld [vmem:[%s3570] sm:$0x3]
      %v3573 = vsel %vm944, %v3571, 0
      %3575 = vmatpush.bf16.msra.mxu0 0
      %3576 = vmatpush.bf16.msra.mxu0 0
      %3577 = vmatpush.bf16.msra.mxu0 0
      %3578 = vmatpush.bf16.msra.mxu0 0
      %3579 = vmatpush.bf16.msra.mxu0 0
      %3580 = vmatpush.bf16.msra.mxu0 0
      %3581 = vmatpush.bf16.msra.mxu0 0
      %3582 = vmatpush.bf16.msra.mxu0 %v3573
      %3583 = vmatmul.bf16.gmra.mxu0 %v3321
      %v3584 = vpop.f32.mrf.mxu0
      %v3585 = vadd.f32 0.0, %v3584
      %v3586 = vpop.f32.mrf.mxu0
      %v3587 = vadd.f32 0.0, %v3586
      %3588 = vmatmul.bf16.gmra.mxu0 %v3324
      %v3589 = vpop.f32.mrf.mxu0
      %v3590 = vadd.f32 0.0, %v3589
      %v3591 = vpop.f32.mrf.mxu0
      %3592 = vmatmul.bf16.gmra.mxu0 %v3327
      %v3593 = vpop.f32.mrf.mxu0
      %v3594 = vadd.f32 0.0, %v3593
      %v3595 = vpop.f32.mrf.mxu0
      %v3596 = vadd.f32 0.0, %v3595
      %3597 = vmatmul.bf16.gmra.mxu0 %v3330
      %v3598 = vpop.f32.mrf.mxu0
      %v3599 = vadd.f32 0.0, %v3598
      %v3600 = vpop.f32.mrf.mxu0
      %3601 = vmatmul.bf16.gmra.mxu0 %v3333
      %v3602 = vpop.f32.mrf.mxu0
      %v3603 = vadd.f32 0.0, %v3602
      %v3604 = vpop.f32.mrf.mxu0
      %v3605 = vadd.f32 0.0, %v3604
      %3606 = vmatmul.bf16.gmra.mxu0 %v3336
      %v3607 = vpop.f32.mrf.mxu0
      %v3608 = vadd.f32 0.0, %v3607
      %v3609 = vpop.f32.mrf.mxu0
      %3610 = vmatmul.bf16.gmra.mxu0 %v3339
      %v3611 = vpop.f32.mrf.mxu0
      %v3612 = vadd.f32 0.0, %v3611
      %v3613 = vpop.f32.mrf.mxu0
      %v3614 = vadd.f32 0.0, %v3613
      %3615 = vmatmul.bf16.gmra.mxu0 %v3342
      %v3616 = vpop.f32.mrf.mxu0
      %v3617 = vadd.f32 0.0, %v3616
      %v3618 = vpop.f32.mrf.mxu0
      %3619 = vmatmul.bf16.gmra.mxu0 %v3345
      %v3620 = vpop.f32.mrf.mxu0
      %v3621 = vadd.f32 0.0, %v3620
      %v3622 = vpop.f32.mrf.mxu0
      %v3623 = vadd.f32 0.0, %v3622
      %3624 = vmatmul.bf16.gmra.mxu0 %v3348
      %v3625 = vpop.f32.mrf.mxu0
      %v3626 = vadd.f32 0.0, %v3625
      %v3627 = vpop.f32.mrf.mxu0
      %3628 = vmatmul.bf16.gmra.mxu0 %v3351
      %v3629 = vpop.f32.mrf.mxu0
      %v3630 = vadd.f32 0.0, %v3629
      %v3631 = vpop.f32.mrf.mxu0
      %v3632 = vadd.f32 0.0, %v3631
      %3633 = vmatmul.bf16.gmra.mxu0 %v3354
      %v3634 = vpop.f32.mrf.mxu0
      %v3635 = vadd.f32 0.0, %v3634
      %v3636 = vpop.f32.mrf.mxu0
      %3637 = vmatmul.bf16.gmra.mxu0 %v3357
      %v3638 = vpop.f32.mrf.mxu0
      %v3639 = vadd.f32 0.0, %v3638
      %v3640 = vpop.f32.mrf.mxu0
      %v3641 = vadd.f32 0.0, %v3640
      %3642 = vmatmul.bf16.gmra.mxu0 %v3360
      %v3643 = vpop.f32.mrf.mxu0
      %v3644 = vadd.f32 0.0, %v3643
      %v3645 = vpop.f32.mrf.mxu0
      %3646 = vmatmul.bf16.gmra.mxu0 %v3363
      %v3647 = vpop.f32.mrf.mxu0
      %v3648 = vadd.f32 0.0, %v3647
      %v3649 = vpop.f32.mrf.mxu0
      %v3650 = vadd.f32 0.0, %v3649
      %3651 = vmatmul.bf16.gmra.mxu0 %v3366
      %v3652 = vpop.f32.mrf.mxu0
      %v3653 = vadd.f32 0.0, %v3652
      %v3654 = vpop.f32.mrf.mxu0
      %3655 = vdwg.mxu0
      %v3656 = vadd.f32 %v3182, %v3585
      %v3657 = vadd.f32 %v3183, %v3587
      %v3658 = vadd.f32 %v3184, %v3590
      %v3659 = vadd.f32 %v3185, %v3594
      %v3660 = vadd.f32 %v3186, %v3596
      %v3661 = vadd.f32 %v3187, %v3599
      %v3662 = vadd.f32 %v3188, %v3603
      %v3663 = vadd.f32 %v3189, %v3605
      %v3664 = vadd.f32 %v3190, %v3608
      %v3665 = vadd.f32 %v3191, %v3612
      %v3666 = vadd.f32 %v3192, %v3614
      %v3667 = vadd.f32 %v3193, %v3617
      %v3668 = vadd.f32 %v3194, %v3621
      %v3669 = vadd.f32 %v3195, %v3623
      %v3670 = vadd.f32 %v3196, %v3626
      %v3671 = vadd.f32 %v3197, %v3630
      %v3672 = vadd.f32 %v3198, %v3632
      %v3673 = vadd.f32 %v3199, %v3635
      %v3674 = vadd.f32 %v3200, %v3639
      %v3675 = vadd.f32 %v3201, %v3641
      %v3676 = vadd.f32 %v3202, %v3644
      %v3677 = vadd.f32 %v3203, %v3648
      %v3678 = vadd.f32 %v3204, %v3650
      %v3679 = vadd.f32 %v3205, %v3653
      %s3680 = scalar_lea.vmem %s6, 16
      %v3681 = vld [vmem:[%s3680] sm:$0xf]
      %v3682 = vld [vmem:[%s3680 + $0x4] sm:$0xf]
      %v3683 = vld [vmem:[%s3680 + $0x8] sm:$0xf]
      %v3684 = vld [vmem:[%s3680 + $0xc] sm:$0xf]
      %s3685 = scalar_lea.vmem [#allocation3], 4
      %v3686 = vld [vmem:[%s3685] sm:$0xf]
      %v3691 = vunpack.c.l.b16 %v3681
      %v3692 = vunpack.c.l.b16 %v3682
      %v3693 = vunpack.c.l.b16 %v3683
      %v3694 = vunpack.c.l.b16 %v3684
      %v3695 = vpack.c.b16 %v3692, %v3691
      %v3696 = vpack.c.b16 %v3694, %v3693
      %v3698 = vsel %vm1942, %v3695, 0
      %v3701 = vsel %vm1942, %v3696, 0
      %v3704 = vsel %vm1949, %v3686, 0
      %3706 = vmatpush.bf16.msra.mxu0 0
      %3707 = vmatpush.bf16.msra.mxu0 0
      %3708 = vmatpush.bf16.msra.mxu0 0
      %3709 = vmatpush.bf16.msra.mxu0 0
      %3710 = vmatpush.bf16.msra.mxu0 0
      %3711 = vmatpush.bf16.msra.mxu0 0
      %3712 = vmatpush.bf16.msra.mxu0 0
      %3713 = vmatpush.bf16.msra.mxu0 %v3704
      %3714 = vmatmul.bf16.gmra.mxu0 %v3698
      %v3715 = vpop.f32.mrf.mxu0
      %v3716 = vadd.f32 0.0, %v3715
      %v3717 = vpop.f32.mrf.mxu0
      %v3718 = vadd.f32 0.0, %v3717
      %3719 = vmatmul.bf16.gmra.mxu0 %v3701
      %v3720 = vpop.f32.mrf.mxu0
      %v3721 = vadd.f32 0.0, %v3720
      %v3722 = vpop.f32.mrf.mxu0
      %v3723 = vadd.f32 0.0, %v3722
      %3724 = vdwg.mxu0
      %v3725 = vpack.c.bf16 %v3716, %v3716
      %v3726 = vpack.c.bf16 %v3718, %v3718
      %v3727 = vpack.c.bf16 %v3721, %v3721
      %v3728 = vpack.c.bf16 %v3723, %v3723
      %3729 = vst.msk [vmem:[#allocation4] sm:$0xf] %vm590, %v3725
      %3730 = vst.msk [vmem:[#allocation4 + $0x4] sm:$0xf] %vm590, %v3726
      %3731 = vst.msk [vmem:[#allocation4 + $0x8] sm:$0xf] %vm590, %v3727
      %3732 = vst.msk [vmem:[#allocation4 + $0xc] sm:$0xf] %vm590, %v3728
      %s3733 = scalar_lea.vmem [#allocation3], 20
      %v3734 = vld [vmem:[%s3733] sm:$0xf]
      %v3736 = vsel %vm1949, %v3734, 0
      %3738 = vmatpush.bf16.msra.mxu0 0
      %3739 = vmatpush.bf16.msra.mxu0 0
      %3740 = vmatpush.bf16.msra.mxu0 0
      %3741 = vmatpush.bf16.msra.mxu0 0
      %3742 = vmatpush.bf16.msra.mxu0 0
      %3743 = vmatpush.bf16.msra.mxu0 0
      %3744 = vmatpush.bf16.msra.mxu0 0
      %3745 = vmatpush.bf16.msra.mxu0 %v3736
      %3746 = vmatmul.bf16.gmra.mxu0 %v3698
      %v3747 = vpop.f32.mrf.mxu0
      %v3748 = vadd.f32 0.0, %v3747
      %v3749 = vpop.f32.mrf.mxu0
      %v3750 = vadd.f32 0.0, %v3749
      %3751 = vmatmul.bf16.gmra.mxu0 %v3701
      %v3752 = vpop.f32.mrf.mxu0
      %v3753 = vadd.f32 0.0, %v3752
      %v3754 = vpop.f32.mrf.mxu0
      %v3755 = vadd.f32 0.0, %v3754
      %3756 = vdwg.mxu0
      %v3757 = vpack.c.bf16 %v3748, %v3748
      %v3758 = vpack.c.bf16 %v3750, %v3750
      %v3759 = vpack.c.bf16 %v3753, %v3753
      %v3760 = vpack.c.bf16 %v3755, %v3755
      %3761 = vst.msk [vmem:[#allocation4 + $0x10] sm:$0xf] %vm590, %v3757
      %3762 = vst.msk [vmem:[#allocation4 + $0x14] sm:$0xf] %vm590, %v3758
      %3763 = vst.msk [vmem:[#allocation4 + $0x18] sm:$0xf] %vm590, %v3759
      %3764 = vst.msk [vmem:[#allocation4 + $0x1c] sm:$0xf] %vm590, %v3760
      %s3765 = scalar_lea.vmem [#allocation3], 36
      %v3766 = vld [vmem:[%s3765] sm:$0xf]
      %v3768 = vsel %vm1949, %v3766, 0
      %3770 = vmatpush.bf16.msra.mxu0 0
      %3771 = vmatpush.bf16.msra.mxu0 0
      %3772 = vmatpush.bf16.msra.mxu0 0
      %3773 = vmatpush.bf16.msra.mxu0 0
      %3774 = vmatpush.bf16.msra.mxu0 0
      %3775 = vmatpush.bf16.msra.mxu0 0
      %3776 = vmatpush.bf16.msra.mxu0 0
      %3777 = vmatpush.bf16.msra.mxu0 %v3768
      %3778 = vmatmul.bf16.gmra.mxu0 %v3698
      %v3779 = vpop.f32.mrf.mxu0
      %v3780 = vadd.f32 0.0, %v3779
      %v3781 = vpop.f32.mrf.mxu0
      %v3782 = vadd.f32 0.0, %v3781
      %3783 = vmatmul.bf16.gmra.mxu0 %v3701
      %v3784 = vpop.f32.mrf.mxu0
      %v3785 = vadd.f32 0.0, %v3784
      %v3786 = vpop.f32.mrf.mxu0
      %v3787 = vadd.f32 0.0, %v3786
      %3788 = vdwg.mxu0
      %v3789 = vpack.c.bf16 %v3780, %v3780
      %v3790 = vpack.c.bf16 %v3782, %v3782
      %v3791 = vpack.c.bf16 %v3785, %v3785
      %v3792 = vpack.c.bf16 %v3787, %v3787
      %3793 = vst.msk [vmem:[#allocation4 + $0x20] sm:$0xf] %vm590, %v3789
      %3794 = vst.msk [vmem:[#allocation4 + $0x24] sm:$0xf] %vm590, %v3790
      %3795 = vst.msk [vmem:[#allocation4 + $0x28] sm:$0xf] %vm590, %v3791
      %3796 = vst.msk [vmem:[#allocation4 + $0x2c] sm:$0xf] %vm590, %v3792
      %s3797 = scalar_lea.vmem [#allocation3], 52
      %v3798 = vld [vmem:[%s3797] sm:$0xf]
      %v3800 = vsel %vm1949, %v3798, 0
      %3802 = vmatpush.bf16.msra.mxu0 0
      %3803 = vmatpush.bf16.msra.mxu0 0
      %3804 = vmatpush.bf16.msra.mxu0 0
      %3805 = vmatpush.bf16.msra.mxu0 0
      %3806 = vmatpush.bf16.msra.mxu0 0
      %3807 = vmatpush.bf16.msra.mxu0 0
      %3808 = vmatpush.bf16.msra.mxu0 0
      %3809 = vmatpush.bf16.msra.mxu0 %v3800
      %3810 = vmatmul.bf16.gmra.mxu0 %v3698
      %v3811 = vpop.f32.mrf.mxu0
      %v3812 = vadd.f32 0.0, %v3811
      %v3813 = vpop.f32.mrf.mxu0
      %v3814 = vadd.f32 0.0, %v3813
      %3815 = vmatmul.bf16.gmra.mxu0 %v3701
      %v3816 = vpop.f32.mrf.mxu0
      %v3817 = vadd.f32 0.0, %v3816
      %v3818 = vpop.f32.mrf.mxu0
      %v3819 = vadd.f32 0.0, %v3818
      %3820 = vdwg.mxu0
      %v3821 = vpack.c.bf16 %v3812, %v3812
      %v3822 = vpack.c.bf16 %v3814, %v3814
      %v3823 = vpack.c.bf16 %v3817, %v3817
      %v3824 = vpack.c.bf16 %v3819, %v3819
      %3825 = vst.msk [vmem:[#allocation4 + $0x30] sm:$0xf] %vm590, %v3821
      %3826 = vst.msk [vmem:[#allocation4 + $0x34] sm:$0xf] %vm590, %v3822
      %3827 = vst.msk [vmem:[#allocation4 + $0x38] sm:$0xf] %vm590, %v3823
      %3828 = vst.msk [vmem:[#allocation4 + $0x3c] sm:$0xf] %vm590, %v3824
      %s3829 = scalar_lea.vmem [#allocation3], 68
      %v3830 = vld [vmem:[%s3829] sm:$0xf]
      %v3832 = vsel %vm1949, %v3830, 0
      %3834 = vmatpush.bf16.msra.mxu0 0
      %3835 = vmatpush.bf16.msra.mxu0 0
      %3836 = vmatpush.bf16.msra.mxu0 0
      %3837 = vmatpush.bf16.msra.mxu0 0
      %3838 = vmatpush.bf16.msra.mxu0 0
      %3839 = vmatpush.bf16.msra.mxu0 0
      %3840 = vmatpush.bf16.msra.mxu0 0
      %3841 = vmatpush.bf16.msra.mxu0 %v3832
      %3842 = vmatmul.bf16.gmra.mxu0 %v3698
      %v3843 = vpop.f32.mrf.mxu0
      %v3844 = vadd.f32 0.0, %v3843
      %v3845 = vpop.f32.mrf.mxu0
      %v3846 = vadd.f32 0.0, %v3845
      %3847 = vmatmul.bf16.gmra.mxu0 %v3701
      %v3848 = vpop.f32.mrf.mxu0
      %v3849 = vadd.f32 0.0, %v3848
      %v3850 = vpop.f32.mrf.mxu0
      %v3851 = vadd.f32 0.0, %v3850
      %3852 = vdwg.mxu0
      %v3853 = vpack.c.bf16 %v3844, %v3844
      %v3854 = vpack.c.bf16 %v3846, %v3846
      %v3855 = vpack.c.bf16 %v3849, %v3849
      %v3856 = vpack.c.bf16 %v3851, %v3851
      %3857 = vst.msk [vmem:[#allocation4 + $0x40] sm:$0xf] %vm590, %v3853
      %3858 = vst.msk [vmem:[#allocation4 + $0x44] sm:$0xf] %vm590, %v3854
      %3859 = vst.msk [vmem:[#allocation4 + $0x48] sm:$0xf] %vm590, %v3855
      %3860 = vst.msk [vmem:[#allocation4 + $0x4c] sm:$0xf] %vm590, %v3856
      %s3861 = scalar_lea.vmem [#allocation3], 84
      %v3862 = vld [vmem:[%s3861] sm:$0xf]
      %v3864 = vsel %vm1949, %v3862, 0
      %3866 = vmatpush.bf16.msra.mxu0 0
      %3867 = vmatpush.bf16.msra.mxu0 0
      %3868 = vmatpush.bf16.msra.mxu0 0
      %3869 = vmatpush.bf16.msra.mxu0 0
      %3870 = vmatpush.bf16.msra.mxu0 0
      %3871 = vmatpush.bf16.msra.mxu0 0
      %3872 = vmatpush.bf16.msra.mxu0 0
      %3873 = vmatpush.bf16.msra.mxu0 %v3864
      %3874 = vmatmul.bf16.gmra.mxu0 %v3698
      %v3875 = vpop.f32.mrf.mxu0
      %v3876 = vadd.f32 0.0, %v3875
      %v3877 = vpop.f32.mrf.mxu0
      %v3878 = vadd.f32 0.0, %v3877
      %3879 = vmatmul.bf16.gmra.mxu0 %v3701
      %v3880 = vpop.f32.mrf.mxu0
      %v3881 = vadd.f32 0.0, %v3880
      %v3882 = vpop.f32.mrf.mxu0
      %v3883 = vadd.f32 0.0, %v3882
      %3884 = vdwg.mxu0
      %v3885 = vpack.c.bf16 %v3876, %v3876
      %v3886 = vpack.c.bf16 %v3878, %v3878
      %v3887 = vpack.c.bf16 %v3881, %v3881
      %v3888 = vpack.c.bf16 %v3883, %v3883
      %3889 = vst.msk [vmem:[#allocation4 + $0x50] sm:$0xf] %vm590, %v3885
      %3890 = vst.msk [vmem:[#allocation4 + $0x54] sm:$0xf] %vm590, %v3886
      %3891 = vst.msk [vmem:[#allocation4 + $0x58] sm:$0xf] %vm590, %v3887
      %3892 = vst.msk [vmem:[#allocation4 + $0x5c] sm:$0xf] %vm590, %v3888
      %s3893 = scalar_lea.vmem [#allocation3], 100
      %v3894 = vld [vmem:[%s3893] sm:$0xf]
      %v3896 = vsel %vm1949, %v3894, 0
      %3898 = vmatpush.bf16.msra.mxu0 0
      %3899 = vmatpush.bf16.msra.mxu0 0
      %3900 = vmatpush.bf16.msra.mxu0 0
      %3901 = vmatpush.bf16.msra.mxu0 0
      %3902 = vmatpush.bf16.msra.mxu0 0
      %3903 = vmatpush.bf16.msra.mxu0 0
      %3904 = vmatpush.bf16.msra.mxu0 0
      %3905 = vmatpush.bf16.msra.mxu0 %v3896
      %3906 = vmatmul.bf16.gmra.mxu0 %v3698
      %v3907 = vpop.f32.mrf.mxu0
      %v3908 = vadd.f32 0.0, %v3907
      %v3909 = vpop.f32.mrf.mxu0
      %v3910 = vadd.f32 0.0, %v3909
      %3911 = vmatmul.bf16.gmra.mxu0 %v3701
      %v3912 = vpop.f32.mrf.mxu0
      %v3913 = vadd.f32 0.0, %v3912
      %v3914 = vpop.f32.mrf.mxu0
      %v3915 = vadd.f32 0.0, %v3914
      %3916 = vdwg.mxu0
      %v3917 = vpack.c.bf16 %v3908, %v3908
      %v3918 = vpack.c.bf16 %v3910, %v3910
      %v3919 = vpack.c.bf16 %v3913, %v3913
      %v3920 = vpack.c.bf16 %v3915, %v3915
      %3921 = vst.msk [vmem:[#allocation4 + $0x60] sm:$0xf] %vm590, %v3917
      %3922 = vst.msk [vmem:[#allocation4 + $0x64] sm:$0xf] %vm590, %v3918
      %3923 = vst.msk [vmem:[#allocation4 + $0x68] sm:$0xf] %vm590, %v3919
      %3924 = vst.msk [vmem:[#allocation4 + $0x6c] sm:$0xf] %vm590, %v3920
      %s3925 = scalar_lea.vmem [#allocation3], 116
      %v3926 = vld [vmem:[%s3925] sm:$0xf]
      %v3928 = vsel %vm1949, %v3926, 0
      %3930 = vmatpush.bf16.msra.mxu0 0
      %3931 = vmatpush.bf16.msra.mxu0 0
      %3932 = vmatpush.bf16.msra.mxu0 0
      %3933 = vmatpush.bf16.msra.mxu0 0
      %3934 = vmatpush.bf16.msra.mxu0 0
      %3935 = vmatpush.bf16.msra.mxu0 0
      %3936 = vmatpush.bf16.msra.mxu0 0
      %3937 = vmatpush.bf16.msra.mxu0 %v3928
      %3938 = vmatmul.bf16.gmra.mxu0 %v3698
      %v3939 = vpop.f32.mrf.mxu0
      %v3940 = vadd.f32 0.0, %v3939
      %v3941 = vpop.f32.mrf.mxu0
      %v3942 = vadd.f32 0.0, %v3941
      %3943 = vmatmul.bf16.gmra.mxu0 %v3701
      %v3944 = vpop.f32.mrf.mxu0
      %v3945 = vadd.f32 0.0, %v3944
      %v3946 = vpop.f32.mrf.mxu0
      %v3947 = vadd.f32 0.0, %v3946
      %3948 = vdwg.mxu0
      %v3949 = vpack.c.bf16 %v3940, %v3940
      %v3950 = vpack.c.bf16 %v3942, %v3942
      %v3951 = vpack.c.bf16 %v3945, %v3945
      %v3952 = vpack.c.bf16 %v3947, %v3947
      %3953 = vst.msk [vmem:[#allocation4 + $0x70] sm:$0xf] %vm590, %v3949
      %3954 = vst.msk [vmem:[#allocation4 + $0x74] sm:$0xf] %vm590, %v3950
      %3955 = vst.msk [vmem:[#allocation4 + $0x78] sm:$0xf] %vm590, %v3951
      %3956 = vst.msk [vmem:[#allocation4 + $0x7c] sm:$0xf] %vm590, %v3952
      %s3957 = scalar_lea.vmem [#allocation3], 132
      %v3958 = vld [vmem:[%s3957] sm:$0xf]
      %v3960 = vsel %vm1949, %v3958, 0
      %3962 = vmatpush.bf16.msra.mxu0 0
      %3963 = vmatpush.bf16.msra.mxu0 0
      %3964 = vmatpush.bf16.msra.mxu0 0
      %3965 = vmatpush.bf16.msra.mxu0 0
      %3966 = vmatpush.bf16.msra.mxu0 0
      %3967 = vmatpush.bf16.msra.mxu0 0
      %3968 = vmatpush.bf16.msra.mxu0 0
      %3969 = vmatpush.bf16.msra.mxu0 %v3960
      %3970 = vmatmul.bf16.gmra.mxu0 %v3698
      %v3971 = vpop.f32.mrf.mxu0
      %v3972 = vadd.f32 0.0, %v3971
      %v3973 = vpop.f32.mrf.mxu0
      %v3974 = vadd.f32 0.0, %v3973
      %3975 = vmatmul.bf16.gmra.mxu0 %v3701
      %v3976 = vpop.f32.mrf.mxu0
      %v3977 = vadd.f32 0.0, %v3976
      %v3978 = vpop.f32.mrf.mxu0
      %v3979 = vadd.f32 0.0, %v3978
      %3980 = vdwg.mxu0
      %v3981 = vpack.c.bf16 %v3972, %v3972
      %v3982 = vpack.c.bf16 %v3974, %v3974
      %v3983 = vpack.c.bf16 %v3977, %v3977
      %v3984 = vpack.c.bf16 %v3979, %v3979
      %3985 = vst.msk [vmem:[#allocation4 + $0x80] sm:$0xf] %vm590, %v3981
      %3986 = vst.msk [vmem:[#allocation4 + $0x84] sm:$0xf] %vm590, %v3982
      %3987 = vst.msk [vmem:[#allocation4 + $0x88] sm:$0xf] %vm590, %v3983
      %3988 = vst.msk [vmem:[#allocation4 + $0x8c] sm:$0xf] %vm590, %v3984
      %s3989 = scalar_lea.vmem [#allocation3], 148
      %v3990 = vld [vmem:[%s3989] sm:$0xf]
      %v3992 = vsel %vm1949, %v3990, 0
      %3994 = vmatpush.bf16.msra.mxu0 0
      %3995 = vmatpush.bf16.msra.mxu0 0
      %3996 = vmatpush.bf16.msra.mxu0 0
      %3997 = vmatpush.bf16.msra.mxu0 0
      %3998 = vmatpush.bf16.msra.mxu0 0
      %3999 = vmatpush.bf16.msra.mxu0 0
      %4000 = vmatpush.bf16.msra.mxu0 0
      %4001 = vmatpush.bf16.msra.mxu0 %v3992
      %4002 = vmatmul.bf16.gmra.mxu0 %v3698
      %v4003 = vpop.f32.mrf.mxu0
      %v4004 = vadd.f32 0.0, %v4003
      %v4005 = vpop.f32.mrf.mxu0
      %v4006 = vadd.f32 0.0, %v4005
      %4007 = vmatmul.bf16.gmra.mxu0 %v3701
      %v4008 = vpop.f32.mrf.mxu0
      %v4009 = vadd.f32 0.0, %v4008
      %v4010 = vpop.f32.mrf.mxu0
      %v4011 = vadd.f32 0.0, %v4010
      %4012 = vdwg.mxu0
      %v4013 = vpack.c.bf16 %v4004, %v4004
      %v4014 = vpack.c.bf16 %v4006, %v4006
      %v4015 = vpack.c.bf16 %v4009, %v4009
      %v4016 = vpack.c.bf16 %v4011, %v4011
      %4017 = vst.msk [vmem:[#allocation4 + $0x90] sm:$0xf] %vm590, %v4013
      %4018 = vst.msk [vmem:[#allocation4 + $0x94] sm:$0xf] %vm590, %v4014
      %4019 = vst.msk [vmem:[#allocation4 + $0x98] sm:$0xf] %vm590, %v4015
      %4020 = vst.msk [vmem:[#allocation4 + $0x9c] sm:$0xf] %vm590, %v4016
      %v4021 = vld [vmem:[#allocation4] sm:$0xf]
      %v4022 = vld [vmem:[#allocation4 + $0x4] sm:$0xf]
      %v4023 = vld [vmem:[#allocation4 + $0x8] sm:$0xf]
      %v4024 = vld [vmem:[#allocation4 + $0xc] sm:$0xf]
      %v4025 = vld [vmem:[#allocation4 + $0x10] sm:$0xf]
      %v4026 = vld [vmem:[#allocation4 + $0x14] sm:$0xf]
      %v4027 = vld [vmem:[#allocation4 + $0x18] sm:$0xf]
      %v4028 = vld [vmem:[#allocation4 + $0x1c] sm:$0xf]
      %v4029 = vld [vmem:[#allocation4 + $0x20] sm:$0xf]
      %v4030 = vld [vmem:[#allocation4 + $0x24] sm:$0xf]
      %v4031 = vld [vmem:[#allocation4 + $0x28] sm:$0xf]
      %v4032 = vld [vmem:[#allocation4 + $0x2c] sm:$0xf]
      %v4033 = vld [vmem:[#allocation4 + $0x30] sm:$0xf]
      %v4034 = vld [vmem:[#allocation4 + $0x34] sm:$0xf]
      %v4035 = vld [vmem:[#allocation4 + $0x38] sm:$0xf]
      %v4036 = vld [vmem:[#allocation4 + $0x3c] sm:$0xf]
      %v4037 = vld [vmem:[#allocation4 + $0x40] sm:$0xf]
      %v4038 = vld [vmem:[#allocation4 + $0x44] sm:$0xf]
      %v4039 = vld [vmem:[#allocation4 + $0x48] sm:$0xf]
      %v4040 = vld [vmem:[#allocation4 + $0x4c] sm:$0xf]
      %v4041 = vld [vmem:[#allocation4 + $0x50] sm:$0xf]
      %v4042 = vld [vmem:[#allocation4 + $0x54] sm:$0xf]
      %v4043 = vld [vmem:[#allocation4 + $0x58] sm:$0xf]
      %v4044 = vld [vmem:[#allocation4 + $0x5c] sm:$0xf]
      %v4045 = vld [vmem:[#allocation4 + $0x60] sm:$0xf]
      %v4046 = vld [vmem:[#allocation4 + $0x64] sm:$0xf]
      %v4047 = vld [vmem:[#allocation4 + $0x68] sm:$0xf]
      %v4048 = vld [vmem:[#allocation4 + $0x6c] sm:$0xf]
      %v4049 = vld [vmem:[#allocation4 + $0x70] sm:$0xf]
      %v4050 = vld [vmem:[#allocation4 + $0x74] sm:$0xf]
      %v4051 = vld [vmem:[#allocation4 + $0x78] sm:$0xf]
      %v4052 = vld [vmem:[#allocation4 + $0x7c] sm:$0xf]
      %s4053 = scalar_lea.vmem %s564, 18
      %v4054 = vld [vmem:[%s4053] sm:$0x3]
      %v4087 = vunpack.c.l.b16 %v4021
      %v4088 = vunpack.c.l.b16 %v4022
      %v4089 = vunpack.c.l.b16 %v4023
      %v4090 = vunpack.c.l.b16 %v4024
      %v4091 = vunpack.c.l.b16 %v4025
      %v4092 = vunpack.c.l.b16 %v4026
      %v4093 = vunpack.c.l.b16 %v4027
      %v4094 = vunpack.c.l.b16 %v4028
      %v4095 = vunpack.c.l.b16 %v4029
      %v4096 = vunpack.c.l.b16 %v4030
      %v4097 = vunpack.c.l.b16 %v4031
      %v4098 = vunpack.c.l.b16 %v4032
      %v4099 = vunpack.c.l.b16 %v4033
      %v4100 = vunpack.c.l.b16 %v4034
      %v4101 = vunpack.c.l.b16 %v4035
      %v4102 = vunpack.c.l.b16 %v4036
      %v4103 = vunpack.c.l.b16 %v4037
      %v4104 = vunpack.c.l.b16 %v4038
      %v4105 = vunpack.c.l.b16 %v4039
      %v4106 = vunpack.c.l.b16 %v4040
      %v4107 = vunpack.c.l.b16 %v4041
      %v4108 = vunpack.c.l.b16 %v4042
      %v4109 = vunpack.c.l.b16 %v4043
      %v4110 = vunpack.c.l.b16 %v4044
      %v4111 = vunpack.c.l.b16 %v4045
      %v4112 = vunpack.c.l.b16 %v4046
      %v4113 = vunpack.c.l.b16 %v4047
      %v4114 = vunpack.c.l.b16 %v4048
      %v4115 = vunpack.c.l.b16 %v4049
      %v4116 = vunpack.c.l.b16 %v4050
      %v4117 = vunpack.c.l.b16 %v4051
      %v4118 = vunpack.c.l.b16 %v4052
      %v4119 = vpack.c.b16 %v4088, %v4087
      %v4120 = vpack.c.b16 %v4090, %v4089
      %v4121 = vpack.c.b16 %v4092, %v4091
      %v4122 = vpack.c.b16 %v4094, %v4093
      %v4123 = vpack.c.b16 %v4096, %v4095
      %v4124 = vpack.c.b16 %v4098, %v4097
      %v4125 = vpack.c.b16 %v4100, %v4099
      %v4126 = vpack.c.b16 %v4102, %v4101
      %v4127 = vpack.c.b16 %v4104, %v4103
      %v4128 = vpack.c.b16 %v4106, %v4105
      %v4129 = vpack.c.b16 %v4108, %v4107
      %v4130 = vpack.c.b16 %v4110, %v4109
      %v4131 = vpack.c.b16 %v4112, %v4111
      %v4132 = vpack.c.b16 %v4114, %v4113
      %v4133 = vpack.c.b16 %v4116, %v4115
      %v4134 = vpack.c.b16 %v4118, %v4117
      %v4136 = vsel %vm895, %v4119, 0
      %v4139 = vsel %vm895, %v4120, 0
      %v4142 = vsel %vm895, %v4121, 0
      %v4145 = vsel %vm895, %v4122, 0
      %v4148 = vsel %vm895, %v4123, 0
      %v4151 = vsel %vm895, %v4124, 0
      %v4154 = vsel %vm895, %v4125, 0
      %v4157 = vsel %vm895, %v4126, 0
      %v4160 = vsel %vm895, %v4127, 0
      %v4163 = vsel %vm895, %v4128, 0
      %v4166 = vsel %vm895, %v4129, 0
      %v4169 = vsel %vm895, %v4130, 0
      %v4172 = vsel %vm895, %v4131, 0
      %v4175 = vsel %vm895, %v4132, 0
      %v4178 = vsel %vm895, %v4133, 0
      %v4181 = vsel %vm895, %v4134, 0
      %v4184 = vsel %vm944, %v4054, 0
      %4186 = vmatpush.bf16.msra.mxu0 0
      %4187 = vmatpush.bf16.msra.mxu0 0
      %4188 = vmatpush.bf16.msra.mxu0 0
      %4189 = vmatpush.bf16.msra.mxu0 0
      %4190 = vmatpush.bf16.msra.mxu0 0
      %4191 = vmatpush.bf16.msra.mxu0 0
      %4192 = vmatpush.bf16.msra.mxu0 0
      %4193 = vmatpush.bf16.msra.mxu0 %v4184
      %4194 = vmatmul.bf16.gmra.mxu0 %v4136
      %v4195 = vpop.f32.mrf.mxu0
      %v4196 = vadd.f32 0.0, %v4195
      %v4197 = vpop.f32.mrf.mxu0
      %v4198 = vadd.f32 0.0, %v4197
      %4199 = vmatmul.bf16.gmra.mxu0 %v4139
      %v4200 = vpop.f32.mrf.mxu0
      %v4201 = vpop.f32.mrf.mxu0
      %4202 = vmatmul.bf16.gmra.mxu0 %v4142
      %v4203 = vpop.f32.mrf.mxu0
      %v4204 = vadd.f32 0.0, %v4203
      %v4205 = vpop.f32.mrf.mxu0
      %v4206 = vadd.f32 0.0, %v4205
      %4207 = vmatmul.bf16.gmra.mxu0 %v4145
      %v4208 = vpop.f32.mrf.mxu0
      %v4209 = vpop.f32.mrf.mxu0
      %4210 = vmatmul.bf16.gmra.mxu0 %v4148
      %v4211 = vpop.f32.mrf.mxu0
      %v4212 = vadd.f32 0.0, %v4211
      %v4213 = vpop.f32.mrf.mxu0
      %v4214 = vadd.f32 0.0, %v4213
      %4215 = vmatmul.bf16.gmra.mxu0 %v4151
      %v4216 = vpop.f32.mrf.mxu0
      %v4217 = vpop.f32.mrf.mxu0
      %4218 = vmatmul.bf16.gmra.mxu0 %v4154
      %v4219 = vpop.f32.mrf.mxu0
      %v4220 = vadd.f32 0.0, %v4219
      %v4221 = vpop.f32.mrf.mxu0
      %v4222 = vadd.f32 0.0, %v4221
      %4223 = vmatmul.bf16.gmra.mxu0 %v4157
      %v4224 = vpop.f32.mrf.mxu0
      %v4225 = vpop.f32.mrf.mxu0
      %4226 = vmatmul.bf16.gmra.mxu0 %v4160
      %v4227 = vpop.f32.mrf.mxu0
      %v4228 = vadd.f32 0.0, %v4227
      %v4229 = vpop.f32.mrf.mxu0
      %v4230 = vadd.f32 0.0, %v4229
      %4231 = vmatmul.bf16.gmra.mxu0 %v4163
      %v4232 = vpop.f32.mrf.mxu0
      %v4233 = vpop.f32.mrf.mxu0
      %4234 = vmatmul.bf16.gmra.mxu0 %v4166
      %v4235 = vpop.f32.mrf.mxu0
      %v4236 = vadd.f32 0.0, %v4235
      %v4237 = vpop.f32.mrf.mxu0
      %v4238 = vadd.f32 0.0, %v4237
      %4239 = vmatmul.bf16.gmra.mxu0 %v4169
      %v4240 = vpop.f32.mrf.mxu0
      %v4241 = vpop.f32.mrf.mxu0
      %4242 = vmatmul.bf16.gmra.mxu0 %v4172
      %v4243 = vpop.f32.mrf.mxu0
      %v4244 = vadd.f32 0.0, %v4243
      %v4245 = vpop.f32.mrf.mxu0
      %v4246 = vadd.f32 0.0, %v4245
      %4247 = vmatmul.bf16.gmra.mxu0 %v4175
      %v4248 = vpop.f32.mrf.mxu0
      %v4249 = vpop.f32.mrf.mxu0
      %4250 = vmatmul.bf16.gmra.mxu0 %v4178
      %v4251 = vpop.f32.mrf.mxu0
      %v4252 = vadd.f32 0.0, %v4251
      %v4253 = vpop.f32.mrf.mxu0
      %v4254 = vadd.f32 0.0, %v4253
      %4255 = vmatmul.bf16.gmra.mxu0 %v4181
      %v4256 = vpop.f32.mrf.mxu0
      %v4257 = vpop.f32.mrf.mxu0
      %4258 = vdwg.mxu0
      %v4259 = vadd.f32 %v3444, %v4196
      %v4260 = vadd.f32 %v3445, %v4198
      %v4261 = vadd.f32 %v3446, %v4204
      %v4262 = vadd.f32 %v3447, %v4206
      %v4263 = vadd.f32 %v3448, %v4212
      %v4264 = vadd.f32 %v3449, %v4214
      %v4265 = vadd.f32 %v3450, %v4220
      %v4266 = vadd.f32 %v3451, %v4222
      %v4267 = vadd.f32 %v3452, %v4228
      %v4268 = vadd.f32 %v3453, %v4230
      %v4269 = vadd.f32 %v3454, %v4236
      %v4270 = vadd.f32 %v3455, %v4238
      %v4271 = vadd.f32 %v3456, %v4244
      %v4272 = vadd.f32 %v3457, %v4246
      %v4273 = vadd.f32 %v3458, %v4252
      %v4274 = vadd.f32 %v3459, %v4254
      %s4275 = scalar_lea.vmem %s564, 20
      %v4276 = vld [vmem:[%s4275] sm:$0x3]
      %v4278 = vsel %vm944, %v4276, 0
      %4280 = vmatpush.bf16.msra.mxu0 0
      %4281 = vmatpush.bf16.msra.mxu0 0
      %4282 = vmatpush.bf16.msra.mxu0 0
      %4283 = vmatpush.bf16.msra.mxu0 0
      %4284 = vmatpush.bf16.msra.mxu0 0
      %4285 = vmatpush.bf16.msra.mxu0 0
      %4286 = vmatpush.bf16.msra.mxu0 0
      %4287 = vmatpush.bf16.msra.mxu0 %v4278
      %4288 = vmatmul.bf16.gmra.mxu0 %v4136
      %v4289 = vpop.f32.mrf.mxu0
      %v4290 = vadd.f32 0.0, %v4289
      %v4291 = vpop.f32.mrf.mxu0
      %v4292 = vadd.f32 0.0, %v4291
      %4293 = vmatmul.bf16.gmra.mxu0 %v4139
      %v4294 = vpop.f32.mrf.mxu0
      %v4295 = vadd.f32 0.0, %v4294
      %v4296 = vpop.f32.mrf.mxu0
      %4297 = vmatmul.bf16.gmra.mxu0 %v4142
      %v4298 = vpop.f32.mrf.mxu0
      %v4299 = vadd.f32 0.0, %v4298
      %v4300 = vpop.f32.mrf.mxu0
      %v4301 = vadd.f32 0.0, %v4300
      %4302 = vmatmul.bf16.gmra.mxu0 %v4145
      %v4303 = vpop.f32.mrf.mxu0
      %v4304 = vadd.f32 0.0, %v4303
      %v4305 = vpop.f32.mrf.mxu0
      %4306 = vmatmul.bf16.gmra.mxu0 %v4148
      %v4307 = vpop.f32.mrf.mxu0
      %v4308 = vadd.f32 0.0, %v4307
      %v4309 = vpop.f32.mrf.mxu0
      %v4310 = vadd.f32 0.0, %v4309
      %4311 = vmatmul.bf16.gmra.mxu0 %v4151
      %v4312 = vpop.f32.mrf.mxu0
      %v4313 = vadd.f32 0.0, %v4312
      %v4314 = vpop.f32.mrf.mxu0
      %4315 = vmatmul.bf16.gmra.mxu0 %v4154
      %v4316 = vpop.f32.mrf.mxu0
      %v4317 = vadd.f32 0.0, %v4316
      %v4318 = vpop.f32.mrf.mxu0
      %v4319 = vadd.f32 0.0, %v4318
      %4320 = vmatmul.bf16.gmra.mxu0 %v4157
      %v4321 = vpop.f32.mrf.mxu0
      %v4322 = vadd.f32 0.0, %v4321
      %v4323 = vpop.f32.mrf.mxu0
      %4324 = vmatmul.bf16.gmra.mxu0 %v4160
      %v4325 = vpop.f32.mrf.mxu0
      %v4326 = vadd.f32 0.0, %v4325
      %v4327 = vpop.f32.mrf.mxu0
      %v4328 = vadd.f32 0.0, %v4327
      %4329 = vmatmul.bf16.gmra.mxu0 %v4163
      %v4330 = vpop.f32.mrf.mxu0
      %v4331 = vadd.f32 0.0, %v4330
      %v4332 = vpop.f32.mrf.mxu0
      %4333 = vmatmul.bf16.gmra.mxu0 %v4166
      %v4334 = vpop.f32.mrf.mxu0
      %v4335 = vadd.f32 0.0, %v4334
      %v4336 = vpop.f32.mrf.mxu0
      %v4337 = vadd.f32 0.0, %v4336
      %4338 = vmatmul.bf16.gmra.mxu0 %v4169
      %v4339 = vpop.f32.mrf.mxu0
      %v4340 = vadd.f32 0.0, %v4339
      %v4341 = vpop.f32.mrf.mxu0
      %4342 = vmatmul.bf16.gmra.mxu0 %v4172
      %v4343 = vpop.f32.mrf.mxu0
      %v4344 = vadd.f32 0.0, %v4343
      %v4345 = vpop.f32.mrf.mxu0
      %v4346 = vadd.f32 0.0, %v4345
      %4347 = vmatmul.bf16.gmra.mxu0 %v4175
      %v4348 = vpop.f32.mrf.mxu0
      %v4349 = vadd.f32 0.0, %v4348
      %v4350 = vpop.f32.mrf.mxu0
      %4351 = vmatmul.bf16.gmra.mxu0 %v4178
      %v4352 = vpop.f32.mrf.mxu0
      %v4353 = vadd.f32 0.0, %v4352
      %v4354 = vpop.f32.mrf.mxu0
      %v4355 = vadd.f32 0.0, %v4354
      %4356 = vmatmul.bf16.gmra.mxu0 %v4181
      %v4357 = vpop.f32.mrf.mxu0
      %v4358 = vadd.f32 0.0, %v4357
      %v4359 = vpop.f32.mrf.mxu0
      %4360 = vdwg.mxu0
      %v4361 = vadd.f32 %v3546, %v4290
      %v4362 = vadd.f32 %v3547, %v4292
      %v4363 = vadd.f32 %v3548, %v4295
      %v4364 = vadd.f32 %v3549, %v4299
      %v4365 = vadd.f32 %v3550, %v4301
      %v4366 = vadd.f32 %v3551, %v4304
      %v4367 = vadd.f32 %v3552, %v4308
      %v4368 = vadd.f32 %v3553, %v4310
      %v4369 = vadd.f32 %v3554, %v4313
      %v4370 = vadd.f32 %v3555, %v4317
      %v4371 = vadd.f32 %v3556, %v4319
      %v4372 = vadd.f32 %v3557, %v4322
      %v4373 = vadd.f32 %v3558, %v4326
      %v4374 = vadd.f32 %v3559, %v4328
      %v4375 = vadd.f32 %v3560, %v4331
      %v4376 = vadd.f32 %v3561, %v4335
      %v4377 = vadd.f32 %v3562, %v4337
      %v4378 = vadd.f32 %v3563, %v4340
      %v4379 = vadd.f32 %v3564, %v4344
      %v4380 = vadd.f32 %v3565, %v4346
      %v4381 = vadd.f32 %v3566, %v4349
      %v4382 = vadd.f32 %v3567, %v4353
      %v4383 = vadd.f32 %v3568, %v4355
      %v4384 = vadd.f32 %v3569, %v4358
      %s4385 = scalar_lea.vmem %s564, 22
      %v4386 = vld [vmem:[%s4385] sm:$0x3]
      %v4388 = vsel %vm944, %v4386, 0
      %4390 = vmatpush.bf16.msra.mxu0 0
      %4391 = vmatpush.bf16.msra.mxu0 0
      %4392 = vmatpush.bf16.msra.mxu0 0
      %4393 = vmatpush.bf16.msra.mxu0 0
      %4394 = vmatpush.bf16.msra.mxu0 0
      %4395 = vmatpush.bf16.msra.mxu0 0
      %4396 = vmatpush.bf16.msra.mxu0 0
      %4397 = vmatpush.bf16.msra.mxu0 %v4388
      %4398 = vmatmul.bf16.gmra.mxu0 %v4136
      %v4399 = vpop.f32.mrf.mxu0
      %v4400 = vadd.f32 0.0, %v4399
      %v4401 = vpop.f32.mrf.mxu0
      %v4402 = vadd.f32 0.0, %v4401
      %4403 = vmatmul.bf16.gmra.mxu0 %v4139
      %v4404 = vpop.f32.mrf.mxu0
      %v4405 = vadd.f32 0.0, %v4404
      %v4406 = vpop.f32.mrf.mxu0
      %4407 = vmatmul.bf16.gmra.mxu0 %v4142
      %v4408 = vpop.f32.mrf.mxu0
      %v4409 = vadd.f32 0.0, %v4408
      %v4410 = vpop.f32.mrf.mxu0
      %v4411 = vadd.f32 0.0, %v4410
      %4412 = vmatmul.bf16.gmra.mxu0 %v4145
      %v4413 = vpop.f32.mrf.mxu0
      %v4414 = vadd.f32 0.0, %v4413
      %v4415 = vpop.f32.mrf.mxu0
      %4416 = vmatmul.bf16.gmra.mxu0 %v4148
      %v4417 = vpop.f32.mrf.mxu0
      %v4418 = vadd.f32 0.0, %v4417
      %v4419 = vpop.f32.mrf.mxu0
      %v4420 = vadd.f32 0.0, %v4419
      %4421 = vmatmul.bf16.gmra.mxu0 %v4151
      %v4422 = vpop.f32.mrf.mxu0
      %v4423 = vadd.f32 0.0, %v4422
      %v4424 = vpop.f32.mrf.mxu0
      %4425 = vmatmul.bf16.gmra.mxu0 %v4154
      %v4426 = vpop.f32.mrf.mxu0
      %v4427 = vadd.f32 0.0, %v4426
      %v4428 = vpop.f32.mrf.mxu0
      %v4429 = vadd.f32 0.0, %v4428
      %4430 = vmatmul.bf16.gmra.mxu0 %v4157
      %v4431 = vpop.f32.mrf.mxu0
      %v4432 = vadd.f32 0.0, %v4431
      %v4433 = vpop.f32.mrf.mxu0
      %4434 = vmatmul.bf16.gmra.mxu0 %v4160
      %v4435 = vpop.f32.mrf.mxu0
      %v4436 = vadd.f32 0.0, %v4435
      %v4437 = vpop.f32.mrf.mxu0
      %v4438 = vadd.f32 0.0, %v4437
      %4439 = vmatmul.bf16.gmra.mxu0 %v4163
      %v4440 = vpop.f32.mrf.mxu0
      %v4441 = vadd.f32 0.0, %v4440
      %v4442 = vpop.f32.mrf.mxu0
      %4443 = vmatmul.bf16.gmra.mxu0 %v4166
      %v4444 = vpop.f32.mrf.mxu0
      %v4445 = vadd.f32 0.0, %v4444
      %v4446 = vpop.f32.mrf.mxu0
      %v4447 = vadd.f32 0.0, %v4446
      %4448 = vmatmul.bf16.gmra.mxu0 %v4169
      %v4449 = vpop.f32.mrf.mxu0
      %v4450 = vadd.f32 0.0, %v4449
      %v4451 = vpop.f32.mrf.mxu0
      %4452 = vmatmul.bf16.gmra.mxu0 %v4172
      %v4453 = vpop.f32.mrf.mxu0
      %v4454 = vadd.f32 0.0, %v4453
      %v4455 = vpop.f32.mrf.mxu0
      %v4456 = vadd.f32 0.0, %v4455
      %4457 = vmatmul.bf16.gmra.mxu0 %v4175
      %v4458 = vpop.f32.mrf.mxu0
      %v4459 = vadd.f32 0.0, %v4458
      %v4460 = vpop.f32.mrf.mxu0
      %4461 = vmatmul.bf16.gmra.mxu0 %v4178
      %v4462 = vpop.f32.mrf.mxu0
      %v4463 = vadd.f32 0.0, %v4462
      %v4464 = vpop.f32.mrf.mxu0
      %v4465 = vadd.f32 0.0, %v4464
      %4466 = vmatmul.bf16.gmra.mxu0 %v4181
      %v4467 = vpop.f32.mrf.mxu0
      %v4468 = vadd.f32 0.0, %v4467
      %v4469 = vpop.f32.mrf.mxu0
      %4470 = vdwg.mxu0
      %v4471 = vadd.f32 %v3656, %v4400
      %v4472 = vadd.f32 %v3657, %v4402
      %v4473 = vadd.f32 %v3658, %v4405
      %v4474 = vadd.f32 %v3659, %v4409
      %v4475 = vadd.f32 %v3660, %v4411
      %v4476 = vadd.f32 %v3661, %v4414
      %v4477 = vadd.f32 %v3662, %v4418
      %v4478 = vadd.f32 %v3663, %v4420
      %v4479 = vadd.f32 %v3664, %v4423
      %v4480 = vadd.f32 %v3665, %v4427
      %v4481 = vadd.f32 %v3666, %v4429
      %v4482 = vadd.f32 %v3667, %v4432
      %v4483 = vadd.f32 %v3668, %v4436
      %v4484 = vadd.f32 %v3669, %v4438
      %v4485 = vadd.f32 %v3670, %v4441
      %v4486 = vadd.f32 %v3671, %v4445
      %v4487 = vadd.f32 %v3672, %v4447
      %v4488 = vadd.f32 %v3673, %v4450
      %v4489 = vadd.f32 %v3674, %v4454
      %v4490 = vadd.f32 %v3675, %v4456
      %v4491 = vadd.f32 %v3676, %v4459
      %v4492 = vadd.f32 %v3677, %v4463
      %v4493 = vadd.f32 %v3678, %v4465
      %v4494 = vadd.f32 %v3679, %v4468
      %v4495 = vld [vmem:[#allocation4 + $0x10] sm:$0xf]
      %v4496 = vld [vmem:[#allocation4 + $0x14] sm:$0xf]
      %v4497 = vld [vmem:[#allocation4 + $0x18] sm:$0xf]
      %v4498 = vld [vmem:[#allocation4 + $0x1c] sm:$0xf]
      %v4499 = vld [vmem:[#allocation4 + $0x20] sm:$0xf]
      %v4500 = vld [vmem:[#allocation4 + $0x24] sm:$0xf]
      %v4501 = vld [vmem:[#allocation4 + $0x28] sm:$0xf]
      %v4502 = vld [vmem:[#allocation4 + $0x2c] sm:$0xf]
      %v4503 = vld [vmem:[#allocation4 + $0x30] sm:$0xf]
      %v4504 = vld [vmem:[#allocation4 + $0x34] sm:$0xf]
      %v4505 = vld [vmem:[#allocation4 + $0x38] sm:$0xf]
      %v4506 = vld [vmem:[#allocation4 + $0x3c] sm:$0xf]
      %v4507 = vld [vmem:[#allocation4 + $0x40] sm:$0xf]
      %v4508 = vld [vmem:[#allocation4 + $0x44] sm:$0xf]
      %v4509 = vld [vmem:[#allocation4 + $0x48] sm:$0xf]
      %v4510 = vld [vmem:[#allocation4 + $0x4c] sm:$0xf]
      %v4511 = vld [vmem:[#allocation4 + $0x50] sm:$0xf]
      %v4512 = vld [vmem:[#allocation4 + $0x54] sm:$0xf]
      %v4513 = vld [vmem:[#allocation4 + $0x58] sm:$0xf]
      %v4514 = vld [vmem:[#allocation4 + $0x5c] sm:$0xf]
      %v4515 = vld [vmem:[#allocation4 + $0x60] sm:$0xf]
      %v4516 = vld [vmem:[#allocation4 + $0x64] sm:$0xf]
      %v4517 = vld [vmem:[#allocation4 + $0x68] sm:$0xf]
      %v4518 = vld [vmem:[#allocation4 + $0x6c] sm:$0xf]
      %v4519 = vld [vmem:[#allocation4 + $0x70] sm:$0xf]
      %v4520 = vld [vmem:[#allocation4 + $0x74] sm:$0xf]
      %v4521 = vld [vmem:[#allocation4 + $0x78] sm:$0xf]
      %v4522 = vld [vmem:[#allocation4 + $0x7c] sm:$0xf]
      %v4523 = vld [vmem:[#allocation4 + $0x80] sm:$0xf]
      %v4524 = vld [vmem:[#allocation4 + $0x84] sm:$0xf]
      %v4525 = vld [vmem:[#allocation4 + $0x88] sm:$0xf]
      %v4526 = vld [vmem:[#allocation4 + $0x8c] sm:$0xf]
      %s4527 = scalar_lea.vmem %s564, 24
      %v4528 = vld [vmem:[%s4527] sm:$0x3]
      %v4561 = vunpack.c.l.b16 %v4495
      %v4562 = vunpack.c.l.b16 %v4496
      %v4563 = vunpack.c.l.b16 %v4497
      %v4564 = vunpack.c.l.b16 %v4498
      %v4565 = vunpack.c.l.b16 %v4499
      %v4566 = vunpack.c.l.b16 %v4500
      %v4567 = vunpack.c.l.b16 %v4501
      %v4568 = vunpack.c.l.b16 %v4502
      %v4569 = vunpack.c.l.b16 %v4503
      %v4570 = vunpack.c.l.b16 %v4504
      %v4571 = vunpack.c.l.b16 %v4505
      %v4572 = vunpack.c.l.b16 %v4506
      %v4573 = vunpack.c.l.b16 %v4507
      %v4574 = vunpack.c.l.b16 %v4508
      %v4575 = vunpack.c.l.b16 %v4509
      %v4576 = vunpack.c.l.b16 %v4510
      %v4577 = vunpack.c.l.b16 %v4511
      %v4578 = vunpack.c.l.b16 %v4512
      %v4579 = vunpack.c.l.b16 %v4513
      %v4580 = vunpack.c.l.b16 %v4514
      %v4581 = vunpack.c.l.b16 %v4515
      %v4582 = vunpack.c.l.b16 %v4516
      %v4583 = vunpack.c.l.b16 %v4517
      %v4584 = vunpack.c.l.b16 %v4518
      %v4585 = vunpack.c.l.b16 %v4519
      %v4586 = vunpack.c.l.b16 %v4520
      %v4587 = vunpack.c.l.b16 %v4521
      %v4588 = vunpack.c.l.b16 %v4522
      %v4589 = vunpack.c.l.b16 %v4523
      %v4590 = vunpack.c.l.b16 %v4524
      %v4591 = vunpack.c.l.b16 %v4525
      %v4592 = vunpack.c.l.b16 %v4526
      %v4593 = vpack.c.b16 %v4562, %v4561
      %v4594 = vpack.c.b16 %v4564, %v4563
      %v4595 = vpack.c.b16 %v4566, %v4565
      %v4596 = vpack.c.b16 %v4568, %v4567
      %v4597 = vpack.c.b16 %v4570, %v4569
      %v4598 = vpack.c.b16 %v4572, %v4571
      %v4599 = vpack.c.b16 %v4574, %v4573
      %v4600 = vpack.c.b16 %v4576, %v4575
      %v4601 = vpack.c.b16 %v4578, %v4577
      %v4602 = vpack.c.b16 %v4580, %v4579
      %v4603 = vpack.c.b16 %v4582, %v4581
      %v4604 = vpack.c.b16 %v4584, %v4583
      %v4605 = vpack.c.b16 %v4586, %v4585
      %v4606 = vpack.c.b16 %v4588, %v4587
      %v4607 = vpack.c.b16 %v4590, %v4589
      %v4608 = vpack.c.b16 %v4592, %v4591
      %v4610 = vsel %vm895, %v4593, 0
      %v4613 = vsel %vm895, %v4594, 0
      %v4616 = vsel %vm895, %v4595, 0
      %v4619 = vsel %vm895, %v4596, 0
      %v4622 = vsel %vm895, %v4597, 0
      %v4625 = vsel %vm895, %v4598, 0
      %v4628 = vsel %vm895, %v4599, 0
      %v4631 = vsel %vm895, %v4600, 0
      %v4634 = vsel %vm895, %v4601, 0
      %v4637 = vsel %vm895, %v4602, 0
      %v4640 = vsel %vm895, %v4603, 0
      %v4643 = vsel %vm895, %v4604, 0
      %v4646 = vsel %vm895, %v4605, 0
      %v4649 = vsel %vm895, %v4606, 0
      %v4652 = vsel %vm895, %v4607, 0
      %v4655 = vsel %vm895, %v4608, 0
      %v4658 = vsel %vm944, %v4528, 0
      %4660 = vmatpush.bf16.msra.mxu0 0
      %4661 = vmatpush.bf16.msra.mxu0 0
      %4662 = vmatpush.bf16.msra.mxu0 0
      %4663 = vmatpush.bf16.msra.mxu0 0
      %4664 = vmatpush.bf16.msra.mxu0 0
      %4665 = vmatpush.bf16.msra.mxu0 0
      %4666 = vmatpush.bf16.msra.mxu0 0
      %4667 = vmatpush.bf16.msra.mxu0 %v4658
      %4668 = vmatmul.bf16.gmra.mxu0 %v4610
      %v4669 = vpop.f32.mrf.mxu0
      %v4670 = vadd.f32 0.0, %v4669
      %v4671 = vpop.f32.mrf.mxu0
      %v4672 = vadd.f32 0.0, %v4671
      %4673 = vmatmul.bf16.gmra.mxu0 %v4613
      %v4674 = vpop.f32.mrf.mxu0
      %v4675 = vpop.f32.mrf.mxu0
      %4676 = vmatmul.bf16.gmra.mxu0 %v4616
      %v4677 = vpop.f32.mrf.mxu0
      %v4678 = vadd.f32 0.0, %v4677
      %v4679 = vpop.f32.mrf.mxu0
      %v4680 = vadd.f32 0.0, %v4679
      %4681 = vmatmul.bf16.gmra.mxu0 %v4619
      %v4682 = vpop.f32.mrf.mxu0
      %v4683 = vpop.f32.mrf.mxu0
      %4684 = vmatmul.bf16.gmra.mxu0 %v4622
      %v4685 = vpop.f32.mrf.mxu0
      %v4686 = vadd.f32 0.0, %v4685
      %v4687 = vpop.f32.mrf.mxu0
      %v4688 = vadd.f32 0.0, %v4687
      %4689 = vmatmul.bf16.gmra.mxu0 %v4625
      %v4690 = vpop.f32.mrf.mxu0
      %v4691 = vpop.f32.mrf.mxu0
      %4692 = vmatmul.bf16.gmra.mxu0 %v4628
      %v4693 = vpop.f32.mrf.mxu0
      %v4694 = vadd.f32 0.0, %v4693
      %v4695 = vpop.f32.mrf.mxu0
      %v4696 = vadd.f32 0.0, %v4695
      %4697 = vmatmul.bf16.gmra.mxu0 %v4631
      %v4698 = vpop.f32.mrf.mxu0
      %v4699 = vpop.f32.mrf.mxu0
      %4700 = vmatmul.bf16.gmra.mxu0 %v4634
      %v4701 = vpop.f32.mrf.mxu0
      %v4702 = vadd.f32 0.0, %v4701
      %v4703 = vpop.f32.mrf.mxu0
      %v4704 = vadd.f32 0.0, %v4703
      %4705 = vmatmul.bf16.gmra.mxu0 %v4637
      %v4706 = vpop.f32.mrf.mxu0
      %v4707 = vpop.f32.mrf.mxu0
      %4708 = vmatmul.bf16.gmra.mxu0 %v4640
      %v4709 = vpop.f32.mrf.mxu0
      %v4710 = vadd.f32 0.0, %v4709
      %v4711 = vpop.f32.mrf.mxu0
      %v4712 = vadd.f32 0.0, %v4711
      %4713 = vmatmul.bf16.gmra.mxu0 %v4643
      %v4714 = vpop.f32.mrf.mxu0
      %v4715 = vpop.f32.mrf.mxu0
      %4716 = vmatmul.bf16.gmra.mxu0 %v4646
      %v4717 = vpop.f32.mrf.mxu0
      %v4718 = vadd.f32 0.0, %v4717
      %v4719 = vpop.f32.mrf.mxu0
      %v4720 = vadd.f32 0.0, %v4719
      %4721 = vmatmul.bf16.gmra.mxu0 %v4649
      %v4722 = vpop.f32.mrf.mxu0
      %v4723 = vpop.f32.mrf.mxu0
      %4724 = vmatmul.bf16.gmra.mxu0 %v4652
      %v4725 = vpop.f32.mrf.mxu0
      %v4726 = vadd.f32 0.0, %v4725
      %v4727 = vpop.f32.mrf.mxu0
      %v4728 = vadd.f32 0.0, %v4727
      %4729 = vmatmul.bf16.gmra.mxu0 %v4655
      %v4730 = vpop.f32.mrf.mxu0
      %v4731 = vpop.f32.mrf.mxu0
      %4732 = vdwg.mxu0
      %v4733 = vadd.f32 %v4259, %v4670
      %v4734 = vadd.f32 %v4260, %v4672
      %v4735 = vadd.f32 %v4261, %v4678
      %v4736 = vadd.f32 %v4262, %v4680
      %v4737 = vadd.f32 %v4263, %v4686
      %v4738 = vadd.f32 %v4264, %v4688
      %v4739 = vadd.f32 %v4265, %v4694
      %v4740 = vadd.f32 %v4266, %v4696
      %v4741 = vadd.f32 %v4267, %v4702
      %v4742 = vadd.f32 %v4268, %v4704
      %v4743 = vadd.f32 %v4269, %v4710
      %v4744 = vadd.f32 %v4270, %v4712
      %v4745 = vadd.f32 %v4271, %v4718
      %v4746 = vadd.f32 %v4272, %v4720
      %v4747 = vadd.f32 %v4273, %v4726
      %v4748 = vadd.f32 %v4274, %v4728
      %s4749 = scalar_lea.vmem %s564, 26
      %v4750 = vld [vmem:[%s4749] sm:$0x3]
      %v4752 = vsel %vm944, %v4750, 0
      %4754 = vmatpush.bf16.msra.mxu0 0
      %4755 = vmatpush.bf16.msra.mxu0 0
      %4756 = vmatpush.bf16.msra.mxu0 0
      %4757 = vmatpush.bf16.msra.mxu0 0
      %4758 = vmatpush.bf16.msra.mxu0 0
      %4759 = vmatpush.bf16.msra.mxu0 0
      %4760 = vmatpush.bf16.msra.mxu0 0
      %4761 = vmatpush.bf16.msra.mxu0 %v4752
      %4762 = vmatmul.bf16.gmra.mxu0 %v4610
      %v4763 = vpop.f32.mrf.mxu0
      %v4764 = vadd.f32 0.0, %v4763
      %v4765 = vpop.f32.mrf.mxu0
      %v4766 = vadd.f32 0.0, %v4765
      %4767 = vmatmul.bf16.gmra.mxu0 %v4613
      %v4768 = vpop.f32.mrf.mxu0
      %v4769 = vadd.f32 0.0, %v4768
      %v4770 = vpop.f32.mrf.mxu0
      %4771 = vmatmul.bf16.gmra.mxu0 %v4616
      %v4772 = vpop.f32.mrf.mxu0
      %v4773 = vadd.f32 0.0, %v4772
      %v4774 = vpop.f32.mrf.mxu0
      %v4775 = vadd.f32 0.0, %v4774
      %4776 = vmatmul.bf16.gmra.mxu0 %v4619
      %v4777 = vpop.f32.mrf.mxu0
      %v4778 = vadd.f32 0.0, %v4777
      %v4779 = vpop.f32.mrf.mxu0
      %4780 = vmatmul.bf16.gmra.mxu0 %v4622
      %v4781 = vpop.f32.mrf.mxu0
      %v4782 = vadd.f32 0.0, %v4781
      %v4783 = vpop.f32.mrf.mxu0
      %v4784 = vadd.f32 0.0, %v4783
      %4785 = vmatmul.bf16.gmra.mxu0 %v4625
      %v4786 = vpop.f32.mrf.mxu0
      %v4787 = vadd.f32 0.0, %v4786
      %v4788 = vpop.f32.mrf.mxu0
      %4789 = vmatmul.bf16.gmra.mxu0 %v4628
      %v4790 = vpop.f32.mrf.mxu0
      %v4791 = vadd.f32 0.0, %v4790
      %v4792 = vpop.f32.mrf.mxu0
      %v4793 = vadd.f32 0.0, %v4792
      %4794 = vmatmul.bf16.gmra.mxu0 %v4631
      %v4795 = vpop.f32.mrf.mxu0
      %v4796 = vadd.f32 0.0, %v4795
      %v4797 = vpop.f32.mrf.mxu0
      %4798 = vmatmul.bf16.gmra.mxu0 %v4634
      %v4799 = vpop.f32.mrf.mxu0
      %v4800 = vadd.f32 0.0, %v4799
      %v4801 = vpop.f32.mrf.mxu0
      %v4802 = vadd.f32 0.0, %v4801
      %4803 = vmatmul.bf16.gmra.mxu0 %v4637
      %v4804 = vpop.f32.mrf.mxu0
      %v4805 = vadd.f32 0.0, %v4804
      %v4806 = vpop.f32.mrf.mxu0
      %4807 = vmatmul.bf16.gmra.mxu0 %v4640
      %v4808 = vpop.f32.mrf.mxu0
      %v4809 = vadd.f32 0.0, %v4808
      %v4810 = vpop.f32.mrf.mxu0
      %v4811 = vadd.f32 0.0, %v4810
      %4812 = vmatmul.bf16.gmra.mxu0 %v4643
      %v4813 = vpop.f32.mrf.mxu0
      %v4814 = vadd.f32 0.0, %v4813
      %v4815 = vpop.f32.mrf.mxu0
      %4816 = vmatmul.bf16.gmra.mxu0 %v4646
      %v4817 = vpop.f32.mrf.mxu0
      %v4818 = vadd.f32 0.0, %v4817
      %v4819 = vpop.f32.mrf.mxu0
      %v4820 = vadd.f32 0.0, %v4819
      %4821 = vmatmul.bf16.gmra.mxu0 %v4649
      %v4822 = vpop.f32.mrf.mxu0
      %v4823 = vadd.f32 0.0, %v4822
      %v4824 = vpop.f32.mrf.mxu0
      %4825 = vmatmul.bf16.gmra.mxu0 %v4652
      %v4826 = vpop.f32.mrf.mxu0
      %v4827 = vadd.f32 0.0, %v4826
      %v4828 = vpop.f32.mrf.mxu0
      %v4829 = vadd.f32 0.0, %v4828
      %4830 = vmatmul.bf16.gmra.mxu0 %v4655
      %v4831 = vpop.f32.mrf.mxu0
      %v4832 = vadd.f32 0.0, %v4831
      %v4833 = vpop.f32.mrf.mxu0
      %4834 = vdwg.mxu0
      %v4835 = vadd.f32 %v4361, %v4764
      %v4836 = vadd.f32 %v4362, %v4766
      %v4837 = vadd.f32 %v4363, %v4769
      %v4838 = vadd.f32 %v4364, %v4773
      %v4839 = vadd.f32 %v4365, %v4775
      %v4840 = vadd.f32 %v4366, %v4778
      %v4841 = vadd.f32 %v4367, %v4782
      %v4842 = vadd.f32 %v4368, %v4784
      %v4843 = vadd.f32 %v4369, %v4787
      %v4844 = vadd.f32 %v4370, %v4791
      %v4845 = vadd.f32 %v4371, %v4793
      %v4846 = vadd.f32 %v4372, %v4796
      %v4847 = vadd.f32 %v4373, %v4800
      %v4848 = vadd.f32 %v4374, %v4802
      %v4849 = vadd.f32 %v4375, %v4805
      %v4850 = vadd.f32 %v4376, %v4809
      %v4851 = vadd.f32 %v4377, %v4811
      %v4852 = vadd.f32 %v4378, %v4814
      %v4853 = vadd.f32 %v4379, %v4818
      %v4854 = vadd.f32 %v4380, %v4820
      %v4855 = vadd.f32 %v4381, %v4823
      %v4856 = vadd.f32 %v4382, %v4827
      %v4857 = vadd.f32 %v4383, %v4829
      %v4858 = vadd.f32 %v4384, %v4832
      %s4859 = scalar_lea.vmem %s564, 28
      %v4860 = vld [vmem:[%s4859] sm:$0x3]
      %v4862 = vsel %vm944, %v4860, 0
      %4864 = vmatpush.bf16.msra.mxu0 0
      %4865 = vmatpush.bf16.msra.mxu0 0
      %4866 = vmatpush.bf16.msra.mxu0 0
      %4867 = vmatpush.bf16.msra.mxu0 0
      %4868 = vmatpush.bf16.msra.mxu0 0
      %4869 = vmatpush.bf16.msra.mxu0 0
      %4870 = vmatpush.bf16.msra.mxu0 0
      %4871 = vmatpush.bf16.msra.mxu0 %v4862
      %4872 = vmatmul.bf16.gmra.mxu0 %v4610
      %v4873 = vpop.f32.mrf.mxu0
      %v4874 = vadd.f32 0.0, %v4873
      %v4875 = vpop.f32.mrf.mxu0
      %v4876 = vadd.f32 0.0, %v4875
      %4877 = vmatmul.bf16.gmra.mxu0 %v4613
      %v4878 = vpop.f32.mrf.mxu0
      %v4879 = vadd.f32 0.0, %v4878
      %v4880 = vpop.f32.mrf.mxu0
      %4881 = vmatmul.bf16.gmra.mxu0 %v4616
      %v4882 = vpop.f32.mrf.mxu0
      %v4883 = vadd.f32 0.0, %v4882
      %v4884 = vpop.f32.mrf.mxu0
      %v4885 = vadd.f32 0.0, %v4884
      %4886 = vmatmul.bf16.gmra.mxu0 %v4619
      %v4887 = vpop.f32.mrf.mxu0
      %v4888 = vadd.f32 0.0, %v4887
      %v4889 = vpop.f32.mrf.mxu0
      %4890 = vmatmul.bf16.gmra.mxu0 %v4622
      %v4891 = vpop.f32.mrf.mxu0
      %v4892 = vadd.f32 0.0, %v4891
      %v4893 = vpop.f32.mrf.mxu0
      %v4894 = vadd.f32 0.0, %v4893
      %4895 = vmatmul.bf16.gmra.mxu0 %v4625
      %v4896 = vpop.f32.mrf.mxu0
      %v4897 = vadd.f32 0.0, %v4896
      %v4898 = vpop.f32.mrf.mxu0
      %4899 = vmatmul.bf16.gmra.mxu0 %v4628
      %v4900 = vpop.f32.mrf.mxu0
      %v4901 = vadd.f32 0.0, %v4900
      %v4902 = vpop.f32.mrf.mxu0
      %v4903 = vadd.f32 0.0, %v4902
      %4904 = vmatmul.bf16.gmra.mxu0 %v4631
      %v4905 = vpop.f32.mrf.mxu0
      %v4906 = vadd.f32 0.0, %v4905
      %v4907 = vpop.f32.mrf.mxu0
      %4908 = vmatmul.bf16.gmra.mxu0 %v4634
      %v4909 = vpop.f32.mrf.mxu0
      %v4910 = vadd.f32 0.0, %v4909
      %v4911 = vpop.f32.mrf.mxu0
      %v4912 = vadd.f32 0.0, %v4911
      %4913 = vmatmul.bf16.gmra.mxu0 %v4637
      %v4914 = vpop.f32.mrf.mxu0
      %v4915 = vadd.f32 0.0, %v4914
      %v4916 = vpop.f32.mrf.mxu0
      %4917 = vmatmul.bf16.gmra.mxu0 %v4640
      %v4918 = vpop.f32.mrf.mxu0
      %v4919 = vadd.f32 0.0, %v4918
      %v4920 = vpop.f32.mrf.mxu0
      %v4921 = vadd.f32 0.0, %v4920
      %4922 = vmatmul.bf16.gmra.mxu0 %v4643
      %v4923 = vpop.f32.mrf.mxu0
      %v4924 = vadd.f32 0.0, %v4923
      %v4925 = vpop.f32.mrf.mxu0
      %4926 = vmatmul.bf16.gmra.mxu0 %v4646
      %v4927 = vpop.f32.mrf.mxu0
      %v4928 = vadd.f32 0.0, %v4927
      %v4929 = vpop.f32.mrf.mxu0
      %v4930 = vadd.f32 0.0, %v4929
      %4931 = vmatmul.bf16.gmra.mxu0 %v4649
      %v4932 = vpop.f32.mrf.mxu0
      %v4933 = vadd.f32 0.0, %v4932
      %v4934 = vpop.f32.mrf.mxu0
      %4935 = vmatmul.bf16.gmra.mxu0 %v4652
      %v4936 = vpop.f32.mrf.mxu0
      %v4937 = vadd.f32 0.0, %v4936
      %v4938 = vpop.f32.mrf.mxu0
      %v4939 = vadd.f32 0.0, %v4938
      %4940 = vmatmul.bf16.gmra.mxu0 %v4655
      %v4941 = vpop.f32.mrf.mxu0
      %v4942 = vadd.f32 0.0, %v4941
      %v4943 = vpop.f32.mrf.mxu0
      %4944 = vdwg.mxu0
      %v4945 = vadd.f32 %v4471, %v4874
      %v4946 = vadd.f32 %v4472, %v4876
      %v4947 = vadd.f32 %v4473, %v4879
      %v4948 = vadd.f32 %v4474, %v4883
      %v4949 = vadd.f32 %v4475, %v4885
      %v4950 = vadd.f32 %v4476, %v4888
      %v4951 = vadd.f32 %v4477, %v4892
      %v4952 = vadd.f32 %v4478, %v4894
      %v4953 = vadd.f32 %v4479, %v4897
      %v4954 = vadd.f32 %v4480, %v4901
      %v4955 = vadd.f32 %v4481, %v4903
      %v4956 = vadd.f32 %v4482, %v4906
      %v4957 = vadd.f32 %v4483, %v4910
      %v4958 = vadd.f32 %v4484, %v4912
      %v4959 = vadd.f32 %v4485, %v4915
      %v4960 = vadd.f32 %v4486, %v4919
      %v4961 = vadd.f32 %v4487, %v4921
      %v4962 = vadd.f32 %v4488, %v4924
      %v4963 = vadd.f32 %v4489, %v4928
      %v4964 = vadd.f32 %v4490, %v4930
      %v4965 = vadd.f32 %v4491, %v4933
      %v4966 = vadd.f32 %v4492, %v4937
      %v4967 = vadd.f32 %v4493, %v4939
      %v4968 = vadd.f32 %v4494, %v4942
      %v4969 = vld [vmem:[#allocation4 + $0x20] sm:$0xf]
      %v4970 = vld [vmem:[#allocation4 + $0x24] sm:$0xf]
      %v4971 = vld [vmem:[#allocation4 + $0x28] sm:$0xf]
      %v4972 = vld [vmem:[#allocation4 + $0x2c] sm:$0xf]
      %v4973 = vld [vmem:[#allocation4 + $0x30] sm:$0xf]
      %v4974 = vld [vmem:[#allocation4 + $0x34] sm:$0xf]
      %v4975 = vld [vmem:[#allocation4 + $0x38] sm:$0xf]
      %v4976 = vld [vmem:[#allocation4 + $0x3c] sm:$0xf]
      %v4977 = vld [vmem:[#allocation4 + $0x40] sm:$0xf]
      %v4978 = vld [vmem:[#allocation4 + $0x44] sm:$0xf]
      %v4979 = vld [vmem:[#allocation4 + $0x48] sm:$0xf]
      %v4980 = vld [vmem:[#allocation4 + $0x4c] sm:$0xf]
      %v4981 = vld [vmem:[#allocation4 + $0x50] sm:$0xf]
      %v4982 = vld [vmem:[#allocation4 + $0x54] sm:$0xf]
      %v4983 = vld [vmem:[#allocation4 + $0x58] sm:$0xf]
      %v4984 = vld [vmem:[#allocation4 + $0x5c] sm:$0xf]
      %v4985 = vld [vmem:[#allocation4 + $0x60] sm:$0xf]
      %v4986 = vld [vmem:[#allocation4 + $0x64] sm:$0xf]
      %v4987 = vld [vmem:[#allocation4 + $0x68] sm:$0xf]
      %v4988 = vld [vmem:[#allocation4 + $0x6c] sm:$0xf]
      %v4989 = vld [vmem:[#allocation4 + $0x70] sm:$0xf]
      %v4990 = vld [vmem:[#allocation4 + $0x74] sm:$0xf]
      %v4991 = vld [vmem:[#allocation4 + $0x78] sm:$0xf]
      %v4992 = vld [vmem:[#allocation4 + $0x7c] sm:$0xf]
      %v4993 = vld [vmem:[#allocation4 + $0x80] sm:$0xf]
      %v4994 = vld [vmem:[#allocation4 + $0x84] sm:$0xf]
      %v4995 = vld [vmem:[#allocation4 + $0x88] sm:$0xf]
      %v4996 = vld [vmem:[#allocation4 + $0x8c] sm:$0xf]
      %v4997 = vld [vmem:[#allocation4 + $0x90] sm:$0xf]
      %v4998 = vld [vmem:[#allocation4 + $0x94] sm:$0xf]
      %v4999 = vld [vmem:[#allocation4 + $0x98] sm:$0xf]
      %v5000 = vld [vmem:[#allocation4 + $0x9c] sm:$0xf]
      %s5001 = scalar_lea.vmem %s564, 30
      %v5002 = vld [vmem:[%s5001] sm:$0x3]
      %v5035 = vunpack.c.l.b16 %v4969
      %v5036 = vunpack.c.l.b16 %v4970
      %v5037 = vunpack.c.l.b16 %v4971
      %v5038 = vunpack.c.l.b16 %v4972
      %v5039 = vunpack.c.l.b16 %v4973
      %v5040 = vunpack.c.l.b16 %v4974
      %v5041 = vunpack.c.l.b16 %v4975
      %v5042 = vunpack.c.l.b16 %v4976
      %v5043 = vunpack.c.l.b16 %v4977
      %v5044 = vunpack.c.l.b16 %v4978
      %v5045 = vunpack.c.l.b16 %v4979
      %v5046 = vunpack.c.l.b16 %v4980
      %v5047 = vunpack.c.l.b16 %v4981
      %v5048 = vunpack.c.l.b16 %v4982
      %v5049 = vunpack.c.l.b16 %v4983
      %v5050 = vunpack.c.l.b16 %v4984
      %v5051 = vunpack.c.l.b16 %v4985
      %v5052 = vunpack.c.l.b16 %v4986
      %v5053 = vunpack.c.l.b16 %v4987
      %v5054 = vunpack.c.l.b16 %v4988
      %v5055 = vunpack.c.l.b16 %v4989
      %v5056 = vunpack.c.l.b16 %v4990
      %v5057 = vunpack.c.l.b16 %v4991
      %v5058 = vunpack.c.l.b16 %v4992
      %v5059 = vunpack.c.l.b16 %v4993
      %v5060 = vunpack.c.l.b16 %v4994
      %v5061 = vunpack.c.l.b16 %v4995
      %v5062 = vunpack.c.l.b16 %v4996
      %v5063 = vunpack.c.l.b16 %v4997
      %v5064 = vunpack.c.l.b16 %v4998
      %v5065 = vunpack.c.l.b16 %v4999
      %v5066 = vunpack.c.l.b16 %v5000
      %v5067 = vpack.c.b16 %v5036, %v5035
      %v5068 = vpack.c.b16 %v5038, %v5037
      %v5069 = vpack.c.b16 %v5040, %v5039
      %v5070 = vpack.c.b16 %v5042, %v5041
      %v5071 = vpack.c.b16 %v5044, %v5043
      %v5072 = vpack.c.b16 %v5046, %v5045
      %v5073 = vpack.c.b16 %v5048, %v5047
      %v5074 = vpack.c.b16 %v5050, %v5049
      %v5075 = vpack.c.b16 %v5052, %v5051
      %v5076 = vpack.c.b16 %v5054, %v5053
      %v5077 = vpack.c.b16 %v5056, %v5055
      %v5078 = vpack.c.b16 %v5058, %v5057
      %v5079 = vpack.c.b16 %v5060, %v5059
      %v5080 = vpack.c.b16 %v5062, %v5061
      %v5081 = vpack.c.b16 %v5064, %v5063
      %v5082 = vpack.c.b16 %v5066, %v5065
      %v5084 = vsel %vm895, %v5067, 0
      %v5087 = vsel %vm895, %v5068, 0
      %v5090 = vsel %vm895, %v5069, 0
      %v5093 = vsel %vm895, %v5070, 0
      %v5096 = vsel %vm895, %v5071, 0
      %v5099 = vsel %vm895, %v5072, 0
      %v5102 = vsel %vm895, %v5073, 0
      %v5105 = vsel %vm895, %v5074, 0
      %v5108 = vsel %vm895, %v5075, 0
      %v5111 = vsel %vm895, %v5076, 0
      %v5114 = vsel %vm895, %v5077, 0
      %v5117 = vsel %vm895, %v5078, 0
      %v5120 = vsel %vm895, %v5079, 0
      %v5123 = vsel %vm895, %v5080, 0
      %v5126 = vsel %vm895, %v5081, 0
      %v5129 = vsel %vm895, %v5082, 0
      %v5132 = vsel %vm944, %v5002, 0
      %5134 = vmatpush.bf16.msra.mxu0 0
      %5135 = vmatpush.bf16.msra.mxu0 0
      %5136 = vmatpush.bf16.msra.mxu0 0
      %5137 = vmatpush.bf16.msra.mxu0 0
      %5138 = vmatpush.bf16.msra.mxu0 0
      %5139 = vmatpush.bf16.msra.mxu0 0
      %5140 = vmatpush.bf16.msra.mxu0 0
      %5141 = vmatpush.bf16.msra.mxu0 %v5132
      %5142 = vmatmul.bf16.gmra.mxu0 %v5084
      %v5143 = vpop.f32.mrf.mxu0
      %v5144 = vadd.f32 0.0, %v5143
      %v5145 = vpop.f32.mrf.mxu0
      %v5146 = vadd.f32 0.0, %v5145
      %5147 = vmatmul.bf16.gmra.mxu0 %v5087
      %v5148 = vpop.f32.mrf.mxu0
      %v5149 = vpop.f32.mrf.mxu0
      %5150 = vmatmul.bf16.gmra.mxu0 %v5090
      %v5151 = vpop.f32.mrf.mxu0
      %v5152 = vadd.f32 0.0, %v5151
      %v5153 = vpop.f32.mrf.mxu0
      %v5154 = vadd.f32 0.0, %v5153
      %5155 = vmatmul.bf16.gmra.mxu0 %v5093
      %v5156 = vpop.f32.mrf.mxu0
      %v5157 = vpop.f32.mrf.mxu0
      %5158 = vmatmul.bf16.gmra.mxu0 %v5096
      %v5159 = vpop.f32.mrf.mxu0
      %v5160 = vadd.f32 0.0, %v5159
      %v5161 = vpop.f32.mrf.mxu0
      %v5162 = vadd.f32 0.0, %v5161
      %5163 = vmatmul.bf16.gmra.mxu0 %v5099
      %v5164 = vpop.f32.mrf.mxu0
      %v5165 = vpop.f32.mrf.mxu0
      %5166 = vmatmul.bf16.gmra.mxu0 %v5102
      %v5167 = vpop.f32.mrf.mxu0
      %v5168 = vadd.f32 0.0, %v5167
      %v5169 = vpop.f32.mrf.mxu0
      %v5170 = vadd.f32 0.0, %v5169
      %5171 = vmatmul.bf16.gmra.mxu0 %v5105
      %v5172 = vpop.f32.mrf.mxu0
      %v5173 = vpop.f32.mrf.mxu0
      %5174 = vmatmul.bf16.gmra.mxu0 %v5108
      %v5175 = vpop.f32.mrf.mxu0
      %v5176 = vadd.f32 0.0, %v5175
      %v5177 = vpop.f32.mrf.mxu0
      %v5178 = vadd.f32 0.0, %v5177
      %5179 = vmatmul.bf16.gmra.mxu0 %v5111
      %v5180 = vpop.f32.mrf.mxu0
      %v5181 = vpop.f32.mrf.mxu0
      %5182 = vmatmul.bf16.gmra.mxu0 %v5114
      %v5183 = vpop.f32.mrf.mxu0
      %v5184 = vadd.f32 0.0, %v5183
      %v5185 = vpop.f32.mrf.mxu0
      %v5186 = vadd.f32 0.0, %v5185
      %5187 = vmatmul.bf16.gmra.mxu0 %v5117
      %v5188 = vpop.f32.mrf.mxu0
      %v5189 = vpop.f32.mrf.mxu0
      %5190 = vmatmul.bf16.gmra.mxu0 %v5120
      %v5191 = vpop.f32.mrf.mxu0
      %v5192 = vadd.f32 0.0, %v5191
      %v5193 = vpop.f32.mrf.mxu0
      %v5194 = vadd.f32 0.0, %v5193
      %5195 = vmatmul.bf16.gmra.mxu0 %v5123
      %v5196 = vpop.f32.mrf.mxu0
      %v5197 = vpop.f32.mrf.mxu0
      %5198 = vmatmul.bf16.gmra.mxu0 %v5126
      %v5199 = vpop.f32.mrf.mxu0
      %v5200 = vadd.f32 0.0, %v5199
      %v5201 = vpop.f32.mrf.mxu0
      %v5202 = vadd.f32 0.0, %v5201
      %5203 = vmatmul.bf16.gmra.mxu0 %v5129
      %v5204 = vpop.f32.mrf.mxu0
      %v5205 = vpop.f32.mrf.mxu0
      %5206 = vdwg.mxu0
      %v5207 = vadd.f32 %v4733, %v5144
      %v5208 = vadd.f32 %v4734, %v5146
      %v5209 = vadd.f32 %v4735, %v5152
      %v5210 = vadd.f32 %v4736, %v5154
      %v5211 = vadd.f32 %v4737, %v5160
      %v5212 = vadd.f32 %v4738, %v5162
      %v5213 = vadd.f32 %v4739, %v5168
      %v5214 = vadd.f32 %v4740, %v5170
      %v5215 = vadd.f32 %v4741, %v5176
      %v5216 = vadd.f32 %v4742, %v5178
      %v5217 = vadd.f32 %v4743, %v5184
      %v5218 = vadd.f32 %v4744, %v5186
      %v5219 = vadd.f32 %v4745, %v5192
      %v5220 = vadd.f32 %v4746, %v5194
      %v5221 = vadd.f32 %v4747, %v5200
      %v5222 = vadd.f32 %v4748, %v5202
      %s5223 = scalar_lea.vmem %s564, 32
      %v5224 = vld [vmem:[%s5223] sm:$0x3]
      %v5226 = vsel %vm944, %v5224, 0
      %5228 = vmatpush.bf16.msra.mxu0 0
      %5229 = vmatpush.bf16.msra.mxu0 0
      %5230 = vmatpush.bf16.msra.mxu0 0
      %5231 = vmatpush.bf16.msra.mxu0 0
      %5232 = vmatpush.bf16.msra.mxu0 0
      %5233 = vmatpush.bf16.msra.mxu0 0
      %5234 = vmatpush.bf16.msra.mxu0 0
      %5235 = vmatpush.bf16.msra.mxu0 %v5226
      %5236 = vmatmul.bf16.gmra.mxu0 %v5084
      %v5237 = vpop.f32.mrf.mxu0
      %v5238 = vadd.f32 0.0, %v5237
      %v5239 = vpop.f32.mrf.mxu0
      %v5240 = vadd.f32 0.0, %v5239
      %5241 = vmatmul.bf16.gmra.mxu0 %v5087
      %v5242 = vpop.f32.mrf.mxu0
      %v5243 = vadd.f32 0.0, %v5242
      %v5244 = vpop.f32.mrf.mxu0
      %5245 = vmatmul.bf16.gmra.mxu0 %v5090
      %v5246 = vpop.f32.mrf.mxu0
      %v5247 = vadd.f32 0.0, %v5246
      %v5248 = vpop.f32.mrf.mxu0
      %v5249 = vadd.f32 0.0, %v5248
      %5250 = vmatmul.bf16.gmra.mxu0 %v5093
      %v5251 = vpop.f32.mrf.mxu0
      %v5252 = vadd.f32 0.0, %v5251
      %v5253 = vpop.f32.mrf.mxu0
      %5254 = vmatmul.bf16.gmra.mxu0 %v5096
      %v5255 = vpop.f32.mrf.mxu0
      %v5256 = vadd.f32 0.0, %v5255
      %v5257 = vpop.f32.mrf.mxu0
      %v5258 = vadd.f32 0.0, %v5257
      %5259 = vmatmul.bf16.gmra.mxu0 %v5099
      %v5260 = vpop.f32.mrf.mxu0
      %v5261 = vadd.f32 0.0, %v5260
      %v5262 = vpop.f32.mrf.mxu0
      %5263 = vmatmul.bf16.gmra.mxu0 %v5102
      %v5264 = vpop.f32.mrf.mxu0
      %v5265 = vadd.f32 0.0, %v5264
      %v5266 = vpop.f32.mrf.mxu0
      %v5267 = vadd.f32 0.0, %v5266
      %5268 = vmatmul.bf16.gmra.mxu0 %v5105
      %v5269 = vpop.f32.mrf.mxu0
      %v5270 = vadd.f32 0.0, %v5269
      %v5271 = vpop.f32.mrf.mxu0
      %5272 = vmatmul.bf16.gmra.mxu0 %v5108
      %v5273 = vpop.f32.mrf.mxu0
      %v5274 = vadd.f32 0.0, %v5273
      %v5275 = vpop.f32.mrf.mxu0
      %v5276 = vadd.f32 0.0, %v5275
      %5277 = vmatmul.bf16.gmra.mxu0 %v5111
      %v5278 = vpop.f32.mrf.mxu0
      %v5279 = vadd.f32 0.0, %v5278
      %v5280 = vpop.f32.mrf.mxu0
      %5281 = vmatmul.bf16.gmra.mxu0 %v5114
      %v5282 = vpop.f32.mrf.mxu0
      %v5283 = vadd.f32 0.0, %v5282
      %v5284 = vpop.f32.mrf.mxu0
      %v5285 = vadd.f32 0.0, %v5284
      %5286 = vmatmul.bf16.gmra.mxu0 %v5117
      %v5287 = vpop.f32.mrf.mxu0
      %v5288 = vadd.f32 0.0, %v5287
      %v5289 = vpop.f32.mrf.mxu0
      %5290 = vmatmul.bf16.gmra.mxu0 %v5120
      %v5291 = vpop.f32.mrf.mxu0
      %v5292 = vadd.f32 0.0, %v5291
      %v5293 = vpop.f32.mrf.mxu0
      %v5294 = vadd.f32 0.0, %v5293
      %5295 = vmatmul.bf16.gmra.mxu0 %v5123
      %v5296 = vpop.f32.mrf.mxu0
      %v5297 = vadd.f32 0.0, %v5296
      %v5298 = vpop.f32.mrf.mxu0
      %5299 = vmatmul.bf16.gmra.mxu0 %v5126
      %v5300 = vpop.f32.mrf.mxu0
      %v5301 = vadd.f32 0.0, %v5300
      %v5302 = vpop.f32.mrf.mxu0
      %v5303 = vadd.f32 0.0, %v5302
      %5304 = vmatmul.bf16.gmra.mxu0 %v5129
      %v5305 = vpop.f32.mrf.mxu0
      %v5306 = vadd.f32 0.0, %v5305
      %v5307 = vpop.f32.mrf.mxu0
      %5308 = vdwg.mxu0
      %v5309 = vadd.f32 %v4835, %v5238
      %v5310 = vadd.f32 %v4836, %v5240
      %v5311 = vadd.f32 %v4837, %v5243
      %v5312 = vadd.f32 %v4838, %v5247
      %v5313 = vadd.f32 %v4839, %v5249
      %v5314 = vadd.f32 %v4840, %v5252
      %v5315 = vadd.f32 %v4841, %v5256
      %v5316 = vadd.f32 %v4842, %v5258
      %v5317 = vadd.f32 %v4843, %v5261
      %v5318 = vadd.f32 %v4844, %v5265
      %v5319 = vadd.f32 %v4845, %v5267
      %v5320 = vadd.f32 %v4846, %v5270
      %v5321 = vadd.f32 %v4847, %v5274
      %v5322 = vadd.f32 %v4848, %v5276
      %v5323 = vadd.f32 %v4849, %v5279
      %v5324 = vadd.f32 %v4850, %v5283
      %v5325 = vadd.f32 %v4851, %v5285
      %v5326 = vadd.f32 %v4852, %v5288
      %v5327 = vadd.f32 %v4853, %v5292
      %v5328 = vadd.f32 %v4854, %v5294
      %v5329 = vadd.f32 %v4855, %v5297
      %v5330 = vadd.f32 %v4856, %v5301
      %v5331 = vadd.f32 %v4857, %v5303
      %v5332 = vadd.f32 %v4858, %v5306
      %s5333 = scalar_lea.vmem %s564, 34
      %v5334 = vld [vmem:[%s5333] sm:$0x3]
      %v5336 = vsel %vm944, %v5334, 0
      %5338 = vmatpush.bf16.msra.mxu0 0
      %5339 = vmatpush.bf16.msra.mxu0 0
      %5340 = vmatpush.bf16.msra.mxu0 0
      %5341 = vmatpush.bf16.msra.mxu0 0
      %5342 = vmatpush.bf16.msra.mxu0 0
      %5343 = vmatpush.bf16.msra.mxu0 0
      %5344 = vmatpush.bf16.msra.mxu0 0
      %5345 = vmatpush.bf16.msra.mxu0 %v5336
      %5346 = vmatmul.bf16.gmra.mxu0 %v5084
      %v5347 = vpop.f32.mrf.mxu0
      %v5348 = vadd.f32 0.0, %v5347
      %v5349 = vpop.f32.mrf.mxu0
      %v5350 = vadd.f32 0.0, %v5349
      %5351 = vmatmul.bf16.gmra.mxu0 %v5087
      %v5352 = vpop.f32.mrf.mxu0
      %v5353 = vadd.f32 0.0, %v5352
      %v5354 = vpop.f32.mrf.mxu0
      %5355 = vmatmul.bf16.gmra.mxu0 %v5090
      %v5356 = vpop.f32.mrf.mxu0
      %v5357 = vadd.f32 0.0, %v5356
      %v5358 = vpop.f32.mrf.mxu0
      %v5359 = vadd.f32 0.0, %v5358
      %5360 = vmatmul.bf16.gmra.mxu0 %v5093
      %v5361 = vpop.f32.mrf.mxu0
      %v5362 = vadd.f32 0.0, %v5361
      %v5363 = vpop.f32.mrf.mxu0
      %5364 = vmatmul.bf16.gmra.mxu0 %v5096
      %v5365 = vpop.f32.mrf.mxu0
      %v5366 = vadd.f32 0.0, %v5365
      %v5367 = vpop.f32.mrf.mxu0
      %v5368 = vadd.f32 0.0, %v5367
      %5369 = vmatmul.bf16.gmra.mxu0 %v5099
      %v5370 = vpop.f32.mrf.mxu0
      %v5371 = vadd.f32 0.0, %v5370
      %v5372 = vpop.f32.mrf.mxu0
      %5373 = vmatmul.bf16.gmra.mxu0 %v5102
      %v5374 = vpop.f32.mrf.mxu0
      %v5375 = vadd.f32 0.0, %v5374
      %v5376 = vpop.f32.mrf.mxu0
      %v5377 = vadd.f32 0.0, %v5376
      %5378 = vmatmul.bf16.gmra.mxu0 %v5105
      %v5379 = vpop.f32.mrf.mxu0
      %v5380 = vadd.f32 0.0, %v5379
      %v5381 = vpop.f32.mrf.mxu0
      %5382 = vmatmul.bf16.gmra.mxu0 %v5108
      %v5383 = vpop.f32.mrf.mxu0
      %v5384 = vadd.f32 0.0, %v5383
      %v5385 = vpop.f32.mrf.mxu0
      %v5386 = vadd.f32 0.0, %v5385
      %5387 = vmatmul.bf16.gmra.mxu0 %v5111
      %v5388 = vpop.f32.mrf.mxu0
      %v5389 = vadd.f32 0.0, %v5388
      %v5390 = vpop.f32.mrf.mxu0
      %5391 = vmatmul.bf16.gmra.mxu0 %v5114
      %v5392 = vpop.f32.mrf.mxu0
      %v5393 = vadd.f32 0.0, %v5392
      %v5394 = vpop.f32.mrf.mxu0
      %v5395 = vadd.f32 0.0, %v5394
      %5396 = vmatmul.bf16.gmra.mxu0 %v5117
      %v5397 = vpop.f32.mrf.mxu0
      %v5398 = vadd.f32 0.0, %v5397
      %v5399 = vpop.f32.mrf.mxu0
      %5400 = vmatmul.bf16.gmra.mxu0 %v5120
      %v5401 = vpop.f32.mrf.mxu0
      %v5402 = vadd.f32 0.0, %v5401
      %v5403 = vpop.f32.mrf.mxu0
      %v5404 = vadd.f32 0.0, %v5403
      %5405 = vmatmul.bf16.gmra.mxu0 %v5123
      %v5406 = vpop.f32.mrf.mxu0
      %v5407 = vadd.f32 0.0, %v5406
      %v5408 = vpop.f32.mrf.mxu0
      %5409 = vmatmul.bf16.gmra.mxu0 %v5126
      %v5410 = vpop.f32.mrf.mxu0
      %v5411 = vadd.f32 0.0, %v5410
      %v5412 = vpop.f32.mrf.mxu0
      %v5413 = vadd.f32 0.0, %v5412
      %5414 = vmatmul.bf16.gmra.mxu0 %v5129
      %v5415 = vpop.f32.mrf.mxu0
      %v5416 = vadd.f32 0.0, %v5415
      %v5417 = vpop.f32.mrf.mxu0
      %5418 = vdwg.mxu0
      %v5419 = vadd.f32 %v4945, %v5348
      %v5420 = vadd.f32 %v4946, %v5350
      %v5421 = vadd.f32 %v4947, %v5353
      %v5422 = vadd.f32 %v4948, %v5357
      %v5423 = vadd.f32 %v4949, %v5359
      %v5424 = vadd.f32 %v4950, %v5362
      %v5425 = vadd.f32 %v4951, %v5366
      %v5426 = vadd.f32 %v4952, %v5368
      %v5427 = vadd.f32 %v4953, %v5371
      %v5428 = vadd.f32 %v4954, %v5375
      %v5429 = vadd.f32 %v4955, %v5377
      %v5430 = vadd.f32 %v4956, %v5380
      %v5431 = vadd.f32 %v4957, %v5384
      %v5432 = vadd.f32 %v4958, %v5386
      %v5433 = vadd.f32 %v4959, %v5389
      %v5434 = vadd.f32 %v4960, %v5393
      %v5435 = vadd.f32 %v4961, %v5395
      %v5436 = vadd.f32 %v4962, %v5398
      %v5437 = vadd.f32 %v4963, %v5402
      %v5438 = vadd.f32 %v4964, %v5404
      %v5439 = vadd.f32 %v4965, %v5407
      %v5440 = vadd.f32 %v4966, %v5411
      %v5441 = vadd.f32 %v4967, %v5413
      %v5442 = vadd.f32 %v4968, %v5416
      %s5443 = scalar_lea.vmem %s6, 32
      %v5444 = vld [vmem:[%s5443] sm:$0xf]
      %v5445 = vld [vmem:[%s5443 + $0x4] sm:$0xf]
      %v5446 = vld [vmem:[%s5443 + $0x8] sm:$0xf]
      %v5447 = vld [vmem:[%s5443 + $0xc] sm:$0xf]
      %s5448 = scalar_lea.vmem [#allocation3], 8
      %v5449 = vld [vmem:[%s5448] sm:$0xf]
      %v5454 = vunpack.c.l.b16 %v5444
      %v5455 = vunpack.c.l.b16 %v5445
      %v5456 = vunpack.c.l.b16 %v5446
      %v5457 = vunpack.c.l.b16 %v5447
      %v5458 = vpack.c.b16 %v5455, %v5454
      %v5459 = vpack.c.b16 %v5457, %v5456
      %v5461 = vsel %vm1942, %v5458, 0
      %v5464 = vsel %vm1942, %v5459, 0
      %v5467 = vsel %vm1949, %v5449, 0
      %5469 = vmatpush.bf16.msra.mxu0 0
      %5470 = vmatpush.bf16.msra.mxu0 0
      %5471 = vmatpush.bf16.msra.mxu0 0
      %5472 = vmatpush.bf16.msra.mxu0 0
      %5473 = vmatpush.bf16.msra.mxu0 0
      %5474 = vmatpush.bf16.msra.mxu0 0
      %5475 = vmatpush.bf16.msra.mxu0 0
      %5476 = vmatpush.bf16.msra.mxu0 %v5467
      %5477 = vmatmul.bf16.gmra.mxu0 %v5461
      %v5478 = vpop.f32.mrf.mxu0
      %v5479 = vadd.f32 0.0, %v5478
      %v5480 = vpop.f32.mrf.mxu0
      %v5481 = vadd.f32 0.0, %v5480
      %5482 = vmatmul.bf16.gmra.mxu0 %v5464
      %v5483 = vpop.f32.mrf.mxu0
      %v5484 = vadd.f32 0.0, %v5483
      %v5485 = vpop.f32.mrf.mxu0
      %v5486 = vadd.f32 0.0, %v5485
      %5487 = vdwg.mxu0
      %v5488 = vpack.c.bf16 %v5479, %v5479
      %v5489 = vpack.c.bf16 %v5481, %v5481
      %v5490 = vpack.c.bf16 %v5484, %v5484
      %v5491 = vpack.c.bf16 %v5486, %v5486
      %5492 = vst.msk [vmem:[#allocation4] sm:$0xf] %vm590, %v5488
      %5493 = vst.msk [vmem:[#allocation4 + $0x4] sm:$0xf] %vm590, %v5489
      %5494 = vst.msk [vmem:[#allocation4 + $0x8] sm:$0xf] %vm590, %v5490
      %5495 = vst.msk [vmem:[#allocation4 + $0xc] sm:$0xf] %vm590, %v5491
      %s5496 = scalar_lea.vmem [#allocation3], 24
      %v5497 = vld [vmem:[%s5496] sm:$0xf]
      %v5499 = vsel %vm1949, %v5497, 0
      %5501 = vmatpush.bf16.msra.mxu0 0
      %5502 = vmatpush.bf16.msra.mxu0 0
      %5503 = vmatpush.bf16.msra.mxu0 0
      %5504 = vmatpush.bf16.msra.mxu0 0
      %5505 = vmatpush.bf16.msra.mxu0 0
      %5506 = vmatpush.bf16.msra.mxu0 0
      %5507 = vmatpush.bf16.msra.mxu0 0
      %5508 = vmatpush.bf16.msra.mxu0 %v5499
      %5509 = vmatmul.bf16.gmra.mxu0 %v5461
      %v5510 = vpop.f32.mrf.mxu0
      %v5511 = vadd.f32 0.0, %v5510
      %v5512 = vpop.f32.mrf.mxu0
      %v5513 = vadd.f32 0.0, %v5512
      %5514 = vmatmul.bf16.gmra.mxu0 %v5464
      %v5515 = vpop.f32.mrf.mxu0
      %v5516 = vadd.f32 0.0, %v5515
      %v5517 = vpop.f32.mrf.mxu0
      %v5518 = vadd.f32 0.0, %v5517
      %5519 = vdwg.mxu0
      %v5520 = vpack.c.bf16 %v5511, %v5511
      %v5521 = vpack.c.bf16 %v5513, %v5513
      %v5522 = vpack.c.bf16 %v5516, %v5516
      %v5523 = vpack.c.bf16 %v5518, %v5518
      %5524 = vst.msk [vmem:[#allocation4 + $0x10] sm:$0xf] %vm590, %v5520
      %5525 = vst.msk [vmem:[#allocation4 + $0x14] sm:$0xf] %vm590, %v5521
      %5526 = vst.msk [vmem:[#allocation4 + $0x18] sm:$0xf] %vm590, %v5522
      %5527 = vst.msk [vmem:[#allocation4 + $0x1c] sm:$0xf] %vm590, %v5523
      %s5528 = scalar_lea.vmem [#allocation3], 40
      %v5529 = vld [vmem:[%s5528] sm:$0xf]
      %v5531 = vsel %vm1949, %v5529, 0
      %5533 = vmatpush.bf16.msra.mxu0 0
      %5534 = vmatpush.bf16.msra.mxu0 0
      %5535 = vmatpush.bf16.msra.mxu0 0
      %5536 = vmatpush.bf16.msra.mxu0 0
      %5537 = vmatpush.bf16.msra.mxu0 0
      %5538 = vmatpush.bf16.msra.mxu0 0
      %5539 = vmatpush.bf16.msra.mxu0 0
      %5540 = vmatpush.bf16.msra.mxu0 %v5531
      %5541 = vmatmul.bf16.gmra.mxu0 %v5461
      %v5542 = vpop.f32.mrf.mxu0
      %v5543 = vadd.f32 0.0, %v5542
      %v5544 = vpop.f32.mrf.mxu0
      %v5545 = vadd.f32 0.0, %v5544
      %5546 = vmatmul.bf16.gmra.mxu0 %v5464
      %v5547 = vpop.f32.mrf.mxu0
      %v5548 = vadd.f32 0.0, %v5547
      %v5549 = vpop.f32.mrf.mxu0
      %v5550 = vadd.f32 0.0, %v5549
      %5551 = vdwg.mxu0
      %v5552 = vpack.c.bf16 %v5543, %v5543
      %v5553 = vpack.c.bf16 %v5545, %v5545
      %v5554 = vpack.c.bf16 %v5548, %v5548
      %v5555 = vpack.c.bf16 %v5550, %v5550
      %5556 = vst.msk [vmem:[#allocation4 + $0x20] sm:$0xf] %vm590, %v5552
      %5557 = vst.msk [vmem:[#allocation4 + $0x24] sm:$0xf] %vm590, %v5553
      %5558 = vst.msk [vmem:[#allocation4 + $0x28] sm:$0xf] %vm590, %v5554
      %5559 = vst.msk [vmem:[#allocation4 + $0x2c] sm:$0xf] %vm590, %v5555
      %s5560 = scalar_lea.vmem [#allocation3], 56
      %v5561 = vld [vmem:[%s5560] sm:$0xf]
      %v5563 = vsel %vm1949, %v5561, 0
      %5565 = vmatpush.bf16.msra.mxu0 0
      %5566 = vmatpush.bf16.msra.mxu0 0
      %5567 = vmatpush.bf16.msra.mxu0 0
      %5568 = vmatpush.bf16.msra.mxu0 0
      %5569 = vmatpush.bf16.msra.mxu0 0
      %5570 = vmatpush.bf16.msra.mxu0 0
      %5571 = vmatpush.bf16.msra.mxu0 0
      %5572 = vmatpush.bf16.msra.mxu0 %v5563
      %5573 = vmatmul.bf16.gmra.mxu0 %v5461
      %v5574 = vpop.f32.mrf.mxu0
      %v5575 = vadd.f32 0.0, %v5574
      %v5576 = vpop.f32.mrf.mxu0
      %v5577 = vadd.f32 0.0, %v5576
      %5578 = vmatmul.bf16.gmra.mxu0 %v5464
      %v5579 = vpop.f32.mrf.mxu0
      %v5580 = vadd.f32 0.0, %v5579
      %v5581 = vpop.f32.mrf.mxu0
      %v5582 = vadd.f32 0.0, %v5581
      %5583 = vdwg.mxu0
      %v5584 = vpack.c.bf16 %v5575, %v5575
      %v5585 = vpack.c.bf16 %v5577, %v5577
      %v5586 = vpack.c.bf16 %v5580, %v5580
      %v5587 = vpack.c.bf16 %v5582, %v5582
      %5588 = vst.msk [vmem:[#allocation4 + $0x30] sm:$0xf] %vm590, %v5584
      %5589 = vst.msk [vmem:[#allocation4 + $0x34] sm:$0xf] %vm590, %v5585
      %5590 = vst.msk [vmem:[#allocation4 + $0x38] sm:$0xf] %vm590, %v5586
      %5591 = vst.msk [vmem:[#allocation4 + $0x3c] sm:$0xf] %vm590, %v5587
      %s5592 = scalar_lea.vmem [#allocation3], 72
      %v5593 = vld [vmem:[%s5592] sm:$0xf]
      %v5595 = vsel %vm1949, %v5593, 0
      %5597 = vmatpush.bf16.msra.mxu0 0
      %5598 = vmatpush.bf16.msra.mxu0 0
      %5599 = vmatpush.bf16.msra.mxu0 0
      %5600 = vmatpush.bf16.msra.mxu0 0
      %5601 = vmatpush.bf16.msra.mxu0 0
      %5602 = vmatpush.bf16.msra.mxu0 0
      %5603 = vmatpush.bf16.msra.mxu0 0
      %5604 = vmatpush.bf16.msra.mxu0 %v5595
      %5605 = vmatmul.bf16.gmra.mxu0 %v5461
      %v5606 = vpop.f32.mrf.mxu0
      %v5607 = vadd.f32 0.0, %v5606
      %v5608 = vpop.f32.mrf.mxu0
      %v5609 = vadd.f32 0.0, %v5608
      %5610 = vmatmul.bf16.gmra.mxu0 %v5464
      %v5611 = vpop.f32.mrf.mxu0
      %v5612 = vadd.f32 0.0, %v5611
      %v5613 = vpop.f32.mrf.mxu0
      %v5614 = vadd.f32 0.0, %v5613
      %5615 = vdwg.mxu0
      %v5616 = vpack.c.bf16 %v5607, %v5607
      %v5617 = vpack.c.bf16 %v5609, %v5609
      %v5618 = vpack.c.bf16 %v5612, %v5612
      %v5619 = vpack.c.bf16 %v5614, %v5614
      %5620 = vst.msk [vmem:[#allocation4 + $0x40] sm:$0xf] %vm590, %v5616
      %5621 = vst.msk [vmem:[#allocation4 + $0x44] sm:$0xf] %vm590, %v5617
      %5622 = vst.msk [vmem:[#allocation4 + $0x48] sm:$0xf] %vm590, %v5618
      %5623 = vst.msk [vmem:[#allocation4 + $0x4c] sm:$0xf] %vm590, %v5619
      %s5624 = scalar_lea.vmem [#allocation3], 88
      %v5625 = vld [vmem:[%s5624] sm:$0xf]
      %v5627 = vsel %vm1949, %v5625, 0
      %5629 = vmatpush.bf16.msra.mxu0 0
      %5630 = vmatpush.bf16.msra.mxu0 0
      %5631 = vmatpush.bf16.msra.mxu0 0
      %5632 = vmatpush.bf16.msra.mxu0 0
      %5633 = vmatpush.bf16.msra.mxu0 0
      %5634 = vmatpush.bf16.msra.mxu0 0
      %5635 = vmatpush.bf16.msra.mxu0 0
      %5636 = vmatpush.bf16.msra.mxu0 %v5627
      %5637 = vmatmul.bf16.gmra.mxu0 %v5461
      %v5638 = vpop.f32.mrf.mxu0
      %v5639 = vadd.f32 0.0, %v5638
      %v5640 = vpop.f32.mrf.mxu0
      %v5641 = vadd.f32 0.0, %v5640
      %5642 = vmatmul.bf16.gmra.mxu0 %v5464
      %v5643 = vpop.f32.mrf.mxu0
      %v5644 = vadd.f32 0.0, %v5643
      %v5645 = vpop.f32.mrf.mxu0
      %v5646 = vadd.f32 0.0, %v5645
      %5647 = vdwg.mxu0
      %v5648 = vpack.c.bf16 %v5639, %v5639
      %v5649 = vpack.c.bf16 %v5641, %v5641
      %v5650 = vpack.c.bf16 %v5644, %v5644
      %v5651 = vpack.c.bf16 %v5646, %v5646
      %5652 = vst.msk [vmem:[#allocation4 + $0x50] sm:$0xf] %vm590, %v5648
      %5653 = vst.msk [vmem:[#allocation4 + $0x54] sm:$0xf] %vm590, %v5649
      %5654 = vst.msk [vmem:[#allocation4 + $0x58] sm:$0xf] %vm590, %v5650
      %5655 = vst.msk [vmem:[#allocation4 + $0x5c] sm:$0xf] %vm590, %v5651
      %s5656 = scalar_lea.vmem [#allocation3], 104
      %v5657 = vld [vmem:[%s5656] sm:$0xf]
      %v5659 = vsel %vm1949, %v5657, 0
      %5661 = vmatpush.bf16.msra.mxu0 0
      %5662 = vmatpush.bf16.msra.mxu0 0
      %5663 = vmatpush.bf16.msra.mxu0 0
      %5664 = vmatpush.bf16.msra.mxu0 0
      %5665 = vmatpush.bf16.msra.mxu0 0
      %5666 = vmatpush.bf16.msra.mxu0 0
      %5667 = vmatpush.bf16.msra.mxu0 0
      %5668 = vmatpush.bf16.msra.mxu0 %v5659
      %5669 = vmatmul.bf16.gmra.mxu0 %v5461
      %v5670 = vpop.f32.mrf.mxu0
      %v5671 = vadd.f32 0.0, %v5670
      %v5672 = vpop.f32.mrf.mxu0
      %v5673 = vadd.f32 0.0, %v5672
      %5674 = vmatmul.bf16.gmra.mxu0 %v5464
      %v5675 = vpop.f32.mrf.mxu0
      %v5676 = vadd.f32 0.0, %v5675
      %v5677 = vpop.f32.mrf.mxu0
      %v5678 = vadd.f32 0.0, %v5677
      %5679 = vdwg.mxu0
      %v5680 = vpack.c.bf16 %v5671, %v5671
      %v5681 = vpack.c.bf16 %v5673, %v5673
      %v5682 = vpack.c.bf16 %v5676, %v5676
      %v5683 = vpack.c.bf16 %v5678, %v5678
      %5684 = vst.msk [vmem:[#allocation4 + $0x60] sm:$0xf] %vm590, %v5680
      %5685 = vst.msk [vmem:[#allocation4 + $0x64] sm:$0xf] %vm590, %v5681
      %5686 = vst.msk [vmem:[#allocation4 + $0x68] sm:$0xf] %vm590, %v5682
      %5687 = vst.msk [vmem:[#allocation4 + $0x6c] sm:$0xf] %vm590, %v5683
      %s5688 = scalar_lea.vmem [#allocation3], 120
      %v5689 = vld [vmem:[%s5688] sm:$0xf]
      %v5691 = vsel %vm1949, %v5689, 0
      %5693 = vmatpush.bf16.msra.mxu0 0
      %5694 = vmatpush.bf16.msra.mxu0 0
      %5695 = vmatpush.bf16.msra.mxu0 0
      %5696 = vmatpush.bf16.msra.mxu0 0
      %5697 = vmatpush.bf16.msra.mxu0 0
      %5698 = vmatpush.bf16.msra.mxu0 0
      %5699 = vmatpush.bf16.msra.mxu0 0
      %5700 = vmatpush.bf16.msra.mxu0 %v5691
      %5701 = vmatmul.bf16.gmra.mxu0 %v5461
      %v5702 = vpop.f32.mrf.mxu0
      %v5703 = vadd.f32 0.0, %v5702
      %v5704 = vpop.f32.mrf.mxu0
      %v5705 = vadd.f32 0.0, %v5704
      %5706 = vmatmul.bf16.gmra.mxu0 %v5464
      %v5707 = vpop.f32.mrf.mxu0
      %v5708 = vadd.f32 0.0, %v5707
      %v5709 = vpop.f32.mrf.mxu0
      %v5710 = vadd.f32 0.0, %v5709
      %5711 = vdwg.mxu0
      %v5712 = vpack.c.bf16 %v5703, %v5703
      %v5713 = vpack.c.bf16 %v5705, %v5705
      %v5714 = vpack.c.bf16 %v5708, %v5708
      %v5715 = vpack.c.bf16 %v5710, %v5710
      %5716 = vst.msk [vmem:[#allocation4 + $0x70] sm:$0xf] %vm590, %v5712
      %5717 = vst.msk [vmem:[#allocation4 + $0x74] sm:$0xf] %vm590, %v5713
      %5718 = vst.msk [vmem:[#allocation4 + $0x78] sm:$0xf] %vm590, %v5714
      %5719 = vst.msk [vmem:[#allocation4 + $0x7c] sm:$0xf] %vm590, %v5715
      %s5720 = scalar_lea.vmem [#allocation3], 136
      %v5721 = vld [vmem:[%s5720] sm:$0xf]
      %v5723 = vsel %vm1949, %v5721, 0
      %5725 = vmatpush.bf16.msra.mxu0 0
      %5726 = vmatpush.bf16.msra.mxu0 0
      %5727 = vmatpush.bf16.msra.mxu0 0
      %5728 = vmatpush.bf16.msra.mxu0 0
      %5729 = vmatpush.bf16.msra.mxu0 0
      %5730 = vmatpush.bf16.msra.mxu0 0
      %5731 = vmatpush.bf16.msra.mxu0 0
      %5732 = vmatpush.bf16.msra.mxu0 %v5723
      %5733 = vmatmul.bf16.gmra.mxu0 %v5461
      %v5734 = vpop.f32.mrf.mxu0
      %v5735 = vadd.f32 0.0, %v5734
      %v5736 = vpop.f32.mrf.mxu0
      %v5737 = vadd.f32 0.0, %v5736
      %5738 = vmatmul.bf16.gmra.mxu0 %v5464
      %v5739 = vpop.f32.mrf.mxu0
      %v5740 = vadd.f32 0.0, %v5739
      %v5741 = vpop.f32.mrf.mxu0
      %v5742 = vadd.f32 0.0, %v5741
      %5743 = vdwg.mxu0
      %v5744 = vpack.c.bf16 %v5735, %v5735
      %v5745 = vpack.c.bf16 %v5737, %v5737
      %v5746 = vpack.c.bf16 %v5740, %v5740
      %v5747 = vpack.c.bf16 %v5742, %v5742
      %5748 = vst.msk [vmem:[#allocation4 + $0x80] sm:$0xf] %vm590, %v5744
      %5749 = vst.msk [vmem:[#allocation4 + $0x84] sm:$0xf] %vm590, %v5745
      %5750 = vst.msk [vmem:[#allocation4 + $0x88] sm:$0xf] %vm590, %v5746
      %5751 = vst.msk [vmem:[#allocation4 + $0x8c] sm:$0xf] %vm590, %v5747
      %s5752 = scalar_lea.vmem [#allocation3], 152
      %v5753 = vld [vmem:[%s5752] sm:$0xf]
      %v5755 = vsel %vm1949, %v5753, 0
      %5757 = vmatpush.bf16.msra.mxu0 0
      %5758 = vmatpush.bf16.msra.mxu0 0
      %5759 = vmatpush.bf16.msra.mxu0 0
      %5760 = vmatpush.bf16.msra.mxu0 0
      %5761 = vmatpush.bf16.msra.mxu0 0
      %5762 = vmatpush.bf16.msra.mxu0 0
      %5763 = vmatpush.bf16.msra.mxu0 0
      %5764 = vmatpush.bf16.msra.mxu0 %v5755
      %5765 = vmatmul.bf16.gmra.mxu0 %v5461
      %v5766 = vpop.f32.mrf.mxu0
      %v5767 = vadd.f32 0.0, %v5766
      %v5768 = vpop.f32.mrf.mxu0
      %v5769 = vadd.f32 0.0, %v5768
      %5770 = vmatmul.bf16.gmra.mxu0 %v5464
      %v5771 = vpop.f32.mrf.mxu0
      %v5772 = vadd.f32 0.0, %v5771
      %v5773 = vpop.f32.mrf.mxu0
      %v5774 = vadd.f32 0.0, %v5773
      %5775 = vdwg.mxu0
      %v5776 = vpack.c.bf16 %v5767, %v5767
      %v5777 = vpack.c.bf16 %v5769, %v5769
      %v5778 = vpack.c.bf16 %v5772, %v5772
      %v5779 = vpack.c.bf16 %v5774, %v5774
      %5780 = vst.msk [vmem:[#allocation4 + $0x90] sm:$0xf] %vm590, %v5776
      %5781 = vst.msk [vmem:[#allocation4 + $0x94] sm:$0xf] %vm590, %v5777
      %5782 = vst.msk [vmem:[#allocation4 + $0x98] sm:$0xf] %vm590, %v5778
      %5783 = vst.msk [vmem:[#allocation4 + $0x9c] sm:$0xf] %vm590, %v5779
      %v5784 = vld [vmem:[#allocation4] sm:$0xf]
      %v5785 = vld [vmem:[#allocation4 + $0x4] sm:$0xf]
      %v5786 = vld [vmem:[#allocation4 + $0x8] sm:$0xf]
      %v5787 = vld [vmem:[#allocation4 + $0xc] sm:$0xf]
      %v5788 = vld [vmem:[#allocation4 + $0x10] sm:$0xf]
      %v5789 = vld [vmem:[#allocation4 + $0x14] sm:$0xf]
      %v5790 = vld [vmem:[#allocation4 + $0x18] sm:$0xf]
      %v5791 = vld [vmem:[#allocation4 + $0x1c] sm:$0xf]
      %v5792 = vld [vmem:[#allocation4 + $0x20] sm:$0xf]
      %v5793 = vld [vmem:[#allocation4 + $0x24] sm:$0xf]
      %v5794 = vld [vmem:[#allocation4 + $0x28] sm:$0xf]
      %v5795 = vld [vmem:[#allocation4 + $0x2c] sm:$0xf]
      %v5796 = vld [vmem:[#allocation4 + $0x30] sm:$0xf]
      %v5797 = vld [vmem:[#allocation4 + $0x34] sm:$0xf]
      %v5798 = vld [vmem:[#allocation4 + $0x38] sm:$0xf]
      %v5799 = vld [vmem:[#allocation4 + $0x3c] sm:$0xf]
      %v5800 = vld [vmem:[#allocation4 + $0x40] sm:$0xf]
      %v5801 = vld [vmem:[#allocation4 + $0x44] sm:$0xf]
      %v5802 = vld [vmem:[#allocation4 + $0x48] sm:$0xf]
      %v5803 = vld [vmem:[#allocation4 + $0x4c] sm:$0xf]
      %v5804 = vld [vmem:[#allocation4 + $0x50] sm:$0xf]
      %v5805 = vld [vmem:[#allocation4 + $0x54] sm:$0xf]
      %v5806 = vld [vmem:[#allocation4 + $0x58] sm:$0xf]
      %v5807 = vld [vmem:[#allocation4 + $0x5c] sm:$0xf]
      %v5808 = vld [vmem:[#allocation4 + $0x60] sm:$0xf]
      %v5809 = vld [vmem:[#allocation4 + $0x64] sm:$0xf]
      %v5810 = vld [vmem:[#allocation4 + $0x68] sm:$0xf]
      %v5811 = vld [vmem:[#allocation4 + $0x6c] sm:$0xf]
      %v5812 = vld [vmem:[#allocation4 + $0x70] sm:$0xf]
      %v5813 = vld [vmem:[#allocation4 + $0x74] sm:$0xf]
      %v5814 = vld [vmem:[#allocation4 + $0x78] sm:$0xf]
      %v5815 = vld [vmem:[#allocation4 + $0x7c] sm:$0xf]
      %s5816 = scalar_lea.vmem %s564, 36
      %v5817 = vld [vmem:[%s5816] sm:$0x3]
      %v5850 = vunpack.c.l.b16 %v5784
      %v5851 = vunpack.c.l.b16 %v5785
      %v5852 = vunpack.c.l.b16 %v5786
      %v5853 = vunpack.c.l.b16 %v5787
      %v5854 = vunpack.c.l.b16 %v5788
      %v5855 = vunpack.c.l.b16 %v5789
      %v5856 = vunpack.c.l.b16 %v5790
      %v5857 = vunpack.c.l.b16 %v5791
      %v5858 = vunpack.c.l.b16 %v5792
      %v5859 = vunpack.c.l.b16 %v5793
      %v5860 = vunpack.c.l.b16 %v5794
      %v5861 = vunpack.c.l.b16 %v5795
      %v5862 = vunpack.c.l.b16 %v5796
      %v5863 = vunpack.c.l.b16 %v5797
      %v5864 = vunpack.c.l.b16 %v5798
      %v5865 = vunpack.c.l.b16 %v5799
      %v5866 = vunpack.c.l.b16 %v5800
      %v5867 = vunpack.c.l.b16 %v5801
      %v5868 = vunpack.c.l.b16 %v5802
      %v5869 = vunpack.c.l.b16 %v5803
      %v5870 = vunpack.c.l.b16 %v5804
      %v5871 = vunpack.c.l.b16 %v5805
      %v5872 = vunpack.c.l.b16 %v5806
      %v5873 = vunpack.c.l.b16 %v5807
      %v5874 = vunpack.c.l.b16 %v5808
      %v5875 = vunpack.c.l.b16 %v5809
      %v5876 = vunpack.c.l.b16 %v5810
      %v5877 = vunpack.c.l.b16 %v5811
      %v5878 = vunpack.c.l.b16 %v5812
      %v5879 = vunpack.c.l.b16 %v5813
      %v5880 = vunpack.c.l.b16 %v5814
      %v5881 = vunpack.c.l.b16 %v5815
      %v5882 = vpack.c.b16 %v5851, %v5850
      %v5883 = vpack.c.b16 %v5853, %v5852
      %v5884 = vpack.c.b16 %v5855, %v5854
      %v5885 = vpack.c.b16 %v5857, %v5856
      %v5886 = vpack.c.b16 %v5859, %v5858
      %v5887 = vpack.c.b16 %v5861, %v5860
      %v5888 = vpack.c.b16 %v5863, %v5862
      %v5889 = vpack.c.b16 %v5865, %v5864
      %v5890 = vpack.c.b16 %v5867, %v5866
      %v5891 = vpack.c.b16 %v5869, %v5868
      %v5892 = vpack.c.b16 %v5871, %v5870
      %v5893 = vpack.c.b16 %v5873, %v5872
      %v5894 = vpack.c.b16 %v5875, %v5874
      %v5895 = vpack.c.b16 %v5877, %v5876
      %v5896 = vpack.c.b16 %v5879, %v5878
      %v5897 = vpack.c.b16 %v5881, %v5880
      %v5899 = vsel %vm895, %v5882, 0
      %v5902 = vsel %vm895, %v5883, 0
      %v5905 = vsel %vm895, %v5884, 0
      %v5908 = vsel %vm895, %v5885, 0
      %v5911 = vsel %vm895, %v5886, 0
      %v5914 = vsel %vm895, %v5887, 0
      %v5917 = vsel %vm895, %v5888, 0
      %v5920 = vsel %vm895, %v5889, 0
      %v5923 = vsel %vm895, %v5890, 0
      %v5926 = vsel %vm895, %v5891, 0
      %v5929 = vsel %vm895, %v5892, 0
      %v5932 = vsel %vm895, %v5893, 0
      %v5935 = vsel %vm895, %v5894, 0
      %v5938 = vsel %vm895, %v5895, 0
      %v5941 = vsel %vm895, %v5896, 0
      %v5944 = vsel %vm895, %v5897, 0
      %v5947 = vsel %vm944, %v5817, 0
      %5949 = vmatpush.bf16.msra.mxu0 0
      %5950 = vmatpush.bf16.msra.mxu0 0
      %5951 = vmatpush.bf16.msra.mxu0 0
      %5952 = vmatpush.bf16.msra.mxu0 0
      %5953 = vmatpush.bf16.msra.mxu0 0
      %5954 = vmatpush.bf16.msra.mxu0 0
      %5955 = vmatpush.bf16.msra.mxu0 0
      %5956 = vmatpush.bf16.msra.mxu0 %v5947
      %5957 = vmatmul.bf16.gmra.mxu0 %v5899
      %v5958 = vpop.f32.mrf.mxu0
      %v5959 = vadd.f32 0.0, %v5958
      %v5960 = vpop.f32.mrf.mxu0
      %v5961 = vadd.f32 0.0, %v5960
      %5962 = vmatmul.bf16.gmra.mxu0 %v5902
      %v5963 = vpop.f32.mrf.mxu0
      %v5964 = vpop.f32.mrf.mxu0
      %5965 = vmatmul.bf16.gmra.mxu0 %v5905
      %v5966 = vpop.f32.mrf.mxu0
      %v5967 = vadd.f32 0.0, %v5966
      %v5968 = vpop.f32.mrf.mxu0
      %v5969 = vadd.f32 0.0, %v5968
      %5970 = vmatmul.bf16.gmra.mxu0 %v5908
      %v5971 = vpop.f32.mrf.mxu0
      %v5972 = vpop.f32.mrf.mxu0
      %5973 = vmatmul.bf16.gmra.mxu0 %v5911
      %v5974 = vpop.f32.mrf.mxu0
      %v5975 = vadd.f32 0.0, %v5974
      %v5976 = vpop.f32.mrf.mxu0
      %v5977 = vadd.f32 0.0, %v5976
      %5978 = vmatmul.bf16.gmra.mxu0 %v5914
      %v5979 = vpop.f32.mrf.mxu0
      %v5980 = vpop.f32.mrf.mxu0
      %5981 = vmatmul.bf16.gmra.mxu0 %v5917
      %v5982 = vpop.f32.mrf.mxu0
      %v5983 = vadd.f32 0.0, %v5982
      %v5984 = vpop.f32.mrf.mxu0
      %v5985 = vadd.f32 0.0, %v5984
      %5986 = vmatmul.bf16.gmra.mxu0 %v5920
      %v5987 = vpop.f32.mrf.mxu0
      %v5988 = vpop.f32.mrf.mxu0
      %5989 = vmatmul.bf16.gmra.mxu0 %v5923
      %v5990 = vpop.f32.mrf.mxu0
      %v5991 = vadd.f32 0.0, %v5990
      %v5992 = vpop.f32.mrf.mxu0
      %v5993 = vadd.f32 0.0, %v5992
      %5994 = vmatmul.bf16.gmra.mxu0 %v5926
      %v5995 = vpop.f32.mrf.mxu0
      %v5996 = vpop.f32.mrf.mxu0
      %5997 = vmatmul.bf16.gmra.mxu0 %v5929
      %v5998 = vpop.f32.mrf.mxu0
      %v5999 = vadd.f32 0.0, %v5998
      %v6000 = vpop.f32.mrf.mxu0
      %v6001 = vadd.f32 0.0, %v6000
      %6002 = vmatmul.bf16.gmra.mxu0 %v5932
      %v6003 = vpop.f32.mrf.mxu0
      %v6004 = vpop.f32.mrf.mxu0
      %6005 = vmatmul.bf16.gmra.mxu0 %v5935
      %v6006 = vpop.f32.mrf.mxu0
      %v6007 = vadd.f32 0.0, %v6006
      %v6008 = vpop.f32.mrf.mxu0
      %v6009 = vadd.f32 0.0, %v6008
      %6010 = vmatmul.bf16.gmra.mxu0 %v5938
      %v6011 = vpop.f32.mrf.mxu0
      %v6012 = vpop.f32.mrf.mxu0
      %6013 = vmatmul.bf16.gmra.mxu0 %v5941
      %v6014 = vpop.f32.mrf.mxu0
      %v6015 = vadd.f32 0.0, %v6014
      %v6016 = vpop.f32.mrf.mxu0
      %v6017 = vadd.f32 0.0, %v6016
      %6018 = vmatmul.bf16.gmra.mxu0 %v5944
      %v6019 = vpop.f32.mrf.mxu0
      %v6020 = vpop.f32.mrf.mxu0
      %6021 = vdwg.mxu0
      %v6022 = vadd.f32 %v5207, %v5959
      %v6023 = vadd.f32 %v5208, %v5961
      %v6024 = vadd.f32 %v5209, %v5967
      %v6025 = vadd.f32 %v5210, %v5969
      %v6026 = vadd.f32 %v5211, %v5975
      %v6027 = vadd.f32 %v5212, %v5977
      %v6028 = vadd.f32 %v5213, %v5983
      %v6029 = vadd.f32 %v5214, %v5985
      %v6030 = vadd.f32 %v5215, %v5991
      %v6031 = vadd.f32 %v5216, %v5993
      %v6032 = vadd.f32 %v5217, %v5999
      %v6033 = vadd.f32 %v5218, %v6001
      %v6034 = vadd.f32 %v5219, %v6007
      %v6035 = vadd.f32 %v5220, %v6009
      %v6036 = vadd.f32 %v5221, %v6015
      %v6037 = vadd.f32 %v5222, %v6017
      %s6038 = scalar_lea.vmem %s564, 38
      %v6039 = vld [vmem:[%s6038] sm:$0x3]
      %v6041 = vsel %vm944, %v6039, 0
      %6043 = vmatpush.bf16.msra.mxu0 0
      %6044 = vmatpush.bf16.msra.mxu0 0
      %6045 = vmatpush.bf16.msra.mxu0 0
      %6046 = vmatpush.bf16.msra.mxu0 0
      %6047 = vmatpush.bf16.msra.mxu0 0
      %6048 = vmatpush.bf16.msra.mxu0 0
      %6049 = vmatpush.bf16.msra.mxu0 0
      %6050 = vmatpush.bf16.msra.mxu0 %v6041
      %6051 = vmatmul.bf16.gmra.mxu0 %v5899
      %v6052 = vpop.f32.mrf.mxu0
      %v6053 = vadd.f32 0.0, %v6052
      %v6054 = vpop.f32.mrf.mxu0
      %v6055 = vadd.f32 0.0, %v6054
      %6056 = vmatmul.bf16.gmra.mxu0 %v5902
      %v6057 = vpop.f32.mrf.mxu0
      %v6058 = vadd.f32 0.0, %v6057
      %v6059 = vpop.f32.mrf.mxu0
      %6060 = vmatmul.bf16.gmra.mxu0 %v5905
      %v6061 = vpop.f32.mrf.mxu0
      %v6062 = vadd.f32 0.0, %v6061
      %v6063 = vpop.f32.mrf.mxu0
      %v6064 = vadd.f32 0.0, %v6063
      %6065 = vmatmul.bf16.gmra.mxu0 %v5908
      %v6066 = vpop.f32.mrf.mxu0
      %v6067 = vadd.f32 0.0, %v6066
      %v6068 = vpop.f32.mrf.mxu0
      %6069 = vmatmul.bf16.gmra.mxu0 %v5911
      %v6070 = vpop.f32.mrf.mxu0
      %v6071 = vadd.f32 0.0, %v6070
      %v6072 = vpop.f32.mrf.mxu0
      %v6073 = vadd.f32 0.0, %v6072
      %6074 = vmatmul.bf16.gmra.mxu0 %v5914
      %v6075 = vpop.f32.mrf.mxu0
      %v6076 = vadd.f32 0.0, %v6075
      %v6077 = vpop.f32.mrf.mxu0
      %6078 = vmatmul.bf16.gmra.mxu0 %v5917
      %v6079 = vpop.f32.mrf.mxu0
      %v6080 = vadd.f32 0.0, %v6079
      %v6081 = vpop.f32.mrf.mxu0
      %v6082 = vadd.f32 0.0, %v6081
      %6083 = vmatmul.bf16.gmra.mxu0 %v5920
      %v6084 = vpop.f32.mrf.mxu0
      %v6085 = vadd.f32 0.0, %v6084
      %v6086 = vpop.f32.mrf.mxu0
      %6087 = vmatmul.bf16.gmra.mxu0 %v5923
      %v6088 = vpop.f32.mrf.mxu0
      %v6089 = vadd.f32 0.0, %v6088
      %v6090 = vpop.f32.mrf.mxu0
      %v6091 = vadd.f32 0.0, %v6090
      %6092 = vmatmul.bf16.gmra.mxu0 %v5926
      %v6093 = vpop.f32.mrf.mxu0
      %v6094 = vadd.f32 0.0, %v6093
      %v6095 = vpop.f32.mrf.mxu0
      %6096 = vmatmul.bf16.gmra.mxu0 %v5929
      %v6097 = vpop.f32.mrf.mxu0
      %v6098 = vadd.f32 0.0, %v6097
      %v6099 = vpop.f32.mrf.mxu0
      %v6100 = vadd.f32 0.0, %v6099
      %6101 = vmatmul.bf16.gmra.mxu0 %v5932
      %v6102 = vpop.f32.mrf.mxu0
      %v6103 = vadd.f32 0.0, %v6102
      %v6104 = vpop.f32.mrf.mxu0
      %6105 = vmatmul.bf16.gmra.mxu0 %v5935
      %v6106 = vpop.f32.mrf.mxu0
      %v6107 = vadd.f32 0.0, %v6106
      %v6108 = vpop.f32.mrf.mxu0
      %v6109 = vadd.f32 0.0, %v6108
      %6110 = vmatmul.bf16.gmra.mxu0 %v5938
      %v6111 = vpop.f32.mrf.mxu0
      %v6112 = vadd.f32 0.0, %v6111
      %v6113 = vpop.f32.mrf.mxu0
      %6114 = vmatmul.bf16.gmra.mxu0 %v5941
      %v6115 = vpop.f32.mrf.mxu0
      %v6116 = vadd.f32 0.0, %v6115
      %v6117 = vpop.f32.mrf.mxu0
      %v6118 = vadd.f32 0.0, %v6117
      %6119 = vmatmul.bf16.gmra.mxu0 %v5944
      %v6120 = vpop.f32.mrf.mxu0
      %v6121 = vadd.f32 0.0, %v6120
      %v6122 = vpop.f32.mrf.mxu0
      %6123 = vdwg.mxu0
      %v6124 = vadd.f32 %v5309, %v6053
      %v6125 = vadd.f32 %v5310, %v6055
      %v6126 = vadd.f32 %v5311, %v6058
      %v6127 = vadd.f32 %v5312, %v6062
      %v6128 = vadd.f32 %v5313, %v6064
      %v6129 = vadd.f32 %v5314, %v6067
      %v6130 = vadd.f32 %v5315, %v6071
      %v6131 = vadd.f32 %v5316, %v6073
      %v6132 = vadd.f32 %v5317, %v6076
      %v6133 = vadd.f32 %v5318, %v6080
      %v6134 = vadd.f32 %v5319, %v6082
      %v6135 = vadd.f32 %v5320, %v6085
      %v6136 = vadd.f32 %v5321, %v6089
      %v6137 = vadd.f32 %v5322, %v6091
      %v6138 = vadd.f32 %v5323, %v6094
      %v6139 = vadd.f32 %v5324, %v6098
      %v6140 = vadd.f32 %v5325, %v6100
      %v6141 = vadd.f32 %v5326, %v6103
      %v6142 = vadd.f32 %v5327, %v6107
      %v6143 = vadd.f32 %v5328, %v6109
      %v6144 = vadd.f32 %v5329, %v6112
      %v6145 = vadd.f32 %v5330, %v6116
      %v6146 = vadd.f32 %v5331, %v6118
      %v6147 = vadd.f32 %v5332, %v6121
      %s6148 = scalar_lea.vmem %s564, 40
      %v6149 = vld [vmem:[%s6148] sm:$0x3]
      %v6151 = vsel %vm944, %v6149, 0
      %6153 = vmatpush.bf16.msra.mxu0 0
      %6154 = vmatpush.bf16.msra.mxu0 0
      %6155 = vmatpush.bf16.msra.mxu0 0
      %6156 = vmatpush.bf16.msra.mxu0 0
      %6157 = vmatpush.bf16.msra.mxu0 0
      %6158 = vmatpush.bf16.msra.mxu0 0
      %6159 = vmatpush.bf16.msra.mxu0 0
      %6160 = vmatpush.bf16.msra.mxu0 %v6151
      %6161 = vmatmul.bf16.gmra.mxu0 %v5899
      %v6162 = vpop.f32.mrf.mxu0
      %v6163 = vadd.f32 0.0, %v6162
      %v6164 = vpop.f32.mrf.mxu0
      %v6165 = vadd.f32 0.0, %v6164
      %6166 = vmatmul.bf16.gmra.mxu0 %v5902
      %v6167 = vpop.f32.mrf.mxu0
      %v6168 = vadd.f32 0.0, %v6167
      %v6169 = vpop.f32.mrf.mxu0
      %6170 = vmatmul.bf16.gmra.mxu0 %v5905
      %v6171 = vpop.f32.mrf.mxu0
      %v6172 = vadd.f32 0.0, %v6171
      %v6173 = vpop.f32.mrf.mxu0
      %v6174 = vadd.f32 0.0, %v6173
      %6175 = vmatmul.bf16.gmra.mxu0 %v5908
      %v6176 = vpop.f32.mrf.mxu0
      %v6177 = vadd.f32 0.0, %v6176
      %v6178 = vpop.f32.mrf.mxu0
      %6179 = vmatmul.bf16.gmra.mxu0 %v5911
      %v6180 = vpop.f32.mrf.mxu0
      %v6181 = vadd.f32 0.0, %v6180
      %v6182 = vpop.f32.mrf.mxu0
      %v6183 = vadd.f32 0.0, %v6182
      %6184 = vmatmul.bf16.gmra.mxu0 %v5914
      %v6185 = vpop.f32.mrf.mxu0
      %v6186 = vadd.f32 0.0, %v6185
      %v6187 = vpop.f32.mrf.mxu0
      %6188 = vmatmul.bf16.gmra.mxu0 %v5917
      %v6189 = vpop.f32.mrf.mxu0
      %v6190 = vadd.f32 0.0, %v6189
      %v6191 = vpop.f32.mrf.mxu0
      %v6192 = vadd.f32 0.0, %v6191
      %6193 = vmatmul.bf16.gmra.mxu0 %v5920
      %v6194 = vpop.f32.mrf.mxu0
      %v6195 = vadd.f32 0.0, %v6194
      %v6196 = vpop.f32.mrf.mxu0
      %6197 = vmatmul.bf16.gmra.mxu0 %v5923
      %v6198 = vpop.f32.mrf.mxu0
      %v6199 = vadd.f32 0.0, %v6198
      %v6200 = vpop.f32.mrf.mxu0
      %v6201 = vadd.f32 0.0, %v6200
      %6202 = vmatmul.bf16.gmra.mxu0 %v5926
      %v6203 = vpop.f32.mrf.mxu0
      %v6204 = vadd.f32 0.0, %v6203
      %v6205 = vpop.f32.mrf.mxu0
      %6206 = vmatmul.bf16.gmra.mxu0 %v5929
      %v6207 = vpop.f32.mrf.mxu0
      %v6208 = vadd.f32 0.0, %v6207
      %v6209 = vpop.f32.mrf.mxu0
      %v6210 = vadd.f32 0.0, %v6209
      %6211 = vmatmul.bf16.gmra.mxu0 %v5932
      %v6212 = vpop.f32.mrf.mxu0
      %v6213 = vadd.f32 0.0, %v6212
      %v6214 = vpop.f32.mrf.mxu0
      %6215 = vmatmul.bf16.gmra.mxu0 %v5935
      %v6216 = vpop.f32.mrf.mxu0
      %v6217 = vadd.f32 0.0, %v6216
      %v6218 = vpop.f32.mrf.mxu0
      %v6219 = vadd.f32 0.0, %v6218
      %6220 = vmatmul.bf16.gmra.mxu0 %v5938
      %v6221 = vpop.f32.mrf.mxu0
      %v6222 = vadd.f32 0.0, %v6221
      %v6223 = vpop.f32.mrf.mxu0
      %6224 = vmatmul.bf16.gmra.mxu0 %v5941
      %v6225 = vpop.f32.mrf.mxu0
      %v6226 = vadd.f32 0.0, %v6225
      %v6227 = vpop.f32.mrf.mxu0
      %v6228 = vadd.f32 0.0, %v6227
      %6229 = vmatmul.bf16.gmra.mxu0 %v5944
      %v6230 = vpop.f32.mrf.mxu0
      %v6231 = vadd.f32 0.0, %v6230
      %v6232 = vpop.f32.mrf.mxu0
      %6233 = vdwg.mxu0
      %v6234 = vadd.f32 %v5419, %v6163
      %v6235 = vadd.f32 %v5420, %v6165
      %v6236 = vadd.f32 %v5421, %v6168
      %v6237 = vadd.f32 %v5422, %v6172
      %v6238 = vadd.f32 %v5423, %v6174
      %v6239 = vadd.f32 %v5424, %v6177
      %v6240 = vadd.f32 %v5425, %v6181
      %v6241 = vadd.f32 %v5426, %v6183
      %v6242 = vadd.f32 %v5427, %v6186
      %v6243 = vadd.f32 %v5428, %v6190
      %v6244 = vadd.f32 %v5429, %v6192
      %v6245 = vadd.f32 %v5430, %v6195
      %v6246 = vadd.f32 %v5431, %v6199
      %v6247 = vadd.f32 %v5432, %v6201
      %v6248 = vadd.f32 %v5433, %v6204
      %v6249 = vadd.f32 %v5434, %v6208
      %v6250 = vadd.f32 %v5435, %v6210
      %v6251 = vadd.f32 %v5436, %v6213
      %v6252 = vadd.f32 %v5437, %v6217
      %v6253 = vadd.f32 %v5438, %v6219
      %v6254 = vadd.f32 %v5439, %v6222
      %v6255 = vadd.f32 %v5440, %v6226
      %v6256 = vadd.f32 %v5441, %v6228
      %v6257 = vadd.f32 %v5442, %v6231
      %v6258 = vld [vmem:[#allocation4 + $0x10] sm:$0xf]
      %v6259 = vld [vmem:[#allocation4 + $0x14] sm:$0xf]
      %v6260 = vld [vmem:[#allocation4 + $0x18] sm:$0xf]
      %v6261 = vld [vmem:[#allocation4 + $0x1c] sm:$0xf]
      %v6262 = vld [vmem:[#allocation4 + $0x20] sm:$0xf]
      %v6263 = vld [vmem:[#allocation4 + $0x24] sm:$0xf]
      %v6264 = vld [vmem:[#allocation4 + $0x28] sm:$0xf]
      %v6265 = vld [vmem:[#allocation4 + $0x2c] sm:$0xf]
      %v6266 = vld [vmem:[#allocation4 + $0x30] sm:$0xf]
      %v6267 = vld [vmem:[#allocation4 + $0x34] sm:$0xf]
      %v6268 = vld [vmem:[#allocation4 + $0x38] sm:$0xf]
      %v6269 = vld [vmem:[#allocation4 + $0x3c] sm:$0xf]
      %v6270 = vld [vmem:[#allocation4 + $0x40] sm:$0xf]
      %v6271 = vld [vmem:[#allocation4 + $0x44] sm:$0xf]
      %v6272 = vld [vmem:[#allocation4 + $0x48] sm:$0xf]
      %v6273 = vld [vmem:[#allocation4 + $0x4c] sm:$0xf]
      %v6274 = vld [vmem:[#allocation4 + $0x50] sm:$0xf]
      %v6275 = vld [vmem:[#allocation4 + $0x54] sm:$0xf]
      %v6276 = vld [vmem:[#allocation4 + $0x58] sm:$0xf]
      %v6277 = vld [vmem:[#allocation4 + $0x5c] sm:$0xf]
      %v6278 = vld [vmem:[#allocation4 + $0x60] sm:$0xf]
      %v6279 = vld [vmem:[#allocation4 + $0x64] sm:$0xf]
      %v6280 = vld [vmem:[#allocation4 + $0x68] sm:$0xf]
      %v6281 = vld [vmem:[#allocation4 + $0x6c] sm:$0xf]
      %v6282 = vld [vmem:[#allocation4 + $0x70] sm:$0xf]
      %v6283 = vld [vmem:[#allocation4 + $0x74] sm:$0xf]
      %v6284 = vld [vmem:[#allocation4 + $0x78] sm:$0xf]
      %v6285 = vld [vmem:[#allocation4 + $0x7c] sm:$0xf]
      %v6286 = vld [vmem:[#allocation4 + $0x80] sm:$0xf]
      %v6287 = vld [vmem:[#allocation4 + $0x84] sm:$0xf]
      %v6288 = vld [vmem:[#allocation4 + $0x88] sm:$0xf]
      %v6289 = vld [vmem:[#allocation4 + $0x8c] sm:$0xf]
      %s6290 = scalar_lea.vmem %s564, 42
      %v6291 = vld [vmem:[%s6290] sm:$0x3]
      %v6324 = vunpack.c.l.b16 %v6258
      %v6325 = vunpack.c.l.b16 %v6259
      %v6326 = vunpack.c.l.b16 %v6260
      %v6327 = vunpack.c.l.b16 %v6261
      %v6328 = vunpack.c.l.b16 %v6262
      %v6329 = vunpack.c.l.b16 %v6263
      %v6330 = vunpack.c.l.b16 %v6264
      %v6331 = vunpack.c.l.b16 %v6265
      %v6332 = vunpack.c.l.b16 %v6266
      %v6333 = vunpack.c.l.b16 %v6267
      %v6334 = vunpack.c.l.b16 %v6268
      %v6335 = vunpack.c.l.b16 %v6269
      %v6336 = vunpack.c.l.b16 %v6270
      %v6337 = vunpack.c.l.b16 %v6271
      %v6338 = vunpack.c.l.b16 %v6272
      %v6339 = vunpack.c.l.b16 %v6273
      %v6340 = vunpack.c.l.b16 %v6274
      %v6341 = vunpack.c.l.b16 %v6275
      %v6342 = vunpack.c.l.b16 %v6276
      %v6343 = vunpack.c.l.b16 %v6277
      %v6344 = vunpack.c.l.b16 %v6278
      %v6345 = vunpack.c.l.b16 %v6279
      %v6346 = vunpack.c.l.b16 %v6280
      %v6347 = vunpack.c.l.b16 %v6281
      %v6348 = vunpack.c.l.b16 %v6282
      %v6349 = vunpack.c.l.b16 %v6283
      %v6350 = vunpack.c.l.b16 %v6284
      %v6351 = vunpack.c.l.b16 %v6285
      %v6352 = vunpack.c.l.b16 %v6286
      %v6353 = vunpack.c.l.b16 %v6287
      %v6354 = vunpack.c.l.b16 %v6288
      %v6355 = vunpack.c.l.b16 %v6289
      %v6356 = vpack.c.b16 %v6325, %v6324
      %v6357 = vpack.c.b16 %v6327, %v6326
      %v6358 = vpack.c.b16 %v6329, %v6328
      %v6359 = vpack.c.b16 %v6331, %v6330
      %v6360 = vpack.c.b16 %v6333, %v6332
      %v6361 = vpack.c.b16 %v6335, %v6334
      %v6362 = vpack.c.b16 %v6337, %v6336
      %v6363 = vpack.c.b16 %v6339, %v6338
      %v6364 = vpack.c.b16 %v6341, %v6340
      %v6365 = vpack.c.b16 %v6343, %v6342
      %v6366 = vpack.c.b16 %v6345, %v6344
      %v6367 = vpack.c.b16 %v6347, %v6346
      %v6368 = vpack.c.b16 %v6349, %v6348
      %v6369 = vpack.c.b16 %v6351, %v6350
      %v6370 = vpack.c.b16 %v6353, %v6352
      %v6371 = vpack.c.b16 %v6355, %v6354
      %v6373 = vsel %vm895, %v6356, 0
      %v6376 = vsel %vm895, %v6357, 0
      %v6379 = vsel %vm895, %v6358, 0
      %v6382 = vsel %vm895, %v6359, 0
      %v6385 = vsel %vm895, %v6360, 0
      %v6388 = vsel %vm895, %v6361, 0
      %v6391 = vsel %vm895, %v6362, 0
      %v6394 = vsel %vm895, %v6363, 0
      %v6397 = vsel %vm895, %v6364, 0
      %v6400 = vsel %vm895, %v6365, 0
      %v6403 = vsel %vm895, %v6366, 0
      %v6406 = vsel %vm895, %v6367, 0
      %v6409 = vsel %vm895, %v6368, 0
      %v6412 = vsel %vm895, %v6369, 0
      %v6415 = vsel %vm895, %v6370, 0
      %v6418 = vsel %vm895, %v6371, 0
      %v6421 = vsel %vm944, %v6291, 0
      %6423 = vmatpush.bf16.msra.mxu0 0
      %6424 = vmatpush.bf16.msra.mxu0 0
      %6425 = vmatpush.bf16.msra.mxu0 0
      %6426 = vmatpush.bf16.msra.mxu0 0
      %6427 = vmatpush.bf16.msra.mxu0 0
      %6428 = vmatpush.bf16.msra.mxu0 0
      %6429 = vmatpush.bf16.msra.mxu0 0
      %6430 = vmatpush.bf16.msra.mxu0 %v6421
      %6431 = vmatmul.bf16.gmra.mxu0 %v6373
      %v6432 = vpop.f32.mrf.mxu0
      %v6433 = vadd.f32 0.0, %v6432
      %v6434 = vpop.f32.mrf.mxu0
      %v6435 = vadd.f32 0.0, %v6434
      %6436 = vmatmul.bf16.gmra.mxu0 %v6376
      %v6437 = vpop.f32.mrf.mxu0
      %v6438 = vpop.f32.mrf.mxu0
      %6439 = vmatmul.bf16.gmra.mxu0 %v6379
      %v6440 = vpop.f32.mrf.mxu0
      %v6441 = vadd.f32 0.0, %v6440
      %v6442 = vpop.f32.mrf.mxu0
      %v6443 = vadd.f32 0.0, %v6442
      %6444 = vmatmul.bf16.gmra.mxu0 %v6382
      %v6445 = vpop.f32.mrf.mxu0
      %v6446 = vpop.f32.mrf.mxu0
      %6447 = vmatmul.bf16.gmra.mxu0 %v6385
      %v6448 = vpop.f32.mrf.mxu0
      %v6449 = vadd.f32 0.0, %v6448
      %v6450 = vpop.f32.mrf.mxu0
      %v6451 = vadd.f32 0.0, %v6450
      %6452 = vmatmul.bf16.gmra.mxu0 %v6388
      %v6453 = vpop.f32.mrf.mxu0
      %v6454 = vpop.f32.mrf.mxu0
      %6455 = vmatmul.bf16.gmra.mxu0 %v6391
      %v6456 = vpop.f32.mrf.mxu0
      %v6457 = vadd.f32 0.0, %v6456
      %v6458 = vpop.f32.mrf.mxu0
      %v6459 = vadd.f32 0.0, %v6458
      %6460 = vmatmul.bf16.gmra.mxu0 %v6394
      %v6461 = vpop.f32.mrf.mxu0
      %v6462 = vpop.f32.mrf.mxu0
      %6463 = vmatmul.bf16.gmra.mxu0 %v6397
      %v6464 = vpop.f32.mrf.mxu0
      %v6465 = vadd.f32 0.0, %v6464
      %v6466 = vpop.f32.mrf.mxu0
      %v6467 = vadd.f32 0.0, %v6466
      %6468 = vmatmul.bf16.gmra.mxu0 %v6400
      %v6469 = vpop.f32.mrf.mxu0
      %v6470 = vpop.f32.mrf.mxu0
      %6471 = vmatmul.bf16.gmra.mxu0 %v6403
      %v6472 = vpop.f32.mrf.mxu0
      %v6473 = vadd.f32 0.0, %v6472
      %v6474 = vpop.f32.mrf.mxu0
      %v6475 = vadd.f32 0.0, %v6474
      %6476 = vmatmul.bf16.gmra.mxu0 %v6406
      %v6477 = vpop.f32.mrf.mxu0
      %v6478 = vpop.f32.mrf.mxu0
      %6479 = vmatmul.bf16.gmra.mxu0 %v6409
      %v6480 = vpop.f32.mrf.mxu0
      %v6481 = vadd.f32 0.0, %v6480
      %v6482 = vpop.f32.mrf.mxu0
      %v6483 = vadd.f32 0.0, %v6482
      %6484 = vmatmul.bf16.gmra.mxu0 %v6412
      %v6485 = vpop.f32.mrf.mxu0
      %v6486 = vpop.f32.mrf.mxu0
      %6487 = vmatmul.bf16.gmra.mxu0 %v6415
      %v6488 = vpop.f32.mrf.mxu0
      %v6489 = vadd.f32 0.0, %v6488
      %v6490 = vpop.f32.mrf.mxu0
      %v6491 = vadd.f32 0.0, %v6490
      %6492 = vmatmul.bf16.gmra.mxu0 %v6418
      %v6493 = vpop.f32.mrf.mxu0
      %v6494 = vpop.f32.mrf.mxu0
      %6495 = vdwg.mxu0
      %v6496 = vadd.f32 %v6022, %v6433
      %v6497 = vadd.f32 %v6023, %v6435
      %v6498 = vadd.f32 %v6024, %v6441
      %v6499 = vadd.f32 %v6025, %v6443
      %v6500 = vadd.f32 %v6026, %v6449
      %v6501 = vadd.f32 %v6027, %v6451
      %v6502 = vadd.f32 %v6028, %v6457
      %v6503 = vadd.f32 %v6029, %v6459
      %v6504 = vadd.f32 %v6030, %v6465
      %v6505 = vadd.f32 %v6031, %v6467
      %v6506 = vadd.f32 %v6032, %v6473
      %v6507 = vadd.f32 %v6033, %v6475
      %v6508 = vadd.f32 %v6034, %v6481
      %v6509 = vadd.f32 %v6035, %v6483
      %v6510 = vadd.f32 %v6036, %v6489
      %v6511 = vadd.f32 %v6037, %v6491
      %s6512 = scalar_lea.vmem %s564, 44
      %v6513 = vld [vmem:[%s6512] sm:$0x3]
      %v6515 = vsel %vm944, %v6513, 0
      %6517 = vmatpush.bf16.msra.mxu0 0
      %6518 = vmatpush.bf16.msra.mxu0 0
      %6519 = vmatpush.bf16.msra.mxu0 0
      %6520 = vmatpush.bf16.msra.mxu0 0
      %6521 = vmatpush.bf16.msra.mxu0 0
      %6522 = vmatpush.bf16.msra.mxu0 0
      %6523 = vmatpush.bf16.msra.mxu0 0
      %6524 = vmatpush.bf16.msra.mxu0 %v6515
      %6525 = vmatmul.bf16.gmra.mxu0 %v6373
      %v6526 = vpop.f32.mrf.mxu0
      %v6527 = vadd.f32 0.0, %v6526
      %v6528 = vpop.f32.mrf.mxu0
      %v6529 = vadd.f32 0.0, %v6528
      %6530 = vmatmul.bf16.gmra.mxu0 %v6376
      %v6531 = vpop.f32.mrf.mxu0
      %v6532 = vadd.f32 0.0, %v6531
      %v6533 = vpop.f32.mrf.mxu0
      %6534 = vmatmul.bf16.gmra.mxu0 %v6379
      %v6535 = vpop.f32.mrf.mxu0
      %v6536 = vadd.f32 0.0, %v6535
      %v6537 = vpop.f32.mrf.mxu0
      %v6538 = vadd.f32 0.0, %v6537
      %6539 = vmatmul.bf16.gmra.mxu0 %v6382
      %v6540 = vpop.f32.mrf.mxu0
      %v6541 = vadd.f32 0.0, %v6540
      %v6542 = vpop.f32.mrf.mxu0
      %6543 = vmatmul.bf16.gmra.mxu0 %v6385
      %v6544 = vpop.f32.mrf.mxu0
      %v6545 = vadd.f32 0.0, %v6544
      %v6546 = vpop.f32.mrf.mxu0
      %v6547 = vadd.f32 0.0, %v6546
      %6548 = vmatmul.bf16.gmra.mxu0 %v6388
      %v6549 = vpop.f32.mrf.mxu0
      %v6550 = vadd.f32 0.0, %v6549
      %v6551 = vpop.f32.mrf.mxu0
      %6552 = vmatmul.bf16.gmra.mxu0 %v6391
      %v6553 = vpop.f32.mrf.mxu0
      %v6554 = vadd.f32 0.0, %v6553
      %v6555 = vpop.f32.mrf.mxu0
      %v6556 = vadd.f32 0.0, %v6555
      %6557 = vmatmul.bf16.gmra.mxu0 %v6394
      %v6558 = vpop.f32.mrf.mxu0
      %v6559 = vadd.f32 0.0, %v6558
      %v6560 = vpop.f32.mrf.mxu0
      %6561 = vmatmul.bf16.gmra.mxu0 %v6397
      %v6562 = vpop.f32.mrf.mxu0
      %v6563 = vadd.f32 0.0, %v6562
      %v6564 = vpop.f32.mrf.mxu0
      %v6565 = vadd.f32 0.0, %v6564
      %6566 = vmatmul.bf16.gmra.mxu0 %v6400
      %v6567 = vpop.f32.mrf.mxu0
      %v6568 = vadd.f32 0.0, %v6567
      %v6569 = vpop.f32.mrf.mxu0
      %6570 = vmatmul.bf16.gmra.mxu0 %v6403
      %v6571 = vpop.f32.mrf.mxu0
      %v6572 = vadd.f32 0.0, %v6571
      %v6573 = vpop.f32.mrf.mxu0
      %v6574 = vadd.f32 0.0, %v6573
      %6575 = vmatmul.bf16.gmra.mxu0 %v6406
      %v6576 = vpop.f32.mrf.mxu0
      %v6577 = vadd.f32 0.0, %v6576
      %v6578 = vpop.f32.mrf.mxu0
      %6579 = vmatmul.bf16.gmra.mxu0 %v6409
      %v6580 = vpop.f32.mrf.mxu0
      %v6581 = vadd.f32 0.0, %v6580
      %v6582 = vpop.f32.mrf.mxu0
      %v6583 = vadd.f32 0.0, %v6582
      %6584 = vmatmul.bf16.gmra.mxu0 %v6412
      %v6585 = vpop.f32.mrf.mxu0
      %v6586 = vadd.f32 0.0, %v6585
      %v6587 = vpop.f32.mrf.mxu0
      %6588 = vmatmul.bf16.gmra.mxu0 %v6415
      %v6589 = vpop.f32.mrf.mxu0
      %v6590 = vadd.f32 0.0, %v6589
      %v6591 = vpop.f32.mrf.mxu0
      %v6592 = vadd.f32 0.0, %v6591
      %6593 = vmatmul.bf16.gmra.mxu0 %v6418
      %v6594 = vpop.f32.mrf.mxu0
      %v6595 = vadd.f32 0.0, %v6594
      %v6596 = vpop.f32.mrf.mxu0
      %6597 = vdwg.mxu0
      %v6598 = vadd.f32 %v6124, %v6527
      %v6599 = vadd.f32 %v6125, %v6529
      %v6600 = vadd.f32 %v6126, %v6532
      %v6601 = vadd.f32 %v6127, %v6536
      %v6602 = vadd.f32 %v6128, %v6538
      %v6603 = vadd.f32 %v6129, %v6541
      %v6604 = vadd.f32 %v6130, %v6545
      %v6605 = vadd.f32 %v6131, %v6547
      %v6606 = vadd.f32 %v6132, %v6550
      %v6607 = vadd.f32 %v6133, %v6554
      %v6608 = vadd.f32 %v6134, %v6556
      %v6609 = vadd.f32 %v6135, %v6559
      %v6610 = vadd.f32 %v6136, %v6563
      %v6611 = vadd.f32 %v6137, %v6565
      %v6612 = vadd.f32 %v6138, %v6568
      %v6613 = vadd.f32 %v6139, %v6572
      %v6614 = vadd.f32 %v6140, %v6574
      %v6615 = vadd.f32 %v6141, %v6577
      %v6616 = vadd.f32 %v6142, %v6581
      %v6617 = vadd.f32 %v6143, %v6583
      %v6618 = vadd.f32 %v6144, %v6586
      %v6619 = vadd.f32 %v6145, %v6590
      %v6620 = vadd.f32 %v6146, %v6592
      %v6621 = vadd.f32 %v6147, %v6595
      %s6622 = scalar_lea.vmem %s564, 46
      %v6623 = vld [vmem:[%s6622] sm:$0x3]
      %v6625 = vsel %vm944, %v6623, 0
      %6627 = vmatpush.bf16.msra.mxu0 0
      %6628 = vmatpush.bf16.msra.mxu0 0
      %6629 = vmatpush.bf16.msra.mxu0 0
      %6630 = vmatpush.bf16.msra.mxu0 0
      %6631 = vmatpush.bf16.msra.mxu0 0
      %6632 = vmatpush.bf16.msra.mxu0 0
      %6633 = vmatpush.bf16.msra.mxu0 0
      %6634 = vmatpush.bf16.msra.mxu0 %v6625
      %6635 = vmatmul.bf16.gmra.mxu0 %v6373
      %v6636 = vpop.f32.mrf.mxu0
      %v6637 = vadd.f32 0.0, %v6636
      %v6638 = vpop.f32.mrf.mxu0
      %v6639 = vadd.f32 0.0, %v6638
      %6640 = vmatmul.bf16.gmra.mxu0 %v6376
      %v6641 = vpop.f32.mrf.mxu0
      %v6642 = vadd.f32 0.0, %v6641
      %v6643 = vpop.f32.mrf.mxu0
      %6644 = vmatmul.bf16.gmra.mxu0 %v6379
      %v6645 = vpop.f32.mrf.mxu0
      %v6646 = vadd.f32 0.0, %v6645
      %v6647 = vpop.f32.mrf.mxu0
      %v6648 = vadd.f32 0.0, %v6647
      %6649 = vmatmul.bf16.gmra.mxu0 %v6382
      %v6650 = vpop.f32.mrf.mxu0
      %v6651 = vadd.f32 0.0, %v6650
      %v6652 = vpop.f32.mrf.mxu0
      %6653 = vmatmul.bf16.gmra.mxu0 %v6385
      %v6654 = vpop.f32.mrf.mxu0
      %v6655 = vadd.f32 0.0, %v6654
      %v6656 = vpop.f32.mrf.mxu0
      %v6657 = vadd.f32 0.0, %v6656
      %6658 = vmatmul.bf16.gmra.mxu0 %v6388
      %v6659 = vpop.f32.mrf.mxu0
      %v6660 = vadd.f32 0.0, %v6659
      %v6661 = vpop.f32.mrf.mxu0
      %6662 = vmatmul.bf16.gmra.mxu0 %v6391
      %v6663 = vpop.f32.mrf.mxu0
      %v6664 = vadd.f32 0.0, %v6663
      %v6665 = vpop.f32.mrf.mxu0
      %v6666 = vadd.f32 0.0, %v6665
      %6667 = vmatmul.bf16.gmra.mxu0 %v6394
      %v6668 = vpop.f32.mrf.mxu0
      %v6669 = vadd.f32 0.0, %v6668
      %v6670 = vpop.f32.mrf.mxu0
      %6671 = vmatmul.bf16.gmra.mxu0 %v6397
      %v6672 = vpop.f32.mrf.mxu0
      %v6673 = vadd.f32 0.0, %v6672
      %v6674 = vpop.f32.mrf.mxu0
      %v6675 = vadd.f32 0.0, %v6674
      %6676 = vmatmul.bf16.gmra.mxu0 %v6400
      %v6677 = vpop.f32.mrf.mxu0
      %v6678 = vadd.f32 0.0, %v6677
      %v6679 = vpop.f32.mrf.mxu0
      %6680 = vmatmul.bf16.gmra.mxu0 %v6403
      %v6681 = vpop.f32.mrf.mxu0
      %v6682 = vadd.f32 0.0, %v6681
      %v6683 = vpop.f32.mrf.mxu0
      %v6684 = vadd.f32 0.0, %v6683
      %6685 = vmatmul.bf16.gmra.mxu0 %v6406
      %v6686 = vpop.f32.mrf.mxu0
      %v6687 = vadd.f32 0.0, %v6686
      %v6688 = vpop.f32.mrf.mxu0
      %6689 = vmatmul.bf16.gmra.mxu0 %v6409
      %v6690 = vpop.f32.mrf.mxu0
      %v6691 = vadd.f32 0.0, %v6690
      %v6692 = vpop.f32.mrf.mxu0
      %v6693 = vadd.f32 0.0, %v6692
      %6694 = vmatmul.bf16.gmra.mxu0 %v6412
      %v6695 = vpop.f32.mrf.mxu0
      %v6696 = vadd.f32 0.0, %v6695
      %v6697 = vpop.f32.mrf.mxu0
      %6698 = vmatmul.bf16.gmra.mxu0 %v6415
      %v6699 = vpop.f32.mrf.mxu0
      %v6700 = vadd.f32 0.0, %v6699
      %v6701 = vpop.f32.mrf.mxu0
      %v6702 = vadd.f32 0.0, %v6701
      %6703 = vmatmul.bf16.gmra.mxu0 %v6418
      %v6704 = vpop.f32.mrf.mxu0
      %v6705 = vadd.f32 0.0, %v6704
      %v6706 = vpop.f32.mrf.mxu0
      %6707 = vdwg.mxu0
      %v6708 = vadd.f32 %v6234, %v6637
      %v6709 = vadd.f32 %v6235, %v6639
      %v6710 = vadd.f32 %v6236, %v6642
      %v6711 = vadd.f32 %v6237, %v6646
      %v6712 = vadd.f32 %v6238, %v6648
      %v6713 = vadd.f32 %v6239, %v6651
      %v6714 = vadd.f32 %v6240, %v6655
      %v6715 = vadd.f32 %v6241, %v6657
      %v6716 = vadd.f32 %v6242, %v6660
      %v6717 = vadd.f32 %v6243, %v6664
      %v6718 = vadd.f32 %v6244, %v6666
      %v6719 = vadd.f32 %v6245, %v6669
      %v6720 = vadd.f32 %v6246, %v6673
      %v6721 = vadd.f32 %v6247, %v6675
      %v6722 = vadd.f32 %v6248, %v6678
      %v6723 = vadd.f32 %v6249, %v6682
      %v6724 = vadd.f32 %v6250, %v6684
      %v6725 = vadd.f32 %v6251, %v6687
      %v6726 = vadd.f32 %v6252, %v6691
      %v6727 = vadd.f32 %v6253, %v6693
      %v6728 = vadd.f32 %v6254, %v6696
      %v6729 = vadd.f32 %v6255, %v6700
      %v6730 = vadd.f32 %v6256, %v6702
      %v6731 = vadd.f32 %v6257, %v6705
      %v6732 = vld [vmem:[#allocation4 + $0x20] sm:$0xf]
      %v6733 = vld [vmem:[#allocation4 + $0x24] sm:$0xf]
      %v6734 = vld [vmem:[#allocation4 + $0x28] sm:$0xf]
      %v6735 = vld [vmem:[#allocation4 + $0x2c] sm:$0xf]
      %v6736 = vld [vmem:[#allocation4 + $0x30] sm:$0xf]
      %v6737 = vld [vmem:[#allocation4 + $0x34] sm:$0xf]
      %v6738 = vld [vmem:[#allocation4 + $0x38] sm:$0xf]
      %v6739 = vld [vmem:[#allocation4 + $0x3c] sm:$0xf]
      %v6740 = vld [vmem:[#allocation4 + $0x40] sm:$0xf]
      %v6741 = vld [vmem:[#allocation4 + $0x44] sm:$0xf]
      %v6742 = vld [vmem:[#allocation4 + $0x48] sm:$0xf]
      %v6743 = vld [vmem:[#allocation4 + $0x4c] sm:$0xf]
      %v6744 = vld [vmem:[#allocation4 + $0x50] sm:$0xf]
      %v6745 = vld [vmem:[#allocation4 + $0x54] sm:$0xf]
      %v6746 = vld [vmem:[#allocation4 + $0x58] sm:$0xf]
      %v6747 = vld [vmem:[#allocation4 + $0x5c] sm:$0xf]
      %v6748 = vld [vmem:[#allocation4 + $0x60] sm:$0xf]
      %v6749 = vld [vmem:[#allocation4 + $0x64] sm:$0xf]
      %v6750 = vld [vmem:[#allocation4 + $0x68] sm:$0xf]
      %v6751 = vld [vmem:[#allocation4 + $0x6c] sm:$0xf]
      %v6752 = vld [vmem:[#allocation4 + $0x70] sm:$0xf]
      %v6753 = vld [vmem:[#allocation4 + $0x74] sm:$0xf]
      %v6754 = vld [vmem:[#allocation4 + $0x78] sm:$0xf]
      %v6755 = vld [vmem:[#allocation4 + $0x7c] sm:$0xf]
      %v6756 = vld [vmem:[#allocation4 + $0x80] sm:$0xf]
      %v6757 = vld [vmem:[#allocation4 + $0x84] sm:$0xf]
      %v6758 = vld [vmem:[#allocation4 + $0x88] sm:$0xf]
      %v6759 = vld [vmem:[#allocation4 + $0x8c] sm:$0xf]
      %v6760 = vld [vmem:[#allocation4 + $0x90] sm:$0xf]
      %v6761 = vld [vmem:[#allocation4 + $0x94] sm:$0xf]
      %v6762 = vld [vmem:[#allocation4 + $0x98] sm:$0xf]
      %v6763 = vld [vmem:[#allocation4 + $0x9c] sm:$0xf]
      %s6764 = scalar_lea.vmem %s564, 48
      %v6765 = vld [vmem:[%s6764] sm:$0x3]
      %v6798 = vunpack.c.l.b16 %v6732
      %v6799 = vunpack.c.l.b16 %v6733
      %v6800 = vunpack.c.l.b16 %v6734
      %v6801 = vunpack.c.l.b16 %v6735
      %v6802 = vunpack.c.l.b16 %v6736
      %v6803 = vunpack.c.l.b16 %v6737
      %v6804 = vunpack.c.l.b16 %v6738
      %v6805 = vunpack.c.l.b16 %v6739
      %v6806 = vunpack.c.l.b16 %v6740
      %v6807 = vunpack.c.l.b16 %v6741
      %v6808 = vunpack.c.l.b16 %v6742
      %v6809 = vunpack.c.l.b16 %v6743
      %v6810 = vunpack.c.l.b16 %v6744
      %v6811 = vunpack.c.l.b16 %v6745
      %v6812 = vunpack.c.l.b16 %v6746
      %v6813 = vunpack.c.l.b16 %v6747
      %v6814 = vunpack.c.l.b16 %v6748
      %v6815 = vunpack.c.l.b16 %v6749
      %v6816 = vunpack.c.l.b16 %v6750
      %v6817 = vunpack.c.l.b16 %v6751
      %v6818 = vunpack.c.l.b16 %v6752
      %v6819 = vunpack.c.l.b16 %v6753
      %v6820 = vunpack.c.l.b16 %v6754
      %v6821 = vunpack.c.l.b16 %v6755
      %v6822 = vunpack.c.l.b16 %v6756
      %v6823 = vunpack.c.l.b16 %v6757
      %v6824 = vunpack.c.l.b16 %v6758
      %v6825 = vunpack.c.l.b16 %v6759
      %v6826 = vunpack.c.l.b16 %v6760
      %v6827 = vunpack.c.l.b16 %v6761
      %v6828 = vunpack.c.l.b16 %v6762
      %v6829 = vunpack.c.l.b16 %v6763
      %v6830 = vpack.c.b16 %v6799, %v6798
      %v6831 = vpack.c.b16 %v6801, %v6800
      %v6832 = vpack.c.b16 %v6803, %v6802
      %v6833 = vpack.c.b16 %v6805, %v6804
      %v6834 = vpack.c.b16 %v6807, %v6806
      %v6835 = vpack.c.b16 %v6809, %v6808
      %v6836 = vpack.c.b16 %v6811, %v6810
      %v6837 = vpack.c.b16 %v6813, %v6812
      %v6838 = vpack.c.b16 %v6815, %v6814
      %v6839 = vpack.c.b16 %v6817, %v6816
      %v6840 = vpack.c.b16 %v6819, %v6818
      %v6841 = vpack.c.b16 %v6821, %v6820
      %v6842 = vpack.c.b16 %v6823, %v6822
      %v6843 = vpack.c.b16 %v6825, %v6824
      %v6844 = vpack.c.b16 %v6827, %v6826
      %v6845 = vpack.c.b16 %v6829, %v6828
      %v6847 = vsel %vm895, %v6830, 0
      %v6850 = vsel %vm895, %v6831, 0
      %v6853 = vsel %vm895, %v6832, 0
      %v6856 = vsel %vm895, %v6833, 0
      %v6859 = vsel %vm895, %v6834, 0
      %v6862 = vsel %vm895, %v6835, 0
      %v6865 = vsel %vm895, %v6836, 0
      %v6868 = vsel %vm895, %v6837, 0
      %v6871 = vsel %vm895, %v6838, 0
      %v6874 = vsel %vm895, %v6839, 0
      %v6877 = vsel %vm895, %v6840, 0
      %v6880 = vsel %vm895, %v6841, 0
      %v6883 = vsel %vm895, %v6842, 0
      %v6886 = vsel %vm895, %v6843, 0
      %v6889 = vsel %vm895, %v6844, 0
      %v6892 = vsel %vm895, %v6845, 0
      %v6895 = vsel %vm944, %v6765, 0
      %6897 = vmatpush.bf16.msra.mxu0 0
      %6898 = vmatpush.bf16.msra.mxu0 0
      %6899 = vmatpush.bf16.msra.mxu0 0
      %6900 = vmatpush.bf16.msra.mxu0 0
      %6901 = vmatpush.bf16.msra.mxu0 0
      %6902 = vmatpush.bf16.msra.mxu0 0
      %6903 = vmatpush.bf16.msra.mxu0 0
      %6904 = vmatpush.bf16.msra.mxu0 %v6895
      %6905 = vmatmul.bf16.gmra.mxu0 %v6847
      %v6906 = vpop.f32.mrf.mxu0
      %v6907 = vadd.f32 0.0, %v6906
      %v6908 = vpop.f32.mrf.mxu0
      %v6909 = vadd.f32 0.0, %v6908
      %6910 = vmatmul.bf16.gmra.mxu0 %v6850
      %v6911 = vpop.f32.mrf.mxu0
      %v6912 = vpop.f32.mrf.mxu0
      %6913 = vmatmul.bf16.gmra.mxu0 %v6853
      %v6914 = vpop.f32.mrf.mxu0
      %v6915 = vadd.f32 0.0, %v6914
      %v6916 = vpop.f32.mrf.mxu0
      %v6917 = vadd.f32 0.0, %v6916
      %6918 = vmatmul.bf16.gmra.mxu0 %v6856
      %v6919 = vpop.f32.mrf.mxu0
      %v6920 = vpop.f32.mrf.mxu0
      %6921 = vmatmul.bf16.gmra.mxu0 %v6859
      %v6922 = vpop.f32.mrf.mxu0
      %v6923 = vadd.f32 0.0, %v6922
      %v6924 = vpop.f32.mrf.mxu0
      %v6925 = vadd.f32 0.0, %v6924
      %6926 = vmatmul.bf16.gmra.mxu0 %v6862
      %v6927 = vpop.f32.mrf.mxu0
      %v6928 = vpop.f32.mrf.mxu0
      %6929 = vmatmul.bf16.gmra.mxu0 %v6865
      %v6930 = vpop.f32.mrf.mxu0
      %v6931 = vadd.f32 0.0, %v6930
      %v6932 = vpop.f32.mrf.mxu0
      %v6933 = vadd.f32 0.0, %v6932
      %6934 = vmatmul.bf16.gmra.mxu0 %v6868
      %v6935 = vpop.f32.mrf.mxu0
      %v6936 = vpop.f32.mrf.mxu0
      %6937 = vmatmul.bf16.gmra.mxu0 %v6871
      %v6938 = vpop.f32.mrf.mxu0
      %v6939 = vadd.f32 0.0, %v6938
      %v6940 = vpop.f32.mrf.mxu0
      %v6941 = vadd.f32 0.0, %v6940
      %6942 = vmatmul.bf16.gmra.mxu0 %v6874
      %v6943 = vpop.f32.mrf.mxu0
      %v6944 = vpop.f32.mrf.mxu0
      %6945 = vmatmul.bf16.gmra.mxu0 %v6877
      %v6946 = vpop.f32.mrf.mxu0
      %v6947 = vadd.f32 0.0, %v6946
      %v6948 = vpop.f32.mrf.mxu0
      %v6949 = vadd.f32 0.0, %v6948
      %6950 = vmatmul.bf16.gmra.mxu0 %v6880
      %v6951 = vpop.f32.mrf.mxu0
      %v6952 = vpop.f32.mrf.mxu0
      %6953 = vmatmul.bf16.gmra.mxu0 %v6883
      %v6954 = vpop.f32.mrf.mxu0
      %v6955 = vadd.f32 0.0, %v6954
      %v6956 = vpop.f32.mrf.mxu0
      %v6957 = vadd.f32 0.0, %v6956
      %6958 = vmatmul.bf16.gmra.mxu0 %v6886
      %v6959 = vpop.f32.mrf.mxu0
      %v6960 = vpop.f32.mrf.mxu0
      %6961 = vmatmul.bf16.gmra.mxu0 %v6889
      %v6962 = vpop.f32.mrf.mxu0
      %v6963 = vadd.f32 0.0, %v6962
      %v6964 = vpop.f32.mrf.mxu0
      %v6965 = vadd.f32 0.0, %v6964
      %6966 = vmatmul.bf16.gmra.mxu0 %v6892
      %v6967 = vpop.f32.mrf.mxu0
      %v6968 = vpop.f32.mrf.mxu0
      %6969 = vdwg.mxu0
      %v6970 = vadd.f32 %v6496, %v6907
      %v6971 = vadd.f32 %v6497, %v6909
      %v6972 = vadd.f32 %v6498, %v6915
      %v6973 = vadd.f32 %v6499, %v6917
      %v6974 = vadd.f32 %v6500, %v6923
      %v6975 = vadd.f32 %v6501, %v6925
      %v6976 = vadd.f32 %v6502, %v6931
      %v6977 = vadd.f32 %v6503, %v6933
      %v6978 = vadd.f32 %v6504, %v6939
      %v6979 = vadd.f32 %v6505, %v6941
      %v6980 = vadd.f32 %v6506, %v6947
      %v6981 = vadd.f32 %v6507, %v6949
      %v6982 = vadd.f32 %v6508, %v6955
      %v6983 = vadd.f32 %v6509, %v6957
      %v6984 = vadd.f32 %v6510, %v6963
      %v6985 = vadd.f32 %v6511, %v6965
      %s6986 = scalar_lea.vmem %s564, 50
      %v6987 = vld [vmem:[%s6986] sm:$0x3]
      %v6989 = vsel %vm944, %v6987, 0
      %6991 = vmatpush.bf16.msra.mxu0 0
      %6992 = vmatpush.bf16.msra.mxu0 0
      %6993 = vmatpush.bf16.msra.mxu0 0
      %6994 = vmatpush.bf16.msra.mxu0 0
      %6995 = vmatpush.bf16.msra.mxu0 0
      %6996 = vmatpush.bf16.msra.mxu0 0
      %6997 = vmatpush.bf16.msra.mxu0 0
      %6998 = vmatpush.bf16.msra.mxu0 %v6989
      %6999 = vmatmul.bf16.gmra.mxu0 %v6847
      %v7000 = vpop.f32.mrf.mxu0
      %v7001 = vadd.f32 0.0, %v7000
      %v7002 = vpop.f32.mrf.mxu0
      %v7003 = vadd.f32 0.0, %v7002
      %7004 = vmatmul.bf16.gmra.mxu0 %v6850
      %v7005 = vpop.f32.mrf.mxu0
      %v7006 = vadd.f32 0.0, %v7005
      %v7007 = vpop.f32.mrf.mxu0
      %7008 = vmatmul.bf16.gmra.mxu0 %v6853
      %v7009 = vpop.f32.mrf.mxu0
      %v7010 = vadd.f32 0.0, %v7009
      %v7011 = vpop.f32.mrf.mxu0
      %v7012 = vadd.f32 0.0, %v7011
      %7013 = vmatmul.bf16.gmra.mxu0 %v6856
      %v7014 = vpop.f32.mrf.mxu0
      %v7015 = vadd.f32 0.0, %v7014
      %v7016 = vpop.f32.mrf.mxu0
      %7017 = vmatmul.bf16.gmra.mxu0 %v6859
      %v7018 = vpop.f32.mrf.mxu0
      %v7019 = vadd.f32 0.0, %v7018
      %v7020 = vpop.f32.mrf.mxu0
      %v7021 = vadd.f32 0.0, %v7020
      %7022 = vmatmul.bf16.gmra.mxu0 %v6862
      %v7023 = vpop.f32.mrf.mxu0
      %v7024 = vadd.f32 0.0, %v7023
      %v7025 = vpop.f32.mrf.mxu0
      %7026 = vmatmul.bf16.gmra.mxu0 %v6865
      %v7027 = vpop.f32.mrf.mxu0
      %v7028 = vadd.f32 0.0, %v7027
      %v7029 = vpop.f32.mrf.mxu0
      %v7030 = vadd.f32 0.0, %v7029
      %7031 = vmatmul.bf16.gmra.mxu0 %v6868
      %v7032 = vpop.f32.mrf.mxu0
      %v7033 = vadd.f32 0.0, %v7032
      %v7034 = vpop.f32.mrf.mxu0
      %7035 = vmatmul.bf16.gmra.mxu0 %v6871
      %v7036 = vpop.f32.mrf.mxu0
      %v7037 = vadd.f32 0.0, %v7036
      %v7038 = vpop.f32.mrf.mxu0
      %v7039 = vadd.f32 0.0, %v7038
      %7040 = vmatmul.bf16.gmra.mxu0 %v6874
      %v7041 = vpop.f32.mrf.mxu0
      %v7042 = vadd.f32 0.0, %v7041
      %v7043 = vpop.f32.mrf.mxu0
      %7044 = vmatmul.bf16.gmra.mxu0 %v6877
      %v7045 = vpop.f32.mrf.mxu0
      %v7046 = vadd.f32 0.0, %v7045
      %v7047 = vpop.f32.mrf.mxu0
      %v7048 = vadd.f32 0.0, %v7047
      %7049 = vmatmul.bf16.gmra.mxu0 %v6880
      %v7050 = vpop.f32.mrf.mxu0
      %v7051 = vadd.f32 0.0, %v7050
      %v7052 = vpop.f32.mrf.mxu0
      %7053 = vmatmul.bf16.gmra.mxu0 %v6883
      %v7054 = vpop.f32.mrf.mxu0
      %v7055 = vadd.f32 0.0, %v7054
      %v7056 = vpop.f32.mrf.mxu0
      %v7057 = vadd.f32 0.0, %v7056
      %7058 = vmatmul.bf16.gmra.mxu0 %v6886
      %v7059 = vpop.f32.mrf.mxu0
      %v7060 = vadd.f32 0.0, %v7059
      %v7061 = vpop.f32.mrf.mxu0
      %7062 = vmatmul.bf16.gmra.mxu0 %v6889
      %v7063 = vpop.f32.mrf.mxu0
      %v7064 = vadd.f32 0.0, %v7063
      %v7065 = vpop.f32.mrf.mxu0
      %v7066 = vadd.f32 0.0, %v7065
      %7067 = vmatmul.bf16.gmra.mxu0 %v6892
      %v7068 = vpop.f32.mrf.mxu0
      %v7069 = vadd.f32 0.0, %v7068
      %v7070 = vpop.f32.mrf.mxu0
      %7071 = vdwg.mxu0
      %v7072 = vadd.f32 %v6598, %v7001
      %v7073 = vadd.f32 %v6599, %v7003
      %v7074 = vadd.f32 %v6600, %v7006
      %v7075 = vadd.f32 %v6601, %v7010
      %v7076 = vadd.f32 %v6602, %v7012
      %v7077 = vadd.f32 %v6603, %v7015
      %v7078 = vadd.f32 %v6604, %v7019
      %v7079 = vadd.f32 %v6605, %v7021
      %v7080 = vadd.f32 %v6606, %v7024
      %v7081 = vadd.f32 %v6607, %v7028
      %v7082 = vadd.f32 %v6608, %v7030
      %v7083 = vadd.f32 %v6609, %v7033
      %v7084 = vadd.f32 %v6610, %v7037
      %v7085 = vadd.f32 %v6611, %v7039
      %v7086 = vadd.f32 %v6612, %v7042
      %v7087 = vadd.f32 %v6613, %v7046
      %v7088 = vadd.f32 %v6614, %v7048
      %v7089 = vadd.f32 %v6615, %v7051
      %v7090 = vadd.f32 %v6616, %v7055
      %v7091 = vadd.f32 %v6617, %v7057
      %v7092 = vadd.f32 %v6618, %v7060
      %v7093 = vadd.f32 %v6619, %v7064
      %v7094 = vadd.f32 %v6620, %v7066
      %v7095 = vadd.f32 %v6621, %v7069
      %s7096 = scalar_lea.vmem %s564, 52
      %v7097 = vld [vmem:[%s7096] sm:$0x3]
      %v7099 = vsel %vm944, %v7097, 0
      %7101 = vmatpush.bf16.msra.mxu0 0
      %7102 = vmatpush.bf16.msra.mxu0 0
      %7103 = vmatpush.bf16.msra.mxu0 0
      %7104 = vmatpush.bf16.msra.mxu0 0
      %7105 = vmatpush.bf16.msra.mxu0 0
      %7106 = vmatpush.bf16.msra.mxu0 0
      %7107 = vmatpush.bf16.msra.mxu0 0
      %7108 = vmatpush.bf16.msra.mxu0 %v7099
      %7109 = vmatmul.bf16.gmra.mxu0 %v6847
      %v7110 = vpop.f32.mrf.mxu0
      %v7111 = vadd.f32 0.0, %v7110
      %v7112 = vpop.f32.mrf.mxu0
      %v7113 = vadd.f32 0.0, %v7112
      %7114 = vmatmul.bf16.gmra.mxu0 %v6850
      %v7115 = vpop.f32.mrf.mxu0
      %v7116 = vadd.f32 0.0, %v7115
      %v7117 = vpop.f32.mrf.mxu0
      %7118 = vmatmul.bf16.gmra.mxu0 %v6853
      %v7119 = vpop.f32.mrf.mxu0
      %v7120 = vadd.f32 0.0, %v7119
      %v7121 = vpop.f32.mrf.mxu0
      %v7122 = vadd.f32 0.0, %v7121
      %7123 = vmatmul.bf16.gmra.mxu0 %v6856
      %v7124 = vpop.f32.mrf.mxu0
      %v7125 = vadd.f32 0.0, %v7124
      %v7126 = vpop.f32.mrf.mxu0
      %7127 = vmatmul.bf16.gmra.mxu0 %v6859
      %v7128 = vpop.f32.mrf.mxu0
      %v7129 = vadd.f32 0.0, %v7128
      %v7130 = vpop.f32.mrf.mxu0
      %v7131 = vadd.f32 0.0, %v7130
      %7132 = vmatmul.bf16.gmra.mxu0 %v6862
      %v7133 = vpop.f32.mrf.mxu0
      %v7134 = vadd.f32 0.0, %v7133
      %v7135 = vpop.f32.mrf.mxu0
      %7136 = vmatmul.bf16.gmra.mxu0 %v6865
      %v7137 = vpop.f32.mrf.mxu0
      %v7138 = vadd.f32 0.0, %v7137
      %v7139 = vpop.f32.mrf.mxu0
      %v7140 = vadd.f32 0.0, %v7139
      %7141 = vmatmul.bf16.gmra.mxu0 %v6868
      %v7142 = vpop.f32.mrf.mxu0
      %v7143 = vadd.f32 0.0, %v7142
      %v7144 = vpop.f32.mrf.mxu0
      %7145 = vmatmul.bf16.gmra.mxu0 %v6871
      %v7146 = vpop.f32.mrf.mxu0
      %v7147 = vadd.f32 0.0, %v7146
      %v7148 = vpop.f32.mrf.mxu0
      %v7149 = vadd.f32 0.0, %v7148
      %7150 = vmatmul.bf16.gmra.mxu0 %v6874
      %v7151 = vpop.f32.mrf.mxu0
      %v7152 = vadd.f32 0.0, %v7151
      %v7153 = vpop.f32.mrf.mxu0
      %7154 = vmatmul.bf16.gmra.mxu0 %v6877
      %v7155 = vpop.f32.mrf.mxu0
      %v7156 = vadd.f32 0.0, %v7155
      %v7157 = vpop.f32.mrf.mxu0
      %v7158 = vadd.f32 0.0, %v7157
      %7159 = vmatmul.bf16.gmra.mxu0 %v6880
      %v7160 = vpop.f32.mrf.mxu0
      %v7161 = vadd.f32 0.0, %v7160
      %v7162 = vpop.f32.mrf.mxu0
      %7163 = vmatmul.bf16.gmra.mxu0 %v6883
      %v7164 = vpop.f32.mrf.mxu0
      %v7165 = vadd.f32 0.0, %v7164
      %v7166 = vpop.f32.mrf.mxu0
      %v7167 = vadd.f32 0.0, %v7166
      %7168 = vmatmul.bf16.gmra.mxu0 %v6886
      %v7169 = vpop.f32.mrf.mxu0
      %v7170 = vadd.f32 0.0, %v7169
      %v7171 = vpop.f32.mrf.mxu0
      %7172 = vmatmul.bf16.gmra.mxu0 %v6889
      %v7173 = vpop.f32.mrf.mxu0
      %v7174 = vadd.f32 0.0, %v7173
      %v7175 = vpop.f32.mrf.mxu0
      %v7176 = vadd.f32 0.0, %v7175
      %7177 = vmatmul.bf16.gmra.mxu0 %v6892
      %v7178 = vpop.f32.mrf.mxu0
      %v7179 = vadd.f32 0.0, %v7178
      %v7180 = vpop.f32.mrf.mxu0
      %7181 = vdwg.mxu0
      %v7182 = vadd.f32 %v6708, %v7111
      %v7183 = vadd.f32 %v6709, %v7113
      %v7184 = vadd.f32 %v6710, %v7116
      %v7185 = vadd.f32 %v6711, %v7120
      %v7186 = vadd.f32 %v6712, %v7122
      %v7187 = vadd.f32 %v6713, %v7125
      %v7188 = vadd.f32 %v6714, %v7129
      %v7189 = vadd.f32 %v6715, %v7131
      %v7190 = vadd.f32 %v6716, %v7134
      %v7191 = vadd.f32 %v6717, %v7138
      %v7192 = vadd.f32 %v6718, %v7140
      %v7193 = vadd.f32 %v6719, %v7143
      %v7194 = vadd.f32 %v6720, %v7147
      %v7195 = vadd.f32 %v6721, %v7149
      %v7196 = vadd.f32 %v6722, %v7152
      %v7197 = vadd.f32 %v6723, %v7156
      %v7198 = vadd.f32 %v6724, %v7158
      %v7199 = vadd.f32 %v6725, %v7161
      %v7200 = vadd.f32 %v6726, %v7165
      %v7201 = vadd.f32 %v6727, %v7167
      %v7202 = vadd.f32 %v6728, %v7170
      %v7203 = vadd.f32 %v6729, %v7174
      %v7204 = vadd.f32 %v6730, %v7176
      %v7205 = vadd.f32 %v6731, %v7179
      %s7206 = scalar_lea.vmem %s6, 48
      %v7207 = vld [vmem:[%s7206] sm:$0xf]
      %v7208 = vld [vmem:[%s7206 + $0x4] sm:$0xf]
      %v7209 = vld [vmem:[%s7206 + $0x8] sm:$0xf]
      %v7210 = vld [vmem:[%s7206 + $0xc] sm:$0xf]
      %s7211 = scalar_lea.vmem [#allocation3], 12
      %v7212 = vld [vmem:[%s7211] sm:$0xf]
      %v7217 = vunpack.c.l.b16 %v7207
      %v7218 = vunpack.c.l.b16 %v7208
      %v7219 = vunpack.c.l.b16 %v7209
      %v7220 = vunpack.c.l.b16 %v7210
      %v7221 = vpack.c.b16 %v7218, %v7217
      %v7222 = vpack.c.b16 %v7220, %v7219
      %v7224 = vsel %vm1942, %v7221, 0
      %v7227 = vsel %vm1942, %v7222, 0
      %v7230 = vsel %vm1949, %v7212, 0
      %7232 = vmatpush.bf16.msra.mxu0 0
      %7233 = vmatpush.bf16.msra.mxu0 0
      %7234 = vmatpush.bf16.msra.mxu0 0
      %7235 = vmatpush.bf16.msra.mxu0 0
      %7236 = vmatpush.bf16.msra.mxu0 0
      %7237 = vmatpush.bf16.msra.mxu0 0
      %7238 = vmatpush.bf16.msra.mxu0 0
      %7239 = vmatpush.bf16.msra.mxu0 %v7230
      %7240 = vmatmul.bf16.gmra.mxu0 %v7224
      %v7241 = vpop.f32.mrf.mxu0
      %v7242 = vadd.f32 0.0, %v7241
      %v7243 = vpop.f32.mrf.mxu0
      %v7244 = vadd.f32 0.0, %v7243
      %7245 = vmatmul.bf16.gmra.mxu0 %v7227
      %v7246 = vpop.f32.mrf.mxu0
      %v7247 = vadd.f32 0.0, %v7246
      %v7248 = vpop.f32.mrf.mxu0
      %v7249 = vadd.f32 0.0, %v7248
      %7250 = vdwg.mxu0
      %v7251 = vpack.c.bf16 %v7242, %v7242
      %v7252 = vpack.c.bf16 %v7244, %v7244
      %v7253 = vpack.c.bf16 %v7247, %v7247
      %v7254 = vpack.c.bf16 %v7249, %v7249
      %7255 = vst.msk [vmem:[#allocation4] sm:$0xf] %vm590, %v7251
      %7256 = vst.msk [vmem:[#allocation4 + $0x4] sm:$0xf] %vm590, %v7252
      %7257 = vst.msk [vmem:[#allocation4 + $0x8] sm:$0xf] %vm590, %v7253
      %7258 = vst.msk [vmem:[#allocation4 + $0xc] sm:$0xf] %vm590, %v7254
      %s7259 = scalar_lea.vmem [#allocation3], 28
      %v7260 = vld [vmem:[%s7259] sm:$0xf]
      %v7262 = vsel %vm1949, %v7260, 0
      %7264 = vmatpush.bf16.msra.mxu0 0
      %7265 = vmatpush.bf16.msra.mxu0 0
      %7266 = vmatpush.bf16.msra.mxu0 0
      %7267 = vmatpush.bf16.msra.mxu0 0
      %7268 = vmatpush.bf16.msra.mxu0 0
      %7269 = vmatpush.bf16.msra.mxu0 0
      %7270 = vmatpush.bf16.msra.mxu0 0
      %7271 = vmatpush.bf16.msra.mxu0 %v7262
      %7272 = vmatmul.bf16.gmra.mxu0 %v7224
      %v7273 = vpop.f32.mrf.mxu0
      %v7274 = vadd.f32 0.0, %v7273
      %v7275 = vpop.f32.mrf.mxu0
      %v7276 = vadd.f32 0.0, %v7275
      %7277 = vmatmul.bf16.gmra.mxu0 %v7227
      %v7278 = vpop.f32.mrf.mxu0
      %v7279 = vadd.f32 0.0, %v7278
      %v7280 = vpop.f32.mrf.mxu0
      %v7281 = vadd.f32 0.0, %v7280
      %7282 = vdwg.mxu0
      %v7283 = vpack.c.bf16 %v7274, %v7274
      %v7284 = vpack.c.bf16 %v7276, %v7276
      %v7285 = vpack.c.bf16 %v7279, %v7279
      %v7286 = vpack.c.bf16 %v7281, %v7281
      %7287 = vst.msk [vmem:[#allocation4 + $0x10] sm:$0xf] %vm590, %v7283
      %7288 = vst.msk [vmem:[#allocation4 + $0x14] sm:$0xf] %vm590, %v7284
      %7289 = vst.msk [vmem:[#allocation4 + $0x18] sm:$0xf] %vm590, %v7285
      %7290 = vst.msk [vmem:[#allocation4 + $0x1c] sm:$0xf] %vm590, %v7286
      %s7291 = scalar_lea.vmem [#allocation3], 44
      %v7292 = vld [vmem:[%s7291] sm:$0xf]
      %v7294 = vsel %vm1949, %v7292, 0
      %7296 = vmatpush.bf16.msra.mxu0 0
      %7297 = vmatpush.bf16.msra.mxu0 0
      %7298 = vmatpush.bf16.msra.mxu0 0
      %7299 = vmatpush.bf16.msra.mxu0 0
      %7300 = vmatpush.bf16.msra.mxu0 0
      %7301 = vmatpush.bf16.msra.mxu0 0
      %7302 = vmatpush.bf16.msra.mxu0 0
      %7303 = vmatpush.bf16.msra.mxu0 %v7294
      %7304 = vmatmul.bf16.gmra.mxu0 %v7224
      %v7305 = vpop.f32.mrf.mxu0
      %v7306 = vadd.f32 0.0, %v7305
      %v7307 = vpop.f32.mrf.mxu0
      %v7308 = vadd.f32 0.0, %v7307
      %7309 = vmatmul.bf16.gmra.mxu0 %v7227
      %v7310 = vpop.f32.mrf.mxu0
      %v7311 = vadd.f32 0.0, %v7310
      %v7312 = vpop.f32.mrf.mxu0
      %v7313 = vadd.f32 0.0, %v7312
      %7314 = vdwg.mxu0
      %v7315 = vpack.c.bf16 %v7306, %v7306
      %v7316 = vpack.c.bf16 %v7308, %v7308
      %v7317 = vpack.c.bf16 %v7311, %v7311
      %v7318 = vpack.c.bf16 %v7313, %v7313
      %7319 = vst.msk [vmem:[#allocation4 + $0x20] sm:$0xf] %vm590, %v7315
      %7320 = vst.msk [vmem:[#allocation4 + $0x24] sm:$0xf] %vm590, %v7316
      %7321 = vst.msk [vmem:[#allocation4 + $0x28] sm:$0xf] %vm590, %v7317
      %7322 = vst.msk [vmem:[#allocation4 + $0x2c] sm:$0xf] %vm590, %v7318
      %s7323 = scalar_lea.vmem [#allocation3], 60
      %v7324 = vld [vmem:[%s7323] sm:$0xf]
      %v7326 = vsel %vm1949, %v7324, 0
      %7328 = vmatpush.bf16.msra.mxu0 0
      %7329 = vmatpush.bf16.msra.mxu0 0
      %7330 = vmatpush.bf16.msra.mxu0 0
      %7331 = vmatpush.bf16.msra.mxu0 0
      %7332 = vmatpush.bf16.msra.mxu0 0
      %7333 = vmatpush.bf16.msra.mxu0 0
      %7334 = vmatpush.bf16.msra.mxu0 0
      %7335 = vmatpush.bf16.msra.mxu0 %v7326
      %7336 = vmatmul.bf16.gmra.mxu0 %v7224
      %v7337 = vpop.f32.mrf.mxu0
      %v7338 = vadd.f32 0.0, %v7337
      %v7339 = vpop.f32.mrf.mxu0
      %v7340 = vadd.f32 0.0, %v7339
      %7341 = vmatmul.bf16.gmra.mxu0 %v7227
      %v7342 = vpop.f32.mrf.mxu0
      %v7343 = vadd.f32 0.0, %v7342
      %v7344 = vpop.f32.mrf.mxu0
      %v7345 = vadd.f32 0.0, %v7344
      %7346 = vdwg.mxu0
      %v7347 = vpack.c.bf16 %v7338, %v7338
      %v7348 = vpack.c.bf16 %v7340, %v7340
      %v7349 = vpack.c.bf16 %v7343, %v7343
      %v7350 = vpack.c.bf16 %v7345, %v7345
      %7351 = vst.msk [vmem:[#allocation4 + $0x30] sm:$0xf] %vm590, %v7347
      %7352 = vst.msk [vmem:[#allocation4 + $0x34] sm:$0xf] %vm590, %v7348
      %7353 = vst.msk [vmem:[#allocation4 + $0x38] sm:$0xf] %vm590, %v7349
      %7354 = vst.msk [vmem:[#allocation4 + $0x3c] sm:$0xf] %vm590, %v7350
      %s7355 = scalar_lea.vmem [#allocation3], 76
      %v7356 = vld [vmem:[%s7355] sm:$0xf]
      %v7358 = vsel %vm1949, %v7356, 0
      %7360 = vmatpush.bf16.msra.mxu0 0
      %7361 = vmatpush.bf16.msra.mxu0 0
      %7362 = vmatpush.bf16.msra.mxu0 0
      %7363 = vmatpush.bf16.msra.mxu0 0
      %7364 = vmatpush.bf16.msra.mxu0 0
      %7365 = vmatpush.bf16.msra.mxu0 0
      %7366 = vmatpush.bf16.msra.mxu0 0
      %7367 = vmatpush.bf16.msra.mxu0 %v7358
      %7368 = vmatmul.bf16.gmra.mxu0 %v7224
      %v7369 = vpop.f32.mrf.mxu0
      %v7370 = vadd.f32 0.0, %v7369
      %v7371 = vpop.f32.mrf.mxu0
      %v7372 = vadd.f32 0.0, %v7371
      %7373 = vmatmul.bf16.gmra.mxu0 %v7227
      %v7374 = vpop.f32.mrf.mxu0
      %v7375 = vadd.f32 0.0, %v7374
      %v7376 = vpop.f32.mrf.mxu0
      %v7377 = vadd.f32 0.0, %v7376
      %7378 = vdwg.mxu0
      %v7379 = vpack.c.bf16 %v7370, %v7370
      %v7380 = vpack.c.bf16 %v7372, %v7372
      %v7381 = vpack.c.bf16 %v7375, %v7375
      %v7382 = vpack.c.bf16 %v7377, %v7377
      %7383 = vst.msk [vmem:[#allocation4 + $0x40] sm:$0xf] %vm590, %v7379
      %7384 = vst.msk [vmem:[#allocation4 + $0x44] sm:$0xf] %vm590, %v7380
      %7385 = vst.msk [vmem:[#allocation4 + $0x48] sm:$0xf] %vm590, %v7381
      %7386 = vst.msk [vmem:[#allocation4 + $0x4c] sm:$0xf] %vm590, %v7382
      %s7387 = scalar_lea.vmem [#allocation3], 92
      %v7388 = vld [vmem:[%s7387] sm:$0xf]
      %v7390 = vsel %vm1949, %v7388, 0
      %7392 = vmatpush.bf16.msra.mxu0 0
      %7393 = vmatpush.bf16.msra.mxu0 0
      %7394 = vmatpush.bf16.msra.mxu0 0
      %7395 = vmatpush.bf16.msra.mxu0 0
      %7396 = vmatpush.bf16.msra.mxu0 0
      %7397 = vmatpush.bf16.msra.mxu0 0
      %7398 = vmatpush.bf16.msra.mxu0 0
      %7399 = vmatpush.bf16.msra.mxu0 %v7390
      %7400 = vmatmul.bf16.gmra.mxu0 %v7224
      %v7401 = vpop.f32.mrf.mxu0
      %v7402 = vadd.f32 0.0, %v7401
      %v7403 = vpop.f32.mrf.mxu0
      %v7404 = vadd.f32 0.0, %v7403
      %7405 = vmatmul.bf16.gmra.mxu0 %v7227
      %v7406 = vpop.f32.mrf.mxu0
      %v7407 = vadd.f32 0.0, %v7406
      %v7408 = vpop.f32.mrf.mxu0
      %v7409 = vadd.f32 0.0, %v7408
      %7410 = vdwg.mxu0
      %v7411 = vpack.c.bf16 %v7402, %v7402
      %v7412 = vpack.c.bf16 %v7404, %v7404
      %v7413 = vpack.c.bf16 %v7407, %v7407
      %v7414 = vpack.c.bf16 %v7409, %v7409
      %7415 = vst.msk [vmem:[#allocation4 + $0x50] sm:$0xf] %vm590, %v7411
      %7416 = vst.msk [vmem:[#allocation4 + $0x54] sm:$0xf] %vm590, %v7412
      %7417 = vst.msk [vmem:[#allocation4 + $0x58] sm:$0xf] %vm590, %v7413
      %7418 = vst.msk [vmem:[#allocation4 + $0x5c] sm:$0xf] %vm590, %v7414
      %s7419 = scalar_lea.vmem [#allocation3], 108
      %v7420 = vld [vmem:[%s7419] sm:$0xf]
      %v7422 = vsel %vm1949, %v7420, 0
      %7424 = vmatpush.bf16.msra.mxu0 0
      %7425 = vmatpush.bf16.msra.mxu0 0
      %7426 = vmatpush.bf16.msra.mxu0 0
      %7427 = vmatpush.bf16.msra.mxu0 0
      %7428 = vmatpush.bf16.msra.mxu0 0
      %7429 = vmatpush.bf16.msra.mxu0 0
      %7430 = vmatpush.bf16.msra.mxu0 0
      %7431 = vmatpush.bf16.msra.mxu0 %v7422
      %7432 = vmatmul.bf16.gmra.mxu0 %v7224
      %v7433 = vpop.f32.mrf.mxu0
      %v7434 = vadd.f32 0.0, %v7433
      %v7435 = vpop.f32.mrf.mxu0
      %v7436 = vadd.f32 0.0, %v7435
      %7437 = vmatmul.bf16.gmra.mxu0 %v7227
      %v7438 = vpop.f32.mrf.mxu0
      %v7439 = vadd.f32 0.0, %v7438
      %v7440 = vpop.f32.mrf.mxu0
      %v7441 = vadd.f32 0.0, %v7440
      %7442 = vdwg.mxu0
      %v7443 = vpack.c.bf16 %v7434, %v7434
      %v7444 = vpack.c.bf16 %v7436, %v7436
      %v7445 = vpack.c.bf16 %v7439, %v7439
      %v7446 = vpack.c.bf16 %v7441, %v7441
      %7447 = vst.msk [vmem:[#allocation4 + $0x60] sm:$0xf] %vm590, %v7443
      %7448 = vst.msk [vmem:[#allocation4 + $0x64] sm:$0xf] %vm590, %v7444
      %7449 = vst.msk [vmem:[#allocation4 + $0x68] sm:$0xf] %vm590, %v7445
      %7450 = vst.msk [vmem:[#allocation4 + $0x6c] sm:$0xf] %vm590, %v7446
      %s7451 = scalar_lea.vmem [#allocation3], 124
      %v7452 = vld [vmem:[%s7451] sm:$0xf]
      %v7454 = vsel %vm1949, %v7452, 0
      %7456 = vmatpush.bf16.msra.mxu0 0
      %7457 = vmatpush.bf16.msra.mxu0 0
      %7458 = vmatpush.bf16.msra.mxu0 0
      %7459 = vmatpush.bf16.msra.mxu0 0
      %7460 = vmatpush.bf16.msra.mxu0 0
      %7461 = vmatpush.bf16.msra.mxu0 0
      %7462 = vmatpush.bf16.msra.mxu0 0
      %7463 = vmatpush.bf16.msra.mxu0 %v7454
      %7464 = vmatmul.bf16.gmra.mxu0 %v7224
      %v7465 = vpop.f32.mrf.mxu0
      %v7466 = vadd.f32 0.0, %v7465
      %v7467 = vpop.f32.mrf.mxu0
      %v7468 = vadd.f32 0.0, %v7467
      %7469 = vmatmul.bf16.gmra.mxu0 %v7227
      %v7470 = vpop.f32.mrf.mxu0
      %v7471 = vadd.f32 0.0, %v7470
      %v7472 = vpop.f32.mrf.mxu0
      %v7473 = vadd.f32 0.0, %v7472
      %7474 = vdwg.mxu0
      %v7475 = vpack.c.bf16 %v7466, %v7466
      %v7476 = vpack.c.bf16 %v7468, %v7468
      %v7477 = vpack.c.bf16 %v7471, %v7471
      %v7478 = vpack.c.bf16 %v7473, %v7473
      %7479 = vst.msk [vmem:[#allocation4 + $0x70] sm:$0xf] %vm590, %v7475
      %7480 = vst.msk [vmem:[#allocation4 + $0x74] sm:$0xf] %vm590, %v7476
      %7481 = vst.msk [vmem:[#allocation4 + $0x78] sm:$0xf] %vm590, %v7477
      %7482 = vst.msk [vmem:[#allocation4 + $0x7c] sm:$0xf] %vm590, %v7478
      %s7483 = scalar_lea.vmem [#allocation3], 140
      %v7484 = vld [vmem:[%s7483] sm:$0xf]
      %v7486 = vsel %vm1949, %v7484, 0
      %7488 = vmatpush.bf16.msra.mxu0 0
      %7489 = vmatpush.bf16.msra.mxu0 0
      %7490 = vmatpush.bf16.msra.mxu0 0
      %7491 = vmatpush.bf16.msra.mxu0 0
      %7492 = vmatpush.bf16.msra.mxu0 0
      %7493 = vmatpush.bf16.msra.mxu0 0
      %7494 = vmatpush.bf16.msra.mxu0 0
      %7495 = vmatpush.bf16.msra.mxu0 %v7486
      %7496 = vmatmul.bf16.gmra.mxu0 %v7224
      %v7497 = vpop.f32.mrf.mxu0
      %v7498 = vadd.f32 0.0, %v7497
      %v7499 = vpop.f32.mrf.mxu0
      %v7500 = vadd.f32 0.0, %v7499
      %7501 = vmatmul.bf16.gmra.mxu0 %v7227
      %v7502 = vpop.f32.mrf.mxu0
      %v7503 = vadd.f32 0.0, %v7502
      %v7504 = vpop.f32.mrf.mxu0
      %v7505 = vadd.f32 0.0, %v7504
      %7506 = vdwg.mxu0
      %v7507 = vpack.c.bf16 %v7498, %v7498
      %v7508 = vpack.c.bf16 %v7500, %v7500
      %v7509 = vpack.c.bf16 %v7503, %v7503
      %v7510 = vpack.c.bf16 %v7505, %v7505
      %7511 = vst.msk [vmem:[#allocation4 + $0x80] sm:$0xf] %vm590, %v7507
      %7512 = vst.msk [vmem:[#allocation4 + $0x84] sm:$0xf] %vm590, %v7508
      %7513 = vst.msk [vmem:[#allocation4 + $0x88] sm:$0xf] %vm590, %v7509
      %7514 = vst.msk [vmem:[#allocation4 + $0x8c] sm:$0xf] %vm590, %v7510
      %s7515 = scalar_lea.vmem [#allocation3], 156
      %v7516 = vld [vmem:[%s7515] sm:$0xf]
      %v7518 = vsel %vm1949, %v7516, 0
      %7520 = vmatpush.bf16.msra.mxu0 0
      %7521 = vmatpush.bf16.msra.mxu0 0
      %7522 = vmatpush.bf16.msra.mxu0 0
      %7523 = vmatpush.bf16.msra.mxu0 0
      %7524 = vmatpush.bf16.msra.mxu0 0
      %7525 = vmatpush.bf16.msra.mxu0 0
      %7526 = vmatpush.bf16.msra.mxu0 0
      %7527 = vmatpush.bf16.msra.mxu0 %v7518
      %7528 = vmatmul.bf16.gmra.mxu0 %v7224
      %v7529 = vpop.f32.mrf.mxu0
      %v7530 = vadd.f32 0.0, %v7529
      %v7531 = vpop.f32.mrf.mxu0
      %v7532 = vadd.f32 0.0, %v7531
      %7533 = vmatmul.bf16.gmra.mxu0 %v7227
      %v7534 = vpop.f32.mrf.mxu0
      %v7535 = vadd.f32 0.0, %v7534
      %v7536 = vpop.f32.mrf.mxu0
      %v7537 = vadd.f32 0.0, %v7536
      %7538 = vdwg.mxu0
      %v7539 = vpack.c.bf16 %v7530, %v7530
      %v7540 = vpack.c.bf16 %v7532, %v7532
      %v7541 = vpack.c.bf16 %v7535, %v7535
      %v7542 = vpack.c.bf16 %v7537, %v7537
      %7543 = vst.msk [vmem:[#allocation4 + $0x90] sm:$0xf] %vm590, %v7539
      %7544 = vst.msk [vmem:[#allocation4 + $0x94] sm:$0xf] %vm590, %v7540
      %7545 = vst.msk [vmem:[#allocation4 + $0x98] sm:$0xf] %vm590, %v7541
      %7546 = vst.msk [vmem:[#allocation4 + $0x9c] sm:$0xf] %vm590, %v7542
      %v7547 = vld [vmem:[#allocation4] sm:$0xf]
      %v7548 = vld [vmem:[#allocation4 + $0x4] sm:$0xf]
      %v7549 = vld [vmem:[#allocation4 + $0x8] sm:$0xf]
      %v7550 = vld [vmem:[#allocation4 + $0xc] sm:$0xf]
      %v7551 = vld [vmem:[#allocation4 + $0x10] sm:$0xf]
      %v7552 = vld [vmem:[#allocation4 + $0x14] sm:$0xf]
      %v7553 = vld [vmem:[#allocation4 + $0x18] sm:$0xf]
      %v7554 = vld [vmem:[#allocation4 + $0x1c] sm:$0xf]
      %v7555 = vld [vmem:[#allocation4 + $0x20] sm:$0xf]
      %v7556 = vld [vmem:[#allocation4 + $0x24] sm:$0xf]
      %v7557 = vld [vmem:[#allocation4 + $0x28] sm:$0xf]
      %v7558 = vld [vmem:[#allocation4 + $0x2c] sm:$0xf]
      %v7559 = vld [vmem:[#allocation4 + $0x30] sm:$0xf]
      %v7560 = vld [vmem:[#allocation4 + $0x34] sm:$0xf]
      %v7561 = vld [vmem:[#allocation4 + $0x38] sm:$0xf]
      %v7562 = vld [vmem:[#allocation4 + $0x3c] sm:$0xf]
      %v7563 = vld [vmem:[#allocation4 + $0x40] sm:$0xf]
      %v7564 = vld [vmem:[#allocation4 + $0x44] sm:$0xf]
      %v7565 = vld [vmem:[#allocation4 + $0x48] sm:$0xf]
      %v7566 = vld [vmem:[#allocation4 + $0x4c] sm:$0xf]
      %v7567 = vld [vmem:[#allocation4 + $0x50] sm:$0xf]
      %v7568 = vld [vmem:[#allocation4 + $0x54] sm:$0xf]
      %v7569 = vld [vmem:[#allocation4 + $0x58] sm:$0xf]
      %v7570 = vld [vmem:[#allocation4 + $0x5c] sm:$0xf]
      %v7571 = vld [vmem:[#allocation4 + $0x60] sm:$0xf]
      %v7572 = vld [vmem:[#allocation4 + $0x64] sm:$0xf]
      %v7573 = vld [vmem:[#allocation4 + $0x68] sm:$0xf]
      %v7574 = vld [vmem:[#allocation4 + $0x6c] sm:$0xf]
      %v7575 = vld [vmem:[#allocation4 + $0x70] sm:$0xf]
      %v7576 = vld [vmem:[#allocation4 + $0x74] sm:$0xf]
      %v7577 = vld [vmem:[#allocation4 + $0x78] sm:$0xf]
      %v7578 = vld [vmem:[#allocation4 + $0x7c] sm:$0xf]
      %s7579 = scalar_lea.vmem %s564, 54
      %v7580 = vld [vmem:[%s7579] sm:$0x3]
      %v7613 = vunpack.c.l.b16 %v7547
      %v7614 = vunpack.c.l.b16 %v7548
      %v7615 = vunpack.c.l.b16 %v7549
      %v7616 = vunpack.c.l.b16 %v7550
      %v7617 = vunpack.c.l.b16 %v7551
      %v7618 = vunpack.c.l.b16 %v7552
      %v7619 = vunpack.c.l.b16 %v7553
      %v7620 = vunpack.c.l.b16 %v7554
      %v7621 = vunpack.c.l.b16 %v7555
      %v7622 = vunpack.c.l.b16 %v7556
      %v7623 = vunpack.c.l.b16 %v7557
      %v7624 = vunpack.c.l.b16 %v7558
      %v7625 = vunpack.c.l.b16 %v7559
      %v7626 = vunpack.c.l.b16 %v7560
      %v7627 = vunpack.c.l.b16 %v7561
      %v7628 = vunpack.c.l.b16 %v7562
      %v7629 = vunpack.c.l.b16 %v7563
      %v7630 = vunpack.c.l.b16 %v7564
      %v7631 = vunpack.c.l.b16 %v7565
      %v7632 = vunpack.c.l.b16 %v7566
      %v7633 = vunpack.c.l.b16 %v7567
      %v7634 = vunpack.c.l.b16 %v7568
      %v7635 = vunpack.c.l.b16 %v7569
      %v7636 = vunpack.c.l.b16 %v7570
      %v7637 = vunpack.c.l.b16 %v7571
      %v7638 = vunpack.c.l.b16 %v7572
      %v7639 = vunpack.c.l.b16 %v7573
      %v7640 = vunpack.c.l.b16 %v7574
      %v7641 = vunpack.c.l.b16 %v7575
      %v7642 = vunpack.c.l.b16 %v7576
      %v7643 = vunpack.c.l.b16 %v7577
      %v7644 = vunpack.c.l.b16 %v7578
      %v7645 = vpack.c.b16 %v7614, %v7613
      %v7646 = vpack.c.b16 %v7616, %v7615
      %v7647 = vpack.c.b16 %v7618, %v7617
      %v7648 = vpack.c.b16 %v7620, %v7619
      %v7649 = vpack.c.b16 %v7622, %v7621
      %v7650 = vpack.c.b16 %v7624, %v7623
      %v7651 = vpack.c.b16 %v7626, %v7625
      %v7652 = vpack.c.b16 %v7628, %v7627
      %v7653 = vpack.c.b16 %v7630, %v7629
      %v7654 = vpack.c.b16 %v7632, %v7631
      %v7655 = vpack.c.b16 %v7634, %v7633
      %v7656 = vpack.c.b16 %v7636, %v7635
      %v7657 = vpack.c.b16 %v7638, %v7637
      %v7658 = vpack.c.b16 %v7640, %v7639
      %v7659 = vpack.c.b16 %v7642, %v7641
      %v7660 = vpack.c.b16 %v7644, %v7643
      %v7662 = vsel %vm895, %v7645, 0
      %v7665 = vsel %vm895, %v7646, 0
      %v7668 = vsel %vm895, %v7647, 0
      %v7671 = vsel %vm895, %v7648, 0
      %v7674 = vsel %vm895, %v7649, 0
      %v7677 = vsel %vm895, %v7650, 0
      %v7680 = vsel %vm895, %v7651, 0
      %v7683 = vsel %vm895, %v7652, 0
      %v7686 = vsel %vm895, %v7653, 0
      %v7689 = vsel %vm895, %v7654, 0
      %v7692 = vsel %vm895, %v7655, 0
      %v7695 = vsel %vm895, %v7656, 0
      %v7698 = vsel %vm895, %v7657, 0
      %v7701 = vsel %vm895, %v7658, 0
      %v7704 = vsel %vm895, %v7659, 0
      %v7707 = vsel %vm895, %v7660, 0
      %v7710 = vsel %vm944, %v7580, 0
      %7712 = vmatpush.bf16.msra.mxu0 0
      %7713 = vmatpush.bf16.msra.mxu0 0
      %7714 = vmatpush.bf16.msra.mxu0 0
      %7715 = vmatpush.bf16.msra.mxu0 0
      %7716 = vmatpush.bf16.msra.mxu0 0
      %7717 = vmatpush.bf16.msra.mxu0 0
      %7718 = vmatpush.bf16.msra.mxu0 0
      %7719 = vmatpush.bf16.msra.mxu0 %v7710
      %7720 = vmatmul.bf16.gmra.mxu0 %v7662
      %v7721 = vpop.f32.mrf.mxu0
      %v7722 = vadd.f32 0.0, %v7721
      %v7723 = vpop.f32.mrf.mxu0
      %v7724 = vadd.f32 0.0, %v7723
      %7725 = vmatmul.bf16.gmra.mxu0 %v7665
      %v7726 = vpop.f32.mrf.mxu0
      %v7727 = vpop.f32.mrf.mxu0
      %7728 = vmatmul.bf16.gmra.mxu0 %v7668
      %v7729 = vpop.f32.mrf.mxu0
      %v7730 = vadd.f32 0.0, %v7729
      %v7731 = vpop.f32.mrf.mxu0
      %v7732 = vadd.f32 0.0, %v7731
      %7733 = vmatmul.bf16.gmra.mxu0 %v7671
      %v7734 = vpop.f32.mrf.mxu0
      %v7735 = vpop.f32.mrf.mxu0
      %7736 = vmatmul.bf16.gmra.mxu0 %v7674
      %v7737 = vpop.f32.mrf.mxu0
      %v7738 = vadd.f32 0.0, %v7737
      %v7739 = vpop.f32.mrf.mxu0
      %v7740 = vadd.f32 0.0, %v7739
      %7741 = vmatmul.bf16.gmra.mxu0 %v7677
      %v7742 = vpop.f32.mrf.mxu0
      %v7743 = vpop.f32.mrf.mxu0
      %7744 = vmatmul.bf16.gmra.mxu0 %v7680
      %v7745 = vpop.f32.mrf.mxu0
      %v7746 = vadd.f32 0.0, %v7745
      %v7747 = vpop.f32.mrf.mxu0
      %v7748 = vadd.f32 0.0, %v7747
      %7749 = vmatmul.bf16.gmra.mxu0 %v7683
      %v7750 = vpop.f32.mrf.mxu0
      %v7751 = vpop.f32.mrf.mxu0
      %7752 = vmatmul.bf16.gmra.mxu0 %v7686
      %v7753 = vpop.f32.mrf.mxu0
      %v7754 = vadd.f32 0.0, %v7753
      %v7755 = vpop.f32.mrf.mxu0
      %v7756 = vadd.f32 0.0, %v7755
      %7757 = vmatmul.bf16.gmra.mxu0 %v7689
      %v7758 = vpop.f32.mrf.mxu0
      %v7759 = vpop.f32.mrf.mxu0
      %7760 = vmatmul.bf16.gmra.mxu0 %v7692
      %v7761 = vpop.f32.mrf.mxu0
      %v7762 = vadd.f32 0.0, %v7761
      %v7763 = vpop.f32.mrf.mxu0
      %v7764 = vadd.f32 0.0, %v7763
      %7765 = vmatmul.bf16.gmra.mxu0 %v7695
      %v7766 = vpop.f32.mrf.mxu0
      %v7767 = vpop.f32.mrf.mxu0
      %7768 = vmatmul.bf16.gmra.mxu0 %v7698
      %v7769 = vpop.f32.mrf.mxu0
      %v7770 = vadd.f32 0.0, %v7769
      %v7771 = vpop.f32.mrf.mxu0
      %v7772 = vadd.f32 0.0, %v7771
      %7773 = vmatmul.bf16.gmra.mxu0 %v7701
      %v7774 = vpop.f32.mrf.mxu0
      %v7775 = vpop.f32.mrf.mxu0
      %7776 = vmatmul.bf16.gmra.mxu0 %v7704
      %v7777 = vpop.f32.mrf.mxu0
      %v7778 = vadd.f32 0.0, %v7777
      %v7779 = vpop.f32.mrf.mxu0
      %v7780 = vadd.f32 0.0, %v7779
      %7781 = vmatmul.bf16.gmra.mxu0 %v7707
      %v7782 = vpop.f32.mrf.mxu0
      %v7783 = vpop.f32.mrf.mxu0
      %7784 = vdwg.mxu0
      %v7785 = vadd.f32 %v6970, %v7722
      %v7786 = vadd.f32 %v6971, %v7724
      %v7787 = vadd.f32 %v6972, %v7730
      %v7788 = vadd.f32 %v6973, %v7732
      %v7789 = vadd.f32 %v6974, %v7738
      %v7790 = vadd.f32 %v6975, %v7740
      %v7791 = vadd.f32 %v6976, %v7746
      %v7792 = vadd.f32 %v6977, %v7748
      %v7793 = vadd.f32 %v6978, %v7754
      %v7794 = vadd.f32 %v6979, %v7756
      %v7795 = vadd.f32 %v6980, %v7762
      %v7796 = vadd.f32 %v6981, %v7764
      %v7797 = vadd.f32 %v6982, %v7770
      %v7798 = vadd.f32 %v6983, %v7772
      %v7799 = vadd.f32 %v6984, %v7778
      %v7800 = vadd.f32 %v6985, %v7780
      %s7801 = scalar_lea.vmem %s564, 56
      %v7802 = vld [vmem:[%s7801] sm:$0x3]
      %v7804 = vsel %vm944, %v7802, 0
      %7806 = vmatpush.bf16.msra.mxu0 0
      %7807 = vmatpush.bf16.msra.mxu0 0
      %7808 = vmatpush.bf16.msra.mxu0 0
      %7809 = vmatpush.bf16.msra.mxu0 0
      %7810 = vmatpush.bf16.msra.mxu0 0
      %7811 = vmatpush.bf16.msra.mxu0 0
      %7812 = vmatpush.bf16.msra.mxu0 0
      %7813 = vmatpush.bf16.msra.mxu0 %v7804
      %7814 = vmatmul.bf16.gmra.mxu0 %v7662
      %v7815 = vpop.f32.mrf.mxu0
      %v7816 = vadd.f32 0.0, %v7815
      %v7817 = vpop.f32.mrf.mxu0
      %v7818 = vadd.f32 0.0, %v7817
      %7819 = vmatmul.bf16.gmra.mxu0 %v7665
      %v7820 = vpop.f32.mrf.mxu0
      %v7821 = vadd.f32 0.0, %v7820
      %v7822 = vpop.f32.mrf.mxu0
      %7823 = vmatmul.bf16.gmra.mxu0 %v7668
      %v7824 = vpop.f32.mrf.mxu0
      %v7825 = vadd.f32 0.0, %v7824
      %v7826 = vpop.f32.mrf.mxu0
      %v7827 = vadd.f32 0.0, %v7826
      %7828 = vmatmul.bf16.gmra.mxu0 %v7671
      %v7829 = vpop.f32.mrf.mxu0
      %v7830 = vadd.f32 0.0, %v7829
      %v7831 = vpop.f32.mrf.mxu0
      %7832 = vmatmul.bf16.gmra.mxu0 %v7674
      %v7833 = vpop.f32.mrf.mxu0
      %v7834 = vadd.f32 0.0, %v7833
      %v7835 = vpop.f32.mrf.mxu0
      %v7836 = vadd.f32 0.0, %v7835
      %7837 = vmatmul.bf16.gmra.mxu0 %v7677
      %v7838 = vpop.f32.mrf.mxu0
      %v7839 = vadd.f32 0.0, %v7838
      %v7840 = vpop.f32.mrf.mxu0
      %7841 = vmatmul.bf16.gmra.mxu0 %v7680
      %v7842 = vpop.f32.mrf.mxu0
      %v7843 = vadd.f32 0.0, %v7842
      %v7844 = vpop.f32.mrf.mxu0
      %v7845 = vadd.f32 0.0, %v7844
      %7846 = vmatmul.bf16.gmra.mxu0 %v7683
      %v7847 = vpop.f32.mrf.mxu0
      %v7848 = vadd.f32 0.0, %v7847
      %v7849 = vpop.f32.mrf.mxu0
      %7850 = vmatmul.bf16.gmra.mxu0 %v7686
      %v7851 = vpop.f32.mrf.mxu0
      %v7852 = vadd.f32 0.0, %v7851
      %v7853 = vpop.f32.mrf.mxu0
      %v7854 = vadd.f32 0.0, %v7853
      %7855 = vmatmul.bf16.gmra.mxu0 %v7689
      %v7856 = vpop.f32.mrf.mxu0
      %v7857 = vadd.f32 0.0, %v7856
      %v7858 = vpop.f32.mrf.mxu0
      %7859 = vmatmul.bf16.gmra.mxu0 %v7692
      %v7860 = vpop.f32.mrf.mxu0
      %v7861 = vadd.f32 0.0, %v7860
      %v7862 = vpop.f32.mrf.mxu0
      %v7863 = vadd.f32 0.0, %v7862
      %7864 = vmatmul.bf16.gmra.mxu0 %v7695
      %v7865 = vpop.f32.mrf.mxu0
      %v7866 = vadd.f32 0.0, %v7865
      %v7867 = vpop.f32.mrf.mxu0
      %7868 = vmatmul.bf16.gmra.mxu0 %v7698
      %v7869 = vpop.f32.mrf.mxu0
      %v7870 = vadd.f32 0.0, %v7869
      %v7871 = vpop.f32.mrf.mxu0
      %v7872 = vadd.f32 0.0, %v7871
      %7873 = vmatmul.bf16.gmra.mxu0 %v7701
      %v7874 = vpop.f32.mrf.mxu0
      %v7875 = vadd.f32 0.0, %v7874
      %v7876 = vpop.f32.mrf.mxu0
      %7877 = vmatmul.bf16.gmra.mxu0 %v7704
      %v7878 = vpop.f32.mrf.mxu0
      %v7879 = vadd.f32 0.0, %v7878
      %v7880 = vpop.f32.mrf.mxu0
      %v7881 = vadd.f32 0.0, %v7880
      %7882 = vmatmul.bf16.gmra.mxu0 %v7707
      %v7883 = vpop.f32.mrf.mxu0
      %v7884 = vadd.f32 0.0, %v7883
      %v7885 = vpop.f32.mrf.mxu0
      %7886 = vdwg.mxu0
      %v7887 = vadd.f32 %v7072, %v7816
      %v7888 = vadd.f32 %v7073, %v7818
      %v7889 = vadd.f32 %v7074, %v7821
      %v7890 = vadd.f32 %v7075, %v7825
      %v7891 = vadd.f32 %v7076, %v7827
      %v7892 = vadd.f32 %v7077, %v7830
      %v7893 = vadd.f32 %v7078, %v7834
      %v7894 = vadd.f32 %v7079, %v7836
      %v7895 = vadd.f32 %v7080, %v7839
      %v7896 = vadd.f32 %v7081, %v7843
      %v7897 = vadd.f32 %v7082, %v7845
      %v7898 = vadd.f32 %v7083, %v7848
      %v7899 = vadd.f32 %v7084, %v7852
      %v7900 = vadd.f32 %v7085, %v7854
      %v7901 = vadd.f32 %v7086, %v7857
      %v7902 = vadd.f32 %v7087, %v7861
      %v7903 = vadd.f32 %v7088, %v7863
      %v7904 = vadd.f32 %v7089, %v7866
      %v7905 = vadd.f32 %v7090, %v7870
      %v7906 = vadd.f32 %v7091, %v7872
      %v7907 = vadd.f32 %v7092, %v7875
      %v7908 = vadd.f32 %v7093, %v7879
      %v7909 = vadd.f32 %v7094, %v7881
      %v7910 = vadd.f32 %v7095, %v7884
      %s7911 = scalar_lea.vmem %s564, 58
      %v7912 = vld [vmem:[%s7911] sm:$0x3]
      %v7914 = vsel %vm944, %v7912, 0
      %7916 = vmatpush.bf16.msra.mxu0 0
      %7917 = vmatpush.bf16.msra.mxu0 0
      %7918 = vmatpush.bf16.msra.mxu0 0
      %7919 = vmatpush.bf16.msra.mxu0 0
      %7920 = vmatpush.bf16.msra.mxu0 0
      %7921 = vmatpush.bf16.msra.mxu0 0
      %7922 = vmatpush.bf16.msra.mxu0 0
      %7923 = vmatpush.bf16.msra.mxu0 %v7914
      %7924 = vmatmul.bf16.gmra.mxu0 %v7662
      %v7925 = vpop.f32.mrf.mxu0
      %v7926 = vadd.f32 0.0, %v7925
      %v7927 = vpop.f32.mrf.mxu0
      %v7928 = vadd.f32 0.0, %v7927
      %7929 = vmatmul.bf16.gmra.mxu0 %v7665
      %v7930 = vpop.f32.mrf.mxu0
      %v7931 = vadd.f32 0.0, %v7930
      %v7932 = vpop.f32.mrf.mxu0
      %7933 = vmatmul.bf16.gmra.mxu0 %v7668
      %v7934 = vpop.f32.mrf.mxu0
      %v7935 = vadd.f32 0.0, %v7934
      %v7936 = vpop.f32.mrf.mxu0
      %v7937 = vadd.f32 0.0, %v7936
      %7938 = vmatmul.bf16.gmra.mxu0 %v7671
      %v7939 = vpop.f32.mrf.mxu0
      %v7940 = vadd.f32 0.0, %v7939
      %v7941 = vpop.f32.mrf.mxu0
      %7942 = vmatmul.bf16.gmra.mxu0 %v7674
      %v7943 = vpop.f32.mrf.mxu0
      %v7944 = vadd.f32 0.0, %v7943
      %v7945 = vpop.f32.mrf.mxu0
      %v7946 = vadd.f32 0.0, %v7945
      %7947 = vmatmul.bf16.gmra.mxu0 %v7677
      %v7948 = vpop.f32.mrf.mxu0
      %v7949 = vadd.f32 0.0, %v7948
      %v7950 = vpop.f32.mrf.mxu0
      %7951 = vmatmul.bf16.gmra.mxu0 %v7680
      %v7952 = vpop.f32.mrf.mxu0
      %v7953 = vadd.f32 0.0, %v7952
      %v7954 = vpop.f32.mrf.mxu0
      %v7955 = vadd.f32 0.0, %v7954
      %7956 = vmatmul.bf16.gmra.mxu0 %v7683
      %v7957 = vpop.f32.mrf.mxu0
      %v7958 = vadd.f32 0.0, %v7957
      %v7959 = vpop.f32.mrf.mxu0
      %7960 = vmatmul.bf16.gmra.mxu0 %v7686
      %v7961 = vpop.f32.mrf.mxu0
      %v7962 = vadd.f32 0.0, %v7961
      %v7963 = vpop.f32.mrf.mxu0
      %v7964 = vadd.f32 0.0, %v7963
      %7965 = vmatmul.bf16.gmra.mxu0 %v7689
      %v7966 = vpop.f32.mrf.mxu0
      %v7967 = vadd.f32 0.0, %v7966
      %v7968 = vpop.f32.mrf.mxu0
      %7969 = vmatmul.bf16.gmra.mxu0 %v7692
      %v7970 = vpop.f32.mrf.mxu0
      %v7971 = vadd.f32 0.0, %v7970
      %v7972 = vpop.f32.mrf.mxu0
      %v7973 = vadd.f32 0.0, %v7972
      %7974 = vmatmul.bf16.gmra.mxu0 %v7695
      %v7975 = vpop.f32.mrf.mxu0
      %v7976 = vadd.f32 0.0, %v7975
      %v7977 = vpop.f32.mrf.mxu0
      %7978 = vmatmul.bf16.gmra.mxu0 %v7698
      %v7979 = vpop.f32.mrf.mxu0
      %v7980 = vadd.f32 0.0, %v7979
      %v7981 = vpop.f32.mrf.mxu0
      %v7982 = vadd.f32 0.0, %v7981
      %7983 = vmatmul.bf16.gmra.mxu0 %v7701
      %v7984 = vpop.f32.mrf.mxu0
      %v7985 = vadd.f32 0.0, %v7984
      %v7986 = vpop.f32.mrf.mxu0
      %7987 = vmatmul.bf16.gmra.mxu0 %v7704
      %v7988 = vpop.f32.mrf.mxu0
      %v7989 = vadd.f32 0.0, %v7988
      %v7990 = vpop.f32.mrf.mxu0
      %v7991 = vadd.f32 0.0, %v7990
      %7992 = vmatmul.bf16.gmra.mxu0 %v7707
      %v7993 = vpop.f32.mrf.mxu0
      %v7994 = vadd.f32 0.0, %v7993
      %v7995 = vpop.f32.mrf.mxu0
      %7996 = vdwg.mxu0
      %v7997 = vadd.f32 %v7182, %v7926
      %v7998 = vadd.f32 %v7183, %v7928
      %v7999 = vadd.f32 %v7184, %v7931
      %v8000 = vadd.f32 %v7185, %v7935
      %v8001 = vadd.f32 %v7186, %v7937
      %v8002 = vadd.f32 %v7187, %v7940
      %v8003 = vadd.f32 %v7188, %v7944
      %v8004 = vadd.f32 %v7189, %v7946
      %v8005 = vadd.f32 %v7190, %v7949
      %v8006 = vadd.f32 %v7191, %v7953
      %v8007 = vadd.f32 %v7192, %v7955
      %v8008 = vadd.f32 %v7193, %v7958
      %v8009 = vadd.f32 %v7194, %v7962
      %v8010 = vadd.f32 %v7195, %v7964
      %v8011 = vadd.f32 %v7196, %v7967
      %v8012 = vadd.f32 %v7197, %v7971
      %v8013 = vadd.f32 %v7198, %v7973
      %v8014 = vadd.f32 %v7199, %v7976
      %v8015 = vadd.f32 %v7200, %v7980
      %v8016 = vadd.f32 %v7201, %v7982
      %v8017 = vadd.f32 %v7202, %v7985
      %v8018 = vadd.f32 %v7203, %v7989
      %v8019 = vadd.f32 %v7204, %v7991
      %v8020 = vadd.f32 %v7205, %v7994
      %v8021 = vld [vmem:[#allocation4 + $0x10] sm:$0xf]
      %v8022 = vld [vmem:[#allocation4 + $0x14] sm:$0xf]
      %v8023 = vld [vmem:[#allocation4 + $0x18] sm:$0xf]
      %v8024 = vld [vmem:[#allocation4 + $0x1c] sm:$0xf]
      %v8025 = vld [vmem:[#allocation4 + $0x20] sm:$0xf]
      %v8026 = vld [vmem:[#allocation4 + $0x24] sm:$0xf]
      %v8027 = vld [vmem:[#allocation4 + $0x28] sm:$0xf]
      %v8028 = vld [vmem:[#allocation4 + $0x2c] sm:$0xf]
      %v8029 = vld [vmem:[#allocation4 + $0x30] sm:$0xf]
      %v8030 = vld [vmem:[#allocation4 + $0x34] sm:$0xf]
      %v8031 = vld [vmem:[#allocation4 + $0x38] sm:$0xf]
      %v8032 = vld [vmem:[#allocation4 + $0x3c] sm:$0xf]
      %v8033 = vld [vmem:[#allocation4 + $0x40] sm:$0xf]
      %v8034 = vld [vmem:[#allocation4 + $0x44] sm:$0xf]
      %v8035 = vld [vmem:[#allocation4 + $0x48] sm:$0xf]
      %v8036 = vld [vmem:[#allocation4 + $0x4c] sm:$0xf]
      %v8037 = vld [vmem:[#allocation4 + $0x50] sm:$0xf]
      %v8038 = vld [vmem:[#allocation4 + $0x54] sm:$0xf]
      %v8039 = vld [vmem:[#allocation4 + $0x58] sm:$0xf]
      %v8040 = vld [vmem:[#allocation4 + $0x5c] sm:$0xf]
      %v8041 = vld [vmem:[#allocation4 + $0x60] sm:$0xf]
      %v8042 = vld [vmem:[#allocation4 + $0x64] sm:$0xf]
      %v8043 = vld [vmem:[#allocation4 + $0x68] sm:$0xf]
      %v8044 = vld [vmem:[#allocation4 + $0x6c] sm:$0xf]
      %v8045 = vld [vmem:[#allocation4 + $0x70] sm:$0xf]
      %v8046 = vld [vmem:[#allocation4 + $0x74] sm:$0xf]
      %v8047 = vld [vmem:[#allocation4 + $0x78] sm:$0xf]
      %v8048 = vld [vmem:[#allocation4 + $0x7c] sm:$0xf]
      %v8049 = vld [vmem:[#allocation4 + $0x80] sm:$0xf]
      %v8050 = vld [vmem:[#allocation4 + $0x84] sm:$0xf]
      %v8051 = vld [vmem:[#allocation4 + $0x88] sm:$0xf]
      %v8052 = vld [vmem:[#allocation4 + $0x8c] sm:$0xf]
      %s8053 = scalar_lea.vmem %s564, 60
      %v8054 = vld [vmem:[%s8053] sm:$0x3]
      %v8087 = vunpack.c.l.b16 %v8021
      %v8088 = vunpack.c.l.b16 %v8022
      %v8089 = vunpack.c.l.b16 %v8023
      %v8090 = vunpack.c.l.b16 %v8024
      %v8091 = vunpack.c.l.b16 %v8025
      %v8092 = vunpack.c.l.b16 %v8026
      %v8093 = vunpack.c.l.b16 %v8027
      %v8094 = vunpack.c.l.b16 %v8028
      %v8095 = vunpack.c.l.b16 %v8029
      %v8096 = vunpack.c.l.b16 %v8030
      %v8097 = vunpack.c.l.b16 %v8031
      %v8098 = vunpack.c.l.b16 %v8032
      %v8099 = vunpack.c.l.b16 %v8033
      %v8100 = vunpack.c.l.b16 %v8034
      %v8101 = vunpack.c.l.b16 %v8035
      %v8102 = vunpack.c.l.b16 %v8036
      %v8103 = vunpack.c.l.b16 %v8037
      %v8104 = vunpack.c.l.b16 %v8038
      %v8105 = vunpack.c.l.b16 %v8039
      %v8106 = vunpack.c.l.b16 %v8040
      %v8107 = vunpack.c.l.b16 %v8041
      %v8108 = vunpack.c.l.b16 %v8042
      %v8109 = vunpack.c.l.b16 %v8043
      %v8110 = vunpack.c.l.b16 %v8044
      %v8111 = vunpack.c.l.b16 %v8045
      %v8112 = vunpack.c.l.b16 %v8046
      %v8113 = vunpack.c.l.b16 %v8047
      %v8114 = vunpack.c.l.b16 %v8048
      %v8115 = vunpack.c.l.b16 %v8049
      %v8116 = vunpack.c.l.b16 %v8050
      %v8117 = vunpack.c.l.b16 %v8051
      %v8118 = vunpack.c.l.b16 %v8052
      %v8119 = vpack.c.b16 %v8088, %v8087
      %v8120 = vpack.c.b16 %v8090, %v8089
      %v8121 = vpack.c.b16 %v8092, %v8091
      %v8122 = vpack.c.b16 %v8094, %v8093
      %v8123 = vpack.c.b16 %v8096, %v8095
      %v8124 = vpack.c.b16 %v8098, %v8097
      %v8125 = vpack.c.b16 %v8100, %v8099
      %v8126 = vpack.c.b16 %v8102, %v8101
      %v8127 = vpack.c.b16 %v8104, %v8103
      %v8128 = vpack.c.b16 %v8106, %v8105
      %v8129 = vpack.c.b16 %v8108, %v8107
      %v8130 = vpack.c.b16 %v8110, %v8109
      %v8131 = vpack.c.b16 %v8112, %v8111
      %v8132 = vpack.c.b16 %v8114, %v8113
      %v8133 = vpack.c.b16 %v8116, %v8115
      %v8134 = vpack.c.b16 %v8118, %v8117
      %v8136 = vsel %vm895, %v8119, 0
      %v8139 = vsel %vm895, %v8120, 0
      %v8142 = vsel %vm895, %v8121, 0
      %v8145 = vsel %vm895, %v8122, 0
      %v8148 = vsel %vm895, %v8123, 0
      %v8151 = vsel %vm895, %v8124, 0
      %v8154 = vsel %vm895, %v8125, 0
      %v8157 = vsel %vm895, %v8126, 0
      %v8160 = vsel %vm895, %v8127, 0
      %v8163 = vsel %vm895, %v8128, 0
      %v8166 = vsel %vm895, %v8129, 0
      %v8169 = vsel %vm895, %v8130, 0
      %v8172 = vsel %vm895, %v8131, 0
      %v8175 = vsel %vm895, %v8132, 0
      %v8178 = vsel %vm895, %v8133, 0
      %v8181 = vsel %vm895, %v8134, 0
      %v8184 = vsel %vm944, %v8054, 0
      %8186 = vmatpush.bf16.msra.mxu0 0
      %8187 = vmatpush.bf16.msra.mxu0 0
      %8188 = vmatpush.bf16.msra.mxu0 0
      %8189 = vmatpush.bf16.msra.mxu0 0
      %8190 = vmatpush.bf16.msra.mxu0 0
      %8191 = vmatpush.bf16.msra.mxu0 0
      %8192 = vmatpush.bf16.msra.mxu0 0
      %8193 = vmatpush.bf16.msra.mxu0 %v8184
      %8194 = vmatmul.bf16.gmra.mxu0 %v8136
      %v8195 = vpop.f32.mrf.mxu0
      %v8196 = vadd.f32 0.0, %v8195
      %v8197 = vpop.f32.mrf.mxu0
      %v8198 = vadd.f32 0.0, %v8197
      %8199 = vmatmul.bf16.gmra.mxu0 %v8139
      %v8200 = vpop.f32.mrf.mxu0
      %v8201 = vpop.f32.mrf.mxu0
      %8202 = vmatmul.bf16.gmra.mxu0 %v8142
      %v8203 = vpop.f32.mrf.mxu0
      %v8204 = vadd.f32 0.0, %v8203
      %v8205 = vpop.f32.mrf.mxu0
      %v8206 = vadd.f32 0.0, %v8205
      %8207 = vmatmul.bf16.gmra.mxu0 %v8145
      %v8208 = vpop.f32.mrf.mxu0
      %v8209 = vpop.f32.mrf.mxu0
      %8210 = vmatmul.bf16.gmra.mxu0 %v8148
      %v8211 = vpop.f32.mrf.mxu0
      %v8212 = vadd.f32 0.0, %v8211
      %v8213 = vpop.f32.mrf.mxu0
      %v8214 = vadd.f32 0.0, %v8213
      %8215 = vmatmul.bf16.gmra.mxu0 %v8151
      %v8216 = vpop.f32.mrf.mxu0
      %v8217 = vpop.f32.mrf.mxu0
      %8218 = vmatmul.bf16.gmra.mxu0 %v8154
      %v8219 = vpop.f32.mrf.mxu0
      %v8220 = vadd.f32 0.0, %v8219
      %v8221 = vpop.f32.mrf.mxu0
      %v8222 = vadd.f32 0.0, %v8221
      %8223 = vmatmul.bf16.gmra.mxu0 %v8157
      %v8224 = vpop.f32.mrf.mxu0
      %v8225 = vpop.f32.mrf.mxu0
      %8226 = vmatmul.bf16.gmra.mxu0 %v8160
      %v8227 = vpop.f32.mrf.mxu0
      %v8228 = vadd.f32 0.0, %v8227
      %v8229 = vpop.f32.mrf.mxu0
      %v8230 = vadd.f32 0.0, %v8229
      %8231 = vmatmul.bf16.gmra.mxu0 %v8163
      %v8232 = vpop.f32.mrf.mxu0
      %v8233 = vpop.f32.mrf.mxu0
      %8234 = vmatmul.bf16.gmra.mxu0 %v8166
      %v8235 = vpop.f32.mrf.mxu0
      %v8236 = vadd.f32 0.0, %v8235
      %v8237 = vpop.f32.mrf.mxu0
      %v8238 = vadd.f32 0.0, %v8237
      %8239 = vmatmul.bf16.gmra.mxu0 %v8169
      %v8240 = vpop.f32.mrf.mxu0
      %v8241 = vpop.f32.mrf.mxu0
      %8242 = vmatmul.bf16.gmra.mxu0 %v8172
      %v8243 = vpop.f32.mrf.mxu0
      %v8244 = vadd.f32 0.0, %v8243
      %v8245 = vpop.f32.mrf.mxu0
      %v8246 = vadd.f32 0.0, %v8245
      %8247 = vmatmul.bf16.gmra.mxu0 %v8175
      %v8248 = vpop.f32.mrf.mxu0
      %v8249 = vpop.f32.mrf.mxu0
      %8250 = vmatmul.bf16.gmra.mxu0 %v8178
      %v8251 = vpop.f32.mrf.mxu0
      %v8252 = vadd.f32 0.0, %v8251
      %v8253 = vpop.f32.mrf.mxu0
      %v8254 = vadd.f32 0.0, %v8253
      %8255 = vmatmul.bf16.gmra.mxu0 %v8181
      %v8256 = vpop.f32.mrf.mxu0
      %v8257 = vpop.f32.mrf.mxu0
      %8258 = vdwg.mxu0
      %v8259 = vadd.f32 %v7785, %v8196
      %v8260 = vadd.f32 %v7786, %v8198
      %v8261 = vadd.f32 %v7787, %v8204
      %v8262 = vadd.f32 %v7788, %v8206
      %v8263 = vadd.f32 %v7789, %v8212
      %v8264 = vadd.f32 %v7790, %v8214
      %v8265 = vadd.f32 %v7791, %v8220
      %v8266 = vadd.f32 %v7792, %v8222
      %v8267 = vadd.f32 %v7793, %v8228
      %v8268 = vadd.f32 %v7794, %v8230
      %v8269 = vadd.f32 %v7795, %v8236
      %v8270 = vadd.f32 %v7796, %v8238
      %v8271 = vadd.f32 %v7797, %v8244
      %v8272 = vadd.f32 %v7798, %v8246
      %v8273 = vadd.f32 %v7799, %v8252
      %v8274 = vadd.f32 %v7800, %v8254
      %s8275 = scalar_lea.vmem %s564, 62
      %v8276 = vld [vmem:[%s8275] sm:$0x3]
      %v8278 = vsel %vm944, %v8276, 0
      %8280 = vmatpush.bf16.msra.mxu0 0
      %8281 = vmatpush.bf16.msra.mxu0 0
      %8282 = vmatpush.bf16.msra.mxu0 0
      %8283 = vmatpush.bf16.msra.mxu0 0
      %8284 = vmatpush.bf16.msra.mxu0 0
      %8285 = vmatpush.bf16.msra.mxu0 0
      %8286 = vmatpush.bf16.msra.mxu0 0
      %8287 = vmatpush.bf16.msra.mxu0 %v8278
      %8288 = vmatmul.bf16.gmra.mxu0 %v8136
      %v8289 = vpop.f32.mrf.mxu0
      %v8290 = vadd.f32 0.0, %v8289
      %v8291 = vpop.f32.mrf.mxu0
      %v8292 = vadd.f32 0.0, %v8291
      %8293 = vmatmul.bf16.gmra.mxu0 %v8139
      %v8294 = vpop.f32.mrf.mxu0
      %v8295 = vadd.f32 0.0, %v8294
      %v8296 = vpop.f32.mrf.mxu0
      %8297 = vmatmul.bf16.gmra.mxu0 %v8142
      %v8298 = vpop.f32.mrf.mxu0
      %v8299 = vadd.f32 0.0, %v8298
      %v8300 = vpop.f32.mrf.mxu0
      %v8301 = vadd.f32 0.0, %v8300
      %8302 = vmatmul.bf16.gmra.mxu0 %v8145
      %v8303 = vpop.f32.mrf.mxu0
      %v8304 = vadd.f32 0.0, %v8303
      %v8305 = vpop.f32.mrf.mxu0
      %8306 = vmatmul.bf16.gmra.mxu0 %v8148
      %v8307 = vpop.f32.mrf.mxu0
      %v8308 = vadd.f32 0.0, %v8307
      %v8309 = vpop.f32.mrf.mxu0
      %v8310 = vadd.f32 0.0, %v8309
      %8311 = vmatmul.bf16.gmra.mxu0 %v8151
      %v8312 = vpop.f32.mrf.mxu0
      %v8313 = vadd.f32 0.0, %v8312
      %v8314 = vpop.f32.mrf.mxu0
      %8315 = vmatmul.bf16.gmra.mxu0 %v8154
      %v8316 = vpop.f32.mrf.mxu0
      %v8317 = vadd.f32 0.0, %v8316
      %v8318 = vpop.f32.mrf.mxu0
      %v8319 = vadd.f32 0.0, %v8318
      %8320 = vmatmul.bf16.gmra.mxu0 %v8157
      %v8321 = vpop.f32.mrf.mxu0
      %v8322 = vadd.f32 0.0, %v8321
      %v8323 = vpop.f32.mrf.mxu0
      %8324 = vmatmul.bf16.gmra.mxu0 %v8160
      %v8325 = vpop.f32.mrf.mxu0
      %v8326 = vadd.f32 0.0, %v8325
      %v8327 = vpop.f32.mrf.mxu0
      %v8328 = vadd.f32 0.0, %v8327
      %8329 = vmatmul.bf16.gmra.mxu0 %v8163
      %v8330 = vpop.f32.mrf.mxu0
      %v8331 = vadd.f32 0.0, %v8330
      %v8332 = vpop.f32.mrf.mxu0
      %8333 = vmatmul.bf16.gmra.mxu0 %v8166
      %v8334 = vpop.f32.mrf.mxu0
      %v8335 = vadd.f32 0.0, %v8334
      %v8336 = vpop.f32.mrf.mxu0
      %v8337 = vadd.f32 0.0, %v8336
      %8338 = vmatmul.bf16.gmra.mxu0 %v8169
      %v8339 = vpop.f32.mrf.mxu0
      %v8340 = vadd.f32 0.0, %v8339
      %v8341 = vpop.f32.mrf.mxu0
      %8342 = vmatmul.bf16.gmra.mxu0 %v8172
      %v8343 = vpop.f32.mrf.mxu0
      %v8344 = vadd.f32 0.0, %v8343
      %v8345 = vpop.f32.mrf.mxu0
      %v8346 = vadd.f32 0.0, %v8345
      %8347 = vmatmul.bf16.gmra.mxu0 %v8175
      %v8348 = vpop.f32.mrf.mxu0
      %v8349 = vadd.f32 0.0, %v8348
      %v8350 = vpop.f32.mrf.mxu0
      %8351 = vmatmul.bf16.gmra.mxu0 %v8178
      %v8352 = vpop.f32.mrf.mxu0
      %v8353 = vadd.f32 0.0, %v8352
      %v8354 = vpop.f32.mrf.mxu0
      %v8355 = vadd.f32 0.0, %v8354
      %8356 = vmatmul.bf16.gmra.mxu0 %v8181
      %v8357 = vpop.f32.mrf.mxu0
      %v8358 = vadd.f32 0.0, %v8357
      %v8359 = vpop.f32.mrf.mxu0
      %8360 = vdwg.mxu0
      %v8361 = vadd.f32 %v7887, %v8290
      %v8362 = vadd.f32 %v7888, %v8292
      %v8363 = vadd.f32 %v7889, %v8295
      %v8364 = vadd.f32 %v7890, %v8299
      %v8365 = vadd.f32 %v7891, %v8301
      %v8366 = vadd.f32 %v7892, %v8304
      %v8367 = vadd.f32 %v7893, %v8308
      %v8368 = vadd.f32 %v7894, %v8310
      %v8369 = vadd.f32 %v7895, %v8313
      %v8370 = vadd.f32 %v7896, %v8317
      %v8371 = vadd.f32 %v7897, %v8319
      %v8372 = vadd.f32 %v7898, %v8322
      %v8373 = vadd.f32 %v7899, %v8326
      %v8374 = vadd.f32 %v7900, %v8328
      %v8375 = vadd.f32 %v7901, %v8331
      %v8376 = vadd.f32 %v7902, %v8335
      %v8377 = vadd.f32 %v7903, %v8337
      %v8378 = vadd.f32 %v7904, %v8340
      %v8379 = vadd.f32 %v7905, %v8344
      %v8380 = vadd.f32 %v7906, %v8346
      %v8381 = vadd.f32 %v7907, %v8349
      %v8382 = vadd.f32 %v7908, %v8353
      %v8383 = vadd.f32 %v7909, %v8355
      %v8384 = vadd.f32 %v7910, %v8358
      %s8385 = scalar_lea.vmem %s564, 64
      %v8386 = vld [vmem:[%s8385] sm:$0x3]
      %v8388 = vsel %vm944, %v8386, 0
      %8390 = vmatpush.bf16.msra.mxu0 0
      %8391 = vmatpush.bf16.msra.mxu0 0
      %8392 = vmatpush.bf16.msra.mxu0 0
      %8393 = vmatpush.bf16.msra.mxu0 0
      %8394 = vmatpush.bf16.msra.mxu0 0
      %8395 = vmatpush.bf16.msra.mxu0 0
      %8396 = vmatpush.bf16.msra.mxu0 0
      %8397 = vmatpush.bf16.msra.mxu0 %v8388
      %8398 = vmatmul.bf16.gmra.mxu0 %v8136
      %v8399 = vpop.f32.mrf.mxu0
      %v8400 = vadd.f32 0.0, %v8399
      %v8401 = vpop.f32.mrf.mxu0
      %v8402 = vadd.f32 0.0, %v8401
      %8403 = vmatmul.bf16.gmra.mxu0 %v8139
      %v8404 = vpop.f32.mrf.mxu0
      %v8405 = vadd.f32 0.0, %v8404
      %v8406 = vpop.f32.mrf.mxu0
      %8407 = vmatmul.bf16.gmra.mxu0 %v8142
      %v8408 = vpop.f32.mrf.mxu0
      %v8409 = vadd.f32 0.0, %v8408
      %v8410 = vpop.f32.mrf.mxu0
      %v8411 = vadd.f32 0.0, %v8410
      %8412 = vmatmul.bf16.gmra.mxu0 %v8145
      %v8413 = vpop.f32.mrf.mxu0
      %v8414 = vadd.f32 0.0, %v8413
      %v8415 = vpop.f32.mrf.mxu0
      %8416 = vmatmul.bf16.gmra.mxu0 %v8148
      %v8417 = vpop.f32.mrf.mxu0
      %v8418 = vadd.f32 0.0, %v8417
      %v8419 = vpop.f32.mrf.mxu0
      %v8420 = vadd.f32 0.0, %v8419
      %8421 = vmatmul.bf16.gmra.mxu0 %v8151
      %v8422 = vpop.f32.mrf.mxu0
      %v8423 = vadd.f32 0.0, %v8422
      %v8424 = vpop.f32.mrf.mxu0
      %8425 = vmatmul.bf16.gmra.mxu0 %v8154
      %v8426 = vpop.f32.mrf.mxu0
      %v8427 = vadd.f32 0.0, %v8426
      %v8428 = vpop.f32.mrf.mxu0
      %v8429 = vadd.f32 0.0, %v8428
      %8430 = vmatmul.bf16.gmra.mxu0 %v8157
      %v8431 = vpop.f32.mrf.mxu0
      %v8432 = vadd.f32 0.0, %v8431
      %v8433 = vpop.f32.mrf.mxu0
      %8434 = vmatmul.bf16.gmra.mxu0 %v8160
      %v8435 = vpop.f32.mrf.mxu0
      %v8436 = vadd.f32 0.0, %v8435
      %v8437 = vpop.f32.mrf.mxu0
      %v8438 = vadd.f32 0.0, %v8437
      %8439 = vmatmul.bf16.gmra.mxu0 %v8163
      %v8440 = vpop.f32.mrf.mxu0
      %v8441 = vadd.f32 0.0, %v8440
      %v8442 = vpop.f32.mrf.mxu0
      %8443 = vmatmul.bf16.gmra.mxu0 %v8166
      %v8444 = vpop.f32.mrf.mxu0
      %v8445 = vadd.f32 0.0, %v8444
      %v8446 = vpop.f32.mrf.mxu0
      %v8447 = vadd.f32 0.0, %v8446
      %8448 = vmatmul.bf16.gmra.mxu0 %v8169
      %v8449 = vpop.f32.mrf.mxu0
      %v8450 = vadd.f32 0.0, %v8449
      %v8451 = vpop.f32.mrf.mxu0
      %8452 = vmatmul.bf16.gmra.mxu0 %v8172
      %v8453 = vpop.f32.mrf.mxu0
      %v8454 = vadd.f32 0.0, %v8453
      %v8455 = vpop.f32.mrf.mxu0
      %v8456 = vadd.f32 0.0, %v8455
      %8457 = vmatmul.bf16.gmra.mxu0 %v8175
      %v8458 = vpop.f32.mrf.mxu0
      %v8459 = vadd.f32 0.0, %v8458
      %v8460 = vpop.f32.mrf.mxu0
      %8461 = vmatmul.bf16.gmra.mxu0 %v8178
      %v8462 = vpop.f32.mrf.mxu0
      %v8463 = vadd.f32 0.0, %v8462
      %v8464 = vpop.f32.mrf.mxu0
      %v8465 = vadd.f32 0.0, %v8464
      %8466 = vmatmul.bf16.gmra.mxu0 %v8181
      %v8467 = vpop.f32.mrf.mxu0
      %v8468 = vadd.f32 0.0, %v8467
      %v8469 = vpop.f32.mrf.mxu0
      %8470 = vdwg.mxu0
      %v8471 = vadd.f32 %v7997, %v8400
      %v8472 = vadd.f32 %v7998, %v8402
      %v8473 = vadd.f32 %v7999, %v8405
      %v8474 = vadd.f32 %v8000, %v8409
      %v8475 = vadd.f32 %v8001, %v8411
      %v8476 = vadd.f32 %v8002, %v8414
      %v8477 = vadd.f32 %v8003, %v8418
      %v8478 = vadd.f32 %v8004, %v8420
      %v8479 = vadd.f32 %v8005, %v8423
      %v8480 = vadd.f32 %v8006, %v8427
      %v8481 = vadd.f32 %v8007, %v8429
      %v8482 = vadd.f32 %v8008, %v8432
      %v8483 = vadd.f32 %v8009, %v8436
      %v8484 = vadd.f32 %v8010, %v8438
      %v8485 = vadd.f32 %v8011, %v8441
      %v8486 = vadd.f32 %v8012, %v8445
      %v8487 = vadd.f32 %v8013, %v8447
      %v8488 = vadd.f32 %v8014, %v8450
      %v8489 = vadd.f32 %v8015, %v8454
      %v8490 = vadd.f32 %v8016, %v8456
      %v8491 = vadd.f32 %v8017, %v8459
      %v8492 = vadd.f32 %v8018, %v8463
      %v8493 = vadd.f32 %v8019, %v8465
      %v8494 = vadd.f32 %v8020, %v8468
      %v8495 = vld [vmem:[#allocation4 + $0x20] sm:$0xf]
      %v8496 = vld [vmem:[#allocation4 + $0x24] sm:$0xf]
      %v8497 = vld [vmem:[#allocation4 + $0x28] sm:$0xf]
      %v8498 = vld [vmem:[#allocation4 + $0x2c] sm:$0xf]
      %v8499 = vld [vmem:[#allocation4 + $0x30] sm:$0xf]
      %v8500 = vld [vmem:[#allocation4 + $0x34] sm:$0xf]
      %v8501 = vld [vmem:[#allocation4 + $0x38] sm:$0xf]
      %v8502 = vld [vmem:[#allocation4 + $0x3c] sm:$0xf]
      %v8503 = vld [vmem:[#allocation4 + $0x40] sm:$0xf]
      %v8504 = vld [vmem:[#allocation4 + $0x44] sm:$0xf]
      %v8505 = vld [vmem:[#allocation4 + $0x48] sm:$0xf]
      %v8506 = vld [vmem:[#allocation4 + $0x4c] sm:$0xf]
      %v8507 = vld [vmem:[#allocation4 + $0x50] sm:$0xf]
      %v8508 = vld [vmem:[#allocation4 + $0x54] sm:$0xf]
      %v8509 = vld [vmem:[#allocation4 + $0x58] sm:$0xf]
      %v8510 = vld [vmem:[#allocation4 + $0x5c] sm:$0xf]
      %v8511 = vld [vmem:[#allocation4 + $0x60] sm:$0xf]
      %v8512 = vld [vmem:[#allocation4 + $0x64] sm:$0xf]
      %v8513 = vld [vmem:[#allocation4 + $0x68] sm:$0xf]
      %v8514 = vld [vmem:[#allocation4 + $0x6c] sm:$0xf]
      %v8515 = vld [vmem:[#allocation4 + $0x70] sm:$0xf]
      %v8516 = vld [vmem:[#allocation4 + $0x74] sm:$0xf]
      %v8517 = vld [vmem:[#allocation4 + $0x78] sm:$0xf]
      %v8518 = vld [vmem:[#allocation4 + $0x7c] sm:$0xf]
      %v8519 = vld [vmem:[#allocation4 + $0x80] sm:$0xf]
      %v8520 = vld [vmem:[#allocation4 + $0x84] sm:$0xf]
      %v8521 = vld [vmem:[#allocation4 + $0x88] sm:$0xf]
      %v8522 = vld [vmem:[#allocation4 + $0x8c] sm:$0xf]
      %v8523 = vld [vmem:[#allocation4 + $0x90] sm:$0xf]
      %v8524 = vld [vmem:[#allocation4 + $0x94] sm:$0xf]
      %v8525 = vld [vmem:[#allocation4 + $0x98] sm:$0xf]
      %v8526 = vld [vmem:[#allocation4 + $0x9c] sm:$0xf]
      %s8527 = scalar_lea.vmem %s564, 66
      %v8528 = vld [vmem:[%s8527] sm:$0x3]
      %v8561 = vunpack.c.l.b16 %v8495
      %v8562 = vunpack.c.l.b16 %v8496
      %v8563 = vunpack.c.l.b16 %v8497
      %v8564 = vunpack.c.l.b16 %v8498
      %v8565 = vunpack.c.l.b16 %v8499
      %v8566 = vunpack.c.l.b16 %v8500
      %v8567 = vunpack.c.l.b16 %v8501
      %v8568 = vunpack.c.l.b16 %v8502
      %v8569 = vunpack.c.l.b16 %v8503
      %v8570 = vunpack.c.l.b16 %v8504
      %v8571 = vunpack.c.l.b16 %v8505
      %v8572 = vunpack.c.l.b16 %v8506
      %v8573 = vunpack.c.l.b16 %v8507
      %v8574 = vunpack.c.l.b16 %v8508
      %v8575 = vunpack.c.l.b16 %v8509
      %v8576 = vunpack.c.l.b16 %v8510
      %v8577 = vunpack.c.l.b16 %v8511
      %v8578 = vunpack.c.l.b16 %v8512
      %v8579 = vunpack.c.l.b16 %v8513
      %v8580 = vunpack.c.l.b16 %v8514
      %v8581 = vunpack.c.l.b16 %v8515
      %v8582 = vunpack.c.l.b16 %v8516
      %v8583 = vunpack.c.l.b16 %v8517
      %v8584 = vunpack.c.l.b16 %v8518
      %v8585 = vunpack.c.l.b16 %v8519
      %v8586 = vunpack.c.l.b16 %v8520
      %v8587 = vunpack.c.l.b16 %v8521
      %v8588 = vunpack.c.l.b16 %v8522
      %v8589 = vunpack.c.l.b16 %v8523
      %v8590 = vunpack.c.l.b16 %v8524
      %v8591 = vunpack.c.l.b16 %v8525
      %v8592 = vunpack.c.l.b16 %v8526
      %v8593 = vpack.c.b16 %v8562, %v8561
      %v8594 = vpack.c.b16 %v8564, %v8563
      %v8595 = vpack.c.b16 %v8566, %v8565
      %v8596 = vpack.c.b16 %v8568, %v8567
      %v8597 = vpack.c.b16 %v8570, %v8569
      %v8598 = vpack.c.b16 %v8572, %v8571
      %v8599 = vpack.c.b16 %v8574, %v8573
      %v8600 = vpack.c.b16 %v8576, %v8575
      %v8601 = vpack.c.b16 %v8578, %v8577
      %v8602 = vpack.c.b16 %v8580, %v8579
      %v8603 = vpack.c.b16 %v8582, %v8581
      %v8604 = vpack.c.b16 %v8584, %v8583
      %v8605 = vpack.c.b16 %v8586, %v8585
      %v8606 = vpack.c.b16 %v8588, %v8587
      %v8607 = vpack.c.b16 %v8590, %v8589
      %v8608 = vpack.c.b16 %v8592, %v8591
      %v8610 = vsel %vm895, %v8593, 0
      %v8613 = vsel %vm895, %v8594, 0
      %v8616 = vsel %vm895, %v8595, 0
      %v8619 = vsel %vm895, %v8596, 0
      %v8622 = vsel %vm895, %v8597, 0
      %v8625 = vsel %vm895, %v8598, 0
      %v8628 = vsel %vm895, %v8599, 0
      %v8631 = vsel %vm895, %v8600, 0
      %v8634 = vsel %vm895, %v8601, 0
      %v8637 = vsel %vm895, %v8602, 0
      %v8640 = vsel %vm895, %v8603, 0
      %v8643 = vsel %vm895, %v8604, 0
      %v8646 = vsel %vm895, %v8605, 0
      %v8649 = vsel %vm895, %v8606, 0
      %v8652 = vsel %vm895, %v8607, 0
      %v8655 = vsel %vm895, %v8608, 0
      %v8658 = vsel %vm944, %v8528, 0
      %8660 = vmatpush.bf16.msra.mxu0 0
      %8661 = vmatpush.bf16.msra.mxu0 0
      %8662 = vmatpush.bf16.msra.mxu0 0
      %8663 = vmatpush.bf16.msra.mxu0 0
      %8664 = vmatpush.bf16.msra.mxu0 0
      %8665 = vmatpush.bf16.msra.mxu0 0
      %8666 = vmatpush.bf16.msra.mxu0 0
      %8667 = vmatpush.bf16.msra.mxu0 %v8658
      %8668 = vmatmul.bf16.gmra.mxu0 %v8610
      %v8669 = vpop.f32.mrf.mxu0
      %v8670 = vadd.f32 0.0, %v8669
      %v8671 = vpop.f32.mrf.mxu0
      %v8672 = vadd.f32 0.0, %v8671
      %8673 = vmatmul.bf16.gmra.mxu0 %v8613
      %v8674 = vpop.f32.mrf.mxu0
      %v8675 = vpop.f32.mrf.mxu0
      %8676 = vmatmul.bf16.gmra.mxu0 %v8616
      %v8677 = vpop.f32.mrf.mxu0
      %v8678 = vadd.f32 0.0, %v8677
      %v8679 = vpop.f32.mrf.mxu0
      %v8680 = vadd.f32 0.0, %v8679
      %8681 = vmatmul.bf16.gmra.mxu0 %v8619
      %v8682 = vpop.f32.mrf.mxu0
      %v8683 = vpop.f32.mrf.mxu0
      %8684 = vmatmul.bf16.gmra.mxu0 %v8622
      %v8685 = vpop.f32.mrf.mxu0
      %v8686 = vadd.f32 0.0, %v8685
      %v8687 = vpop.f32.mrf.mxu0
      %v8688 = vadd.f32 0.0, %v8687
      %8689 = vmatmul.bf16.gmra.mxu0 %v8625
      %v8690 = vpop.f32.mrf.mxu0
      %v8691 = vpop.f32.mrf.mxu0
      %8692 = vmatmul.bf16.gmra.mxu0 %v8628
      %v8693 = vpop.f32.mrf.mxu0
      %v8694 = vadd.f32 0.0, %v8693
      %v8695 = vpop.f32.mrf.mxu0
      %v8696 = vadd.f32 0.0, %v8695
      %8697 = vmatmul.bf16.gmra.mxu0 %v8631
      %v8698 = vpop.f32.mrf.mxu0
      %v8699 = vpop.f32.mrf.mxu0
      %8700 = vmatmul.bf16.gmra.mxu0 %v8634
      %v8701 = vpop.f32.mrf.mxu0
      %v8702 = vadd.f32 0.0, %v8701
      %v8703 = vpop.f32.mrf.mxu0
      %v8704 = vadd.f32 0.0, %v8703
      %8705 = vmatmul.bf16.gmra.mxu0 %v8637
      %v8706 = vpop.f32.mrf.mxu0
      %v8707 = vpop.f32.mrf.mxu0
      %8708 = vmatmul.bf16.gmra.mxu0 %v8640
      %v8709 = vpop.f32.mrf.mxu0
      %v8710 = vadd.f32 0.0, %v8709
      %v8711 = vpop.f32.mrf.mxu0
      %v8712 = vadd.f32 0.0, %v8711
      %8713 = vmatmul.bf16.gmra.mxu0 %v8643
      %v8714 = vpop.f32.mrf.mxu0
      %v8715 = vpop.f32.mrf.mxu0
      %8716 = vmatmul.bf16.gmra.mxu0 %v8646
      %v8717 = vpop.f32.mrf.mxu0
      %v8718 = vadd.f32 0.0, %v8717
      %v8719 = vpop.f32.mrf.mxu0
      %v8720 = vadd.f32 0.0, %v8719
      %8721 = vmatmul.bf16.gmra.mxu0 %v8649
      %v8722 = vpop.f32.mrf.mxu0
      %v8723 = vpop.f32.mrf.mxu0
      %8724 = vmatmul.bf16.gmra.mxu0 %v8652
      %v8725 = vpop.f32.mrf.mxu0
      %v8726 = vadd.f32 0.0, %v8725
      %v8727 = vpop.f32.mrf.mxu0
      %v8728 = vadd.f32 0.0, %v8727
      %8729 = vmatmul.bf16.gmra.mxu0 %v8655
      %v8730 = vpop.f32.mrf.mxu0
      %v8731 = vpop.f32.mrf.mxu0
      %8732 = vdwg.mxu0
      %v8733 = vadd.f32 %v8259, %v8670
      %v8734 = vadd.f32 %v8260, %v8672
      %v8735 = vadd.f32 %v8261, %v8678
      %v8736 = vadd.f32 %v8262, %v8680
      %v8737 = vadd.f32 %v8263, %v8686
      %v8738 = vadd.f32 %v8264, %v8688
      %v8739 = vadd.f32 %v8265, %v8694
      %v8740 = vadd.f32 %v8266, %v8696
      %v8741 = vadd.f32 %v8267, %v8702
      %v8742 = vadd.f32 %v8268, %v8704
      %v8743 = vadd.f32 %v8269, %v8710
      %v8744 = vadd.f32 %v8270, %v8712
      %v8745 = vadd.f32 %v8271, %v8718
      %v8746 = vadd.f32 %v8272, %v8720
      %v8747 = vadd.f32 %v8273, %v8726
      %v8748 = vadd.f32 %v8274, %v8728
      %s8749 = scalar_lea.vmem %s564, 68
      %v8750 = vld [vmem:[%s8749] sm:$0x3]
      %v8752 = vsel %vm944, %v8750, 0
      %8754 = vmatpush.bf16.msra.mxu0 0
      %8755 = vmatpush.bf16.msra.mxu0 0
      %8756 = vmatpush.bf16.msra.mxu0 0
      %8757 = vmatpush.bf16.msra.mxu0 0
      %8758 = vmatpush.bf16.msra.mxu0 0
      %8759 = vmatpush.bf16.msra.mxu0 0
      %8760 = vmatpush.bf16.msra.mxu0 0
      %8761 = vmatpush.bf16.msra.mxu0 %v8752
      %8762 = vmatmul.bf16.gmra.mxu0 %v8610
      %v8763 = vpop.f32.mrf.mxu0
      %v8764 = vadd.f32 0.0, %v8763
      %v8765 = vpop.f32.mrf.mxu0
      %v8766 = vadd.f32 0.0, %v8765
      %8767 = vmatmul.bf16.gmra.mxu0 %v8613
      %v8768 = vpop.f32.mrf.mxu0
      %v8769 = vadd.f32 0.0, %v8768
      %v8770 = vpop.f32.mrf.mxu0
      %8771 = vmatmul.bf16.gmra.mxu0 %v8616
      %v8772 = vpop.f32.mrf.mxu0
      %v8773 = vadd.f32 0.0, %v8772
      %v8774 = vpop.f32.mrf.mxu0
      %v8775 = vadd.f32 0.0, %v8774
      %8776 = vmatmul.bf16.gmra.mxu0 %v8619
      %v8777 = vpop.f32.mrf.mxu0
      %v8778 = vadd.f32 0.0, %v8777
      %v8779 = vpop.f32.mrf.mxu0
      %8780 = vmatmul.bf16.gmra.mxu0 %v8622
      %v8781 = vpop.f32.mrf.mxu0
      %v8782 = vadd.f32 0.0, %v8781
      %v8783 = vpop.f32.mrf.mxu0
      %v8784 = vadd.f32 0.0, %v8783
      %8785 = vmatmul.bf16.gmra.mxu0 %v8625
      %v8786 = vpop.f32.mrf.mxu0
      %v8787 = vadd.f32 0.0, %v8786
      %v8788 = vpop.f32.mrf.mxu0
      %8789 = vmatmul.bf16.gmra.mxu0 %v8628
      %v8790 = vpop.f32.mrf.mxu0
      %v8791 = vadd.f32 0.0, %v8790
      %v8792 = vpop.f32.mrf.mxu0
      %v8793 = vadd.f32 0.0, %v8792
      %8794 = vmatmul.bf16.gmra.mxu0 %v8631
      %v8795 = vpop.f32.mrf.mxu0
      %v8796 = vadd.f32 0.0, %v8795
      %v8797 = vpop.f32.mrf.mxu0
      %8798 = vmatmul.bf16.gmra.mxu0 %v8634
      %v8799 = vpop.f32.mrf.mxu0
      %v8800 = vadd.f32 0.0, %v8799
      %v8801 = vpop.f32.mrf.mxu0
      %v8802 = vadd.f32 0.0, %v8801
      %8803 = vmatmul.bf16.gmra.mxu0 %v8637
      %v8804 = vpop.f32.mrf.mxu0
      %v8805 = vadd.f32 0.0, %v8804
      %v8806 = vpop.f32.mrf.mxu0
      %8807 = vmatmul.bf16.gmra.mxu0 %v8640
      %v8808 = vpop.f32.mrf.mxu0
      %v8809 = vadd.f32 0.0, %v8808
      %v8810 = vpop.f32.mrf.mxu0
      %v8811 = vadd.f32 0.0, %v8810
      %8812 = vmatmul.bf16.gmra.mxu0 %v8643
      %v8813 = vpop.f32.mrf.mxu0
      %v8814 = vadd.f32 0.0, %v8813
      %v8815 = vpop.f32.mrf.mxu0
      %8816 = vmatmul.bf16.gmra.mxu0 %v8646
      %v8817 = vpop.f32.mrf.mxu0
      %v8818 = vadd.f32 0.0, %v8817
      %v8819 = vpop.f32.mrf.mxu0
      %v8820 = vadd.f32 0.0, %v8819
      %8821 = vmatmul.bf16.gmra.mxu0 %v8649
      %v8822 = vpop.f32.mrf.mxu0
      %v8823 = vadd.f32 0.0, %v8822
      %v8824 = vpop.f32.mrf.mxu0
      %8825 = vmatmul.bf16.gmra.mxu0 %v8652
      %v8826 = vpop.f32.mrf.mxu0
      %v8827 = vadd.f32 0.0, %v8826
      %v8828 = vpop.f32.mrf.mxu0
      %v8829 = vadd.f32 0.0, %v8828
      %8830 = vmatmul.bf16.gmra.mxu0 %v8655
      %v8831 = vpop.f32.mrf.mxu0
      %v8832 = vadd.f32 0.0, %v8831
      %v8833 = vpop.f32.mrf.mxu0
      %8834 = vdwg.mxu0
      %v8835 = vadd.f32 %v8361, %v8764
      %v8836 = vadd.f32 %v8362, %v8766
      %v8837 = vadd.f32 %v8363, %v8769
      %v8838 = vadd.f32 %v8364, %v8773
      %v8839 = vadd.f32 %v8365, %v8775
      %v8840 = vadd.f32 %v8366, %v8778
      %v8841 = vadd.f32 %v8367, %v8782
      %v8842 = vadd.f32 %v8368, %v8784
      %v8843 = vadd.f32 %v8369, %v8787
      %v8844 = vadd.f32 %v8370, %v8791
      %v8845 = vadd.f32 %v8371, %v8793
      %v8846 = vadd.f32 %v8372, %v8796
      %v8847 = vadd.f32 %v8373, %v8800
      %v8848 = vadd.f32 %v8374, %v8802
      %v8849 = vadd.f32 %v8375, %v8805
      %v8850 = vadd.f32 %v8376, %v8809
      %v8851 = vadd.f32 %v8377, %v8811
      %v8852 = vadd.f32 %v8378, %v8814
      %v8853 = vadd.f32 %v8379, %v8818
      %v8854 = vadd.f32 %v8380, %v8820
      %v8855 = vadd.f32 %v8381, %v8823
      %v8856 = vadd.f32 %v8382, %v8827
      %v8857 = vadd.f32 %v8383, %v8829
      %v8858 = vadd.f32 %v8384, %v8832
      %s8859 = scalar_lea.vmem %s564, 70
      %v8860 = vld [vmem:[%s8859] sm:$0x3]
      %v8862 = vsel %vm944, %v8860, 0
      %8864 = vmatpush.bf16.msra.mxu0 0
      %8865 = vmatpush.bf16.msra.mxu0 0
      %8866 = vmatpush.bf16.msra.mxu0 0
      %8867 = vmatpush.bf16.msra.mxu0 0
      %8868 = vmatpush.bf16.msra.mxu0 0
      %8869 = vmatpush.bf16.msra.mxu0 0
      %8870 = vmatpush.bf16.msra.mxu0 0
      %8871 = vmatpush.bf16.msra.mxu0 %v8862
      %8872 = vmatmul.bf16.gmra.mxu0 %v8610
      %v8873 = vpop.f32.mrf.mxu0
      %v8874 = vadd.f32 0.0, %v8873
      %v8875 = vpop.f32.mrf.mxu0
      %v8876 = vadd.f32 0.0, %v8875
      %8877 = vmatmul.bf16.gmra.mxu0 %v8613
      %v8878 = vpop.f32.mrf.mxu0
      %v8879 = vadd.f32 0.0, %v8878
      %v8880 = vpop.f32.mrf.mxu0
      %8881 = vmatmul.bf16.gmra.mxu0 %v8616
      %v8882 = vpop.f32.mrf.mxu0
      %v8883 = vadd.f32 0.0, %v8882
      %v8884 = vpop.f32.mrf.mxu0
      %v8885 = vadd.f32 0.0, %v8884
      %8886 = vmatmul.bf16.gmra.mxu0 %v8619
      %v8887 = vpop.f32.mrf.mxu0
      %v8888 = vadd.f32 0.0, %v8887
      %v8889 = vpop.f32.mrf.mxu0
      %8890 = vmatmul.bf16.gmra.mxu0 %v8622
      %v8891 = vpop.f32.mrf.mxu0
      %v8892 = vadd.f32 0.0, %v8891
      %v8893 = vpop.f32.mrf.mxu0
      %v8894 = vadd.f32 0.0, %v8893
      %8895 = vmatmul.bf16.gmra.mxu0 %v8625
      %v8896 = vpop.f32.mrf.mxu0
      %v8897 = vadd.f32 0.0, %v8896
      %v8898 = vpop.f32.mrf.mxu0
      %8899 = vmatmul.bf16.gmra.mxu0 %v8628
      %v8900 = vpop.f32.mrf.mxu0
      %v8901 = vadd.f32 0.0, %v8900
      %v8902 = vpop.f32.mrf.mxu0
      %v8903 = vadd.f32 0.0, %v8902
      %8904 = vmatmul.bf16.gmra.mxu0 %v8631
      %v8905 = vpop.f32.mrf.mxu0
      %v8906 = vadd.f32 0.0, %v8905
      %v8907 = vpop.f32.mrf.mxu0
      %8908 = vmatmul.bf16.gmra.mxu0 %v8634
      %v8909 = vpop.f32.mrf.mxu0
      %v8910 = vadd.f32 0.0, %v8909
      %v8911 = vpop.f32.mrf.mxu0
      %v8912 = vadd.f32 0.0, %v8911
      %8913 = vmatmul.bf16.gmra.mxu0 %v8637
      %v8914 = vpop.f32.mrf.mxu0
      %v8915 = vadd.f32 0.0, %v8914
      %v8916 = vpop.f32.mrf.mxu0
      %8917 = vmatmul.bf16.gmra.mxu0 %v8640
      %v8918 = vpop.f32.mrf.mxu0
      %v8919 = vadd.f32 0.0, %v8918
      %v8920 = vpop.f32.mrf.mxu0
      %v8921 = vadd.f32 0.0, %v8920
      %8922 = vmatmul.bf16.gmra.mxu0 %v8643
      %v8923 = vpop.f32.mrf.mxu0
      %v8924 = vadd.f32 0.0, %v8923
      %v8925 = vpop.f32.mrf.mxu0
      %8926 = vmatmul.bf16.gmra.mxu0 %v8646
      %v8927 = vpop.f32.mrf.mxu0
      %v8928 = vadd.f32 0.0, %v8927
      %v8929 = vpop.f32.mrf.mxu0
      %v8930 = vadd.f32 0.0, %v8929
      %8931 = vmatmul.bf16.gmra.mxu0 %v8649
      %v8932 = vpop.f32.mrf.mxu0
      %v8933 = vadd.f32 0.0, %v8932
      %v8934 = vpop.f32.mrf.mxu0
      %8935 = vmatmul.bf16.gmra.mxu0 %v8652
      %v8936 = vpop.f32.mrf.mxu0
      %v8937 = vadd.f32 0.0, %v8936
      %v8938 = vpop.f32.mrf.mxu0
      %v8939 = vadd.f32 0.0, %v8938
      %8940 = vmatmul.bf16.gmra.mxu0 %v8655
      %v8941 = vpop.f32.mrf.mxu0
      %v8942 = vadd.f32 0.0, %v8941
      %v8943 = vpop.f32.mrf.mxu0
      %8944 = vdwg.mxu0
      %v8945 = vadd.f32 %v8471, %v8874
      %v8946 = vadd.f32 %v8472, %v8876
      %v8947 = vadd.f32 %v8473, %v8879
      %v8948 = vadd.f32 %v8474, %v8883
      %v8949 = vadd.f32 %v8475, %v8885
      %v8950 = vadd.f32 %v8476, %v8888
      %v8951 = vadd.f32 %v8477, %v8892
      %v8952 = vadd.f32 %v8478, %v8894
      %v8953 = vadd.f32 %v8479, %v8897
      %v8954 = vadd.f32 %v8480, %v8901
      %v8955 = vadd.f32 %v8481, %v8903
      %v8956 = vadd.f32 %v8482, %v8906
      %v8957 = vadd.f32 %v8483, %v8910
      %v8958 = vadd.f32 %v8484, %v8912
      %v8959 = vadd.f32 %v8485, %v8915
      %v8960 = vadd.f32 %v8486, %v8919
      %v8961 = vadd.f32 %v8487, %v8921
      %v8962 = vadd.f32 %v8488, %v8924
      %v8963 = vadd.f32 %v8489, %v8928
      %v8964 = vadd.f32 %v8490, %v8930
      %v8965 = vadd.f32 %v8491, %v8933
      %v8966 = vadd.f32 %v8492, %v8937
      %v8967 = vadd.f32 %v8493, %v8939
      %v8968 = vadd.f32 %v8494, %v8942
      %v8969 = vld [vmem:[%s567] sm:$0x1]
      %v8970 = vld [vmem:[%s570] sm:$0x1]
      %vm8974 = vcmask 1046528
      %v8975 = vrot.slane %v8835, 1
      %v8976 = vrot.slane %v8836, 1
      %v8977 = vsel %vm8974, %v8975, %v8976
      %v8978 = vrot.slane %v8837, 1
      %v8979 = vsel %vm8974, %v8976, %v8978
      %v8982 = vadd.f32 %v8733, %v8977
      %v8983 = vadd.f32 %v8734, %v8979
      %vm8987 = vcmask 1045504
      %v8988 = vrot.slane %v8945, 2
      %v8989 = vrot.slane %v8946, 2
      %v8990 = vsel %vm8987, %v8988, %v8989
      %v8991 = vrot.slane %v8947, 2
      %v8992 = vsel %vm8987, %v8989, %v8991
      %v8995 = vadd.f32 %v8982, %v8990
      %v8996 = vadd.f32 %v8983, %v8992
      %v8998 = vperm.slane %v8969, 0
      %v9000 = vmul.f32 %v8995, %v8998
      %v9001 = vmul.f32 %v8996, %v8998
      %v9003 = vperm.slane %v8970, 0
      %v9005 = vadd.f32 %v9000, %v9003
      %v9006 = vadd.f32 %v9001, %v9003
      %v9007 = vmax.f32 %v9005, 0.0
      %v9008 = vmax.f32 %v9006, 0.0
      %v9009 = vpack.c.bf16 %v9007, %v9007
      %v9010 = vpack.c.bf16 %v9008, %v9008
      %9011 = vst.msk [vmem:[%s583] sm:$0xf] %vm590, %v9009
      %9012 = vst.msk [vmem:[%s583 + $0x4] sm:$0xf] %vm590, %v9010
      %v9016 = vrot.slane %v8838, 1
      %v9017 = vrot.slane %v8839, 1
      %v9018 = vsel %vm8974, %v9016, %v9017
      %v9019 = vrot.slane %v8840, 1
      %v9020 = vsel %vm8974, %v9017, %v9019
      %v9023 = vadd.f32 %v8735, %v9018
      %v9024 = vadd.f32 %v8736, %v9020
      %v9028 = vrot.slane %v8948, 2
      %v9029 = vrot.slane %v8949, 2
      %v9030 = vsel %vm8987, %v9028, %v9029
      %v9031 = vrot.slane %v8950, 2
      %v9032 = vsel %vm8987, %v9029, %v9031
      %v9035 = vadd.f32 %v9023, %v9030
      %v9036 = vadd.f32 %v9024, %v9032
      %v9037 = vmul.f32 %v9035, %v8998
      %v9038 = vmul.f32 %v9036, %v8998
      %v9039 = vadd.f32 %v9037, %v9003
      %v9040 = vadd.f32 %v9038, %v9003
      %v9041 = vmax.f32 %v9039, 0.0
      %v9042 = vmax.f32 %v9040, 0.0
      %v9043 = vpack.c.bf16 %v9041, %v9041
      %v9044 = vpack.c.bf16 %v9042, %v9042
      %s9045 = scalar_lea.vmem %s583, 8
      %9046 = vst.msk [vmem:[%s9045] sm:$0xf] %vm590, %v9043
      %9047 = vst.msk [vmem:[%s9045 + $0x4] sm:$0xf] %vm590, %v9044
      %v9051 = vrot.slane %v8841, 1
      %v9052 = vrot.slane %v8842, 1
      %v9053 = vsel %vm8974, %v9051, %v9052
      %v9054 = vrot.slane %v8843, 1
      %v9055 = vsel %vm8974, %v9052, %v9054
      %v9058 = vadd.f32 %v8737, %v9053
      %v9059 = vadd.f32 %v8738, %v9055
      %v9063 = vrot.slane %v8951, 2
      %v9064 = vrot.slane %v8952, 2
      %v9065 = vsel %vm8987, %v9063, %v9064
      %v9066 = vrot.slane %v8953, 2
      %v9067 = vsel %vm8987, %v9064, %v9066
      %v9070 = vadd.f32 %v9058, %v9065
      %v9071 = vadd.f32 %v9059, %v9067
      %v9072 = vmul.f32 %v9070, %v8998
      %v9073 = vmul.f32 %v9071, %v8998
      %v9074 = vadd.f32 %v9072, %v9003
      %v9075 = vadd.f32 %v9073, %v9003
      %v9076 = vmax.f32 %v9074, 0.0
      %v9077 = vmax.f32 %v9075, 0.0
      %v9078 = vpack.c.bf16 %v9076, %v9076
      %v9079 = vpack.c.bf16 %v9077, %v9077
      %s9080 = scalar_lea.vmem %s583, 16
      %9081 = vst.msk [vmem:[%s9080] sm:$0xf] %vm590, %v9078
      %9082 = vst.msk [vmem:[%s9080 + $0x4] sm:$0xf] %vm590, %v9079
      %v9086 = vrot.slane %v8844, 1
      %v9087 = vrot.slane %v8845, 1
      %v9088 = vsel %vm8974, %v9086, %v9087
      %v9089 = vrot.slane %v8846, 1
      %v9090 = vsel %vm8974, %v9087, %v9089
      %v9093 = vadd.f32 %v8739, %v9088
      %v9094 = vadd.f32 %v8740, %v9090
      %v9098 = vrot.slane %v8954, 2
      %v9099 = vrot.slane %v8955, 2
      %v9100 = vsel %vm8987, %v9098, %v9099
      %v9101 = vrot.slane %v8956, 2
      %v9102 = vsel %vm8987, %v9099, %v9101
      %v9105 = vadd.f32 %v9093, %v9100
      %v9106 = vadd.f32 %v9094, %v9102
      %v9107 = vmul.f32 %v9105, %v8998
      %v9108 = vmul.f32 %v9106, %v8998
      %v9109 = vadd.f32 %v9107, %v9003
      %v9110 = vadd.f32 %v9108, %v9003
      %v9111 = vmax.f32 %v9109, 0.0
      %v9112 = vmax.f32 %v9110, 0.0
      %v9113 = vpack.c.bf16 %v9111, %v9111
      %v9114 = vpack.c.bf16 %v9112, %v9112
      %s9115 = scalar_lea.vmem %s583, 24
      %9116 = vst.msk [vmem:[%s9115] sm:$0xf] %vm590, %v9113
      %9117 = vst.msk [vmem:[%s9115 + $0x4] sm:$0xf] %vm590, %v9114
      %v9121 = vrot.slane %v8847, 1
      %v9122 = vrot.slane %v8848, 1
      %v9123 = vsel %vm8974, %v9121, %v9122
      %v9124 = vrot.slane %v8849, 1
      %v9125 = vsel %vm8974, %v9122, %v9124
      %v9128 = vadd.f32 %v8741, %v9123
      %v9129 = vadd.f32 %v8742, %v9125
      %v9133 = vrot.slane %v8957, 2
      %v9134 = vrot.slane %v8958, 2
      %v9135 = vsel %vm8987, %v9133, %v9134
      %v9136 = vrot.slane %v8959, 2
      %v9137 = vsel %vm8987, %v9134, %v9136
      %v9140 = vadd.f32 %v9128, %v9135
      %v9141 = vadd.f32 %v9129, %v9137
      %v9142 = vmul.f32 %v9140, %v8998
      %v9143 = vmul.f32 %v9141, %v8998
      %v9144 = vadd.f32 %v9142, %v9003
      %v9145 = vadd.f32 %v9143, %v9003
      %v9146 = vmax.f32 %v9144, 0.0
      %v9147 = vmax.f32 %v9145, 0.0
      %v9148 = vpack.c.bf16 %v9146, %v9146
      %v9149 = vpack.c.bf16 %v9147, %v9147
      %s9150 = scalar_lea.vmem %s583, 32
      %9151 = vst.msk [vmem:[%s9150] sm:$0xf] %vm590, %v9148
      %9152 = vst.msk [vmem:[%s9150 + $0x4] sm:$0xf] %vm590, %v9149
      %v9156 = vrot.slane %v8850, 1
      %v9157 = vrot.slane %v8851, 1
      %v9158 = vsel %vm8974, %v9156, %v9157
      %v9159 = vrot.slane %v8852, 1
      %v9160 = vsel %vm8974, %v9157, %v9159
      %v9163 = vadd.f32 %v8743, %v9158
      %v9164 = vadd.f32 %v8744, %v9160
      %v9168 = vrot.slane %v8960, 2
      %v9169 = vrot.slane %v8961, 2
      %v9170 = vsel %vm8987, %v9168, %v9169
      %v9171 = vrot.slane %v8962, 2
      %v9172 = vsel %vm8987, %v9169, %v9171
      %v9175 = vadd.f32 %v9163, %v9170
      %v9176 = vadd.f32 %v9164, %v9172
      %v9177 = vmul.f32 %v9175, %v8998
      %v9178 = vmul.f32 %v9176, %v8998
      %v9179 = vadd.f32 %v9177, %v9003
      %v9180 = vadd.f32 %v9178, %v9003
      %v9181 = vmax.f32 %v9179, 0.0
      %v9182 = vmax.f32 %v9180, 0.0
      %v9183 = vpack.c.bf16 %v9181, %v9181
      %v9184 = vpack.c.bf16 %v9182, %v9182
      %s9185 = scalar_lea.vmem %s583, 40
      %9186 = vst.msk [vmem:[%s9185] sm:$0xf] %vm590, %v9183
      %9187 = vst.msk [vmem:[%s9185 + $0x4] sm:$0xf] %vm590, %v9184
      %v9191 = vrot.slane %v8853, 1
      %v9192 = vrot.slane %v8854, 1
      %v9193 = vsel %vm8974, %v9191, %v9192
      %v9194 = vrot.slane %v8855, 1
      %v9195 = vsel %vm8974, %v9192, %v9194
      %v9198 = vadd.f32 %v8745, %v9193
      %v9199 = vadd.f32 %v8746, %v9195
      %v9203 = vrot.slane %v8963, 2
      %v9204 = vrot.slane %v8964, 2
      %v9205 = vsel %vm8987, %v9203, %v9204
      %v9206 = vrot.slane %v8965, 2
      %v9207 = vsel %vm8987, %v9204, %v9206
      %v9210 = vadd.f32 %v9198, %v9205
      %v9211 = vadd.f32 %v9199, %v9207
      %v9212 = vmul.f32 %v9210, %v8998
      %v9213 = vmul.f32 %v9211, %v8998
      %v9214 = vadd.f32 %v9212, %v9003
      %v9215 = vadd.f32 %v9213, %v9003
      %v9216 = vmax.f32 %v9214, 0.0
      %v9217 = vmax.f32 %v9215, 0.0
      %v9218 = vpack.c.bf16 %v9216, %v9216
      %v9219 = vpack.c.bf16 %v9217, %v9217
      %s9220 = scalar_lea.vmem %s583, 48
      %9221 = vst.msk [vmem:[%s9220] sm:$0xf] %vm590, %v9218
      %9222 = vst.msk [vmem:[%s9220 + $0x4] sm:$0xf] %vm590, %v9219
      %v9226 = vrot.slane %v8856, 1
      %v9227 = vrot.slane %v8857, 1
      %v9228 = vsel %vm8974, %v9226, %v9227
      %v9229 = vrot.slane %v8858, 1
      %v9230 = vsel %vm8974, %v9227, %v9229
      %v9233 = vadd.f32 %v8747, %v9228
      %v9234 = vadd.f32 %v8748, %v9230
      %v9238 = vrot.slane %v8966, 2
      %v9239 = vrot.slane %v8967, 2
      %v9240 = vsel %vm8987, %v9238, %v9239
      %v9241 = vrot.slane %v8968, 2
      %v9242 = vsel %vm8987, %v9239, %v9241
      %v9245 = vadd.f32 %v9233, %v9240
      %v9246 = vadd.f32 %v9234, %v9242
      %v9247 = vmul.f32 %v9245, %v8998
      %v9248 = vmul.f32 %v9246, %v8998
      %v9249 = vadd.f32 %v9247, %v9003
      %v9250 = vadd.f32 %v9248, %v9003
      %v9251 = vmax.f32 %v9249, 0.0
      %v9252 = vmax.f32 %v9250, 0.0
      %v9253 = vpack.c.bf16 %v9251, %v9251
      %v9254 = vpack.c.bf16 %v9252, %v9252
      %s9255 = scalar_lea.vmem %s583, 56
      %9256 = vst.msk [vmem:[%s9255] sm:$0xf] %vm590, %v9253
      %9257 = vst.msk [vmem:[%s9255 + $0x4] sm:$0xf] %vm590, %v9254
      %s9258 = smul.u32 8, %s27
      %p9259 = scmp.lt.s32.totalorder %s25, 1
      %s9260 = scalar_select %p9259, %s25, 1
      %p9261 = scmp.lt.s32.totalorder %s9258, 15
      %s9262 = scalar_select %p9261, %s9258, 15
      %p9263 = scmp.lt.s32.totalorder %s26, 0
      %s9264 = scalar_select %p9263, %s26, 0
      %s9265 = smul.addr %s9262, 2
      %s9266 = sadd.s32 %s9264, %s9265
      %s9267 = smul.addr %s9260, 32
      %s9268 = sadd.s32 %s9266, %s9267
      %s9269 = smul.addr %s9268, 4
      %s9270 = scalar_lea.vmem %s9, %s9269
      // Predicated region
      $region57: #{_lambda_.3} parent=55 // pred_check
        %p9271 = pneg %p302
      $region58: #{_lambda_.3} parent=55 // pred_check_branch
        %9273 = sbr.rel (%p9271) target = $region60
      $region59: #{_lambda_.3} parent=55 // pred_region
        %s9274 = smul.u32 8, %s27
      $region60: #{_lambda_.3} parent=55 // pred_fallthru
        _
    $region56: #{_lambda_.3} parent=5 // pred_fallthru
      _
    %p9275 = scmp.le.s32.totalorder 2, %s15
    // Predicated region
    $region61: #{_lambda_.3} parent=5 // pred_check
      %p9276 = pneg %p9275
    $region62: #{_lambda_.3} parent=5 // pred_check_branch
      %9278 = sbr.rel (%p9276) target = $region64
    $region63: #{_lambda_.3} parent=5 // pred_region
      %s9279 = ssub.s32 %s15, 2
      // Predicated region
      $region65: #{_lambda_.3} parent=63 // pred_check
        %p9280 = pneg %p308
      $region66: #{_lambda_.3} parent=63 // pred_check_branch
        %9282 = sbr.rel (%p9280) target = $region68
      $region67: #{_lambda_.3} parent=63 // pred_region
        %s9283 = smul.u32 8, %s30
        %p9284 = scmp.lt.s32.totalorder %s28, 1
        %s9285 = scalar_select %p9284, %s28, 1
        %p9286 = scmp.lt.s32.totalorder %s9283, 15
        %s9287 = scalar_select %p9286, %s9283, 15
        %p9288 = scmp.lt.s32.totalorder %s29, 0
        %s9289 = scalar_select %p9288, %s29, 0
        %s9290 = smul.addr %s9287, 2
        %s9291 = sadd.s32 %s9289, %s9290
        %s9292 = smul.addr %s9285, 32
        %s9293 = sadd.s32 %s9291, %s9292
        %s9294 = smul.addr %s9293, 4
        %s9295 = scalar_lea.vmem %s9, %s9294
      $region68: #{_lambda_.3} parent=63 // pred_fallthru
        _
    $region64: #{_lambda_.3} parent=5 // pred_fallthru
      _
  $region6: #{_lambda_.3} parent=0 // loop_footer
    %s19 = sadd.s32 1, %s15
  $region7: #{_lambda_.3} parent=0 // loop_footer_branch
    %14 = sbr.rel target = $region3
  $region8: #{_lambda_.3} parent=0 // loop_exit
    _

</llo_original>
